<compile_context>
chip_gen: v7x
topology: tpu7x:2x2x1
jax: 0.10.0
libtpu: 0.0.40
codegen_flags: <defaults>
</compile_context>

<pallas_src>
import jax
import jax.numpy as jnp
from jax.experimental import pallas as pl
from jax.experimental.pallas import tpu as pltpu


def _basic_block_kernel(x_ref, w1_ref, b1_ref, w2_ref, b2_ref, o_ref,
                        xpad_ref, tpad_ref):
    """Fused BasicBlock forward for one batch element.

    x_ref:    (H, W, Cin)        input tile (N dim squeezed by BlockSpec)
    w1_ref:   (3, 3, Cin, Cmid)  conv1 weights with BN1 scale pre-folded
    b1_ref:   (1, Cmid)          folded BN1 bias
    w2_ref:   (3, 3, Cmid, Cout) conv2 weights with BN2 scale pre-folded
    b2_ref:   (1, Cout)          folded BN2 bias
    o_ref:    (H, W, Cout)       output tile
    xpad_ref: (H+2, W+2, Cin)    VMEM scratch: zero-halo copy of x
    tpad_ref: (H+2, W+2, Cmid)   VMEM scratch: zero-halo conv1 activation
    """
    H, W, _ = o_ref.shape

    # In-kernel halo padding (no HBM jnp.pad): zero the scratch slabs each step
    # (scratch persists across grid steps / cores, so do not rely on step 0),
    # then write the live data into their interiors.
    xpad_ref[...] = jnp.zeros_like(xpad_ref)
    tpad_ref[...] = jnp.zeros_like(tpad_ref)
    xpad_ref[1:H + 1, 1:W + 1, :] = x_ref[...]

    def conv3x3(src_ref, w_ref):
        cout = w_ref.shape[-1]
        acc = jnp.zeros((H, W, cout), jnp.float32)
        # 3x3 conv (stride=1) as 9 shifted-window matmuls over the channel dim
        # (MXU path); operands at native dtype, accumulation in f32.
        for dy in range(3):
            for dx in range(3):
                window = src_ref[dy:dy + H, dx:dx + W, :]       # (H, W, Cin_tap)
                tap_w = w_ref[dy, dx, :, :]                     # (Cin_tap, cout)
                acc += jax.lax.dot_general(
                    window, tap_w,
                    dimension_numbers=(((2,), (0,)), ((), ())),
                    preferred_element_type=jnp.float32)
        return acc

    # conv1 + bn1 (bias only; scale folded into w1) + ReLU -> zero-halo scratch.
    t = jnp.maximum(conv3x3(xpad_ref, w1_ref) + b1_ref[0, :], 0.0)
    tpad_ref[1:H + 1, 1:W + 1, :] = t.astype(tpad_ref.dtype)

    # conv2 + bn2 (bias only) + identity residual + ReLU (epilogue in f32).
    out = conv3x3(tpad_ref, w2_ref) + b2_ref[0, :] + x_ref[...].astype(jnp.float32)
    o_ref[...] = jnp.maximum(out, 0.0).astype(o_ref.dtype)


def basic_block_pallas(x_nhwc, w1_folded, b1, w2_folded, b2):
    """x_nhwc: (N, H, W, Cin) -> (N, H, W, Cout). stride=1, padding=1, no downsample."""
    N, H, W, Cin = x_nhwc.shape
    Cmid = w1_folded.shape[-1]
    Cout = w2_folded.shape[-1]
    if Cin != Cout:
        raise NotImplementedError(
            "identity residual requires Cin == Cout (stride=1, downsample=None)")

    b1_2d = b1.reshape(1, Cmid).astype(jnp.float32)
    b2_2d = b2.reshape(1, Cout).astype(jnp.float32)

    itemsize = jnp.dtype(x_nhwc.dtype).itemsize
    est_bytes = (
        2 * H * W * Cin * itemsize                        # x block (double-buffered)
        + 2 * H * W * Cout * itemsize                     # out block (double-buffered)
        + 2 * 9 * (Cin * Cmid + Cmid * Cout) * itemsize   # weights
        + (H + 2) * (W + 2) * (Cin + Cmid) * itemsize     # halo scratch slabs
        + H * W * (Cmid + Cout) * 4                       # f32 accumulators
    )
    vmem_limit = int(min(max(2 * est_bytes, 16 * 1024 * 1024), 48 * 1024 * 1024))

    return pl.pallas_call(
        _basic_block_kernel,
        out_shape=jax.ShapeDtypeStruct((N, H, W, Cout), x_nhwc.dtype),
        grid_spec=pltpu.PrefetchScalarGridSpec(
            num_scalar_prefetch=0,
            grid=(N,),  # one image per grid step -> pipelined, megacore-shardable
            in_specs=[
                pl.BlockSpec((None, H, W, Cin), lambda n: (n, 0, 0, 0)),
                pl.BlockSpec((3, 3, Cin, Cmid), lambda n: (0, 0, 0, 0)),
                pl.BlockSpec((1, Cmid), lambda n: (0, 0)),
                pl.BlockSpec((3, 3, Cmid, Cout), lambda n: (0, 0, 0, 0)),
                pl.BlockSpec((1, Cout), lambda n: (0, 0)),
            ],
            out_specs=pl.BlockSpec((None, H, W, Cout), lambda n: (n, 0, 0, 0)),
            scratch_shapes=[
                pltpu.VMEM((H + 2, W + 2, Cin), x_nhwc.dtype),
                pltpu.VMEM((H + 2, W + 2, Cmid), x_nhwc.dtype),
            ],
        ),
        compiler_params=pltpu.CompilerParams(
            dimension_semantics=("parallel",),
            vmem_limit_bytes=vmem_limit,
        ),
    )(x_nhwc, w1_folded, b1_2d, w2_folded, b2_2d)


def fold_bn_into_weights(w_hwio, gamma, beta, mean, var, eps=1e-5):
    """Fold inference-mode BN into the preceding conv: returns (w*scale, bias)."""
    scale = gamma * jax.lax.rsqrt(var + eps)                 # (Cout,)
    w_folded = (w_hwio.astype(jnp.float32) * scale).astype(w_hwio.dtype)
    bias = (beta - mean * scale).astype(jnp.float32)
    return w_folded, bias


def basic_block_forward(x_nchw, params):
    """Forward pass of BasicBlock (inplanes == planes, stride=1, downsample=None)."""
    x = jnp.transpose(x_nchw, (0, 2, 3, 1))  # NCHW -> NHWC

    w1f, b1 = fold_bn_into_weights(params["w1"], params["bn1_gamma"],
                                   params["bn1_beta"], params["bn1_mean"],
                                   params["bn1_var"])
    w2f, b2 = fold_bn_into_weights(params["w2"], params["bn2_gamma"],
                                   params["bn2_beta"], params["bn2_mean"],
                                   params["bn2_var"])

    out = basic_block_pallas(x, w1f, b1, w2f, b2)
    return jnp.transpose(out, (0, 3, 1, 2))  # NHWC -> NCHW


def reference_forward(x_nchw, params):
    """Pure-JAX reference (lax.conv, unfused BN) for correctness checking."""
    x = jnp.transpose(x_nchw, (0, 2, 3, 1))
    dn = ("NHWC", "HWIO", "NHWC")

    def fold_bn(gamma, beta, mean, var, eps=1e-5):
        scale = gamma * jax.lax.rsqrt(var + eps)
        return scale, beta - mean * scale

    s1, b1 = fold_bn(params["bn1_gamma"], params["bn1_beta"],
                     params["bn1_mean"], params["bn1_var"])
    s2, b2 = fold_bn(params["bn2_gamma"], params["bn2_beta"],
                     params["bn2_mean"], params["bn2_var"])

    out = jax.lax.conv_general_dilated(x, params["w1"], (1, 1), ((1, 1), (1, 1)),
                                       dimension_numbers=dn)
    out = jnp.maximum(out * s1 + b1, 0.0)
    out = jax.lax.conv_general_dilated(out, params["w2"], (1, 1), ((1, 1), (1, 1)),
                                       dimension_numbers=dn)
    out = out * s2 + b2
    out = jnp.maximum(out + x, 0.0)
    return jnp.transpose(out, (0, 3, 1, 2))


def init_params(key, inplanes, planes):
    ks = jax.random.split(key, 8)
    return {
        # HWIO weights (PyTorch conv3x3 weights are OIHW (planes, inplanes, 3, 3))
        "w1": 0.1 * jax.random.normal(ks[0], (3, 3, inplanes, planes), jnp.float32),
        "w2": 0.1 * jax.random.normal(ks[1], (3, 3, planes, planes), jnp.float32),
        "bn1_gamma": 1.0 + 0.1 * jax.random.normal(ks[2], (planes,), jnp.float32),
        "bn1_beta": 0.1 * jax.random.normal(ks[3], (planes,), jnp.float32),
        "bn1_mean": 0.05 * jax.random.normal(ks[4], (planes,), jnp.float32),
        "bn1_var": 0.5 + jnp.abs(jax.random.normal(ks[5], (planes,), jnp.float32)),
        "bn2_gamma": 1.0 + 0.1 * jax.random.normal(ks[6], (planes,), jnp.float32),
        "bn2_beta": 0.1 * jax.random.normal(ks[7], (planes,), jnp.float32),
        "bn2_mean": jnp.zeros((planes,), jnp.float32),
        "bn2_var": jnp.ones((planes,), jnp.float32),
    }


if __name__ == "__main__":
    key = jax.random.PRNGKey(0)
    k_x, k_p = jax.random.split(key)

    N, C, H, W = 2, 4, 16, 16  # inplanes = planes = 4, stride = 1, downsample = None
    x = jax.random.normal(k_x, (N, C, H, W), jnp.float32)
    params = init_params(k_p, C, C)

    out = jax.block_until_ready(basic_block_forward(x, params))
    ref = jax.block_until_ready(reference_forward(x, params))

    assert out.shape == (N, C, H, W)
    max_err = float(jnp.max(jnp.abs(out - ref)))
    assert jnp.allclose(out, ref, atol=1e-4, rtol=1e-4), f"max abs err = {max_err}"

    print("KERNEL_OK")
</pallas_src>

<mosaic_0001>
module attributes {stable_mosaic.version = 11 : i64} {
  func.func @_basic_block_kernel(%arg0: i32, %arg1: memref<1x16x16x4xf32, #tpu.memory_space<vmem>>, %arg2: memref<3x3x4x4xf32, #tpu.memory_space<vmem>>, %arg3: memref<1x4xf32, #tpu.memory_space<vmem>>, %arg4: memref<3x3x4x4xf32, #tpu.memory_space<vmem>>, %arg5: memref<1x4xf32, #tpu.memory_space<vmem>>, %arg6: memref<1x16x16x4xf32, #tpu.memory_space<vmem>>, %arg7: memref<18x18x4xf32, #tpu.memory_space<vmem>>, %arg8: memref<18x18x4xf32, #tpu.memory_space<vmem>>) attributes {dimension_semantics = [#tpu.dimension_semantics<parallel>], iteration_bounds = array<i64: 2>, scalar_prefetch = 0 : i64, scratch_operands = 2 : i64, tpu.core_type = #tpu.core_type<tc>, window_params = [{transform_indices = @transform_0, window_bounds = array<i64: 1, 16, 16, 4>}, {pipeline_mode = #tpu.pipeline_mode<synchronous>, transform_indices = @transform_1, window_bounds = array<i64: 3, 3, 4, 4>}, {pipeline_mode = #tpu.pipeline_mode<synchronous>, transform_indices = @transform_2, window_bounds = array<i64: 1, 4>}, {pipeline_mode = #tpu.pipeline_mode<synchronous>, transform_indices = @transform_3, window_bounds = array<i64: 3, 3, 4, 4>}, {pipeline_mode = #tpu.pipeline_mode<synchronous>, transform_indices = @transform_4, window_bounds = array<i64: 1, 4>}, {transform_indices = @transform_5, window_bounds = array<i64: 1, 16, 16, 4>}]} {
    %cst = arith.constant 0.000000e+00 : f32
    %0 = vector.broadcast %cst : f32 to vector<18x18x4xf32>
    %c0 = arith.constant 0 : index
    %c0_0 = arith.constant 0 : index
    %c0_1 = arith.constant 0 : index
    %1 = vector.load %arg7[%c0, %c0_0, %c0_1] : memref<18x18x4xf32, #tpu.memory_space<vmem>>, vector<18x18x4xf32>
    tpu.vector_store %arg7[%c0, %c0_0, %c0_1], %0 {strides = array<i32>} : memref<18x18x4xf32, #tpu.memory_space<vmem>>, vector<18x18x4xf32>,
    %cst_2 = arith.constant 0.000000e+00 : f32
    %2 = vector.broadcast %cst_2 : f32 to vector<18x18x4xf32>
    %c0_3 = arith.constant 0 : index
    %c0_4 = arith.constant 0 : index
    %c0_5 = arith.constant 0 : index
    %3 = vector.load %arg8[%c0_3, %c0_4, %c0_5] : memref<18x18x4xf32, #tpu.memory_space<vmem>>, vector<18x18x4xf32>
    tpu.vector_store %arg8[%c0_3, %c0_4, %c0_5], %2 {strides = array<i32>} : memref<18x18x4xf32, #tpu.memory_space<vmem>>, vector<18x18x4xf32>,
    %c0_6 = arith.constant 0 : index
    %c0_7 = arith.constant 0 : index
    %c0_8 = arith.constant 0 : index
    %c0_9 = arith.constant 0 : index
    %4 = vector.load %arg1[%c0_6, %c0_7, %c0_8, %c0_9] : memref<1x16x16x4xf32, #tpu.memory_space<vmem>>, vector<1x16x16x4xf32>
    %5 = vector.shape_cast %4 : vector<1x16x16x4xf32> to vector<16x16x4xf32>
    %c1 = arith.constant 1 : index
    %c1_10 = arith.constant 1 : index
    %c0_11 = arith.constant 0 : index
    %6 = vector.load %arg7[%c1, %c1_10, %c0_11] : memref<18x18x4xf32, #tpu.memory_space<vmem>>, vector<16x16x4xf32>
    tpu.vector_store %arg7[%c1, %c1_10, %c0_11], %5 {strides = array<i32>} : memref<18x18x4xf32, #tpu.memory_space<vmem>>, vector<16x16x4xf32>,
    %cst_12 = arith.constant 0.000000e+00 : f32
    %7 = vector.broadcast %cst_12 : f32 to vector<16x16x4xf32>
    %c0_13 = arith.constant 0 : index
    %c0_14 = arith.constant 0 : index
    %c0_15 = arith.constant 0 : index
    %8 = vector.load %arg7[%c0_13, %c0_14, %c0_15] : memref<18x18x4xf32, #tpu.memory_space<vmem>>, vector<16x16x4xf32>
    %c0_16 = arith.constant 0 : index
    %c0_17 = arith.constant 0 : index
    %c0_18 = arith.constant 0 : index
    %c0_19 = arith.constant 0 : index
    %9 = vector.load %arg2[%c0_16, %c0_17, %c0_18, %c0_19] : memref<3x3x4x4xf32, #tpu.memory_space<vmem>>, vector<1x1x4x4xf32>
    %10 = vector.shape_cast %9 : vector<1x1x4x4xf32> to vector<4x4xf32>
    %cst_20 = arith.constant dense<0.000000e+00> : vector<16x16x4xf32>
    %11 = tpu.matmul %8, %10, %cst_20 {dimension_numbers = #tpu.dot_dimension_numbers<[2], [0], [0, 1], [1], [0, 0, 0, 1, 1, 1], [], []>} : vector<16x16x4xf32>, vector<4x4xf32>, vector<16x16x4xf32> -> vector<16x16x4xf32>
    %12 = arith.addf %7, %11 : vector<16x16x4xf32>
    %c0_21 = arith.constant 0 : index
    %c1_22 = arith.constant 1 : index
    %c0_23 = arith.constant 0 : index
    %13 = vector.load %arg7[%c0_21, %c1_22, %c0_23] : memref<18x18x4xf32, #tpu.memory_space<vmem>>, vector<16x16x4xf32>
    %c0_24 = arith.constant 0 : index
    %c1_25 = arith.constant 1 : index
    %c0_26 = arith.constant 0 : index
    %c0_27 = arith.constant 0 : index
    %14 = vector.load %arg2[%c0_24, %c1_25, %c0_26, %c0_27] : memref<3x3x4x4xf32, #tpu.memory_space<vmem>>, vector<1x1x4x4xf32>
    %15 = vector.shape_cast %14 : vector<1x1x4x4xf32> to vector<4x4xf32>
    %cst_28 = arith.constant dense<0.000000e+00> : vector<16x16x4xf32>
    %16 = tpu.matmul %13, %15, %cst_28 {dimension_numbers = #tpu.dot_dimension_numbers<[2], [0], [0, 1], [1], [0, 0, 0, 1, 1, 1], [], []>} : vector<16x16x4xf32>, vector<4x4xf32>, vector<16x16x4xf32> -> vector<16x16x4xf32>
    %17 = arith.addf %12, %16 : vector<16x16x4xf32>
    %c0_29 = arith.constant 0 : index
    %c2 = arith.constant 2 : index
    %c0_30 = arith.constant 0 : index
    %18 = vector.load %arg7[%c0_29, %c2, %c0_30] : memref<18x18x4xf32, #tpu.memory_space<vmem>>, vector<16x16x4xf32>
    %c0_31 = arith.constant 0 : index
    %c2_32 = arith.constant 2 : index
    %c0_33 = arith.constant 0 : index
    %c0_34 = arith.constant 0 : index
    %19 = vector.load %arg2[%c0_31, %c2_32, %c0_33, %c0_34] : memref<3x3x4x4xf32, #tpu.memory_space<vmem>>, vector<1x1x4x4xf32>
    %20 = vector.shape_cast %19 : vector<1x1x4x4xf32> to vector<4x4xf32>
    %cst_35 = arith.constant dense<0.000000e+00> : vector<16x16x4xf32>
    %21 = tpu.matmul %18, %20, %cst_35 {dimension_numbers = #tpu.dot_dimension_numbers<[2], [0], [0, 1], [1], [0, 0, 0, 1, 1, 1], [], []>} : vector<16x16x4xf32>, vector<4x4xf32>, vector<16x16x4xf32> -> vector<16x16x4xf32>
    %22 = arith.addf %17, %21 : vector<16x16x4xf32>
    %c1_36 = arith.constant 1 : index
    %c0_37 = arith.constant 0 : index
    %c0_38 = arith.constant 0 : index
    %23 = vector.load %arg7[%c1_36, %c0_37, %c0_38] : memref<18x18x4xf32, #tpu.memory_space<vmem>>, vector<16x16x4xf32>
    %c1_39 = arith.constant 1 : index
    %c0_40 = arith.constant 0 : index
    %c0_41 = arith.constant 0 : index
    %c0_42 = arith.constant 0 : index
    %24 = vector.load %arg2[%c1_39, %c0_40, %c0_41, %c0_42] : memref<3x3x4x4xf32, #tpu.memory_space<vmem>>, vector<1x1x4x4xf32>
    %25 = vector.shape_cast %24 : vector<1x1x4x4xf32> to vector<4x4xf32>
    %cst_43 = arith.constant dense<0.000000e+00> : vector<16x16x4xf32>
    %26 = tpu.matmul %23, %25, %cst_43 {dimension_numbers = #tpu.dot_dimension_numbers<[2], [0], [0, 1], [1], [0, 0, 0, 1, 1, 1], [], []>} : vector<16x16x4xf32>, vector<4x4xf32>, vector<16x16x4xf32> -> vector<16x16x4xf32>
    %27 = arith.addf %22, %26 : vector<16x16x4xf32>
    %c1_44 = arith.constant 1 : index
    %c1_45 = arith.constant 1 : index
    %c0_46 = arith.constant 0 : index
    %28 = vector.load %arg7[%c1_44, %c1_45, %c0_46] : memref<18x18x4xf32, #tpu.memory_space<vmem>>, vector<16x16x4xf32>
    %c1_47 = arith.constant 1 : index
    %c1_48 = arith.constant 1 : index
    %c0_49 = arith.constant 0 : index
    %c0_50 = arith.constant 0 : index
    %29 = vector.load %arg2[%c1_47, %c1_48, %c0_49, %c0_50] : memref<3x3x4x4xf32, #tpu.memory_space<vmem>>, vector<1x1x4x4xf32>
    %30 = vector.shape_cast %29 : vector<1x1x4x4xf32> to vector<4x4xf32>
    %cst_51 = arith.constant dense<0.000000e+00> : vector<16x16x4xf32>
    %31 = tpu.matmul %28, %30, %cst_51 {dimension_numbers = #tpu.dot_dimension_numbers<[2], [0], [0, 1], [1], [0, 0, 0, 1, 1, 1], [], []>} : vector<16x16x4xf32>, vector<4x4xf32>, vector<16x16x4xf32> -> vector<16x16x4xf32>
    %32 = arith.addf %27, %31 : vector<16x16x4xf32>
    %c1_52 = arith.constant 1 : index
    %c2_53 = arith.constant 2 : index
    %c0_54 = arith.constant 0 : index
    %33 = vector.load %arg7[%c1_52, %c2_53, %c0_54] : memref<18x18x4xf32, #tpu.memory_space<vmem>>, vector<16x16x4xf32>
    %c1_55 = arith.constant 1 : index
    %c2_56 = arith.constant 2 : index
    %c0_57 = arith.constant 0 : index
    %c0_58 = arith.constant 0 : index
    %34 = vector.load %arg2[%c1_55, %c2_56, %c0_57, %c0_58] : memref<3x3x4x4xf32, #tpu.memory_space<vmem>>, vector<1x1x4x4xf32>
    %35 = vector.shape_cast %34 : vector<1x1x4x4xf32> to vector<4x4xf32>
    %cst_59 = arith.constant dense<0.000000e+00> : vector<16x16x4xf32>
    %36 = tpu.matmul %33, %35, %cst_59 {dimension_numbers = #tpu.dot_dimension_numbers<[2], [0], [0, 1], [1], [0, 0, 0, 1, 1, 1], [], []>} : vector<16x16x4xf32>, vector<4x4xf32>, vector<16x16x4xf32> -> vector<16x16x4xf32>
    %37 = arith.addf %32, %36 : vector<16x16x4xf32>
    %c2_60 = arith.constant 2 : index
    %c0_61 = arith.constant 0 : index
    %c0_62 = arith.constant 0 : index
    %38 = vector.load %arg7[%c2_60, %c0_61, %c0_62] : memref<18x18x4xf32, #tpu.memory_space<vmem>>, vector<16x16x4xf32>
    %c2_63 = arith.constant 2 : index
    %c0_64 = arith.constant 0 : index
    %c0_65 = arith.constant 0 : index
    %c0_66 = arith.constant 0 : index
    %39 = vector.load %arg2[%c2_63, %c0_64, %c0_65, %c0_66] : memref<3x3x4x4xf32, #tpu.memory_space<vmem>>, vector<1x1x4x4xf32>
    %40 = vector.shape_cast %39 : vector<1x1x4x4xf32> to vector<4x4xf32>
    %cst_67 = arith.constant dense<0.000000e+00> : vector<16x16x4xf32>
    %41 = tpu.matmul %38, %40, %cst_67 {dimension_numbers = #tpu.dot_dimension_numbers<[2], [0], [0, 1], [1], [0, 0, 0, 1, 1, 1], [], []>} : vector<16x16x4xf32>, vector<4x4xf32>, vector<16x16x4xf32> -> vector<16x16x4xf32>
    %42 = arith.addf %37, %41 : vector<16x16x4xf32>
    %c2_68 = arith.constant 2 : index
    %c1_69 = arith.constant 1 : index
    %c0_70 = arith.constant 0 : index
    %43 = vector.load %arg7[%c2_68, %c1_69, %c0_70] : memref<18x18x4xf32, #tpu.memory_space<vmem>>, vector<16x16x4xf32>
    %c2_71 = arith.constant 2 : index
    %c1_72 = arith.constant 1 : index
    %c0_73 = arith.constant 0 : index
    %c0_74 = arith.constant 0 : index
    %44 = vector.load %arg2[%c2_71, %c1_72, %c0_73, %c0_74] : memref<3x3x4x4xf32, #tpu.memory_space<vmem>>, vector<1x1x4x4xf32>
    %45 = vector.shape_cast %44 : vector<1x1x4x4xf32> to vector<4x4xf32>
    %cst_75 = arith.constant dense<0.000000e+00> : vector<16x16x4xf32>
    %46 = tpu.matmul %43, %45, %cst_75 {dimension_numbers = #tpu.dot_dimension_numbers<[2], [0], [0, 1], [1], [0, 0, 0, 1, 1, 1], [], []>} : vector<16x16x4xf32>, vector<4x4xf32>, vector<16x16x4xf32> -> vector<16x16x4xf32>
    %47 = arith.addf %42, %46 : vector<16x16x4xf32>
    %c2_76 = arith.constant 2 : index
    %c2_77 = arith.constant 2 : index
    %c0_78 = arith.constant 0 : index
    %48 = vector.load %arg7[%c2_76, %c2_77, %c0_78] : memref<18x18x4xf32, #tpu.memory_space<vmem>>, vector<16x16x4xf32>
    %c2_79 = arith.constant 2 : index
    %c2_80 = arith.constant 2 : index
    %c0_81 = arith.constant 0 : index
    %c0_82 = arith.constant 0 : index
    %49 = vector.load %arg2[%c2_79, %c2_80, %c0_81, %c0_82] : memref<3x3x4x4xf32, #tpu.memory_space<vmem>>, vector<1x1x4x4xf32>
    %50 = vector.shape_cast %49 : vector<1x1x4x4xf32> to vector<4x4xf32>
    %cst_83 = arith.constant dense<0.000000e+00> : vector<16x16x4xf32>
    %51 = tpu.matmul %48, %50, %cst_83 {dimension_numbers = #tpu.dot_dimension_numbers<[2], [0], [0, 1], [1], [0, 0, 0, 1, 1, 1], [], []>} : vector<16x16x4xf32>, vector<4x4xf32>, vector<16x16x4xf32> -> vector<16x16x4xf32>
    %52 = arith.addf %47, %51 : vector<16x16x4xf32>
    %c0_84 = arith.constant 0 : index
    %c0_85 = arith.constant 0 : index
    %53 = vector.load %arg3[%c0_84, %c0_85] : memref<1x4xf32, #tpu.memory_space<vmem>>, vector<1x4xf32>
    %54 = vector.shape_cast %53 : vector<1x4xf32> to vector<4xf32>
    %55 = vector.shape_cast %54 : vector<4xf32> to vector<1x1x4xf32>
    %56 = vector.broadcast %55 : vector<1x1x4xf32> to vector<16x16x4xf32>
    %57 = arith.addf %52, %56 : vector<16x16x4xf32>
    %cst_86 = arith.constant 0.000000e+00 : f32
    %58 = vector.broadcast %cst_86 : f32 to vector<16x16x4xf32>
    %59 = arith.maximumf %57, %58 : vector<16x16x4xf32>
    %c1_87 = arith.constant 1 : index
    %c1_88 = arith.constant 1 : index
    %c0_89 = arith.constant 0 : index
    %60 = vector.load %arg8[%c1_87, %c1_88, %c0_89] : memref<18x18x4xf32, #tpu.memory_space<vmem>>, vector<16x16x4xf32>
    tpu.vector_store %arg8[%c1_87, %c1_88, %c0_89], %59 {strides = array<i32>} : memref<18x18x4xf32, #tpu.memory_space<vmem>>, vector<16x16x4xf32>,
    %cst_90 = arith.constant 0.000000e+00 : f32
    %61 = vector.broadcast %cst_90 : f32 to vector<16x16x4xf32>
    %c0_91 = arith.constant 0 : index
    %c0_92 = arith.constant 0 : index
    %c0_93 = arith.constant 0 : index
    %62 = vector.load %arg8[%c0_91, %c0_92, %c0_93] : memref<18x18x4xf32, #tpu.memory_space<vmem>>, vector<16x16x4xf32>
    %c0_94 = arith.constant 0 : index
    %c0_95 = arith.constant 0 : index
    %c0_96 = arith.constant 0 : index
    %c0_97 = arith.constant 0 : index
    %63 = vector.load %arg4[%c0_94, %c0_95, %c0_96, %c0_97] : memref<3x3x4x4xf32, #tpu.memory_space<vmem>>, vector<1x1x4x4xf32>
    %64 = vector.shape_cast %63 : vector<1x1x4x4xf32> to vector<4x4xf32>
    %cst_98 = arith.constant dense<0.000000e+00> : vector<16x16x4xf32>
    %65 = tpu.matmul %62, %64, %cst_98 {dimension_numbers = #tpu.dot_dimension_numbers<[2], [0], [0, 1], [1], [0, 0, 0, 1, 1, 1], [], []>} : vector<16x16x4xf32>, vector<4x4xf32>, vector<16x16x4xf32> -> vector<16x16x4xf32>
    %66 = arith.addf %61, %65 : vector<16x16x4xf32>
    %c0_99 = arith.constant 0 : index
    %c1_100 = arith.constant 1 : index
    %c0_101 = arith.constant 0 : index
    %67 = vector.load %arg8[%c0_99, %c1_100, %c0_101] : memref<18x18x4xf32, #tpu.memory_space<vmem>>, vector<16x16x4xf32>
    %c0_102 = arith.constant 0 : index
    %c1_103 = arith.constant 1 : index
    %c0_104 = arith.constant 0 : index
    %c0_105 = arith.constant 0 : index
    %68 = vector.load %arg4[%c0_102, %c1_103, %c0_104, %c0_105] : memref<3x3x4x4xf32, #tpu.memory_space<vmem>>, vector<1x1x4x4xf32>
    %69 = vector.shape_cast %68 : vector<1x1x4x4xf32> to vector<4x4xf32>
    %cst_106 = arith.constant dense<0.000000e+00> : vector<16x16x4xf32>
    %70 = tpu.matmul %67, %69, %cst_106 {dimension_numbers = #tpu.dot_dimension_numbers<[2], [0], [0, 1], [1], [0, 0, 0, 1, 1, 1], [], []>} : vector<16x16x4xf32>, vector<4x4xf32>, vector<16x16x4xf32> -> vector<16x16x4xf32>
    %71 = arith.addf %66, %70 : vector<16x16x4xf32>
    %c0_107 = arith.constant 0 : index
    %c2_108 = arith.constant 2 : index
    %c0_109 = arith.constant 0 : index
    %72 = vector.load %arg8[%c0_107, %c2_108, %c0_109] : memref<18x18x4xf32, #tpu.memory_space<vmem>>, vector<16x16x4xf32>
    %c0_110 = arith.constant 0 : index
    %c2_111 = arith.constant 2 : index
    %c0_112 = arith.constant 0 : index
    %c0_113 = arith.constant 0 : index
    %73 = vector.load %arg4[%c0_110, %c2_111, %c0_112, %c0_113] : memref<3x3x4x4xf32, #tpu.memory_space<vmem>>, vector<1x1x4x4xf32>
    %74 = vector.shape_cast %73 : vector<1x1x4x4xf32> to vector<4x4xf32>
    %cst_114 = arith.constant dense<0.000000e+00> : vector<16x16x4xf32>
    %75 = tpu.matmul %72, %74, %cst_114 {dimension_numbers = #tpu.dot_dimension_numbers<[2], [0], [0, 1], [1], [0, 0, 0, 1, 1, 1], [], []>} : vector<16x16x4xf32>, vector<4x4xf32>, vector<16x16x4xf32> -> vector<16x16x4xf32>
    %76 = arith.addf %71, %75 : vector<16x16x4xf32>
    %c1_115 = arith.constant 1 : index
    %c0_116 = arith.constant 0 : index
    %c0_117 = arith.constant 0 : index
    %77 = vector.load %arg8[%c1_115, %c0_116, %c0_117] : memref<18x18x4xf32, #tpu.memory_space<vmem>>, vector<16x16x4xf32>
    %c1_118 = arith.constant 1 : index
    %c0_119 = arith.constant 0 : index
    %c0_120 = arith.constant 0 : index
    %c0_121 = arith.constant 0 : index
    %78 = vector.load %arg4[%c1_118, %c0_119, %c0_120, %c0_121] : memref<3x3x4x4xf32, #tpu.memory_space<vmem>>, vector<1x1x4x4xf32>
    %79 = vector.shape_cast %78 : vector<1x1x4x4xf32> to vector<4x4xf32>
    %cst_122 = arith.constant dense<0.000000e+00> : vector<16x16x4xf32>
    %80 = tpu.matmul %77, %79, %cst_122 {dimension_numbers = #tpu.dot_dimension_numbers<[2], [0], [0, 1], [1], [0, 0, 0, 1, 1, 1], [], []>} : vector<16x16x4xf32>, vector<4x4xf32>, vector<16x16x4xf32> -> vector<16x16x4xf32>
    %81 = arith.addf %76, %80 : vector<16x16x4xf32>
    %c1_123 = arith.constant 1 : index
    %c1_124 = arith.constant 1 : index
    %c0_125 = arith.constant 0 : index
    %82 = vector.load %arg8[%c1_123, %c1_124, %c0_125] : memref<18x18x4xf32, #tpu.memory_space<vmem>>, vector<16x16x4xf32>
    %c1_126 = arith.constant 1 : index
    %c1_127 = arith.constant 1 : index
    %c0_128 = arith.constant 0 : index
    %c0_129 = arith.constant 0 : index
    %83 = vector.load %arg4[%c1_126, %c1_127, %c0_128, %c0_129] : memref<3x3x4x4xf32, #tpu.memory_space<vmem>>, vector<1x1x4x4xf32>
    %84 = vector.shape_cast %83 : vector<1x1x4x4xf32> to vector<4x4xf32>
    %cst_130 = arith.constant dense<0.000000e+00> : vector<16x16x4xf32>
    %85 = tpu.matmul %82, %84, %cst_130 {dimension_numbers = #tpu.dot_dimension_numbers<[2], [0], [0, 1], [1], [0, 0, 0, 1, 1, 1], [], []>} : vector<16x16x4xf32>, vector<4x4xf32>, vector<16x16x4xf32> -> vector<16x16x4xf32>
    %86 = arith.addf %81, %85 : vector<16x16x4xf32>
    %c1_131 = arith.constant 1 : index
    %c2_132 = arith.constant 2 : index
    %c0_133 = arith.constant 0 : index
    %87 = vector.load %arg8[%c1_131, %c2_132, %c0_133] : memref<18x18x4xf32, #tpu.memory_space<vmem>>, vector<16x16x4xf32>
    %c1_134 = arith.constant 1 : index
    %c2_135 = arith.constant 2 : index
    %c0_136 = arith.constant 0 : index
    %c0_137 = arith.constant 0 : index
    %88 = vector.load %arg4[%c1_134, %c2_135, %c0_136, %c0_137] : memref<3x3x4x4xf32, #tpu.memory_space<vmem>>, vector<1x1x4x4xf32>
    %89 = vector.shape_cast %88 : vector<1x1x4x4xf32> to vector<4x4xf32>
    %cst_138 = arith.constant dense<0.000000e+00> : vector<16x16x4xf32>
    %90 = tpu.matmul %87, %89, %cst_138 {dimension_numbers = #tpu.dot_dimension_numbers<[2], [0], [0, 1], [1], [0, 0, 0, 1, 1, 1], [], []>} : vector<16x16x4xf32>, vector<4x4xf32>, vector<16x16x4xf32> -> vector<16x16x4xf32>
    %91 = arith.addf %86, %90 : vector<16x16x4xf32>
    %c2_139 = arith.constant 2 : index
    %c0_140 = arith.constant 0 : index
    %c0_141 = arith.constant 0 : index
    %92 = vector.load %arg8[%c2_139, %c0_140, %c0_141] : memref<18x18x4xf32, #tpu.memory_space<vmem>>, vector<16x16x4xf32>
    %c2_142 = arith.constant 2 : index
    %c0_143 = arith.constant 0 : index
    %c0_144 = arith.constant 0 : index
    %c0_145 = arith.constant 0 : index
    %93 = vector.load %arg4[%c2_142, %c0_143, %c0_144, %c0_145] : memref<3x3x4x4xf32, #tpu.memory_space<vmem>>, vector<1x1x4x4xf32>
    %94 = vector.shape_cast %93 : vector<1x1x4x4xf32> to vector<4x4xf32>
    %cst_146 = arith.constant dense<0.000000e+00> : vector<16x16x4xf32>
    %95 = tpu.matmul %92, %94, %cst_146 {dimension_numbers = #tpu.dot_dimension_numbers<[2], [0], [0, 1], [1], [0, 0, 0, 1, 1, 1], [], []>} : vector<16x16x4xf32>, vector<4x4xf32>, vector<16x16x4xf32> -> vector<16x16x4xf32>
    %96 = arith.addf %91, %95 : vector<16x16x4xf32>
    %c2_147 = arith.constant 2 : index
    %c1_148 = arith.constant 1 : index
    %c0_149 = arith.constant 0 : index
    %97 = vector.load %arg8[%c2_147, %c1_148, %c0_149] : memref<18x18x4xf32, #tpu.memory_space<vmem>>, vector<16x16x4xf32>
    %c2_150 = arith.constant 2 : index
    %c1_151 = arith.constant 1 : index
    %c0_152 = arith.constant 0 : index
    %c0_153 = arith.constant 0 : index
    %98 = vector.load %arg4[%c2_150, %c1_151, %c0_152, %c0_153] : memref<3x3x4x4xf32, #tpu.memory_space<vmem>>, vector<1x1x4x4xf32>
    %99 = vector.shape_cast %98 : vector<1x1x4x4xf32> to vector<4x4xf32>
    %cst_154 = arith.constant dense<0.000000e+00> : vector<16x16x4xf32>
    %100 = tpu.matmul %97, %99, %cst_154 {dimension_numbers = #tpu.dot_dimension_numbers<[2], [0], [0, 1], [1], [0, 0, 0, 1, 1, 1], [], []>} : vector<16x16x4xf32>, vector<4x4xf32>, vector<16x16x4xf32> -> vector<16x16x4xf32>
    %101 = arith.addf %96, %100 : vector<16x16x4xf32>
    %c2_155 = arith.constant 2 : index
    %c2_156 = arith.constant 2 : index
    %c0_157 = arith.constant 0 : index
    %102 = vector.load %arg8[%c2_155, %c2_156, %c0_157] : memref<18x18x4xf32, #tpu.memory_space<vmem>>, vector<16x16x4xf32>
    %c2_158 = arith.constant 2 : index
    %c2_159 = arith.constant 2 : index
    %c0_160 = arith.constant 0 : index
    %c0_161 = arith.constant 0 : index
    %103 = vector.load %arg4[%c2_158, %c2_159, %c0_160, %c0_161] : memref<3x3x4x4xf32, #tpu.memory_space<vmem>>, vector<1x1x4x4xf32>
    %104 = vector.shape_cast %103 : vector<1x1x4x4xf32> to vector<4x4xf32>
    %cst_162 = arith.constant dense<0.000000e+00> : vector<16x16x4xf32>
    %105 = tpu.matmul %102, %104, %cst_162 {dimension_numbers = #tpu.dot_dimension_numbers<[2], [0], [0, 1], [1], [0, 0, 0, 1, 1, 1], [], []>} : vector<16x16x4xf32>, vector<4x4xf32>, vector<16x16x4xf32> -> vector<16x16x4xf32>
    %106 = arith.addf %101, %105 : vector<16x16x4xf32>
    %c0_163 = arith.constant 0 : index
    %c0_164 = arith.constant 0 : index
    %107 = vector.load %arg5[%c0_163, %c0_164] : memref<1x4xf32, #tpu.memory_space<vmem>>, vector<1x4xf32>
    %108 = vector.shape_cast %107 : vector<1x4xf32> to vector<4xf32>
    %109 = vector.shape_cast %108 : vector<4xf32> to vector<1x1x4xf32>
    %110 = vector.broadcast %109 : vector<1x1x4xf32> to vector<16x16x4xf32>
    %111 = arith.addf %106, %110 : vector<16x16x4xf32>
    %c0_165 = arith.constant 0 : index
    %c0_166 = arith.constant 0 : index
    %c0_167 = arith.constant 0 : index
    %c0_168 = arith.constant 0 : index
    %112 = vector.load %arg1[%c0_165, %c0_166, %c0_167, %c0_168] : memref<1x16x16x4xf32, #tpu.memory_space<vmem>>, vector<1x16x16x4xf32>
    %113 = vector.shape_cast %112 : vector<1x16x16x4xf32> to vector<16x16x4xf32>
    %114 = arith.addf %111, %113 : vector<16x16x4xf32>
    %cst_169 = arith.constant 0.000000e+00 : f32
    %115 = vector.broadcast %cst_169 : f32 to vector<16x16x4xf32>
    %116 = arith.maximumf %114, %115 : vector<16x16x4xf32>
    %c0_170 = arith.constant 0 : index
    %c0_171 = arith.constant 0 : index
    %c0_172 = arith.constant 0 : index
    %c0_173 = arith.constant 0 : index
    %117 = vector.load %arg6[%c0_170, %c0_171, %c0_172, %c0_173] : memref<1x16x16x4xf32, #tpu.memory_space<vmem>>, vector<1x16x16x4xf32>
    %118 = vector.shape_cast %117 : vector<1x16x16x4xf32> to vector<16x16x4xf32>
    %119 = vector.shape_cast %116 : vector<16x16x4xf32> to vector<1x16x16x4xf32>
    tpu.vector_store %arg6[%c0_170, %c0_171, %c0_172, %c0_173], %119 {strides = array<i32>} : memref<1x16x16x4xf32, #tpu.memory_space<vmem>>, vector<1x16x16x4xf32>,
    return
  }
  func.func @transform_0(%arg0: i32) -> (i32, i32, i32, i32) {
    %c0_i32 = arith.constant 0 : i32
    %c0_i32_0 = arith.constant 0 : i32
    %c0_i32_1 = arith.constant 0 : i32
    %c0_i32_2 = arith.constant 0 : i32
    return %arg0, %c0_i32, %c0_i32_0, %c0_i32_1 : i32, i32, i32, i32
  }
  func.func @transform_1(%arg0: i32) -> (i32, i32, i32, i32) {
    %c0_i32 = arith.constant 0 : i32
    %c0_i32_0 = arith.constant 0 : i32
    %c0_i32_1 = arith.constant 0 : i32
    %c0_i32_2 = arith.constant 0 : i32
    %c0_i32_3 = arith.constant 0 : i32
    return %c0_i32, %c0_i32_0, %c0_i32_1, %c0_i32_2 : i32, i32, i32, i32
  }
  func.func @transform_2(%arg0: i32) -> (i32, i32) {
    %c0_i32 = arith.constant 0 : i32
    %c0_i32_0 = arith.constant 0 : i32
    %c0_i32_1 = arith.constant 0 : i32
    return %c0_i32, %c0_i32_0 : i32, i32
  }
  func.func @transform_3(%arg0: i32) -> (i32, i32, i32, i32) {
    %c0_i32 = arith.constant 0 : i32
    %c0_i32_0 = arith.constant 0 : i32
    %c0_i32_1 = arith.constant 0 : i32
    %c0_i32_2 = arith.constant 0 : i32
    %c0_i32_3 = arith.constant 0 : i32
    return %c0_i32, %c0_i32_0, %c0_i32_1, %c0_i32_2 : i32, i32, i32, i32
  }
  func.func @transform_4(%arg0: i32) -> (i32, i32) {
    %c0_i32 = arith.constant 0 : i32
    %c0_i32_0 = arith.constant 0 : i32
    %c0_i32_1 = arith.constant 0 : i32
    return %c0_i32, %c0_i32_0 : i32, i32
  }
  func.func @transform_5(%arg0: i32) -> (i32, i32, i32, i32) {
    %c0_i32 = arith.constant 0 : i32
    %c0_i32_0 = arith.constant 0 : i32
    %c0_i32_1 = arith.constant 0 : i32
    %c0_i32_2 = arith.constant 0 : i32
    return %arg0, %c0_i32, %c0_i32_0, %c0_i32_1 : i32, i32, i32, i32
  }
}

</mosaic_0001>

<llo_original>
// kernel: tpu_custom_call.1
$region0: #{tpu_custom_call.1}
  #allocation0 [shape = 'u32[]', space=smem, size = 0x4, offset = 0x4, fixed_abs, tag = 'smem constant byte address 0x4 - core index']
  #allocation1 [shape = 'u32[144,128]{1,0:T(1,128)}', space=vmem, size = 0x12000, scoped, tag = 'internal scratch']
  #allocation2 [shape = 'f32[18,18,4]{2,1,0:T(8,128)}', space=vmem, size = 0x36000, scoped, tag = 'scratch operand']
  #allocation3 [shape = 'f32[18,18,4]{2,1,0:T(8,128)}', space=vmem, size = 0x36000, scoped, tag = 'scratch operand']
  %s0 = inlined_call_operand.vmem [shape: f32[2,16,16,4], index: 0, kind: input, shape index: {}]
  %s1 = inlined_call_operand.vmem [shape: f32[3,3,4,4], index: 1, kind: input, shape index: {}]
  %s2 = inlined_call_operand.vmem [shape: f32[1,4], index: 2, kind: input, shape index: {}]
  %s3 = inlined_call_operand.vmem [shape: f32[3,3,4,4], index: 3, kind: input, shape index: {}]
  %s4 = inlined_call_operand.vmem [shape: f32[1,4], index: 4, kind: input, shape index: {}]
  %s5 = inlined_call_operand.vmem [shape: f32[2,16,16,4], index: 5, kind: output, shape index: {}]
  %s6 = sld [smem:[#allocation0]]
  $region53: #{tpu_custom_call.1} parent=0
    _
  %s8 = ssub.s32 1, %s6
  %s9 = scalar_select 0, %s8, %s6
  loop: start=0, step=1, limit=4
  $region2: #{tpu_custom_call.1} parent=0 // loop_pre_header
    _
  $region3: #{tpu_custom_call.1} parent=0 // loop_header
    %s11 = sphi 0, %s15
    %p12 = scmp.ge.s32.totalorder %s11, 4
    %s21 = sphi 0, %s23
    %s24 = sphi 0, %s21
    %s25 = sphi 0, %s24
    %s41 = sphi 0, %s25
    %s45 = sphi 0, %s45
    %s47 = sphi 0, %s45
    %s48 = sphi 0, %s47
    %s62 = sphi 0, %s48
    %s66 = sphi 0, %s66
    %s68 = sphi 0, %s66
    %s69 = sphi 0, %s68
    %s83 = sphi 0, %s69
    %s87 = sphi 0, %s87
    %s89 = sphi 0, %s87
    %s90 = sphi 0, %s89
    %s104 = sphi 0, %s90
    %s108 = sphi 0, %s108
    %s110 = sphi 0, %s108
    %s111 = sphi 0, %s110
    %s125 = sphi 0, %s111
    %s131 = sphi 0, %s133
    %s134 = sphi 0, %s131
    %s135 = sphi 0, %s134
    %s151 = sphi 0, %s135
  $region4: #{tpu_custom_call.1} parent=0 // loop_header_branch
    %14 = sbr.rel (%p12) target = $region8
  $region5: #{tpu_custom_call.1} parent=0 // loop_body
    %s16 = ssub.s32 %s11, 1
    %s17 = ssub.s32 %s11, 2
    %s18 = sadd.s32 %s11, 1
    %s19 = ssub.s32 %s11, %s18
    %p20 = scmp.eq.s32.totalorder %s19, 0
    %s22 = sadd.s32 %s21, 1
    %s23 = scalar_select %p20, %s21, %s22
    %p26 = pneg %p20
    %p27 = scmp.eq.s32.totalorder %s11, 1
    %p28 = por %p26, %p27
    %p29 = scmp.ne.s32.totalorder %s21, %s24
    %p30 = scmp.eq.s32.totalorder %s11, 0
    %p31 = por %p29, %p30
    %p32 = scmp.ne.s32.totalorder %s21, %s24
    %p33 = scmp.eq.s32.totalorder %s16, 1
    %p34 = por %p32, %p33
    %p35 = scmp.ne.s32.totalorder %s24, %s25
    %p36 = scmp.eq.s32.totalorder %s16, 0
    %p37 = por %p35, %p36
    %p38 = scmp.ne.s32.totalorder %s24, %s25
    %p39 = scmp.eq.s32.totalorder %s17, 1
    %p40 = por %p38, %p39
    %p42 = scmp.ne.s32.totalorder %s25, %s41
    %p43 = scmp.eq.s32.totalorder %s17, 0
    %p44 = por %p42, %p43
    %s46 = sadd.s32 %s45, 1
    %p49 = scmp.eq.s32.totalorder %s11, 1
    %p50 = scmp.ne.s32.totalorder %s45, %s47
    %p51 = scmp.eq.s32.totalorder %s11, 0
    %p52 = por %p50, %p51
    %p53 = scmp.ne.s32.totalorder %s45, %s47
    %p54 = scmp.eq.s32.totalorder %s16, 1
    %p55 = por %p53, %p54
    %p56 = scmp.ne.s32.totalorder %s47, %s48
    %p57 = scmp.eq.s32.totalorder %s16, 0
    %p58 = por %p56, %p57
    %p59 = scmp.ne.s32.totalorder %s47, %s48
    %p60 = scmp.eq.s32.totalorder %s17, 1
    %p61 = por %p59, %p60
    %p63 = scmp.ne.s32.totalorder %s48, %s62
    %p64 = scmp.eq.s32.totalorder %s17, 0
    %p65 = por %p63, %p64
    %s67 = sadd.s32 %s66, 1
    %p70 = scmp.eq.s32.totalorder %s11, 1
    %p71 = scmp.ne.s32.totalorder %s66, %s68
    %p72 = scmp.eq.s32.totalorder %s11, 0
    %p73 = por %p71, %p72
    %p74 = scmp.ne.s32.totalorder %s66, %s68
    %p75 = scmp.eq.s32.totalorder %s16, 1
    %p76 = por %p74, %p75
    %p77 = scmp.ne.s32.totalorder %s68, %s69
    %p78 = scmp.eq.s32.totalorder %s16, 0
    %p79 = por %p77, %p78
    %p80 = scmp.ne.s32.totalorder %s68, %s69
    %p81 = scmp.eq.s32.totalorder %s17, 1
    %p82 = por %p80, %p81
    %p84 = scmp.ne.s32.totalorder %s69, %s83
    %p85 = scmp.eq.s32.totalorder %s17, 0
    %p86 = por %p84, %p85
    %s88 = sadd.s32 %s87, 1
    %p91 = scmp.eq.s32.totalorder %s11, 1
    %p92 = scmp.ne.s32.totalorder %s87, %s89
    %p93 = scmp.eq.s32.totalorder %s11, 0
    %p94 = por %p92, %p93
    %p95 = scmp.ne.s32.totalorder %s87, %s89
    %p96 = scmp.eq.s32.totalorder %s16, 1
    %p97 = por %p95, %p96
    %p98 = scmp.ne.s32.totalorder %s89, %s90
    %p99 = scmp.eq.s32.totalorder %s16, 0
    %p100 = por %p98, %p99
    %p101 = scmp.ne.s32.totalorder %s89, %s90
    %p102 = scmp.eq.s32.totalorder %s17, 1
    %p103 = por %p101, %p102
    %p105 = scmp.ne.s32.totalorder %s90, %s104
    %p106 = scmp.eq.s32.totalorder %s17, 0
    %p107 = por %p105, %p106
    %s109 = sadd.s32 %s108, 1
    %p112 = scmp.eq.s32.totalorder %s11, 1
    %p113 = scmp.ne.s32.totalorder %s108, %s110
    %p114 = scmp.eq.s32.totalorder %s11, 0
    %p115 = por %p113, %p114
    %p116 = scmp.ne.s32.totalorder %s108, %s110
    %p117 = scmp.eq.s32.totalorder %s16, 1
    %p118 = por %p116, %p117
    %p119 = scmp.ne.s32.totalorder %s110, %s111
    %p120 = scmp.eq.s32.totalorder %s16, 0
    %p121 = por %p119, %p120
    %p122 = scmp.ne.s32.totalorder %s110, %s111
    %p123 = scmp.eq.s32.totalorder %s17, 1
    %p124 = por %p122, %p123
    %p126 = scmp.ne.s32.totalorder %s111, %s125
    %p127 = scmp.eq.s32.totalorder %s17, 0
    %p128 = por %p126, %p127
    %s129 = ssub.s32 %s11, %s18
    %p130 = scmp.eq.s32.totalorder %s129, 0
    %s132 = sadd.s32 %s131, 1
    %s133 = scalar_select %p130, %s131, %s132
    %p136 = pneg %p130
    %p137 = scmp.eq.s32.totalorder %s11, 1
    %p138 = por %p136, %p137
    %p139 = scmp.ne.s32.totalorder %s131, %s134
    %p140 = scmp.eq.s32.totalorder %s11, 0
    %p141 = por %p139, %p140
    %p142 = scmp.ne.s32.totalorder %s131, %s134
    %p143 = scmp.eq.s32.totalorder %s16, 1
    %p144 = por %p142, %p143
    %p145 = scmp.ne.s32.totalorder %s134, %s135
    %p146 = scmp.eq.s32.totalorder %s16, 0
    %p147 = por %p145, %p146
    %p148 = scmp.ne.s32.totalorder %s134, %s135
    %p149 = scmp.eq.s32.totalorder %s17, 1
    %p150 = por %p148, %p149
    %p152 = scmp.ne.s32.totalorder %s135, %s151
    %p153 = scmp.eq.s32.totalorder %s17, 0
    %p154 = por %p152, %p153
    %p155 = scmp.le.s32.totalorder 1, %s11
    %p156 = scmp.lt.s32.totalorder %s11, 3
    %p157 = pnand %p155, %p156
    %p158 = pneg %p157
    // Predicated region
    $region9: #{tpu_custom_call.1} parent=5 // pred_check
      _
    $region10: #{tpu_custom_call.1} parent=5 // pred_check_branch
      %160 = sbr.rel (%p157) target = $region12
    $region11: #{tpu_custom_call.1} parent=5 // pred_region
      %s161 = ssub.s32 %s11, 1
      // Predicated region
      $region13: #{tpu_custom_call.1} parent=11 // pred_check
        %p162 = pneg %p58
      $region14: #{tpu_custom_call.1} parent=11 // pred_check_branch
        %164 = sbr.rel (%p162) target = $region16
      $region15: #{tpu_custom_call.1} parent=11 // pred_region
        _
      $region16: #{tpu_custom_call.1} parent=11 // pred_fallthru
        _
      // Predicated region
      $region17: #{tpu_custom_call.1} parent=11 // pred_check
        %p165 = pneg %p79
      $region18: #{tpu_custom_call.1} parent=11 // pred_check_branch
        %167 = sbr.rel (%p165) target = $region20
      $region19: #{tpu_custom_call.1} parent=11 // pred_region
        _
      $region20: #{tpu_custom_call.1} parent=11 // pred_fallthru
        _
      // Predicated region
      $region21: #{tpu_custom_call.1} parent=11 // pred_check
        %p168 = pneg %p100
      $region22: #{tpu_custom_call.1} parent=11 // pred_check_branch
        %170 = sbr.rel (%p168) target = $region24
      $region23: #{tpu_custom_call.1} parent=11 // pred_region
        _
      $region24: #{tpu_custom_call.1} parent=11 // pred_fallthru
        _
      // Predicated region
      $region25: #{tpu_custom_call.1} parent=11 // pred_check
        %p171 = pneg %p121
      $region26: #{tpu_custom_call.1} parent=11 // pred_check_branch
        %173 = sbr.rel (%p171) target = $region28
      $region27: #{tpu_custom_call.1} parent=11 // pred_region
        _
      $region28: #{tpu_custom_call.1} parent=11 // pred_fallthru
        _
    $region12: #{tpu_custom_call.1} parent=5 // pred_fallthru
      _
    %p174 = scmp.lt.s32.totalorder %s11, 2
    // Predicated region
    $region29: #{tpu_custom_call.1} parent=5 // pred_check
      %p175 = pneg %p174
    $region30: #{tpu_custom_call.1} parent=5 // pred_check_branch
      %177 = sbr.rel (%p175) target = $region32
    $region31: #{tpu_custom_call.1} parent=5 // pred_region
      // Predicated region
      $region33: #{tpu_custom_call.1} parent=31 // pred_check
        %p178 = pneg %p31
      $region34: #{tpu_custom_call.1} parent=31 // pred_check_branch
        %180 = sbr.rel (%p178) target = $region36
      $region35: #{tpu_custom_call.1} parent=31 // pred_region
        %p181 = scmp.lt.s32.totalorder %s11, 1
        %s182 = scalar_select %p181, %s11, 1
        %s183 = smul.addr %s182, 32
        %s184 = smul.addr %s183, 8
        %s185 = scalar_lea.vmem %s0, %s184
      $region36: #{tpu_custom_call.1} parent=31 // pred_fallthru
        _
    $region32: #{tpu_custom_call.1} parent=5 // pred_fallthru
      _
    %p186 = scmp.le.s32.totalorder 1, %s11
    %p187 = scmp.lt.s32.totalorder %s11, 3
    %p188 = pnand %p186, %p187
    %p189 = pneg %p188
    // Predicated region
    $region37: #{tpu_custom_call.1} parent=5 // pred_check
      _
    $region38: #{tpu_custom_call.1} parent=5 // pred_check_branch
      %191 = sbr.rel (%p188) target = $region40
    $region39: #{tpu_custom_call.1} parent=5 // pred_region
      %s192 = ssub.s32 %s11, 1
      %p193 = scmp.lt.s32.totalorder %s16, 1
      %s194 = scalar_select %p193, %s16, 1
      %s195 = smul.addr %s194, 32
      %s196 = smul.addr %s195, 8
      %s197 = scalar_lea.vmem %s0, %s196
      %p198 = pneg %p37
      %p199 = pneg %p34
      %p200 = pneg %p58
      %p201 = pneg %p55
      %p202 = pneg %p79
      %p203 = pneg %p76
      %p204 = pneg %p100
      %p205 = pneg %p97
      %p206 = pneg %p121
      %p207 = pneg %p118
      %p208 = pneg %p147
      %p209 = pneg %p144
      %p210 = scmp.lt.s32.totalorder %s16, 1
      %s211 = scalar_select %p210, %s16, 1
      %s212 = smul.addr %s211, 32
      %s213 = smul.addr %s212, 8
      %s214 = scalar_lea.vmem %s5, %s213
      %p215 = scmp.lt.s32.totalorder %s16, 1
      %s216 = scalar_select %p215, %s16, 1
      %s217 = smul.addr %s216, 32
      %s218 = smul.addr %s217, 8
      %s219 = scalar_lea.vmem %s0, %s218
      %p220 = scmp.lt.s32.totalorder %s16, 1
      %s221 = scalar_select %p220, %s16, 1
      %s222 = smul.addr %s221, 32
      %s223 = smul.addr %s222, 8
      %s224 = scalar_lea.vmem %s5, %s223
      %vm225 = vcmask 31744
      %226 = vst.msk [vmem:[#allocation2] sm:$0xff] %vm225, 0.0
      %227 = vst.msk [vmem:[#allocation2 + $0x8] sm:$0xff] %vm225, 0.0
      %vm228 = vcmask 25600
      %229 = vst.msk [vmem:[#allocation2 + $0x10] sm:$0x3] %vm228, 0.0
      %230 = vst.msk [vmem:[#allocation2 + $0x18] sm:$0xff] %vm225, 0.0
      %231 = vst.msk [vmem:[#allocation2 + $0x20] sm:$0xff] %vm225, 0.0
      %232 = vst.msk [vmem:[#allocation2 + $0x28] sm:$0x3] %vm228, 0.0
      %233 = vst.msk [vmem:[#allocation2 + $0x30] sm:$0xff] %vm225, 0.0
      %234 = vst.msk [vmem:[#allocation2 + $0x38] sm:$0xff] %vm225, 0.0
      %235 = vst.msk [vmem:[#allocation2 + $0x40] sm:$0x3] %vm228, 0.0
      %236 = vst.msk [vmem:[#allocation2 + $0x48] sm:$0xff] %vm225, 0.0
      %237 = vst.msk [vmem:[#allocation2 + $0x50] sm:$0xff] %vm225, 0.0
      %238 = vst.msk [vmem:[#allocation2 + $0x58] sm:$0x3] %vm228, 0.0
      %239 = vst.msk [vmem:[#allocation2 + $0x60] sm:$0xff] %vm225, 0.0
      %240 = vst.msk [vmem:[#allocation2 + $0x68] sm:$0xff] %vm225, 0.0
      %241 = vst.msk [vmem:[#allocation2 + $0x70] sm:$0x3] %vm228, 0.0
      %242 = vst.msk [vmem:[#allocation2 + $0x78] sm:$0xff] %vm225, 0.0
      %243 = vst.msk [vmem:[#allocation2 + $0x80] sm:$0xff] %vm225, 0.0
      %244 = vst.msk [vmem:[#allocation2 + $0x88] sm:$0x3] %vm228, 0.0
      %245 = vst.msk [vmem:[#allocation2 + $0x90] sm:$0xff] %vm225, 0.0
      %246 = vst.msk [vmem:[#allocation2 + $0x98] sm:$0xff] %vm225, 0.0
      %247 = vst.msk [vmem:[#allocation2 + $0xa0] sm:$0x3] %vm228, 0.0
      %248 = vst.msk [vmem:[#allocation2 + $0xa8] sm:$0xff] %vm225, 0.0
      %249 = vst.msk [vmem:[#allocation2 + $0xb0] sm:$0xff] %vm225, 0.0
      %250 = vst.msk [vmem:[#allocation2 + $0xb8] sm:$0x3] %vm228, 0.0
      %251 = vst.msk [vmem:[#allocation2 + $0xc0] sm:$0xff] %vm225, 0.0
      %252 = vst.msk [vmem:[#allocation2 + $0xc8] sm:$0xff] %vm225, 0.0
      %253 = vst.msk [vmem:[#allocation2 + $0xd0] sm:$0x3] %vm228, 0.0
      %254 = vst.msk [vmem:[#allocation2 + $0xd8] sm:$0xff] %vm225, 0.0
      %255 = vst.msk [vmem:[#allocation2 + $0xe0] sm:$0xff] %vm225, 0.0
      %256 = vst.msk [vmem:[#allocation2 + $0xe8] sm:$0x3] %vm228, 0.0
      %257 = vst.msk [vmem:[#allocation2 + $0xf0] sm:$0xff] %vm225, 0.0
      %258 = vst.msk [vmem:[#allocation2 + $0xf8] sm:$0xff] %vm225, 0.0
      %259 = vst.msk [vmem:[#allocation2 + $0x100] sm:$0x3] %vm228, 0.0
      %260 = vst.msk [vmem:[#allocation2 + $0x108] sm:$0xff] %vm225, 0.0
      %261 = vst.msk [vmem:[#allocation2 + $0x110] sm:$0xff] %vm225, 0.0
      %262 = vst.msk [vmem:[#allocation2 + $0x118] sm:$0x3] %vm228, 0.0
      %263 = vst.msk [vmem:[#allocation2 + $0x120] sm:$0xff] %vm225, 0.0
      %264 = vst.msk [vmem:[#allocation2 + $0x128] sm:$0xff] %vm225, 0.0
      %265 = vst.msk [vmem:[#allocation2 + $0x130] sm:$0x3] %vm228, 0.0
      %266 = vst.msk [vmem:[#allocation2 + $0x138] sm:$0xff] %vm225, 0.0
      %267 = vst.msk [vmem:[#allocation2 + $0x140] sm:$0xff] %vm225, 0.0
      %268 = vst.msk [vmem:[#allocation2 + $0x148] sm:$0x3] %vm228, 0.0
      %269 = vst.msk [vmem:[#allocation2 + $0x150] sm:$0xff] %vm225, 0.0
      %270 = vst.msk [vmem:[#allocation2 + $0x158] sm:$0xff] %vm225, 0.0
      %271 = vst.msk [vmem:[#allocation2 + $0x160] sm:$0x3] %vm228, 0.0
      %272 = vst.msk [vmem:[#allocation2 + $0x168] sm:$0xff] %vm225, 0.0
      %273 = vst.msk [vmem:[#allocation2 + $0x170] sm:$0xff] %vm225, 0.0
      %274 = vst.msk [vmem:[#allocation2 + $0x178] sm:$0x3] %vm228, 0.0
      %275 = vst.msk [vmem:[#allocation2 + $0x180] sm:$0xff] %vm225, 0.0
      %276 = vst.msk [vmem:[#allocation2 + $0x188] sm:$0xff] %vm225, 0.0
      %277 = vst.msk [vmem:[#allocation2 + $0x190] sm:$0x3] %vm228, 0.0
      %278 = vst.msk [vmem:[#allocation2 + $0x198] sm:$0xff] %vm225, 0.0
      %279 = vst.msk [vmem:[#allocation2 + $0x1a0] sm:$0xff] %vm225, 0.0
      %280 = vst.msk [vmem:[#allocation2 + $0x1a8] sm:$0x3] %vm228, 0.0
      %281 = vst.msk [vmem:[#allocation3] sm:$0xff] %vm225, 0.0
      %282 = vst.msk [vmem:[#allocation3 + $0x8] sm:$0xff] %vm225, 0.0
      %283 = vst.msk [vmem:[#allocation3 + $0x10] sm:$0x3] %vm228, 0.0
      %284 = vst.msk [vmem:[#allocation3 + $0x18] sm:$0xff] %vm225, 0.0
      %285 = vst.msk [vmem:[#allocation3 + $0x20] sm:$0xff] %vm225, 0.0
      %286 = vst.msk [vmem:[#allocation3 + $0x28] sm:$0x3] %vm228, 0.0
      %287 = vst.msk [vmem:[#allocation3 + $0x30] sm:$0xff] %vm225, 0.0
      %288 = vst.msk [vmem:[#allocation3 + $0x38] sm:$0xff] %vm225, 0.0
      %289 = vst.msk [vmem:[#allocation3 + $0x40] sm:$0x3] %vm228, 0.0
      %290 = vst.msk [vmem:[#allocation3 + $0x48] sm:$0xff] %vm225, 0.0
      %291 = vst.msk [vmem:[#allocation3 + $0x50] sm:$0xff] %vm225, 0.0
      %292 = vst.msk [vmem:[#allocation3 + $0x58] sm:$0x3] %vm228, 0.0
      %293 = vst.msk [vmem:[#allocation3 + $0x60] sm:$0xff] %vm225, 0.0
      %294 = vst.msk [vmem:[#allocation3 + $0x68] sm:$0xff] %vm225, 0.0
      %295 = vst.msk [vmem:[#allocation3 + $0x70] sm:$0x3] %vm228, 0.0
      %296 = vst.msk [vmem:[#allocation3 + $0x78] sm:$0xff] %vm225, 0.0
      %297 = vst.msk [vmem:[#allocation3 + $0x80] sm:$0xff] %vm225, 0.0
      %298 = vst.msk [vmem:[#allocation3 + $0x88] sm:$0x3] %vm228, 0.0
      %299 = vst.msk [vmem:[#allocation3 + $0x90] sm:$0xff] %vm225, 0.0
      %300 = vst.msk [vmem:[#allocation3 + $0x98] sm:$0xff] %vm225, 0.0
      %301 = vst.msk [vmem:[#allocation3 + $0xa0] sm:$0x3] %vm228, 0.0
      %302 = vst.msk [vmem:[#allocation3 + $0xa8] sm:$0xff] %vm225, 0.0
      %303 = vst.msk [vmem:[#allocation3 + $0xb0] sm:$0xff] %vm225, 0.0
      %304 = vst.msk [vmem:[#allocation3 + $0xb8] sm:$0x3] %vm228, 0.0
      %305 = vst.msk [vmem:[#allocation3 + $0xc0] sm:$0xff] %vm225, 0.0
      %306 = vst.msk [vmem:[#allocation3 + $0xc8] sm:$0xff] %vm225, 0.0
      %307 = vst.msk [vmem:[#allocation3 + $0xd0] sm:$0x3] %vm228, 0.0
      %308 = vst.msk [vmem:[#allocation3 + $0xd8] sm:$0xff] %vm225, 0.0
      %309 = vst.msk [vmem:[#allocation3 + $0xe0] sm:$0xff] %vm225, 0.0
      %310 = vst.msk [vmem:[#allocation3 + $0xe8] sm:$0x3] %vm228, 0.0
      %311 = vst.msk [vmem:[#allocation3 + $0xf0] sm:$0xff] %vm225, 0.0
      %312 = vst.msk [vmem:[#allocation3 + $0xf8] sm:$0xff] %vm225, 0.0
      %313 = vst.msk [vmem:[#allocation3 + $0x100] sm:$0x3] %vm228, 0.0
      %314 = vst.msk [vmem:[#allocation3 + $0x108] sm:$0xff] %vm225, 0.0
      %315 = vst.msk [vmem:[#allocation3 + $0x110] sm:$0xff] %vm225, 0.0
      %316 = vst.msk [vmem:[#allocation3 + $0x118] sm:$0x3] %vm228, 0.0
      %317 = vst.msk [vmem:[#allocation3 + $0x120] sm:$0xff] %vm225, 0.0
      %318 = vst.msk [vmem:[#allocation3 + $0x128] sm:$0xff] %vm225, 0.0
      %319 = vst.msk [vmem:[#allocation3 + $0x130] sm:$0x3] %vm228, 0.0
      %320 = vst.msk [vmem:[#allocation3 + $0x138] sm:$0xff] %vm225, 0.0
      %321 = vst.msk [vmem:[#allocation3 + $0x140] sm:$0xff] %vm225, 0.0
      %322 = vst.msk [vmem:[#allocation3 + $0x148] sm:$0x3] %vm228, 0.0
      %323 = vst.msk [vmem:[#allocation3 + $0x150] sm:$0xff] %vm225, 0.0
      %324 = vst.msk [vmem:[#allocation3 + $0x158] sm:$0xff] %vm225, 0.0
      %325 = vst.msk [vmem:[#allocation3 + $0x160] sm:$0x3] %vm228, 0.0
      %326 = vst.msk [vmem:[#allocation3 + $0x168] sm:$0xff] %vm225, 0.0
      %327 = vst.msk [vmem:[#allocation3 + $0x170] sm:$0xff] %vm225, 0.0
      %328 = vst.msk [vmem:[#allocation3 + $0x178] sm:$0x3] %vm228, 0.0
      %329 = vst.msk [vmem:[#allocation3 + $0x180] sm:$0xff] %vm225, 0.0
      %330 = vst.msk [vmem:[#allocation3 + $0x188] sm:$0xff] %vm225, 0.0
      %331 = vst.msk [vmem:[#allocation3 + $0x190] sm:$0x3] %vm228, 0.0
      %332 = vst.msk [vmem:[#allocation3 + $0x198] sm:$0xff] %vm225, 0.0
      %333 = vst.msk [vmem:[#allocation3 + $0x1a0] sm:$0xff] %vm225, 0.0
      %334 = vst.msk [vmem:[#allocation3 + $0x1a8] sm:$0x3] %vm228, 0.0
      %v335 = vld [vmem:[%s219] sm:$0xff]
      %v336 = vld [vmem:[%s219 + $0x8] sm:$0xff]
      %v337 = vld [vmem:[%s219 + $0x10] sm:$0xff]
      %v338 = vld [vmem:[%s219 + $0x18] sm:$0xff]
      %v339 = vld [vmem:[%s219 + $0x20] sm:$0xff]
      %v340 = vld [vmem:[%s219 + $0x28] sm:$0xff]
      %v341 = vld [vmem:[%s219 + $0x30] sm:$0xff]
      %v342 = vld [vmem:[%s219 + $0x38] sm:$0xff]
      %v343 = vld [vmem:[%s219 + $0x40] sm:$0xff]
      %v344 = vld [vmem:[%s219 + $0x48] sm:$0xff]
      %v345 = vld [vmem:[%s219 + $0x50] sm:$0xff]
      %v346 = vld [vmem:[%s219 + $0x58] sm:$0xff]
      %v347 = vld [vmem:[%s219 + $0x60] sm:$0xff]
      %v348 = vld [vmem:[%s219 + $0x68] sm:$0xff]
      %v349 = vld [vmem:[%s219 + $0x70] sm:$0xff]
      %v350 = vld [vmem:[%s219 + $0x78] sm:$0xff]
      %v351 = vld [vmem:[%s219 + $0x80] sm:$0xff]
      %v352 = vld [vmem:[%s219 + $0x88] sm:$0xff]
      %v353 = vld [vmem:[%s219 + $0x90] sm:$0xff]
      %v354 = vld [vmem:[%s219 + $0x98] sm:$0xff]
      %v355 = vld [vmem:[%s219 + $0xa0] sm:$0xff]
      %v356 = vld [vmem:[%s219 + $0xa8] sm:$0xff]
      %v357 = vld [vmem:[%s219 + $0xb0] sm:$0xff]
      %v358 = vld [vmem:[%s219 + $0xb8] sm:$0xff]
      %v359 = vld [vmem:[%s219 + $0xc0] sm:$0xff]
      %v360 = vld [vmem:[%s219 + $0xc8] sm:$0xff]
      %v361 = vld [vmem:[%s219 + $0xd0] sm:$0xff]
      %v362 = vld [vmem:[%s219 + $0xd8] sm:$0xff]
      %v363 = vld [vmem:[%s219 + $0xe0] sm:$0xff]
      %v364 = vld [vmem:[%s219 + $0xe8] sm:$0xff]
      %v365 = vld [vmem:[%s219 + $0xf0] sm:$0xff]
      %v366 = vld [vmem:[%s219 + $0xf8] sm:$0xff]
      %s367 = scalar_lea.vmem [#allocation2], 24
      %368 = vst.msk [vmem:[%s367 + $0x1] sm:$0xff] %vm225, %v335
      %369 = vst.msk [vmem:[%s367 + $0x9] sm:$0xff] %vm225, %v336
      %370 = vst.msk [vmem:[%s367 + $0x19] sm:$0xff] %vm225, %v337
      %371 = vst.msk [vmem:[%s367 + $0x21] sm:$0xff] %vm225, %v338
      %372 = vst.msk [vmem:[%s367 + $0x31] sm:$0xff] %vm225, %v339
      %373 = vst.msk [vmem:[%s367 + $0x39] sm:$0xff] %vm225, %v340
      %374 = vst.msk [vmem:[%s367 + $0x49] sm:$0xff] %vm225, %v341
      %375 = vst.msk [vmem:[%s367 + $0x51] sm:$0xff] %vm225, %v342
      %376 = vst.msk [vmem:[%s367 + $0x61] sm:$0xff] %vm225, %v343
      %377 = vst.msk [vmem:[%s367 + $0x69] sm:$0xff] %vm225, %v344
      %378 = vst.msk [vmem:[%s367 + $0x79] sm:$0xff] %vm225, %v345
      %379 = vst.msk [vmem:[%s367 + $0x81] sm:$0xff] %vm225, %v346
      %380 = vst.msk [vmem:[%s367 + $0x91] sm:$0xff] %vm225, %v347
      %381 = vst.msk [vmem:[%s367 + $0x99] sm:$0xff] %vm225, %v348
      %382 = vst.msk [vmem:[%s367 + $0xa9] sm:$0xff] %vm225, %v349
      %383 = vst.msk [vmem:[%s367 + $0xb1] sm:$0xff] %vm225, %v350
      %384 = vst.msk [vmem:[%s367 + $0xc1] sm:$0xff] %vm225, %v351
      %385 = vst.msk [vmem:[%s367 + $0xc9] sm:$0xff] %vm225, %v352
      %386 = vst.msk [vmem:[%s367 + $0xd9] sm:$0xff] %vm225, %v353
      %387 = vst.msk [vmem:[%s367 + $0xe1] sm:$0xff] %vm225, %v354
      %388 = vst.msk [vmem:[%s367 + $0xf1] sm:$0xff] %vm225, %v355
      %389 = vst.msk [vmem:[%s367 + $0xf9] sm:$0xff] %vm225, %v356
      %390 = vst.msk [vmem:[%s367 + $0x109] sm:$0xff] %vm225, %v357
      %391 = vst.msk [vmem:[%s367 + $0x111] sm:$0xff] %vm225, %v358
      %392 = vst.msk [vmem:[%s367 + $0x121] sm:$0xff] %vm225, %v359
      %393 = vst.msk [vmem:[%s367 + $0x129] sm:$0xff] %vm225, %v360
      %394 = vst.msk [vmem:[%s367 + $0x139] sm:$0xff] %vm225, %v361
      %395 = vst.msk [vmem:[%s367 + $0x141] sm:$0xff] %vm225, %v362
      %396 = vst.msk [vmem:[%s367 + $0x151] sm:$0xff] %vm225, %v363
      %397 = vst.msk [vmem:[%s367 + $0x159] sm:$0xff] %vm225, %v364
      %398 = vst.msk [vmem:[%s367 + $0x169] sm:$0xff] %vm225, %v365
      %399 = vst.msk [vmem:[%s367 + $0x171] sm:$0xff] %vm225, %v366
      %v400 = vld [vmem:[#allocation2] sm:$0xff]
      %v401 = vld [vmem:[#allocation2 + $0x8] sm:$0xff]
      %v402 = vld [vmem:[#allocation2 + $0x18] sm:$0xff]
      %v403 = vld [vmem:[#allocation2 + $0x20] sm:$0xff]
      %v404 = vld [vmem:[#allocation2 + $0x30] sm:$0xff]
      %v405 = vld [vmem:[#allocation2 + $0x38] sm:$0xff]
      %v406 = vld [vmem:[#allocation2 + $0x48] sm:$0xff]
      %v407 = vld [vmem:[#allocation2 + $0x50] sm:$0xff]
      %v408 = vld [vmem:[#allocation2 + $0x60] sm:$0xff]
      %v409 = vld [vmem:[#allocation2 + $0x68] sm:$0xff]
      %v410 = vld [vmem:[#allocation2 + $0x78] sm:$0xff]
      %v411 = vld [vmem:[#allocation2 + $0x80] sm:$0xff]
      %v412 = vld [vmem:[#allocation2 + $0x90] sm:$0xff]
      %v413 = vld [vmem:[#allocation2 + $0x98] sm:$0xff]
      %v414 = vld [vmem:[#allocation2 + $0xa8] sm:$0xff]
      %v415 = vld [vmem:[#allocation2 + $0xb0] sm:$0xff]
      %v416 = vld [vmem:[#allocation2 + $0xc0] sm:$0xff]
      %v417 = vld [vmem:[#allocation2 + $0xc8] sm:$0xff]
      %v418 = vld [vmem:[#allocation2 + $0xd8] sm:$0xff]
      %v419 = vld [vmem:[#allocation2 + $0xe0] sm:$0xff]
      %v420 = vld [vmem:[#allocation2 + $0xf0] sm:$0xff]
      %v421 = vld [vmem:[#allocation2 + $0xf8] sm:$0xff]
      %v422 = vld [vmem:[#allocation2 + $0x108] sm:$0xff]
      %v423 = vld [vmem:[#allocation2 + $0x110] sm:$0xff]
      %v424 = vld [vmem:[#allocation2 + $0x120] sm:$0xff]
      %v425 = vld [vmem:[#allocation2 + $0x128] sm:$0xff]
      %v426 = vld [vmem:[#allocation2 + $0x138] sm:$0xff]
      %v427 = vld [vmem:[#allocation2 + $0x140] sm:$0xff]
      %v428 = vld [vmem:[#allocation2 + $0x150] sm:$0xff]
      %v429 = vld [vmem:[#allocation2 + $0x158] sm:$0xff]
      %v430 = vld [vmem:[#allocation2 + $0x168] sm:$0xff]
      %v431 = vld [vmem:[#allocation2 + $0x170] sm:$0xff]
      %v432 = vld [vmem:[%s1] sm:$0xf]
      %v433 = vld [vmem:[#allocation2 + $0x1] sm:$0xff]
      %v434 = vld [vmem:[#allocation2 + $0x9] sm:$0xff]
      %v435 = vld [vmem:[#allocation2 + $0x19] sm:$0xff]
      %v436 = vld [vmem:[#allocation2 + $0x21] sm:$0xff]
      %v437 = vld [vmem:[#allocation2 + $0x31] sm:$0xff]
      %v438 = vld [vmem:[#allocation2 + $0x39] sm:$0xff]
      %v439 = vld [vmem:[#allocation2 + $0x49] sm:$0xff]
      %v440 = vld [vmem:[#allocation2 + $0x51] sm:$0xff]
      %v441 = vld [vmem:[#allocation2 + $0x61] sm:$0xff]
      %v442 = vld [vmem:[#allocation2 + $0x69] sm:$0xff]
      %v443 = vld [vmem:[#allocation2 + $0x79] sm:$0xff]
      %v444 = vld [vmem:[#allocation2 + $0x81] sm:$0xff]
      %v445 = vld [vmem:[#allocation2 + $0x91] sm:$0xff]
      %v446 = vld [vmem:[#allocation2 + $0x99] sm:$0xff]
      %v447 = vld [vmem:[#allocation2 + $0xa9] sm:$0xff]
      %v448 = vld [vmem:[#allocation2 + $0xb1] sm:$0xff]
      %v449 = vld [vmem:[#allocation2 + $0xc1] sm:$0xff]
      %v450 = vld [vmem:[#allocation2 + $0xc9] sm:$0xff]
      %v451 = vld [vmem:[#allocation2 + $0xd9] sm:$0xff]
      %v452 = vld [vmem:[#allocation2 + $0xe1] sm:$0xff]
      %v453 = vld [vmem:[#allocation2 + $0xf1] sm:$0xff]
      %v454 = vld [vmem:[#allocation2 + $0xf9] sm:$0xff]
      %v455 = vld [vmem:[#allocation2 + $0x109] sm:$0xff]
      %v456 = vld [vmem:[#allocation2 + $0x111] sm:$0xff]
      %v457 = vld [vmem:[#allocation2 + $0x121] sm:$0xff]
      %v458 = vld [vmem:[#allocation2 + $0x129] sm:$0xff]
      %v459 = vld [vmem:[#allocation2 + $0x139] sm:$0xff]
      %v460 = vld [vmem:[#allocation2 + $0x141] sm:$0xff]
      %v461 = vld [vmem:[#allocation2 + $0x151] sm:$0xff]
      %v462 = vld [vmem:[#allocation2 + $0x159] sm:$0xff]
      %v463 = vld [vmem:[#allocation2 + $0x169] sm:$0xff]
      %v464 = vld [vmem:[#allocation2 + $0x171] sm:$0xff]
      %s465 = scalar_lea.vmem %s1, 4
      %v466 = vld [vmem:[%s465] sm:$0xf]
      %v468 = vsel %vm225, %v433, 0
      %v471 = vsel %vm225, %v434, 0
      %v474 = vsel %vm225, %v435, 0
      %v477 = vsel %vm225, %v436, 0
      %v480 = vsel %vm225, %v437, 0
      %v483 = vsel %vm225, %v438, 0
      %v486 = vsel %vm225, %v439, 0
      %v489 = vsel %vm225, %v440, 0
      %v492 = vsel %vm225, %v441, 0
      %v495 = vsel %vm225, %v442, 0
      %v498 = vsel %vm225, %v443, 0
      %v501 = vsel %vm225, %v444, 0
      %v504 = vsel %vm225, %v445, 0
      %v507 = vsel %vm225, %v446, 0
      %v510 = vsel %vm225, %v447, 0
      %v513 = vsel %vm225, %v448, 0
      %v516 = vsel %vm225, %v449, 0
      %v519 = vsel %vm225, %v450, 0
      %v522 = vsel %vm225, %v451, 0
      %v525 = vsel %vm225, %v452, 0
      %v528 = vsel %vm225, %v453, 0
      %v531 = vsel %vm225, %v454, 0
      %v534 = vsel %vm225, %v455, 0
      %v537 = vsel %vm225, %v456, 0
      %v540 = vsel %vm225, %v457, 0
      %v543 = vsel %vm225, %v458, 0
      %v546 = vsel %vm225, %v459, 0
      %v549 = vsel %vm225, %v460, 0
      %v552 = vsel %vm225, %v461, 0
      %v555 = vsel %vm225, %v462, 0
      %v558 = vsel %vm225, %v463, 0
      %v561 = vsel %vm225, %v464, 0
      %vm563 = vcmask 1043456
      %v565 = vsel %vm563, %v466, 0
      %567 = vmatprep.subr.mxu0 0.0
      %568 = vmatpush1.msra.mxu0 %v565
      %569 = vmatprep.subr.mxu0 0.0
      %570 = vmatpush1.msra.mxu0 0.0
      %571 = vmatprep.subr.mxu0 0.0
      %572 = vmatpush1.msra.mxu0 0.0
      %573 = vmatprep.subr.mxu0 0.0
      %574 = vmatpush1.msra.mxu0 0.0
      %575 = vmatprep.subr.mxu0 0.0
      %576 = vmatpush1.msra.mxu0 0.0
      %577 = vmatprep.subr.mxu0 0.0
      %578 = vmatpush1.msra.mxu0 0.0
      %579 = vmatprep.subr.mxu0 0.0
      %580 = vmatpush1.msra.mxu0 0.0
      %581 = vmatprep.subr.mxu0 0.0
      %582 = vmatpush1.msra.mxu0 0.0
      %583 = vmatprep.subr.mxu0 0.0
      %584 = vmatpush1.msra.mxu0 0.0
      %585 = vmatprep.subr.mxu0 0.0
      %586 = vmatpush1.msra.mxu0 0.0
      %587 = vmatprep.subr.mxu0 0.0
      %588 = vmatpush1.msra.mxu0 0.0
      %589 = vmatprep.subr.mxu0 0.0
      %590 = vmatpush1.msra.mxu0 0.0
      %591 = vmatprep.subr.mxu0 0.0
      %592 = vmatpush1.msra.mxu0 0.0
      %593 = vmatprep.subr.mxu0 0.0
      %594 = vmatpush1.msra.mxu0 0.0
      %595 = vmatprep.subr.mxu0 0.0
      %596 = vmatpush1.msra.mxu0 0.0
      %597 = vmatprep.subr.mxu0 0.0
      %598 = vmatpush1.msra.mxu0 0.0
      %599 = vmatprep.subr.mxu0 0.0
      %600 = vmatpush1.msra.mxu0 0.0
      %601 = vmatprep.subr.mxu0 0.0
      %602 = vmatpush1.msra.mxu0 0.0
      %603 = vmatprep.subr.mxu0 0.0
      %604 = vmatpush1.msra.mxu0 0.0
      %605 = vmatprep.subr.mxu0 0.0
      %606 = vmatpush1.msra.mxu0 0.0
      %607 = vmatprep.subr.mxu0 0.0
      %608 = vmatpush1.msra.mxu0 0.0
      %609 = vmatprep.subr.mxu0 0.0
      %610 = vmatpush1.msra.mxu0 0.0
      %611 = vmatprep.subr.mxu0 0.0
      %612 = vmatpush1.msra.mxu0 0.0
      %613 = vmatprep.subr.mxu0 0.0
      %614 = vmatpush1.msra.mxu0 0.0
      %615 = vmatprep.subr.mxu0 0.0
      %616 = vmatpush1.msra.mxu0 0.0
      %617 = vmatprep.subr.mxu0 0.0
      %618 = vmatpush1.msra.mxu0 0.0
      %619 = vmatprep.subr.mxu0 0.0
      %620 = vmatpush1.msra.mxu0 0.0
      %621 = vmatprep.subr.mxu0 0.0
      %622 = vmatpush1.msra.mxu0 0.0
      %623 = vmatprep.subr.mxu0 0.0
      %624 = vmatpush1.msra.mxu0 0.0
      %625 = vmatprep.subr.mxu0 0.0
      %626 = vmatpush1.msra.mxu0 0.0
      %627 = vmatprep.subr.mxu0 0.0
      %628 = vmatpush1.msra.mxu0 0.0
      %629 = vmatprep.subr.mxu0 0.0
      %630 = vmatpush1.msra.mxu0 0.0
      %631 = vmatprep.mubr.f32.mxu0 0.0
      %632 = vmatmul.mubr.f32.gmra.mrb[0].mxu0 %v468
      %v633 = vpop.f32.mrb[0].mxu0
      %v634 = vadd.f32 0.0, %v633
      %v635 = vpop.f32.mrb[0].mxu0
      %636 = vmatprep.mubr.f32.mxu0 0.0
      %637 = vmatmul.mubr.f32.gmra.mrb[0].mxu0 %v471
      %v638 = vpop.f32.mrb[0].mxu0
      %v639 = vadd.f32 0.0, %v638
      %v640 = vpop.f32.mrb[0].mxu0
      %641 = vmatprep.mubr.f32.mxu0 0.0
      %642 = vmatmul.mubr.f32.gmra.mrb[0].mxu0 %v474
      %v643 = vpop.f32.mrb[0].mxu0
      %v644 = vadd.f32 0.0, %v643
      %v645 = vpop.f32.mrb[0].mxu0
      %646 = vmatprep.mubr.f32.mxu0 0.0
      %647 = vmatmul.mubr.f32.gmra.mrb[0].mxu0 %v477
      %v648 = vpop.f32.mrb[0].mxu0
      %v649 = vadd.f32 0.0, %v648
      %v650 = vpop.f32.mrb[0].mxu0
      %651 = vmatprep.mubr.f32.mxu0 0.0
      %652 = vmatmul.mubr.f32.gmra.mrb[0].mxu0 %v480
      %v653 = vpop.f32.mrb[0].mxu0
      %v654 = vadd.f32 0.0, %v653
      %v655 = vpop.f32.mrb[0].mxu0
      %656 = vmatprep.mubr.f32.mxu0 0.0
      %657 = vmatmul.mubr.f32.gmra.mrb[0].mxu0 %v483
      %v658 = vpop.f32.mrb[0].mxu0
      %v659 = vadd.f32 0.0, %v658
      %v660 = vpop.f32.mrb[0].mxu0
      %661 = vmatprep.mubr.f32.mxu0 0.0
      %662 = vmatmul.mubr.f32.gmra.mrb[0].mxu0 %v486
      %v663 = vpop.f32.mrb[0].mxu0
      %v664 = vadd.f32 0.0, %v663
      %v665 = vpop.f32.mrb[0].mxu0
      %666 = vmatprep.mubr.f32.mxu0 0.0
      %667 = vmatmul.mubr.f32.gmra.mrb[0].mxu0 %v489
      %v668 = vpop.f32.mrb[0].mxu0
      %v669 = vadd.f32 0.0, %v668
      %v670 = vpop.f32.mrb[0].mxu0
      %671 = vmatprep.mubr.f32.mxu0 0.0
      %672 = vmatmul.mubr.f32.gmra.mrb[0].mxu0 %v492
      %v673 = vpop.f32.mrb[0].mxu0
      %v674 = vadd.f32 0.0, %v673
      %v675 = vpop.f32.mrb[0].mxu0
      %676 = vmatprep.mubr.f32.mxu0 0.0
      %677 = vmatmul.mubr.f32.gmra.mrb[0].mxu0 %v495
      %v678 = vpop.f32.mrb[0].mxu0
      %v679 = vadd.f32 0.0, %v678
      %v680 = vpop.f32.mrb[0].mxu0
      %681 = vmatprep.mubr.f32.mxu0 0.0
      %682 = vmatmul.mubr.f32.gmra.mrb[0].mxu0 %v498
      %v683 = vpop.f32.mrb[0].mxu0
      %v684 = vadd.f32 0.0, %v683
      %v685 = vpop.f32.mrb[0].mxu0
      %686 = vmatprep.mubr.f32.mxu0 0.0
      %687 = vmatmul.mubr.f32.gmra.mrb[0].mxu0 %v501
      %v688 = vpop.f32.mrb[0].mxu0
      %v689 = vadd.f32 0.0, %v688
      %v690 = vpop.f32.mrb[0].mxu0
      %691 = vmatprep.mubr.f32.mxu0 0.0
      %692 = vmatmul.mubr.f32.gmra.mrb[0].mxu0 %v504
      %v693 = vpop.f32.mrb[0].mxu0
      %v694 = vadd.f32 0.0, %v693
      %v695 = vpop.f32.mrb[0].mxu0
      %696 = vmatprep.mubr.f32.mxu0 0.0
      %697 = vmatmul.mubr.f32.gmra.mrb[0].mxu0 %v507
      %v698 = vpop.f32.mrb[0].mxu0
      %v699 = vadd.f32 0.0, %v698
      %v700 = vpop.f32.mrb[0].mxu0
      %701 = vmatprep.mubr.f32.mxu0 0.0
      %702 = vmatmul.mubr.f32.gmra.mrb[0].mxu0 %v510
      %v703 = vpop.f32.mrb[0].mxu0
      %v704 = vadd.f32 0.0, %v703
      %v705 = vpop.f32.mrb[0].mxu0
      %706 = vmatprep.mubr.f32.mxu0 0.0
      %707 = vmatmul.mubr.f32.gmra.mrb[0].mxu0 %v513
      %v708 = vpop.f32.mrb[0].mxu0
      %v709 = vadd.f32 0.0, %v708
      %v710 = vpop.f32.mrb[0].mxu0
      %711 = vmatprep.mubr.f32.mxu0 0.0
      %712 = vmatmul.mubr.f32.gmra.mrb[0].mxu0 %v516
      %v713 = vpop.f32.mrb[0].mxu0
      %v714 = vadd.f32 0.0, %v713
      %v715 = vpop.f32.mrb[0].mxu0
      %716 = vmatprep.mubr.f32.mxu0 0.0
      %717 = vmatmul.mubr.f32.gmra.mrb[0].mxu0 %v519
      %v718 = vpop.f32.mrb[0].mxu0
      %v719 = vadd.f32 0.0, %v718
      %v720 = vpop.f32.mrb[0].mxu0
      %721 = vmatprep.mubr.f32.mxu0 0.0
      %722 = vmatmul.mubr.f32.gmra.mrb[0].mxu0 %v522
      %v723 = vpop.f32.mrb[0].mxu0
      %v724 = vadd.f32 0.0, %v723
      %v725 = vpop.f32.mrb[0].mxu0
      %726 = vmatprep.mubr.f32.mxu0 0.0
      %727 = vmatmul.mubr.f32.gmra.mrb[0].mxu0 %v525
      %v728 = vpop.f32.mrb[0].mxu0
      %v729 = vadd.f32 0.0, %v728
      %v730 = vpop.f32.mrb[0].mxu0
      %731 = vmatprep.mubr.f32.mxu0 0.0
      %732 = vmatmul.mubr.f32.gmra.mrb[0].mxu0 %v528
      %v733 = vpop.f32.mrb[0].mxu0
      %v734 = vadd.f32 0.0, %v733
      %v735 = vpop.f32.mrb[0].mxu0
      %736 = vmatprep.mubr.f32.mxu0 0.0
      %737 = vmatmul.mubr.f32.gmra.mrb[0].mxu0 %v531
      %v738 = vpop.f32.mrb[0].mxu0
      %v739 = vadd.f32 0.0, %v738
      %v740 = vpop.f32.mrb[0].mxu0
      %741 = vmatprep.mubr.f32.mxu0 0.0
      %742 = vmatmul.mubr.f32.gmra.mrb[0].mxu0 %v534
      %v743 = vpop.f32.mrb[0].mxu0
      %v744 = vadd.f32 0.0, %v743
      %v745 = vpop.f32.mrb[0].mxu0
      %746 = vmatprep.mubr.f32.mxu0 0.0
      %747 = vmatmul.mubr.f32.gmra.mrb[0].mxu0 %v537
      %v748 = vpop.f32.mrb[0].mxu0
      %v749 = vadd.f32 0.0, %v748
      %v750 = vpop.f32.mrb[0].mxu0
      %751 = vmatprep.mubr.f32.mxu0 0.0
      %752 = vmatmul.mubr.f32.gmra.mrb[0].mxu0 %v540
      %v753 = vpop.f32.mrb[0].mxu0
      %v754 = vadd.f32 0.0, %v753
      %v755 = vpop.f32.mrb[0].mxu0
      %756 = vmatprep.mubr.f32.mxu0 0.0
      %757 = vmatmul.mubr.f32.gmra.mrb[0].mxu0 %v543
      %v758 = vpop.f32.mrb[0].mxu0
      %v759 = vadd.f32 0.0, %v758
      %v760 = vpop.f32.mrb[0].mxu0
      %761 = vmatprep.mubr.f32.mxu0 0.0
      %762 = vmatmul.mubr.f32.gmra.mrb[0].mxu0 %v546
      %v763 = vpop.f32.mrb[0].mxu0
      %v764 = vadd.f32 0.0, %v763
      %v765 = vpop.f32.mrb[0].mxu0
      %766 = vmatprep.mubr.f32.mxu0 0.0
      %767 = vmatmul.mubr.f32.gmra.mrb[0].mxu0 %v549
      %v768 = vpop.f32.mrb[0].mxu0
      %v769 = vadd.f32 0.0, %v768
      %v770 = vpop.f32.mrb[0].mxu0
      %771 = vmatprep.mubr.f32.mxu0 0.0
      %772 = vmatmul.mubr.f32.gmra.mrb[0].mxu0 %v552
      %v773 = vpop.f32.mrb[0].mxu0
      %v774 = vadd.f32 0.0, %v773
      %v775 = vpop.f32.mrb[0].mxu0
      %776 = vmatprep.mubr.f32.mxu0 0.0
      %777 = vmatmul.mubr.f32.gmra.mrb[0].mxu0 %v555
      %v778 = vpop.f32.mrb[0].mxu0
      %v779 = vadd.f32 0.0, %v778
      %v780 = vpop.f32.mrb[0].mxu0
      %781 = vmatprep.mubr.f32.mxu0 0.0
      %782 = vmatmul.mubr.f32.gmra.mrb[0].mxu0 %v558
      %v783 = vpop.f32.mrb[0].mxu0
      %v784 = vadd.f32 0.0, %v783
      %v785 = vpop.f32.mrb[0].mxu0
      %786 = vmatprep.mubr.f32.mxu0 0.0
      %787 = vmatmul.mubr.f32.gmra.mrb[0].mxu0 %v561
      %v788 = vpop.f32.mrb[0].mxu0
      %v789 = vadd.f32 0.0, %v788
      %v790 = vpop.f32.mrb[0].mxu0
      %791 = vdwg.mxu0
      %v793 = vsel %vm225, %v400, 0
      %v796 = vsel %vm225, %v401, 0
      %v799 = vsel %vm225, %v402, 0
      %v802 = vsel %vm225, %v403, 0
      %v805 = vsel %vm225, %v404, 0
      %v808 = vsel %vm225, %v405, 0
      %v811 = vsel %vm225, %v406, 0
      %v814 = vsel %vm225, %v407, 0
      %v817 = vsel %vm225, %v408, 0
      %v820 = vsel %vm225, %v409, 0
      %v823 = vsel %vm225, %v410, 0
      %v826 = vsel %vm225, %v411, 0
      %v829 = vsel %vm225, %v412, 0
      %v832 = vsel %vm225, %v413, 0
      %v835 = vsel %vm225, %v414, 0
      %v838 = vsel %vm225, %v415, 0
      %v841 = vsel %vm225, %v416, 0
      %v844 = vsel %vm225, %v417, 0
      %v847 = vsel %vm225, %v418, 0
      %v850 = vsel %vm225, %v419, 0
      %v853 = vsel %vm225, %v420, 0
      %v856 = vsel %vm225, %v421, 0
      %v859 = vsel %vm225, %v422, 0
      %v862 = vsel %vm225, %v423, 0
      %v865 = vsel %vm225, %v424, 0
      %v868 = vsel %vm225, %v425, 0
      %v871 = vsel %vm225, %v426, 0
      %v874 = vsel %vm225, %v427, 0
      %v877 = vsel %vm225, %v428, 0
      %v880 = vsel %vm225, %v429, 0
      %v883 = vsel %vm225, %v430, 0
      %v886 = vsel %vm225, %v431, 0
      %v889 = vsel %vm563, %v432, 0
      %891 = vmatprep.subr.mxu0 0.0
      %892 = vmatpush1.msra.mxu0 %v889
      %893 = vmatprep.subr.mxu0 0.0
      %894 = vmatpush1.msra.mxu0 0.0
      %895 = vmatprep.subr.mxu0 0.0
      %896 = vmatpush1.msra.mxu0 0.0
      %897 = vmatprep.subr.mxu0 0.0
      %898 = vmatpush1.msra.mxu0 0.0
      %899 = vmatprep.subr.mxu0 0.0
      %900 = vmatpush1.msra.mxu0 0.0
      %901 = vmatprep.subr.mxu0 0.0
      %902 = vmatpush1.msra.mxu0 0.0
      %903 = vmatprep.subr.mxu0 0.0
      %904 = vmatpush1.msra.mxu0 0.0
      %905 = vmatprep.subr.mxu0 0.0
      %906 = vmatpush1.msra.mxu0 0.0
      %907 = vmatprep.subr.mxu0 0.0
      %908 = vmatpush1.msra.mxu0 0.0
      %909 = vmatprep.subr.mxu0 0.0
      %910 = vmatpush1.msra.mxu0 0.0
      %911 = vmatprep.subr.mxu0 0.0
      %912 = vmatpush1.msra.mxu0 0.0
      %913 = vmatprep.subr.mxu0 0.0
      %914 = vmatpush1.msra.mxu0 0.0
      %915 = vmatprep.subr.mxu0 0.0
      %916 = vmatpush1.msra.mxu0 0.0
      %917 = vmatprep.subr.mxu0 0.0
      %918 = vmatpush1.msra.mxu0 0.0
      %919 = vmatprep.subr.mxu0 0.0
      %920 = vmatpush1.msra.mxu0 0.0
      %921 = vmatprep.subr.mxu0 0.0
      %922 = vmatpush1.msra.mxu0 0.0
      %923 = vmatprep.subr.mxu0 0.0
      %924 = vmatpush1.msra.mxu0 0.0
      %925 = vmatprep.subr.mxu0 0.0
      %926 = vmatpush1.msra.mxu0 0.0
      %927 = vmatprep.subr.mxu0 0.0
      %928 = vmatpush1.msra.mxu0 0.0
      %929 = vmatprep.subr.mxu0 0.0
      %930 = vmatpush1.msra.mxu0 0.0
      %931 = vmatprep.subr.mxu0 0.0
      %932 = vmatpush1.msra.mxu0 0.0
      %933 = vmatprep.subr.mxu0 0.0
      %934 = vmatpush1.msra.mxu0 0.0
      %935 = vmatprep.subr.mxu0 0.0
      %936 = vmatpush1.msra.mxu0 0.0
      %937 = vmatprep.subr.mxu0 0.0
      %938 = vmatpush1.msra.mxu0 0.0
      %939 = vmatprep.subr.mxu0 0.0
      %940 = vmatpush1.msra.mxu0 0.0
      %941 = vmatprep.subr.mxu0 0.0
      %942 = vmatpush1.msra.mxu0 0.0
      %943 = vmatprep.subr.mxu0 0.0
      %944 = vmatpush1.msra.mxu0 0.0
      %945 = vmatprep.subr.mxu0 0.0
      %946 = vmatpush1.msra.mxu0 0.0
      %947 = vmatprep.subr.mxu0 0.0
      %948 = vmatpush1.msra.mxu0 0.0
      %949 = vmatprep.subr.mxu0 0.0
      %950 = vmatpush1.msra.mxu0 0.0
      %951 = vmatprep.subr.mxu0 0.0
      %952 = vmatpush1.msra.mxu0 0.0
      %953 = vmatprep.subr.mxu0 0.0
      %954 = vmatpush1.msra.mxu0 0.0
      %955 = vmatprep.mubr.f32.mxu0 0.0
      %956 = vmatmul.mubr.f32.gmra.mrb[0].mxu0 %v793
      %v957 = vpop.f32.mrb[0].mxu0
      %v958 = vadd.f32 %v634, %v957
      %v959 = vpop.f32.mrb[0].mxu0
      %960 = vmatprep.mubr.f32.mxu0 0.0
      %961 = vmatmul.mubr.f32.gmra.mrb[0].mxu0 %v796
      %v962 = vpop.f32.mrb[0].mxu0
      %v963 = vadd.f32 %v639, %v962
      %v964 = vpop.f32.mrb[0].mxu0
      %965 = vmatprep.mubr.f32.mxu0 0.0
      %966 = vmatmul.mubr.f32.gmra.mrb[0].mxu0 %v799
      %v967 = vpop.f32.mrb[0].mxu0
      %v968 = vadd.f32 %v644, %v967
      %v969 = vpop.f32.mrb[0].mxu0
      %970 = vmatprep.mubr.f32.mxu0 0.0
      %971 = vmatmul.mubr.f32.gmra.mrb[0].mxu0 %v802
      %v972 = vpop.f32.mrb[0].mxu0
      %v973 = vadd.f32 %v649, %v972
      %v974 = vpop.f32.mrb[0].mxu0
      %975 = vmatprep.mubr.f32.mxu0 0.0
      %976 = vmatmul.mubr.f32.gmra.mrb[0].mxu0 %v805
      %v977 = vpop.f32.mrb[0].mxu0
      %v978 = vadd.f32 %v654, %v977
      %v979 = vpop.f32.mrb[0].mxu0
      %980 = vmatprep.mubr.f32.mxu0 0.0
      %981 = vmatmul.mubr.f32.gmra.mrb[0].mxu0 %v808
      %v982 = vpop.f32.mrb[0].mxu0
      %v983 = vadd.f32 %v659, %v982
      %v984 = vpop.f32.mrb[0].mxu0
      %985 = vmatprep.mubr.f32.mxu0 0.0
      %986 = vmatmul.mubr.f32.gmra.mrb[0].mxu0 %v811
      %v987 = vpop.f32.mrb[0].mxu0
      %v988 = vadd.f32 %v664, %v987
      %v989 = vpop.f32.mrb[0].mxu0
      %990 = vmatprep.mubr.f32.mxu0 0.0
      %991 = vmatmul.mubr.f32.gmra.mrb[0].mxu0 %v814
      %v992 = vpop.f32.mrb[0].mxu0
      %v993 = vadd.f32 %v669, %v992
      %v994 = vpop.f32.mrb[0].mxu0
      %995 = vmatprep.mubr.f32.mxu0 0.0
      %996 = vmatmul.mubr.f32.gmra.mrb[0].mxu0 %v817
      %v997 = vpop.f32.mrb[0].mxu0
      %v998 = vadd.f32 %v674, %v997
      %v999 = vpop.f32.mrb[0].mxu0
      %1000 = vmatprep.mubr.f32.mxu0 0.0
      %1001 = vmatmul.mubr.f32.gmra.mrb[0].mxu0 %v820
      %v1002 = vpop.f32.mrb[0].mxu0
      %v1003 = vadd.f32 %v679, %v1002
      %v1004 = vpop.f32.mrb[0].mxu0
      %1005 = vmatprep.mubr.f32.mxu0 0.0
      %1006 = vmatmul.mubr.f32.gmra.mrb[0].mxu0 %v823
      %v1007 = vpop.f32.mrb[0].mxu0
      %v1008 = vadd.f32 %v684, %v1007
      %v1009 = vpop.f32.mrb[0].mxu0
      %1010 = vmatprep.mubr.f32.mxu0 0.0
      %1011 = vmatmul.mubr.f32.gmra.mrb[0].mxu0 %v826
      %v1012 = vpop.f32.mrb[0].mxu0
      %v1013 = vadd.f32 %v689, %v1012
      %v1014 = vpop.f32.mrb[0].mxu0
      %1015 = vmatprep.mubr.f32.mxu0 0.0
      %1016 = vmatmul.mubr.f32.gmra.mrb[0].mxu0 %v829
      %v1017 = vpop.f32.mrb[0].mxu0
      %v1018 = vadd.f32 %v694, %v1017
      %v1019 = vpop.f32.mrb[0].mxu0
      %1020 = vmatprep.mubr.f32.mxu0 0.0
      %1021 = vmatmul.mubr.f32.gmra.mrb[0].mxu0 %v832
      %v1022 = vpop.f32.mrb[0].mxu0
      %v1023 = vadd.f32 %v699, %v1022
      %v1024 = vpop.f32.mrb[0].mxu0
      %1025 = vmatprep.mubr.f32.mxu0 0.0
      %1026 = vmatmul.mubr.f32.gmra.mrb[0].mxu0 %v835
      %v1027 = vpop.f32.mrb[0].mxu0
      %v1028 = vadd.f32 %v704, %v1027
      %v1029 = vpop.f32.mrb[0].mxu0
      %1030 = vmatprep.mubr.f32.mxu0 0.0
      %1031 = vmatmul.mubr.f32.gmra.mrb[0].mxu0 %v838
      %v1032 = vpop.f32.mrb[0].mxu0
      %v1033 = vadd.f32 %v709, %v1032
      %v1034 = vpop.f32.mrb[0].mxu0
      %1035 = vmatprep.mubr.f32.mxu0 0.0
      %1036 = vmatmul.mubr.f32.gmra.mrb[0].mxu0 %v841
      %v1037 = vpop.f32.mrb[0].mxu0
      %v1038 = vadd.f32 %v714, %v1037
      %v1039 = vpop.f32.mrb[0].mxu0
      %1040 = vmatprep.mubr.f32.mxu0 0.0
      %1041 = vmatmul.mubr.f32.gmra.mrb[0].mxu0 %v844
      %v1042 = vpop.f32.mrb[0].mxu0
      %v1043 = vadd.f32 %v719, %v1042
      %v1044 = vpop.f32.mrb[0].mxu0
      %1045 = vmatprep.mubr.f32.mxu0 0.0
      %1046 = vmatmul.mubr.f32.gmra.mrb[0].mxu0 %v847
      %v1047 = vpop.f32.mrb[0].mxu0
      %v1048 = vadd.f32 %v724, %v1047
      %v1049 = vpop.f32.mrb[0].mxu0
      %1050 = vmatprep.mubr.f32.mxu0 0.0
      %1051 = vmatmul.mubr.f32.gmra.mrb[0].mxu0 %v850
      %v1052 = vpop.f32.mrb[0].mxu0
      %v1053 = vadd.f32 %v729, %v1052
      %v1054 = vpop.f32.mrb[0].mxu0
      %1055 = vmatprep.mubr.f32.mxu0 0.0
      %1056 = vmatmul.mubr.f32.gmra.mrb[0].mxu0 %v853
      %v1057 = vpop.f32.mrb[0].mxu0
      %v1058 = vadd.f32 %v734, %v1057
      %v1059 = vpop.f32.mrb[0].mxu0
      %1060 = vmatprep.mubr.f32.mxu0 0.0
      %1061 = vmatmul.mubr.f32.gmra.mrb[0].mxu0 %v856
      %v1062 = vpop.f32.mrb[0].mxu0
      %v1063 = vadd.f32 %v739, %v1062
      %v1064 = vpop.f32.mrb[0].mxu0
      %1065 = vmatprep.mubr.f32.mxu0 0.0
      %1066 = vmatmul.mubr.f32.gmra.mrb[0].mxu0 %v859
      %v1067 = vpop.f32.mrb[0].mxu0
      %v1068 = vadd.f32 %v744, %v1067
      %v1069 = vpop.f32.mrb[0].mxu0
      %1070 = vmatprep.mubr.f32.mxu0 0.0
      %1071 = vmatmul.mubr.f32.gmra.mrb[0].mxu0 %v862
      %v1072 = vpop.f32.mrb[0].mxu0
      %v1073 = vadd.f32 %v749, %v1072
      %v1074 = vpop.f32.mrb[0].mxu0
      %1075 = vmatprep.mubr.f32.mxu0 0.0
      %1076 = vmatmul.mubr.f32.gmra.mrb[0].mxu0 %v865
      %v1077 = vpop.f32.mrb[0].mxu0
      %v1078 = vadd.f32 %v754, %v1077
      %v1079 = vpop.f32.mrb[0].mxu0
      %1080 = vmatprep.mubr.f32.mxu0 0.0
      %1081 = vmatmul.mubr.f32.gmra.mrb[0].mxu0 %v868
      %v1082 = vpop.f32.mrb[0].mxu0
      %v1083 = vadd.f32 %v759, %v1082
      %v1084 = vpop.f32.mrb[0].mxu0
      %1085 = vmatprep.mubr.f32.mxu0 0.0
      %1086 = vmatmul.mubr.f32.gmra.mrb[0].mxu0 %v871
      %v1087 = vpop.f32.mrb[0].mxu0
      %v1088 = vadd.f32 %v764, %v1087
      %v1089 = vpop.f32.mrb[0].mxu0
      %1090 = vmatprep.mubr.f32.mxu0 0.0
      %1091 = vmatmul.mubr.f32.gmra.mrb[0].mxu0 %v874
      %v1092 = vpop.f32.mrb[0].mxu0
      %v1093 = vadd.f32 %v769, %v1092
      %v1094 = vpop.f32.mrb[0].mxu0
      %1095 = vmatprep.mubr.f32.mxu0 0.0
      %1096 = vmatmul.mubr.f32.gmra.mrb[0].mxu0 %v877
      %v1097 = vpop.f32.mrb[0].mxu0
      %v1098 = vadd.f32 %v774, %v1097
      %v1099 = vpop.f32.mrb[0].mxu0
      %1100 = vmatprep.mubr.f32.mxu0 0.0
      %1101 = vmatmul.mubr.f32.gmra.mrb[0].mxu0 %v880
      %v1102 = vpop.f32.mrb[0].mxu0
      %v1103 = vadd.f32 %v779, %v1102
      %v1104 = vpop.f32.mrb[0].mxu0
      %1105 = vmatprep.mubr.f32.mxu0 0.0
      %1106 = vmatmul.mubr.f32.gmra.mrb[0].mxu0 %v883
      %v1107 = vpop.f32.mrb[0].mxu0
      %v1108 = vadd.f32 %v784, %v1107
      %v1109 = vpop.f32.mrb[0].mxu0
      %1110 = vmatprep.mubr.f32.mxu0 0.0
      %1111 = vmatmul.mubr.f32.gmra.mrb[0].mxu0 %v886
      %v1112 = vpop.f32.mrb[0].mxu0
      %v1113 = vadd.f32 %v789, %v1112
      %v1114 = vpop.f32.mrb[0].mxu0
      %1115 = vdwg.mxu0
      %v1116 = vld [vmem:[#allocation2 + $0x2] sm:$0xff]
      %v1117 = vld [vmem:[#allocation2 + $0xa] sm:$0xff]
      %v1118 = vld [vmem:[#allocation2 + $0x1a] sm:$0xff]
      %v1119 = vld [vmem:[#allocation2 + $0x22] sm:$0xff]
      %v1120 = vld [vmem:[#allocation2 + $0x32] sm:$0xff]
      %v1121 = vld [vmem:[#allocation2 + $0x3a] sm:$0xff]
      %v1122 = vld [vmem:[#allocation2 + $0x4a] sm:$0xff]
      %v1123 = vld [vmem:[#allocation2 + $0x52] sm:$0xff]
      %v1124 = vld [vmem:[#allocation2 + $0x62] sm:$0xff]
      %v1125 = vld [vmem:[#allocation2 + $0x6a] sm:$0xff]
      %v1126 = vld [vmem:[#allocation2 + $0x7a] sm:$0xff]
      %v1127 = vld [vmem:[#allocation2 + $0x82] sm:$0xff]
      %v1128 = vld [vmem:[#allocation2 + $0x92] sm:$0xff]
      %v1129 = vld [vmem:[#allocation2 + $0x9a] sm:$0xff]
      %v1130 = vld [vmem:[#allocation2 + $0xaa] sm:$0xff]
      %v1131 = vld [vmem:[#allocation2 + $0xb2] sm:$0xff]
      %v1132 = vld [vmem:[#allocation2 + $0xc2] sm:$0xff]
      %v1133 = vld [vmem:[#allocation2 + $0xca] sm:$0xff]
      %v1134 = vld [vmem:[#allocation2 + $0xda] sm:$0xff]
      %v1135 = vld [vmem:[#allocation2 + $0xe2] sm:$0xff]
      %v1136 = vld [vmem:[#allocation2 + $0xf2] sm:$0xff]
      %v1137 = vld [vmem:[#allocation2 + $0xfa] sm:$0xff]
      %v1138 = vld [vmem:[#allocation2 + $0x10a] sm:$0xff]
      %v1139 = vld [vmem:[#allocation2 + $0x112] sm:$0xff]
      %v1140 = vld [vmem:[#allocation2 + $0x122] sm:$0xff]
      %v1141 = vld [vmem:[#allocation2 + $0x12a] sm:$0xff]
      %v1142 = vld [vmem:[#allocation2 + $0x13a] sm:$0xff]
      %v1143 = vld [vmem:[#allocation2 + $0x142] sm:$0xff]
      %v1144 = vld [vmem:[#allocation2 + $0x152] sm:$0xff]
      %v1145 = vld [vmem:[#allocation2 + $0x15a] sm:$0xff]
      %v1146 = vld [vmem:[#allocation2 + $0x16a] sm:$0xff]
      %v1147 = vld [vmem:[#allocation2 + $0x172] sm:$0xff]
      %s1148 = scalar_lea.vmem %s1, 8
      %v1149 = vld [vmem:[%s1148] sm:$0xf]
      %v1151 = vsel %vm225, %v1116, 0
      %v1154 = vsel %vm225, %v1117, 0
      %v1157 = vsel %vm225, %v1118, 0
      %v1160 = vsel %vm225, %v1119, 0
      %v1163 = vsel %vm225, %v1120, 0
      %v1166 = vsel %vm225, %v1121, 0
      %v1169 = vsel %vm225, %v1122, 0
      %v1172 = vsel %vm225, %v1123, 0
      %v1175 = vsel %vm225, %v1124, 0
      %v1178 = vsel %vm225, %v1125, 0
      %v1181 = vsel %vm225, %v1126, 0
      %v1184 = vsel %vm225, %v1127, 0
      %v1187 = vsel %vm225, %v1128, 0
      %v1190 = vsel %vm225, %v1129, 0
      %v1193 = vsel %vm225, %v1130, 0
      %v1196 = vsel %vm225, %v1131, 0
      %v1199 = vsel %vm225, %v1132, 0
      %v1202 = vsel %vm225, %v1133, 0
      %v1205 = vsel %vm225, %v1134, 0
      %v1208 = vsel %vm225, %v1135, 0
      %v1211 = vsel %vm225, %v1136, 0
      %v1214 = vsel %vm225, %v1137, 0
      %v1217 = vsel %vm225, %v1138, 0
      %v1220 = vsel %vm225, %v1139, 0
      %v1223 = vsel %vm225, %v1140, 0
      %v1226 = vsel %vm225, %v1141, 0
      %v1229 = vsel %vm225, %v1142, 0
      %v1232 = vsel %vm225, %v1143, 0
      %v1235 = vsel %vm225, %v1144, 0
      %v1238 = vsel %vm225, %v1145, 0
      %v1241 = vsel %vm225, %v1146, 0
      %v1244 = vsel %vm225, %v1147, 0
      %v1247 = vsel %vm563, %v1149, 0
      %1249 = vmatprep.subr.mxu0 0.0
      %1250 = vmatpush1.msra.mxu0 %v1247
      %1251 = vmatprep.subr.mxu0 0.0
      %1252 = vmatpush1.msra.mxu0 0.0
      %1253 = vmatprep.subr.mxu0 0.0
      %1254 = vmatpush1.msra.mxu0 0.0
      %1255 = vmatprep.subr.mxu0 0.0
      %1256 = vmatpush1.msra.mxu0 0.0
      %1257 = vmatprep.subr.mxu0 0.0
      %1258 = vmatpush1.msra.mxu0 0.0
      %1259 = vmatprep.subr.mxu0 0.0
      %1260 = vmatpush1.msra.mxu0 0.0
      %1261 = vmatprep.subr.mxu0 0.0
      %1262 = vmatpush1.msra.mxu0 0.0
      %1263 = vmatprep.subr.mxu0 0.0
      %1264 = vmatpush1.msra.mxu0 0.0
      %1265 = vmatprep.subr.mxu0 0.0
      %1266 = vmatpush1.msra.mxu0 0.0
      %1267 = vmatprep.subr.mxu0 0.0
      %1268 = vmatpush1.msra.mxu0 0.0
      %1269 = vmatprep.subr.mxu0 0.0
      %1270 = vmatpush1.msra.mxu0 0.0
      %1271 = vmatprep.subr.mxu0 0.0
      %1272 = vmatpush1.msra.mxu0 0.0
      %1273 = vmatprep.subr.mxu0 0.0
      %1274 = vmatpush1.msra.mxu0 0.0
      %1275 = vmatprep.subr.mxu0 0.0
      %1276 = vmatpush1.msra.mxu0 0.0
      %1277 = vmatprep.subr.mxu0 0.0
      %1278 = vmatpush1.msra.mxu0 0.0
      %1279 = vmatprep.subr.mxu0 0.0
      %1280 = vmatpush1.msra.mxu0 0.0
      %1281 = vmatprep.subr.mxu0 0.0
      %1282 = vmatpush1.msra.mxu0 0.0
      %1283 = vmatprep.subr.mxu0 0.0
      %1284 = vmatpush1.msra.mxu0 0.0
      %1285 = vmatprep.subr.mxu0 0.0
      %1286 = vmatpush1.msra.mxu0 0.0
      %1287 = vmatprep.subr.mxu0 0.0
      %1288 = vmatpush1.msra.mxu0 0.0
      %1289 = vmatprep.subr.mxu0 0.0
      %1290 = vmatpush1.msra.mxu0 0.0
      %1291 = vmatprep.subr.mxu0 0.0
      %1292 = vmatpush1.msra.mxu0 0.0
      %1293 = vmatprep.subr.mxu0 0.0
      %1294 = vmatpush1.msra.mxu0 0.0
      %1295 = vmatprep.subr.mxu0 0.0
      %1296 = vmatpush1.msra.mxu0 0.0
      %1297 = vmatprep.subr.mxu0 0.0
      %1298 = vmatpush1.msra.mxu0 0.0
      %1299 = vmatprep.subr.mxu0 0.0
      %1300 = vmatpush1.msra.mxu0 0.0
      %1301 = vmatprep.subr.mxu0 0.0
      %1302 = vmatpush1.msra.mxu0 0.0
      %1303 = vmatprep.subr.mxu0 0.0
      %1304 = vmatpush1.msra.mxu0 0.0
      %1305 = vmatprep.subr.mxu0 0.0
      %1306 = vmatpush1.msra.mxu0 0.0
      %1307 = vmatprep.subr.mxu0 0.0
      %1308 = vmatpush1.msra.mxu0 0.0
      %1309 = vmatprep.subr.mxu0 0.0
      %1310 = vmatpush1.msra.mxu0 0.0
      %1311 = vmatprep.subr.mxu0 0.0
      %1312 = vmatpush1.msra.mxu0 0.0
      %1313 = vmatprep.mubr.f32.mxu0 0.0
      %1314 = vmatmul.mubr.f32.gmra.mrb[0].mxu0 %v1151
      %v1315 = vpop.f32.mrb[0].mxu0
      %v1316 = vadd.f32 0.0, %v1315
      %v1317 = vpop.f32.mrb[0].mxu0
      %1318 = vmatprep.mubr.f32.mxu0 0.0
      %1319 = vmatmul.mubr.f32.gmra.mrb[0].mxu0 %v1154
      %v1320 = vpop.f32.mrb[0].mxu0
      %v1321 = vadd.f32 0.0, %v1320
      %v1322 = vpop.f32.mrb[0].mxu0
      %1323 = vmatprep.mubr.f32.mxu0 0.0
      %1324 = vmatmul.mubr.f32.gmra.mrb[0].mxu0 %v1157
      %v1325 = vpop.f32.mrb[0].mxu0
      %v1326 = vadd.f32 0.0, %v1325
      %v1327 = vpop.f32.mrb[0].mxu0
      %1328 = vmatprep.mubr.f32.mxu0 0.0
      %1329 = vmatmul.mubr.f32.gmra.mrb[0].mxu0 %v1160
      %v1330 = vpop.f32.mrb[0].mxu0
      %v1331 = vadd.f32 0.0, %v1330
      %v1332 = vpop.f32.mrb[0].mxu0
      %1333 = vmatprep.mubr.f32.mxu0 0.0
      %1334 = vmatmul.mubr.f32.gmra.mrb[0].mxu0 %v1163
      %v1335 = vpop.f32.mrb[0].mxu0
      %v1336 = vadd.f32 0.0, %v1335
      %v1337 = vpop.f32.mrb[0].mxu0
      %1338 = vmatprep.mubr.f32.mxu0 0.0
      %1339 = vmatmul.mubr.f32.gmra.mrb[0].mxu0 %v1166
      %v1340 = vpop.f32.mrb[0].mxu0
      %v1341 = vadd.f32 0.0, %v1340
      %v1342 = vpop.f32.mrb[0].mxu0
      %1343 = vmatprep.mubr.f32.mxu0 0.0
      %1344 = vmatmul.mubr.f32.gmra.mrb[0].mxu0 %v1169
      %v1345 = vpop.f32.mrb[0].mxu0
      %v1346 = vadd.f32 0.0, %v1345
      %v1347 = vpop.f32.mrb[0].mxu0
      %1348 = vmatprep.mubr.f32.mxu0 0.0
      %1349 = vmatmul.mubr.f32.gmra.mrb[0].mxu0 %v1172
      %v1350 = vpop.f32.mrb[0].mxu0
      %v1351 = vadd.f32 0.0, %v1350
      %v1352 = vpop.f32.mrb[0].mxu0
      %1353 = vmatprep.mubr.f32.mxu0 0.0
      %1354 = vmatmul.mubr.f32.gmra.mrb[0].mxu0 %v1175
      %v1355 = vpop.f32.mrb[0].mxu0
      %v1356 = vadd.f32 0.0, %v1355
      %v1357 = vpop.f32.mrb[0].mxu0
      %1358 = vmatprep.mubr.f32.mxu0 0.0
      %1359 = vmatmul.mubr.f32.gmra.mrb[0].mxu0 %v1178
      %v1360 = vpop.f32.mrb[0].mxu0
      %v1361 = vadd.f32 0.0, %v1360
      %v1362 = vpop.f32.mrb[0].mxu0
      %1363 = vmatprep.mubr.f32.mxu0 0.0
      %1364 = vmatmul.mubr.f32.gmra.mrb[0].mxu0 %v1181
      %v1365 = vpop.f32.mrb[0].mxu0
      %v1366 = vadd.f32 0.0, %v1365
      %v1367 = vpop.f32.mrb[0].mxu0
      %1368 = vmatprep.mubr.f32.mxu0 0.0
      %1369 = vmatmul.mubr.f32.gmra.mrb[0].mxu0 %v1184
      %v1370 = vpop.f32.mrb[0].mxu0
      %v1371 = vadd.f32 0.0, %v1370
      %v1372 = vpop.f32.mrb[0].mxu0
      %1373 = vmatprep.mubr.f32.mxu0 0.0
      %1374 = vmatmul.mubr.f32.gmra.mrb[0].mxu0 %v1187
      %v1375 = vpop.f32.mrb[0].mxu0
      %v1376 = vadd.f32 0.0, %v1375
      %v1377 = vpop.f32.mrb[0].mxu0
      %1378 = vmatprep.mubr.f32.mxu0 0.0
      %1379 = vmatmul.mubr.f32.gmra.mrb[0].mxu0 %v1190
      %v1380 = vpop.f32.mrb[0].mxu0
      %v1381 = vadd.f32 0.0, %v1380
      %v1382 = vpop.f32.mrb[0].mxu0
      %1383 = vmatprep.mubr.f32.mxu0 0.0
      %1384 = vmatmul.mubr.f32.gmra.mrb[0].mxu0 %v1193
      %v1385 = vpop.f32.mrb[0].mxu0
      %v1386 = vadd.f32 0.0, %v1385
      %v1387 = vpop.f32.mrb[0].mxu0
      %1388 = vmatprep.mubr.f32.mxu0 0.0
      %1389 = vmatmul.mubr.f32.gmra.mrb[0].mxu0 %v1196
      %v1390 = vpop.f32.mrb[0].mxu0
      %v1391 = vadd.f32 0.0, %v1390
      %v1392 = vpop.f32.mrb[0].mxu0
      %1393 = vmatprep.mubr.f32.mxu0 0.0
      %1394 = vmatmul.mubr.f32.gmra.mrb[0].mxu0 %v1199
      %v1395 = vpop.f32.mrb[0].mxu0
      %v1396 = vadd.f32 0.0, %v1395
      %v1397 = vpop.f32.mrb[0].mxu0
      %1398 = vmatprep.mubr.f32.mxu0 0.0
      %1399 = vmatmul.mubr.f32.gmra.mrb[0].mxu0 %v1202
      %v1400 = vpop.f32.mrb[0].mxu0
      %v1401 = vadd.f32 0.0, %v1400
      %v1402 = vpop.f32.mrb[0].mxu0
      %1403 = vmatprep.mubr.f32.mxu0 0.0
      %1404 = vmatmul.mubr.f32.gmra.mrb[0].mxu0 %v1205
      %v1405 = vpop.f32.mrb[0].mxu0
      %v1406 = vadd.f32 0.0, %v1405
      %v1407 = vpop.f32.mrb[0].mxu0
      %1408 = vmatprep.mubr.f32.mxu0 0.0
      %1409 = vmatmul.mubr.f32.gmra.mrb[0].mxu0 %v1208
      %v1410 = vpop.f32.mrb[0].mxu0
      %v1411 = vadd.f32 0.0, %v1410
      %v1412 = vpop.f32.mrb[0].mxu0
      %1413 = vmatprep.mubr.f32.mxu0 0.0
      %1414 = vmatmul.mubr.f32.gmra.mrb[0].mxu0 %v1211
      %v1415 = vpop.f32.mrb[0].mxu0
      %v1416 = vadd.f32 0.0, %v1415
      %v1417 = vpop.f32.mrb[0].mxu0
      %1418 = vmatprep.mubr.f32.mxu0 0.0
      %1419 = vmatmul.mubr.f32.gmra.mrb[0].mxu0 %v1214
      %v1420 = vpop.f32.mrb[0].mxu0
      %v1421 = vadd.f32 0.0, %v1420
      %v1422 = vpop.f32.mrb[0].mxu0
      %1423 = vmatprep.mubr.f32.mxu0 0.0
      %1424 = vmatmul.mubr.f32.gmra.mrb[0].mxu0 %v1217
      %v1425 = vpop.f32.mrb[0].mxu0
      %v1426 = vadd.f32 0.0, %v1425
      %v1427 = vpop.f32.mrb[0].mxu0
      %1428 = vmatprep.mubr.f32.mxu0 0.0
      %1429 = vmatmul.mubr.f32.gmra.mrb[0].mxu0 %v1220
      %v1430 = vpop.f32.mrb[0].mxu0
      %v1431 = vadd.f32 0.0, %v1430
      %v1432 = vpop.f32.mrb[0].mxu0
      %1433 = vmatprep.mubr.f32.mxu0 0.0
      %1434 = vmatmul.mubr.f32.gmra.mrb[0].mxu0 %v1223
      %v1435 = vpop.f32.mrb[0].mxu0
      %v1436 = vadd.f32 0.0, %v1435
      %v1437 = vpop.f32.mrb[0].mxu0
      %1438 = vmatprep.mubr.f32.mxu0 0.0
      %1439 = vmatmul.mubr.f32.gmra.mrb[0].mxu0 %v1226
      %v1440 = vpop.f32.mrb[0].mxu0
      %v1441 = vadd.f32 0.0, %v1440
      %v1442 = vpop.f32.mrb[0].mxu0
      %1443 = vmatprep.mubr.f32.mxu0 0.0
      %1444 = vmatmul.mubr.f32.gmra.mrb[0].mxu0 %v1229
      %v1445 = vpop.f32.mrb[0].mxu0
      %v1446 = vadd.f32 0.0, %v1445
      %v1447 = vpop.f32.mrb[0].mxu0
      %1448 = vmatprep.mubr.f32.mxu0 0.0
      %1449 = vmatmul.mubr.f32.gmra.mrb[0].mxu0 %v1232
      %v1450 = vpop.f32.mrb[0].mxu0
      %v1451 = vadd.f32 0.0, %v1450
      %v1452 = vpop.f32.mrb[0].mxu0
      %1453 = vmatprep.mubr.f32.mxu0 0.0
      %1454 = vmatmul.mubr.f32.gmra.mrb[0].mxu0 %v1235
      %v1455 = vpop.f32.mrb[0].mxu0
      %v1456 = vadd.f32 0.0, %v1455
      %v1457 = vpop.f32.mrb[0].mxu0
      %1458 = vmatprep.mubr.f32.mxu0 0.0
      %1459 = vmatmul.mubr.f32.gmra.mrb[0].mxu0 %v1238
      %v1460 = vpop.f32.mrb[0].mxu0
      %v1461 = vadd.f32 0.0, %v1460
      %v1462 = vpop.f32.mrb[0].mxu0
      %1463 = vmatprep.mubr.f32.mxu0 0.0
      %1464 = vmatmul.mubr.f32.gmra.mrb[0].mxu0 %v1241
      %v1465 = vpop.f32.mrb[0].mxu0
      %v1466 = vadd.f32 0.0, %v1465
      %v1467 = vpop.f32.mrb[0].mxu0
      %1468 = vmatprep.mubr.f32.mxu0 0.0
      %1469 = vmatmul.mubr.f32.gmra.mrb[0].mxu0 %v1244
      %v1470 = vpop.f32.mrb[0].mxu0
      %v1471 = vadd.f32 0.0, %v1470
      %v1472 = vpop.f32.mrb[0].mxu0
      %1473 = vdwg.mxu0
      %v1474 = vadd.f32 %v958, %v1316
      %v1475 = vadd.f32 %v963, %v1321
      %v1476 = vadd.f32 %v968, %v1326
      %v1477 = vadd.f32 %v973, %v1331
      %v1478 = vadd.f32 %v978, %v1336
      %v1479 = vadd.f32 %v983, %v1341
      %v1480 = vadd.f32 %v988, %v1346
      %v1481 = vadd.f32 %v993, %v1351
      %v1482 = vadd.f32 %v998, %v1356
      %v1483 = vadd.f32 %v1003, %v1361
      %v1484 = vadd.f32 %v1008, %v1366
      %v1485 = vadd.f32 %v1013, %v1371
      %v1486 = vadd.f32 %v1018, %v1376
      %v1487 = vadd.f32 %v1023, %v1381
      %v1488 = vadd.f32 %v1028, %v1386
      %v1489 = vadd.f32 %v1033, %v1391
      %v1490 = vadd.f32 %v1038, %v1396
      %v1491 = vadd.f32 %v1043, %v1401
      %v1492 = vadd.f32 %v1048, %v1406
      %v1493 = vadd.f32 %v1053, %v1411
      %v1494 = vadd.f32 %v1058, %v1416
      %v1495 = vadd.f32 %v1063, %v1421
      %v1496 = vadd.f32 %v1068, %v1426
      %v1497 = vadd.f32 %v1073, %v1431
      %v1498 = vadd.f32 %v1078, %v1436
      %v1499 = vadd.f32 %v1083, %v1441
      %v1500 = vadd.f32 %v1088, %v1446
      %v1501 = vadd.f32 %v1093, %v1451
      %v1502 = vadd.f32 %v1098, %v1456
      %v1503 = vadd.f32 %v1103, %v1461
      %v1504 = vadd.f32 %v1108, %v1466
      %v1505 = vadd.f32 %v1113, %v1471
      %v1506 = vld [vmem:[%s367] sm:$0xff]
      %v1507 = vld [vmem:[%s367 + $0x8] sm:$0xff]
      %v1508 = vld [vmem:[%s367 + $0x18] sm:$0xff]
      %v1509 = vld [vmem:[%s367 + $0x20] sm:$0xff]
      %v1510 = vld [vmem:[%s367 + $0x30] sm:$0xff]
      %v1511 = vld [vmem:[%s367 + $0x38] sm:$0xff]
      %v1512 = vld [vmem:[%s367 + $0x48] sm:$0xff]
      %v1513 = vld [vmem:[%s367 + $0x50] sm:$0xff]
      %v1514 = vld [vmem:[%s367 + $0x60] sm:$0xff]
      %v1515 = vld [vmem:[%s367 + $0x68] sm:$0xff]
      %v1516 = vld [vmem:[%s367 + $0x78] sm:$0xff]
      %v1517 = vld [vmem:[%s367 + $0x80] sm:$0xff]
      %v1518 = vld [vmem:[%s367 + $0x90] sm:$0xff]
      %v1519 = vld [vmem:[%s367 + $0x98] sm:$0xff]
      %v1520 = vld [vmem:[%s367 + $0xa8] sm:$0xff]
      %v1521 = vld [vmem:[%s367 + $0xb0] sm:$0xff]
      %v1522 = vld [vmem:[%s367 + $0xc0] sm:$0xff]
      %v1523 = vld [vmem:[%s367 + $0xc8] sm:$0xff]
      %v1524 = vld [vmem:[%s367 + $0xd8] sm:$0xff]
      %v1525 = vld [vmem:[%s367 + $0xe0] sm:$0xff]
      %v1526 = vld [vmem:[%s367 + $0xf0] sm:$0xff]
      %v1527 = vld [vmem:[%s367 + $0xf8] sm:$0xff]
      %v1528 = vld [vmem:[%s367 + $0x108] sm:$0xff]
      %v1529 = vld [vmem:[%s367 + $0x110] sm:$0xff]
      %v1530 = vld [vmem:[%s367 + $0x120] sm:$0xff]
      %v1531 = vld [vmem:[%s367 + $0x128] sm:$0xff]
      %v1532 = vld [vmem:[%s367 + $0x138] sm:$0xff]
      %v1533 = vld [vmem:[%s367 + $0x140] sm:$0xff]
      %v1534 = vld [vmem:[%s367 + $0x150] sm:$0xff]
      %v1535 = vld [vmem:[%s367 + $0x158] sm:$0xff]
      %v1536 = vld [vmem:[%s367 + $0x168] sm:$0xff]
      %v1537 = vld [vmem:[%s367 + $0x170] sm:$0xff]
      %s1538 = scalar_lea.vmem %s1, 12
      %v1539 = vld [vmem:[%s1538] sm:$0xf]
      %v1541 = vsel %vm225, %v1506, 0
      %v1544 = vsel %vm225, %v1507, 0
      %v1547 = vsel %vm225, %v1508, 0
      %v1550 = vsel %vm225, %v1509, 0
      %v1553 = vsel %vm225, %v1510, 0
      %v1556 = vsel %vm225, %v1511, 0
      %v1559 = vsel %vm225, %v1512, 0
      %v1562 = vsel %vm225, %v1513, 0
      %v1565 = vsel %vm225, %v1514, 0
      %v1568 = vsel %vm225, %v1515, 0
      %v1571 = vsel %vm225, %v1516, 0
      %v1574 = vsel %vm225, %v1517, 0
      %v1577 = vsel %vm225, %v1518, 0
      %v1580 = vsel %vm225, %v1519, 0
      %v1583 = vsel %vm225, %v1520, 0
      %v1586 = vsel %vm225, %v1521, 0
      %v1589 = vsel %vm225, %v1522, 0
      %v1592 = vsel %vm225, %v1523, 0
      %v1595 = vsel %vm225, %v1524, 0
      %v1598 = vsel %vm225, %v1525, 0
      %v1601 = vsel %vm225, %v1526, 0
      %v1604 = vsel %vm225, %v1527, 0
      %v1607 = vsel %vm225, %v1528, 0
      %v1610 = vsel %vm225, %v1529, 0
      %v1613 = vsel %vm225, %v1530, 0
      %v1616 = vsel %vm225, %v1531, 0
      %v1619 = vsel %vm225, %v1532, 0
      %v1622 = vsel %vm225, %v1533, 0
      %v1625 = vsel %vm225, %v1534, 0
      %v1628 = vsel %vm225, %v1535, 0
      %v1631 = vsel %vm225, %v1536, 0
      %v1634 = vsel %vm225, %v1537, 0
      %v1637 = vsel %vm563, %v1539, 0
      %1639 = vmatprep.subr.mxu0 0.0
      %1640 = vmatpush1.msra.mxu0 %v1637
      %1641 = vmatprep.subr.mxu0 0.0
      %1642 = vmatpush1.msra.mxu0 0.0
      %1643 = vmatprep.subr.mxu0 0.0
      %1644 = vmatpush1.msra.mxu0 0.0
      %1645 = vmatprep.subr.mxu0 0.0
      %1646 = vmatpush1.msra.mxu0 0.0
      %1647 = vmatprep.subr.mxu0 0.0
      %1648 = vmatpush1.msra.mxu0 0.0
      %1649 = vmatprep.subr.mxu0 0.0
      %1650 = vmatpush1.msra.mxu0 0.0
      %1651 = vmatprep.subr.mxu0 0.0
      %1652 = vmatpush1.msra.mxu0 0.0
      %1653 = vmatprep.subr.mxu0 0.0
      %1654 = vmatpush1.msra.mxu0 0.0
      %1655 = vmatprep.subr.mxu0 0.0
      %1656 = vmatpush1.msra.mxu0 0.0
      %1657 = vmatprep.subr.mxu0 0.0
      %1658 = vmatpush1.msra.mxu0 0.0
      %1659 = vmatprep.subr.mxu0 0.0
      %1660 = vmatpush1.msra.mxu0 0.0
      %1661 = vmatprep.subr.mxu0 0.0
      %1662 = vmatpush1.msra.mxu0 0.0
      %1663 = vmatprep.subr.mxu0 0.0
      %1664 = vmatpush1.msra.mxu0 0.0
      %1665 = vmatprep.subr.mxu0 0.0
      %1666 = vmatpush1.msra.mxu0 0.0
      %1667 = vmatprep.subr.mxu0 0.0
      %1668 = vmatpush1.msra.mxu0 0.0
      %1669 = vmatprep.subr.mxu0 0.0
      %1670 = vmatpush1.msra.mxu0 0.0
      %1671 = vmatprep.subr.mxu0 0.0
      %1672 = vmatpush1.msra.mxu0 0.0
      %1673 = vmatprep.subr.mxu0 0.0
      %1674 = vmatpush1.msra.mxu0 0.0
      %1675 = vmatprep.subr.mxu0 0.0
      %1676 = vmatpush1.msra.mxu0 0.0
      %1677 = vmatprep.subr.mxu0 0.0
      %1678 = vmatpush1.msra.mxu0 0.0
      %1679 = vmatprep.subr.mxu0 0.0
      %1680 = vmatpush1.msra.mxu0 0.0
      %1681 = vmatprep.subr.mxu0 0.0
      %1682 = vmatpush1.msra.mxu0 0.0
      %1683 = vmatprep.subr.mxu0 0.0
      %1684 = vmatpush1.msra.mxu0 0.0
      %1685 = vmatprep.subr.mxu0 0.0
      %1686 = vmatpush1.msra.mxu0 0.0
      %1687 = vmatprep.subr.mxu0 0.0
      %1688 = vmatpush1.msra.mxu0 0.0
      %1689 = vmatprep.subr.mxu0 0.0
      %1690 = vmatpush1.msra.mxu0 0.0
      %1691 = vmatprep.subr.mxu0 0.0
      %1692 = vmatpush1.msra.mxu0 0.0
      %1693 = vmatprep.subr.mxu0 0.0
      %1694 = vmatpush1.msra.mxu0 0.0
      %1695 = vmatprep.subr.mxu0 0.0
      %1696 = vmatpush1.msra.mxu0 0.0
      %1697 = vmatprep.subr.mxu0 0.0
      %1698 = vmatpush1.msra.mxu0 0.0
      %1699 = vmatprep.subr.mxu0 0.0
      %1700 = vmatpush1.msra.mxu0 0.0
      %1701 = vmatprep.subr.mxu0 0.0
      %1702 = vmatpush1.msra.mxu0 0.0
      %1703 = vmatprep.mubr.f32.mxu0 0.0
      %1704 = vmatmul.mubr.f32.gmra.mrb[0].mxu0 %v1541
      %v1705 = vpop.f32.mrb[0].mxu0
      %v1706 = vadd.f32 0.0, %v1705
      %v1707 = vpop.f32.mrb[0].mxu0
      %1708 = vmatprep.mubr.f32.mxu0 0.0
      %1709 = vmatmul.mubr.f32.gmra.mrb[0].mxu0 %v1544
      %v1710 = vpop.f32.mrb[0].mxu0
      %v1711 = vadd.f32 0.0, %v1710
      %v1712 = vpop.f32.mrb[0].mxu0
      %1713 = vmatprep.mubr.f32.mxu0 0.0
      %1714 = vmatmul.mubr.f32.gmra.mrb[0].mxu0 %v1547
      %v1715 = vpop.f32.mrb[0].mxu0
      %v1716 = vadd.f32 0.0, %v1715
      %v1717 = vpop.f32.mrb[0].mxu0
      %1718 = vmatprep.mubr.f32.mxu0 0.0
      %1719 = vmatmul.mubr.f32.gmra.mrb[0].mxu0 %v1550
      %v1720 = vpop.f32.mrb[0].mxu0
      %v1721 = vadd.f32 0.0, %v1720
      %v1722 = vpop.f32.mrb[0].mxu0
      %1723 = vmatprep.mubr.f32.mxu0 0.0
      %1724 = vmatmul.mubr.f32.gmra.mrb[0].mxu0 %v1553
      %v1725 = vpop.f32.mrb[0].mxu0
      %v1726 = vadd.f32 0.0, %v1725
      %v1727 = vpop.f32.mrb[0].mxu0
      %1728 = vmatprep.mubr.f32.mxu0 0.0
      %1729 = vmatmul.mubr.f32.gmra.mrb[0].mxu0 %v1556
      %v1730 = vpop.f32.mrb[0].mxu0
      %v1731 = vadd.f32 0.0, %v1730
      %v1732 = vpop.f32.mrb[0].mxu0
      %1733 = vmatprep.mubr.f32.mxu0 0.0
      %1734 = vmatmul.mubr.f32.gmra.mrb[0].mxu0 %v1559
      %v1735 = vpop.f32.mrb[0].mxu0
      %v1736 = vadd.f32 0.0, %v1735
      %v1737 = vpop.f32.mrb[0].mxu0
      %1738 = vmatprep.mubr.f32.mxu0 0.0
      %1739 = vmatmul.mubr.f32.gmra.mrb[0].mxu0 %v1562
      %v1740 = vpop.f32.mrb[0].mxu0
      %v1741 = vadd.f32 0.0, %v1740
      %v1742 = vpop.f32.mrb[0].mxu0
      %1743 = vmatprep.mubr.f32.mxu0 0.0
      %1744 = vmatmul.mubr.f32.gmra.mrb[0].mxu0 %v1565
      %v1745 = vpop.f32.mrb[0].mxu0
      %v1746 = vadd.f32 0.0, %v1745
      %v1747 = vpop.f32.mrb[0].mxu0
      %1748 = vmatprep.mubr.f32.mxu0 0.0
      %1749 = vmatmul.mubr.f32.gmra.mrb[0].mxu0 %v1568
      %v1750 = vpop.f32.mrb[0].mxu0
      %v1751 = vadd.f32 0.0, %v1750
      %v1752 = vpop.f32.mrb[0].mxu0
      %1753 = vmatprep.mubr.f32.mxu0 0.0
      %1754 = vmatmul.mubr.f32.gmra.mrb[0].mxu0 %v1571
      %v1755 = vpop.f32.mrb[0].mxu0
      %v1756 = vadd.f32 0.0, %v1755
      %v1757 = vpop.f32.mrb[0].mxu0
      %1758 = vmatprep.mubr.f32.mxu0 0.0
      %1759 = vmatmul.mubr.f32.gmra.mrb[0].mxu0 %v1574
      %v1760 = vpop.f32.mrb[0].mxu0
      %v1761 = vadd.f32 0.0, %v1760
      %v1762 = vpop.f32.mrb[0].mxu0
      %1763 = vmatprep.mubr.f32.mxu0 0.0
      %1764 = vmatmul.mubr.f32.gmra.mrb[0].mxu0 %v1577
      %v1765 = vpop.f32.mrb[0].mxu0
      %v1766 = vadd.f32 0.0, %v1765
      %v1767 = vpop.f32.mrb[0].mxu0
      %1768 = vmatprep.mubr.f32.mxu0 0.0
      %1769 = vmatmul.mubr.f32.gmra.mrb[0].mxu0 %v1580
      %v1770 = vpop.f32.mrb[0].mxu0
      %v1771 = vadd.f32 0.0, %v1770
      %v1772 = vpop.f32.mrb[0].mxu0
      %1773 = vmatprep.mubr.f32.mxu0 0.0
      %1774 = vmatmul.mubr.f32.gmra.mrb[0].mxu0 %v1583
      %v1775 = vpop.f32.mrb[0].mxu0
      %v1776 = vadd.f32 0.0, %v1775
      %v1777 = vpop.f32.mrb[0].mxu0
      %1778 = vmatprep.mubr.f32.mxu0 0.0
      %1779 = vmatmul.mubr.f32.gmra.mrb[0].mxu0 %v1586
      %v1780 = vpop.f32.mrb[0].mxu0
      %v1781 = vadd.f32 0.0, %v1780
      %v1782 = vpop.f32.mrb[0].mxu0
      %1783 = vmatprep.mubr.f32.mxu0 0.0
      %1784 = vmatmul.mubr.f32.gmra.mrb[0].mxu0 %v1589
      %v1785 = vpop.f32.mrb[0].mxu0
      %v1786 = vadd.f32 0.0, %v1785
      %v1787 = vpop.f32.mrb[0].mxu0
      %1788 = vmatprep.mubr.f32.mxu0 0.0
      %1789 = vmatmul.mubr.f32.gmra.mrb[0].mxu0 %v1592
      %v1790 = vpop.f32.mrb[0].mxu0
      %v1791 = vadd.f32 0.0, %v1790
      %v1792 = vpop.f32.mrb[0].mxu0
      %1793 = vmatprep.mubr.f32.mxu0 0.0
      %1794 = vmatmul.mubr.f32.gmra.mrb[0].mxu0 %v1595
      %v1795 = vpop.f32.mrb[0].mxu0
      %v1796 = vadd.f32 0.0, %v1795
      %v1797 = vpop.f32.mrb[0].mxu0
      %1798 = vmatprep.mubr.f32.mxu0 0.0
      %1799 = vmatmul.mubr.f32.gmra.mrb[0].mxu0 %v1598
      %v1800 = vpop.f32.mrb[0].mxu0
      %v1801 = vadd.f32 0.0, %v1800
      %v1802 = vpop.f32.mrb[0].mxu0
      %1803 = vmatprep.mubr.f32.mxu0 0.0
      %1804 = vmatmul.mubr.f32.gmra.mrb[0].mxu0 %v1601
      %v1805 = vpop.f32.mrb[0].mxu0
      %v1806 = vadd.f32 0.0, %v1805
      %v1807 = vpop.f32.mrb[0].mxu0
      %1808 = vmatprep.mubr.f32.mxu0 0.0
      %1809 = vmatmul.mubr.f32.gmra.mrb[0].mxu0 %v1604
      %v1810 = vpop.f32.mrb[0].mxu0
      %v1811 = vadd.f32 0.0, %v1810
      %v1812 = vpop.f32.mrb[0].mxu0
      %1813 = vmatprep.mubr.f32.mxu0 0.0
      %1814 = vmatmul.mubr.f32.gmra.mrb[0].mxu0 %v1607
      %v1815 = vpop.f32.mrb[0].mxu0
      %v1816 = vadd.f32 0.0, %v1815
      %v1817 = vpop.f32.mrb[0].mxu0
      %1818 = vmatprep.mubr.f32.mxu0 0.0
      %1819 = vmatmul.mubr.f32.gmra.mrb[0].mxu0 %v1610
      %v1820 = vpop.f32.mrb[0].mxu0
      %v1821 = vadd.f32 0.0, %v1820
      %v1822 = vpop.f32.mrb[0].mxu0
      %1823 = vmatprep.mubr.f32.mxu0 0.0
      %1824 = vmatmul.mubr.f32.gmra.mrb[0].mxu0 %v1613
      %v1825 = vpop.f32.mrb[0].mxu0
      %v1826 = vadd.f32 0.0, %v1825
      %v1827 = vpop.f32.mrb[0].mxu0
      %1828 = vmatprep.mubr.f32.mxu0 0.0
      %1829 = vmatmul.mubr.f32.gmra.mrb[0].mxu0 %v1616
      %v1830 = vpop.f32.mrb[0].mxu0
      %v1831 = vadd.f32 0.0, %v1830
      %v1832 = vpop.f32.mrb[0].mxu0
      %1833 = vmatprep.mubr.f32.mxu0 0.0
      %1834 = vmatmul.mubr.f32.gmra.mrb[0].mxu0 %v1619
      %v1835 = vpop.f32.mrb[0].mxu0
      %v1836 = vadd.f32 0.0, %v1835
      %v1837 = vpop.f32.mrb[0].mxu0
      %1838 = vmatprep.mubr.f32.mxu0 0.0
      %1839 = vmatmul.mubr.f32.gmra.mrb[0].mxu0 %v1622
      %v1840 = vpop.f32.mrb[0].mxu0
      %v1841 = vadd.f32 0.0, %v1840
      %v1842 = vpop.f32.mrb[0].mxu0
      %1843 = vmatprep.mubr.f32.mxu0 0.0
      %1844 = vmatmul.mubr.f32.gmra.mrb[0].mxu0 %v1625
      %v1845 = vpop.f32.mrb[0].mxu0
      %v1846 = vadd.f32 0.0, %v1845
      %v1847 = vpop.f32.mrb[0].mxu0
      %1848 = vmatprep.mubr.f32.mxu0 0.0
      %1849 = vmatmul.mubr.f32.gmra.mrb[0].mxu0 %v1628
      %v1850 = vpop.f32.mrb[0].mxu0
      %v1851 = vadd.f32 0.0, %v1850
      %v1852 = vpop.f32.mrb[0].mxu0
      %1853 = vmatprep.mubr.f32.mxu0 0.0
      %1854 = vmatmul.mubr.f32.gmra.mrb[0].mxu0 %v1631
      %v1855 = vpop.f32.mrb[0].mxu0
      %v1856 = vadd.f32 0.0, %v1855
      %v1857 = vpop.f32.mrb[0].mxu0
      %1858 = vmatprep.mubr.f32.mxu0 0.0
      %1859 = vmatmul.mubr.f32.gmra.mrb[0].mxu0 %v1634
      %v1860 = vpop.f32.mrb[0].mxu0
      %v1861 = vadd.f32 0.0, %v1860
      %v1862 = vpop.f32.mrb[0].mxu0
      %1863 = vdwg.mxu0
      %v1864 = vadd.f32 %v1474, %v1706
      %v1865 = vadd.f32 %v1475, %v1711
      %v1866 = vadd.f32 %v1476, %v1716
      %v1867 = vadd.f32 %v1477, %v1721
      %v1868 = vadd.f32 %v1478, %v1726
      %v1869 = vadd.f32 %v1479, %v1731
      %v1870 = vadd.f32 %v1480, %v1736
      %v1871 = vadd.f32 %v1481, %v1741
      %v1872 = vadd.f32 %v1482, %v1746
      %v1873 = vadd.f32 %v1483, %v1751
      %v1874 = vadd.f32 %v1484, %v1756
      %v1875 = vadd.f32 %v1485, %v1761
      %v1876 = vadd.f32 %v1486, %v1766
      %v1877 = vadd.f32 %v1487, %v1771
      %v1878 = vadd.f32 %v1488, %v1776
      %v1879 = vadd.f32 %v1489, %v1781
      %v1880 = vadd.f32 %v1490, %v1786
      %v1881 = vadd.f32 %v1491, %v1791
      %v1882 = vadd.f32 %v1492, %v1796
      %v1883 = vadd.f32 %v1493, %v1801
      %v1884 = vadd.f32 %v1494, %v1806
      %v1885 = vadd.f32 %v1495, %v1811
      %v1886 = vadd.f32 %v1496, %v1816
      %v1887 = vadd.f32 %v1497, %v1821
      %v1888 = vadd.f32 %v1498, %v1826
      %v1889 = vadd.f32 %v1499, %v1831
      %v1890 = vadd.f32 %v1500, %v1836
      %v1891 = vadd.f32 %v1501, %v1841
      %v1892 = vadd.f32 %v1502, %v1846
      %v1893 = vadd.f32 %v1503, %v1851
      %v1894 = vadd.f32 %v1504, %v1856
      %v1895 = vadd.f32 %v1505, %v1861
      %v1896 = vld [vmem:[%s367 + $0x1] sm:$0xff]
      %v1897 = vld [vmem:[%s367 + $0x9] sm:$0xff]
      %v1898 = vld [vmem:[%s367 + $0x19] sm:$0xff]
      %v1899 = vld [vmem:[%s367 + $0x21] sm:$0xff]
      %v1900 = vld [vmem:[%s367 + $0x31] sm:$0xff]
      %v1901 = vld [vmem:[%s367 + $0x39] sm:$0xff]
      %v1902 = vld [vmem:[%s367 + $0x49] sm:$0xff]
      %v1903 = vld [vmem:[%s367 + $0x51] sm:$0xff]
      %v1904 = vld [vmem:[%s367 + $0x61] sm:$0xff]
      %v1905 = vld [vmem:[%s367 + $0x69] sm:$0xff]
      %v1906 = vld [vmem:[%s367 + $0x79] sm:$0xff]
      %v1907 = vld [vmem:[%s367 + $0x81] sm:$0xff]
      %v1908 = vld [vmem:[%s367 + $0x91] sm:$0xff]
      %v1909 = vld [vmem:[%s367 + $0x99] sm:$0xff]
      %v1910 = vld [vmem:[%s367 + $0xa9] sm:$0xff]
      %v1911 = vld [vmem:[%s367 + $0xb1] sm:$0xff]
      %v1912 = vld [vmem:[%s367 + $0xc1] sm:$0xff]
      %v1913 = vld [vmem:[%s367 + $0xc9] sm:$0xff]
      %v1914 = vld [vmem:[%s367 + $0xd9] sm:$0xff]
      %v1915 = vld [vmem:[%s367 + $0xe1] sm:$0xff]
      %v1916 = vld [vmem:[%s367 + $0xf1] sm:$0xff]
      %v1917 = vld [vmem:[%s367 + $0xf9] sm:$0xff]
      %v1918 = vld [vmem:[%s367 + $0x109] sm:$0xff]
      %v1919 = vld [vmem:[%s367 + $0x111] sm:$0xff]
      %v1920 = vld [vmem:[%s367 + $0x121] sm:$0xff]
      %v1921 = vld [vmem:[%s367 + $0x129] sm:$0xff]
      %v1922 = vld [vmem:[%s367 + $0x139] sm:$0xff]
      %v1923 = vld [vmem:[%s367 + $0x141] sm:$0xff]
      %v1924 = vld [vmem:[%s367 + $0x151] sm:$0xff]
      %v1925 = vld [vmem:[%s367 + $0x159] sm:$0xff]
      %v1926 = vld [vmem:[%s367 + $0x169] sm:$0xff]
      %v1927 = vld [vmem:[%s367 + $0x171] sm:$0xff]
      %s1928 = scalar_lea.vmem %s1, 16
      %v1929 = vld [vmem:[%s1928] sm:$0xf]
      %v1931 = vsel %vm225, %v1896, 0
      %v1934 = vsel %vm225, %v1897, 0
      %v1937 = vsel %vm225, %v1898, 0
      %v1940 = vsel %vm225, %v1899, 0
      %v1943 = vsel %vm225, %v1900, 0
      %v1946 = vsel %vm225, %v1901, 0
      %v1949 = vsel %vm225, %v1902, 0
      %v1952 = vsel %vm225, %v1903, 0
      %v1955 = vsel %vm225, %v1904, 0
      %v1958 = vsel %vm225, %v1905, 0
      %v1961 = vsel %vm225, %v1906, 0
      %v1964 = vsel %vm225, %v1907, 0
      %v1967 = vsel %vm225, %v1908, 0
      %v1970 = vsel %vm225, %v1909, 0
      %v1973 = vsel %vm225, %v1910, 0
      %v1976 = vsel %vm225, %v1911, 0
      %v1979 = vsel %vm225, %v1912, 0
      %v1982 = vsel %vm225, %v1913, 0
      %v1985 = vsel %vm225, %v1914, 0
      %v1988 = vsel %vm225, %v1915, 0
      %v1991 = vsel %vm225, %v1916, 0
      %v1994 = vsel %vm225, %v1917, 0
      %v1997 = vsel %vm225, %v1918, 0
      %v2000 = vsel %vm225, %v1919, 0
      %v2003 = vsel %vm225, %v1920, 0
      %v2006 = vsel %vm225, %v1921, 0
      %v2009 = vsel %vm225, %v1922, 0
      %v2012 = vsel %vm225, %v1923, 0
      %v2015 = vsel %vm225, %v1924, 0
      %v2018 = vsel %vm225, %v1925, 0
      %v2021 = vsel %vm225, %v1926, 0
      %v2024 = vsel %vm225, %v1927, 0
      %v2027 = vsel %vm563, %v1929, 0
      %2029 = vmatprep.subr.mxu0 0.0
      %2030 = vmatpush1.msra.mxu0 %v2027
      %2031 = vmatprep.subr.mxu0 0.0
      %2032 = vmatpush1.msra.mxu0 0.0
      %2033 = vmatprep.subr.mxu0 0.0
      %2034 = vmatpush1.msra.mxu0 0.0
      %2035 = vmatprep.subr.mxu0 0.0
      %2036 = vmatpush1.msra.mxu0 0.0
      %2037 = vmatprep.subr.mxu0 0.0
      %2038 = vmatpush1.msra.mxu0 0.0
      %2039 = vmatprep.subr.mxu0 0.0
      %2040 = vmatpush1.msra.mxu0 0.0
      %2041 = vmatprep.subr.mxu0 0.0
      %2042 = vmatpush1.msra.mxu0 0.0
      %2043 = vmatprep.subr.mxu0 0.0
      %2044 = vmatpush1.msra.mxu0 0.0
      %2045 = vmatprep.subr.mxu0 0.0
      %2046 = vmatpush1.msra.mxu0 0.0
      %2047 = vmatprep.subr.mxu0 0.0
      %2048 = vmatpush1.msra.mxu0 0.0
      %2049 = vmatprep.subr.mxu0 0.0
      %2050 = vmatpush1.msra.mxu0 0.0
      %2051 = vmatprep.subr.mxu0 0.0
      %2052 = vmatpush1.msra.mxu0 0.0
      %2053 = vmatprep.subr.mxu0 0.0
      %2054 = vmatpush1.msra.mxu0 0.0
      %2055 = vmatprep.subr.mxu0 0.0
      %2056 = vmatpush1.msra.mxu0 0.0
      %2057 = vmatprep.subr.mxu0 0.0
      %2058 = vmatpush1.msra.mxu0 0.0
      %2059 = vmatprep.subr.mxu0 0.0
      %2060 = vmatpush1.msra.mxu0 0.0
      %2061 = vmatprep.subr.mxu0 0.0
      %2062 = vmatpush1.msra.mxu0 0.0
      %2063 = vmatprep.subr.mxu0 0.0
      %2064 = vmatpush1.msra.mxu0 0.0
      %2065 = vmatprep.subr.mxu0 0.0
      %2066 = vmatpush1.msra.mxu0 0.0
      %2067 = vmatprep.subr.mxu0 0.0
      %2068 = vmatpush1.msra.mxu0 0.0
      %2069 = vmatprep.subr.mxu0 0.0
      %2070 = vmatpush1.msra.mxu0 0.0
      %2071 = vmatprep.subr.mxu0 0.0
      %2072 = vmatpush1.msra.mxu0 0.0
      %2073 = vmatprep.subr.mxu0 0.0
      %2074 = vmatpush1.msra.mxu0 0.0
      %2075 = vmatprep.subr.mxu0 0.0
      %2076 = vmatpush1.msra.mxu0 0.0
      %2077 = vmatprep.subr.mxu0 0.0
      %2078 = vmatpush1.msra.mxu0 0.0
      %2079 = vmatprep.subr.mxu0 0.0
      %2080 = vmatpush1.msra.mxu0 0.0
      %2081 = vmatprep.subr.mxu0 0.0
      %2082 = vmatpush1.msra.mxu0 0.0
      %2083 = vmatprep.subr.mxu0 0.0
      %2084 = vmatpush1.msra.mxu0 0.0
      %2085 = vmatprep.subr.mxu0 0.0
      %2086 = vmatpush1.msra.mxu0 0.0
      %2087 = vmatprep.subr.mxu0 0.0
      %2088 = vmatpush1.msra.mxu0 0.0
      %2089 = vmatprep.subr.mxu0 0.0
      %2090 = vmatpush1.msra.mxu0 0.0
      %2091 = vmatprep.subr.mxu0 0.0
      %2092 = vmatpush1.msra.mxu0 0.0
      %2093 = vmatprep.mubr.f32.mxu0 0.0
      %2094 = vmatmul.mubr.f32.gmra.mrb[0].mxu0 %v1931
      %v2095 = vpop.f32.mrb[0].mxu0
      %v2096 = vadd.f32 0.0, %v2095
      %v2097 = vpop.f32.mrb[0].mxu0
      %2098 = vmatprep.mubr.f32.mxu0 0.0
      %2099 = vmatmul.mubr.f32.gmra.mrb[0].mxu0 %v1934
      %v2100 = vpop.f32.mrb[0].mxu0
      %v2101 = vadd.f32 0.0, %v2100
      %v2102 = vpop.f32.mrb[0].mxu0
      %2103 = vmatprep.mubr.f32.mxu0 0.0
      %2104 = vmatmul.mubr.f32.gmra.mrb[0].mxu0 %v1937
      %v2105 = vpop.f32.mrb[0].mxu0
      %v2106 = vadd.f32 0.0, %v2105
      %v2107 = vpop.f32.mrb[0].mxu0
      %2108 = vmatprep.mubr.f32.mxu0 0.0
      %2109 = vmatmul.mubr.f32.gmra.mrb[0].mxu0 %v1940
      %v2110 = vpop.f32.mrb[0].mxu0
      %v2111 = vadd.f32 0.0, %v2110
      %v2112 = vpop.f32.mrb[0].mxu0
      %2113 = vmatprep.mubr.f32.mxu0 0.0
      %2114 = vmatmul.mubr.f32.gmra.mrb[0].mxu0 %v1943
      %v2115 = vpop.f32.mrb[0].mxu0
      %v2116 = vadd.f32 0.0, %v2115
      %v2117 = vpop.f32.mrb[0].mxu0
      %2118 = vmatprep.mubr.f32.mxu0 0.0
      %2119 = vmatmul.mubr.f32.gmra.mrb[0].mxu0 %v1946
      %v2120 = vpop.f32.mrb[0].mxu0
      %v2121 = vadd.f32 0.0, %v2120
      %v2122 = vpop.f32.mrb[0].mxu0
      %2123 = vmatprep.mubr.f32.mxu0 0.0
      %2124 = vmatmul.mubr.f32.gmra.mrb[0].mxu0 %v1949
      %v2125 = vpop.f32.mrb[0].mxu0
      %v2126 = vadd.f32 0.0, %v2125
      %v2127 = vpop.f32.mrb[0].mxu0
      %2128 = vmatprep.mubr.f32.mxu0 0.0
      %2129 = vmatmul.mubr.f32.gmra.mrb[0].mxu0 %v1952
      %v2130 = vpop.f32.mrb[0].mxu0
      %v2131 = vadd.f32 0.0, %v2130
      %v2132 = vpop.f32.mrb[0].mxu0
      %2133 = vmatprep.mubr.f32.mxu0 0.0
      %2134 = vmatmul.mubr.f32.gmra.mrb[0].mxu0 %v1955
      %v2135 = vpop.f32.mrb[0].mxu0
      %v2136 = vadd.f32 0.0, %v2135
      %v2137 = vpop.f32.mrb[0].mxu0
      %2138 = vmatprep.mubr.f32.mxu0 0.0
      %2139 = vmatmul.mubr.f32.gmra.mrb[0].mxu0 %v1958
      %v2140 = vpop.f32.mrb[0].mxu0
      %v2141 = vadd.f32 0.0, %v2140
      %v2142 = vpop.f32.mrb[0].mxu0
      %2143 = vmatprep.mubr.f32.mxu0 0.0
      %2144 = vmatmul.mubr.f32.gmra.mrb[0].mxu0 %v1961
      %v2145 = vpop.f32.mrb[0].mxu0
      %v2146 = vadd.f32 0.0, %v2145
      %v2147 = vpop.f32.mrb[0].mxu0
      %2148 = vmatprep.mubr.f32.mxu0 0.0
      %2149 = vmatmul.mubr.f32.gmra.mrb[0].mxu0 %v1964
      %v2150 = vpop.f32.mrb[0].mxu0
      %v2151 = vadd.f32 0.0, %v2150
      %v2152 = vpop.f32.mrb[0].mxu0
      %2153 = vmatprep.mubr.f32.mxu0 0.0
      %2154 = vmatmul.mubr.f32.gmra.mrb[0].mxu0 %v1967
      %v2155 = vpop.f32.mrb[0].mxu0
      %v2156 = vadd.f32 0.0, %v2155
      %v2157 = vpop.f32.mrb[0].mxu0
      %2158 = vmatprep.mubr.f32.mxu0 0.0
      %2159 = vmatmul.mubr.f32.gmra.mrb[0].mxu0 %v1970
      %v2160 = vpop.f32.mrb[0].mxu0
      %v2161 = vadd.f32 0.0, %v2160
      %v2162 = vpop.f32.mrb[0].mxu0
      %2163 = vmatprep.mubr.f32.mxu0 0.0
      %2164 = vmatmul.mubr.f32.gmra.mrb[0].mxu0 %v1973
      %v2165 = vpop.f32.mrb[0].mxu0
      %v2166 = vadd.f32 0.0, %v2165
      %v2167 = vpop.f32.mrb[0].mxu0
      %2168 = vmatprep.mubr.f32.mxu0 0.0
      %2169 = vmatmul.mubr.f32.gmra.mrb[0].mxu0 %v1976
      %v2170 = vpop.f32.mrb[0].mxu0
      %v2171 = vadd.f32 0.0, %v2170
      %v2172 = vpop.f32.mrb[0].mxu0
      %2173 = vmatprep.mubr.f32.mxu0 0.0
      %2174 = vmatmul.mubr.f32.gmra.mrb[0].mxu0 %v1979
      %v2175 = vpop.f32.mrb[0].mxu0
      %v2176 = vadd.f32 0.0, %v2175
      %v2177 = vpop.f32.mrb[0].mxu0
      %2178 = vmatprep.mubr.f32.mxu0 0.0
      %2179 = vmatmul.mubr.f32.gmra.mrb[0].mxu0 %v1982
      %v2180 = vpop.f32.mrb[0].mxu0
      %v2181 = vadd.f32 0.0, %v2180
      %v2182 = vpop.f32.mrb[0].mxu0
      %2183 = vmatprep.mubr.f32.mxu0 0.0
      %2184 = vmatmul.mubr.f32.gmra.mrb[0].mxu0 %v1985
      %v2185 = vpop.f32.mrb[0].mxu0
      %v2186 = vadd.f32 0.0, %v2185
      %v2187 = vpop.f32.mrb[0].mxu0
      %2188 = vmatprep.mubr.f32.mxu0 0.0
      %2189 = vmatmul.mubr.f32.gmra.mrb[0].mxu0 %v1988
      %v2190 = vpop.f32.mrb[0].mxu0
      %v2191 = vadd.f32 0.0, %v2190
      %v2192 = vpop.f32.mrb[0].mxu0
      %2193 = vmatprep.mubr.f32.mxu0 0.0
      %2194 = vmatmul.mubr.f32.gmra.mrb[0].mxu0 %v1991
      %v2195 = vpop.f32.mrb[0].mxu0
      %v2196 = vadd.f32 0.0, %v2195
      %v2197 = vpop.f32.mrb[0].mxu0
      %2198 = vmatprep.mubr.f32.mxu0 0.0
      %2199 = vmatmul.mubr.f32.gmra.mrb[0].mxu0 %v1994
      %v2200 = vpop.f32.mrb[0].mxu0
      %v2201 = vadd.f32 0.0, %v2200
      %v2202 = vpop.f32.mrb[0].mxu0
      %2203 = vmatprep.mubr.f32.mxu0 0.0
      %2204 = vmatmul.mubr.f32.gmra.mrb[0].mxu0 %v1997
      %v2205 = vpop.f32.mrb[0].mxu0
      %v2206 = vadd.f32 0.0, %v2205
      %v2207 = vpop.f32.mrb[0].mxu0
      %2208 = vmatprep.mubr.f32.mxu0 0.0
      %2209 = vmatmul.mubr.f32.gmra.mrb[0].mxu0 %v2000
      %v2210 = vpop.f32.mrb[0].mxu0
      %v2211 = vadd.f32 0.0, %v2210
      %v2212 = vpop.f32.mrb[0].mxu0
      %2213 = vmatprep.mubr.f32.mxu0 0.0
      %2214 = vmatmul.mubr.f32.gmra.mrb[0].mxu0 %v2003
      %v2215 = vpop.f32.mrb[0].mxu0
      %v2216 = vadd.f32 0.0, %v2215
      %v2217 = vpop.f32.mrb[0].mxu0
      %2218 = vmatprep.mubr.f32.mxu0 0.0
      %2219 = vmatmul.mubr.f32.gmra.mrb[0].mxu0 %v2006
      %v2220 = vpop.f32.mrb[0].mxu0
      %v2221 = vadd.f32 0.0, %v2220
      %v2222 = vpop.f32.mrb[0].mxu0
      %2223 = vmatprep.mubr.f32.mxu0 0.0
      %2224 = vmatmul.mubr.f32.gmra.mrb[0].mxu0 %v2009
      %v2225 = vpop.f32.mrb[0].mxu0
      %v2226 = vadd.f32 0.0, %v2225
      %v2227 = vpop.f32.mrb[0].mxu0
      %2228 = vmatprep.mubr.f32.mxu0 0.0
      %2229 = vmatmul.mubr.f32.gmra.mrb[0].mxu0 %v2012
      %v2230 = vpop.f32.mrb[0].mxu0
      %v2231 = vadd.f32 0.0, %v2230
      %v2232 = vpop.f32.mrb[0].mxu0
      %2233 = vmatprep.mubr.f32.mxu0 0.0
      %2234 = vmatmul.mubr.f32.gmra.mrb[0].mxu0 %v2015
      %v2235 = vpop.f32.mrb[0].mxu0
      %v2236 = vadd.f32 0.0, %v2235
      %v2237 = vpop.f32.mrb[0].mxu0
      %2238 = vmatprep.mubr.f32.mxu0 0.0
      %2239 = vmatmul.mubr.f32.gmra.mrb[0].mxu0 %v2018
      %v2240 = vpop.f32.mrb[0].mxu0
      %v2241 = vadd.f32 0.0, %v2240
      %v2242 = vpop.f32.mrb[0].mxu0
      %2243 = vmatprep.mubr.f32.mxu0 0.0
      %2244 = vmatmul.mubr.f32.gmra.mrb[0].mxu0 %v2021
      %v2245 = vpop.f32.mrb[0].mxu0
      %v2246 = vadd.f32 0.0, %v2245
      %v2247 = vpop.f32.mrb[0].mxu0
      %2248 = vmatprep.mubr.f32.mxu0 0.0
      %2249 = vmatmul.mubr.f32.gmra.mrb[0].mxu0 %v2024
      %v2250 = vpop.f32.mrb[0].mxu0
      %v2251 = vadd.f32 0.0, %v2250
      %v2252 = vpop.f32.mrb[0].mxu0
      %2253 = vdwg.mxu0
      %v2254 = vadd.f32 %v1864, %v2096
      %v2255 = vadd.f32 %v1865, %v2101
      %v2256 = vadd.f32 %v1866, %v2106
      %v2257 = vadd.f32 %v1867, %v2111
      %v2258 = vadd.f32 %v1868, %v2116
      %v2259 = vadd.f32 %v1869, %v2121
      %v2260 = vadd.f32 %v1870, %v2126
      %v2261 = vadd.f32 %v1871, %v2131
      %v2262 = vadd.f32 %v1872, %v2136
      %v2263 = vadd.f32 %v1873, %v2141
      %v2264 = vadd.f32 %v1874, %v2146
      %v2265 = vadd.f32 %v1875, %v2151
      %v2266 = vadd.f32 %v1876, %v2156
      %v2267 = vadd.f32 %v1877, %v2161
      %v2268 = vadd.f32 %v1878, %v2166
      %v2269 = vadd.f32 %v1879, %v2171
      %v2270 = vadd.f32 %v1880, %v2176
      %v2271 = vadd.f32 %v1881, %v2181
      %v2272 = vadd.f32 %v1882, %v2186
      %v2273 = vadd.f32 %v1883, %v2191
      %v2274 = vadd.f32 %v1884, %v2196
      %v2275 = vadd.f32 %v1885, %v2201
      %v2276 = vadd.f32 %v1886, %v2206
      %v2277 = vadd.f32 %v1887, %v2211
      %v2278 = vadd.f32 %v1888, %v2216
      %v2279 = vadd.f32 %v1889, %v2221
      %v2280 = vadd.f32 %v1890, %v2226
      %v2281 = vadd.f32 %v1891, %v2231
      %v2282 = vadd.f32 %v1892, %v2236
      %v2283 = vadd.f32 %v1893, %v2241
      %v2284 = vadd.f32 %v1894, %v2246
      %v2285 = vadd.f32 %v1895, %v2251
      %v2286 = vld [vmem:[%s367 + $0x2] sm:$0xff]
      %v2287 = vld [vmem:[%s367 + $0xa] sm:$0xff]
      %v2288 = vld [vmem:[%s367 + $0x1a] sm:$0xff]
      %v2289 = vld [vmem:[%s367 + $0x22] sm:$0xff]
      %v2290 = vld [vmem:[%s367 + $0x32] sm:$0xff]
      %v2291 = vld [vmem:[%s367 + $0x3a] sm:$0xff]
      %v2292 = vld [vmem:[%s367 + $0x4a] sm:$0xff]
      %v2293 = vld [vmem:[%s367 + $0x52] sm:$0xff]
      %v2294 = vld [vmem:[%s367 + $0x62] sm:$0xff]
      %v2295 = vld [vmem:[%s367 + $0x6a] sm:$0xff]
      %v2296 = vld [vmem:[%s367 + $0x7a] sm:$0xff]
      %v2297 = vld [vmem:[%s367 + $0x82] sm:$0xff]
      %v2298 = vld [vmem:[%s367 + $0x92] sm:$0xff]
      %v2299 = vld [vmem:[%s367 + $0x9a] sm:$0xff]
      %v2300 = vld [vmem:[%s367 + $0xaa] sm:$0xff]
      %v2301 = vld [vmem:[%s367 + $0xb2] sm:$0xff]
      %v2302 = vld [vmem:[%s367 + $0xc2] sm:$0xff]
      %v2303 = vld [vmem:[%s367 + $0xca] sm:$0xff]
      %v2304 = vld [vmem:[%s367 + $0xda] sm:$0xff]
      %v2305 = vld [vmem:[%s367 + $0xe2] sm:$0xff]
      %v2306 = vld [vmem:[%s367 + $0xf2] sm:$0xff]
      %v2307 = vld [vmem:[%s367 + $0xfa] sm:$0xff]
      %v2308 = vld [vmem:[%s367 + $0x10a] sm:$0xff]
      %v2309 = vld [vmem:[%s367 + $0x112] sm:$0xff]
      %v2310 = vld [vmem:[%s367 + $0x122] sm:$0xff]
      %v2311 = vld [vmem:[%s367 + $0x12a] sm:$0xff]
      %v2312 = vld [vmem:[%s367 + $0x13a] sm:$0xff]
      %v2313 = vld [vmem:[%s367 + $0x142] sm:$0xff]
      %v2314 = vld [vmem:[%s367 + $0x152] sm:$0xff]
      %v2315 = vld [vmem:[%s367 + $0x15a] sm:$0xff]
      %v2316 = vld [vmem:[%s367 + $0x16a] sm:$0xff]
      %v2317 = vld [vmem:[%s367 + $0x172] sm:$0xff]
      %s2318 = scalar_lea.vmem %s1, 20
      %v2319 = vld [vmem:[%s2318] sm:$0xf]
      %v2321 = vsel %vm225, %v2286, 0
      %v2324 = vsel %vm225, %v2287, 0
      %v2327 = vsel %vm225, %v2288, 0
      %v2330 = vsel %vm225, %v2289, 0
      %v2333 = vsel %vm225, %v2290, 0
      %v2336 = vsel %vm225, %v2291, 0
      %v2339 = vsel %vm225, %v2292, 0
      %v2342 = vsel %vm225, %v2293, 0
      %v2345 = vsel %vm225, %v2294, 0
      %v2348 = vsel %vm225, %v2295, 0
      %v2351 = vsel %vm225, %v2296, 0
      %v2354 = vsel %vm225, %v2297, 0
      %v2357 = vsel %vm225, %v2298, 0
      %v2360 = vsel %vm225, %v2299, 0
      %v2363 = vsel %vm225, %v2300, 0
      %v2366 = vsel %vm225, %v2301, 0
      %v2369 = vsel %vm225, %v2302, 0
      %v2372 = vsel %vm225, %v2303, 0
      %v2375 = vsel %vm225, %v2304, 0
      %v2378 = vsel %vm225, %v2305, 0
      %v2381 = vsel %vm225, %v2306, 0
      %v2384 = vsel %vm225, %v2307, 0
      %v2387 = vsel %vm225, %v2308, 0
      %v2390 = vsel %vm225, %v2309, 0
      %v2393 = vsel %vm225, %v2310, 0
      %v2396 = vsel %vm225, %v2311, 0
      %v2399 = vsel %vm225, %v2312, 0
      %v2402 = vsel %vm225, %v2313, 0
      %v2405 = vsel %vm225, %v2314, 0
      %v2408 = vsel %vm225, %v2315, 0
      %v2411 = vsel %vm225, %v2316, 0
      %v2414 = vsel %vm225, %v2317, 0
      %v2417 = vsel %vm563, %v2319, 0
      %2419 = vmatprep.subr.mxu0 0.0
      %2420 = vmatpush1.msra.mxu0 %v2417
      %2421 = vmatprep.subr.mxu0 0.0
      %2422 = vmatpush1.msra.mxu0 0.0
      %2423 = vmatprep.subr.mxu0 0.0
      %2424 = vmatpush1.msra.mxu0 0.0
      %2425 = vmatprep.subr.mxu0 0.0
      %2426 = vmatpush1.msra.mxu0 0.0
      %2427 = vmatprep.subr.mxu0 0.0
      %2428 = vmatpush1.msra.mxu0 0.0
      %2429 = vmatprep.subr.mxu0 0.0
      %2430 = vmatpush1.msra.mxu0 0.0
      %2431 = vmatprep.subr.mxu0 0.0
      %2432 = vmatpush1.msra.mxu0 0.0
      %2433 = vmatprep.subr.mxu0 0.0
      %2434 = vmatpush1.msra.mxu0 0.0
      %2435 = vmatprep.subr.mxu0 0.0
      %2436 = vmatpush1.msra.mxu0 0.0
      %2437 = vmatprep.subr.mxu0 0.0
      %2438 = vmatpush1.msra.mxu0 0.0
      %2439 = vmatprep.subr.mxu0 0.0
      %2440 = vmatpush1.msra.mxu0 0.0
      %2441 = vmatprep.subr.mxu0 0.0
      %2442 = vmatpush1.msra.mxu0 0.0
      %2443 = vmatprep.subr.mxu0 0.0
      %2444 = vmatpush1.msra.mxu0 0.0
      %2445 = vmatprep.subr.mxu0 0.0
      %2446 = vmatpush1.msra.mxu0 0.0
      %2447 = vmatprep.subr.mxu0 0.0
      %2448 = vmatpush1.msra.mxu0 0.0
      %2449 = vmatprep.subr.mxu0 0.0
      %2450 = vmatpush1.msra.mxu0 0.0
      %2451 = vmatprep.subr.mxu0 0.0
      %2452 = vmatpush1.msra.mxu0 0.0
      %2453 = vmatprep.subr.mxu0 0.0
      %2454 = vmatpush1.msra.mxu0 0.0
      %2455 = vmatprep.subr.mxu0 0.0
      %2456 = vmatpush1.msra.mxu0 0.0
      %2457 = vmatprep.subr.mxu0 0.0
      %2458 = vmatpush1.msra.mxu0 0.0
      %2459 = vmatprep.subr.mxu0 0.0
      %2460 = vmatpush1.msra.mxu0 0.0
      %2461 = vmatprep.subr.mxu0 0.0
      %2462 = vmatpush1.msra.mxu0 0.0
      %2463 = vmatprep.subr.mxu0 0.0
      %2464 = vmatpush1.msra.mxu0 0.0
      %2465 = vmatprep.subr.mxu0 0.0
      %2466 = vmatpush1.msra.mxu0 0.0
      %2467 = vmatprep.subr.mxu0 0.0
      %2468 = vmatpush1.msra.mxu0 0.0
      %2469 = vmatprep.subr.mxu0 0.0
      %2470 = vmatpush1.msra.mxu0 0.0
      %2471 = vmatprep.subr.mxu0 0.0
      %2472 = vmatpush1.msra.mxu0 0.0
      %2473 = vmatprep.subr.mxu0 0.0
      %2474 = vmatpush1.msra.mxu0 0.0
      %2475 = vmatprep.subr.mxu0 0.0
      %2476 = vmatpush1.msra.mxu0 0.0
      %2477 = vmatprep.subr.mxu0 0.0
      %2478 = vmatpush1.msra.mxu0 0.0
      %2479 = vmatprep.subr.mxu0 0.0
      %2480 = vmatpush1.msra.mxu0 0.0
      %2481 = vmatprep.subr.mxu0 0.0
      %2482 = vmatpush1.msra.mxu0 0.0
      %2483 = vmatprep.mubr.f32.mxu0 0.0
      %2484 = vmatmul.mubr.f32.gmra.mrb[0].mxu0 %v2321
      %v2485 = vpop.f32.mrb[0].mxu0
      %v2486 = vadd.f32 0.0, %v2485
      %v2487 = vpop.f32.mrb[0].mxu0
      %2488 = vmatprep.mubr.f32.mxu0 0.0
      %2489 = vmatmul.mubr.f32.gmra.mrb[0].mxu0 %v2324
      %v2490 = vpop.f32.mrb[0].mxu0
      %v2491 = vadd.f32 0.0, %v2490
      %v2492 = vpop.f32.mrb[0].mxu0
      %2493 = vmatprep.mubr.f32.mxu0 0.0
      %2494 = vmatmul.mubr.f32.gmra.mrb[0].mxu0 %v2327
      %v2495 = vpop.f32.mrb[0].mxu0
      %v2496 = vadd.f32 0.0, %v2495
      %v2497 = vpop.f32.mrb[0].mxu0
      %2498 = vmatprep.mubr.f32.mxu0 0.0
      %2499 = vmatmul.mubr.f32.gmra.mrb[0].mxu0 %v2330
      %v2500 = vpop.f32.mrb[0].mxu0
      %v2501 = vadd.f32 0.0, %v2500
      %v2502 = vpop.f32.mrb[0].mxu0
      %2503 = vmatprep.mubr.f32.mxu0 0.0
      %2504 = vmatmul.mubr.f32.gmra.mrb[0].mxu0 %v2333
      %v2505 = vpop.f32.mrb[0].mxu0
      %v2506 = vadd.f32 0.0, %v2505
      %v2507 = vpop.f32.mrb[0].mxu0
      %2508 = vmatprep.mubr.f32.mxu0 0.0
      %2509 = vmatmul.mubr.f32.gmra.mrb[0].mxu0 %v2336
      %v2510 = vpop.f32.mrb[0].mxu0
      %v2511 = vadd.f32 0.0, %v2510
      %v2512 = vpop.f32.mrb[0].mxu0
      %2513 = vmatprep.mubr.f32.mxu0 0.0
      %2514 = vmatmul.mubr.f32.gmra.mrb[0].mxu0 %v2339
      %v2515 = vpop.f32.mrb[0].mxu0
      %v2516 = vadd.f32 0.0, %v2515
      %v2517 = vpop.f32.mrb[0].mxu0
      %2518 = vmatprep.mubr.f32.mxu0 0.0
      %2519 = vmatmul.mubr.f32.gmra.mrb[0].mxu0 %v2342
      %v2520 = vpop.f32.mrb[0].mxu0
      %v2521 = vadd.f32 0.0, %v2520
      %v2522 = vpop.f32.mrb[0].mxu0
      %2523 = vmatprep.mubr.f32.mxu0 0.0
      %2524 = vmatmul.mubr.f32.gmra.mrb[0].mxu0 %v2345
      %v2525 = vpop.f32.mrb[0].mxu0
      %v2526 = vadd.f32 0.0, %v2525
      %v2527 = vpop.f32.mrb[0].mxu0
      %2528 = vmatprep.mubr.f32.mxu0 0.0
      %2529 = vmatmul.mubr.f32.gmra.mrb[0].mxu0 %v2348
      %v2530 = vpop.f32.mrb[0].mxu0
      %v2531 = vadd.f32 0.0, %v2530
      %v2532 = vpop.f32.mrb[0].mxu0
      %2533 = vmatprep.mubr.f32.mxu0 0.0
      %2534 = vmatmul.mubr.f32.gmra.mrb[0].mxu0 %v2351
      %v2535 = vpop.f32.mrb[0].mxu0
      %v2536 = vadd.f32 0.0, %v2535
      %v2537 = vpop.f32.mrb[0].mxu0
      %2538 = vmatprep.mubr.f32.mxu0 0.0
      %2539 = vmatmul.mubr.f32.gmra.mrb[0].mxu0 %v2354
      %v2540 = vpop.f32.mrb[0].mxu0
      %v2541 = vadd.f32 0.0, %v2540
      %v2542 = vpop.f32.mrb[0].mxu0
      %2543 = vmatprep.mubr.f32.mxu0 0.0
      %2544 = vmatmul.mubr.f32.gmra.mrb[0].mxu0 %v2357
      %v2545 = vpop.f32.mrb[0].mxu0
      %v2546 = vadd.f32 0.0, %v2545
      %v2547 = vpop.f32.mrb[0].mxu0
      %2548 = vmatprep.mubr.f32.mxu0 0.0
      %2549 = vmatmul.mubr.f32.gmra.mrb[0].mxu0 %v2360
      %v2550 = vpop.f32.mrb[0].mxu0
      %v2551 = vadd.f32 0.0, %v2550
      %v2552 = vpop.f32.mrb[0].mxu0
      %2553 = vmatprep.mubr.f32.mxu0 0.0
      %2554 = vmatmul.mubr.f32.gmra.mrb[0].mxu0 %v2363
      %v2555 = vpop.f32.mrb[0].mxu0
      %v2556 = vadd.f32 0.0, %v2555
      %v2557 = vpop.f32.mrb[0].mxu0
      %2558 = vmatprep.mubr.f32.mxu0 0.0
      %2559 = vmatmul.mubr.f32.gmra.mrb[0].mxu0 %v2366
      %v2560 = vpop.f32.mrb[0].mxu0
      %v2561 = vadd.f32 0.0, %v2560
      %v2562 = vpop.f32.mrb[0].mxu0
      %2563 = vmatprep.mubr.f32.mxu0 0.0
      %2564 = vmatmul.mubr.f32.gmra.mrb[0].mxu0 %v2369
      %v2565 = vpop.f32.mrb[0].mxu0
      %v2566 = vadd.f32 0.0, %v2565
      %v2567 = vpop.f32.mrb[0].mxu0
      %2568 = vmatprep.mubr.f32.mxu0 0.0
      %2569 = vmatmul.mubr.f32.gmra.mrb[0].mxu0 %v2372
      %v2570 = vpop.f32.mrb[0].mxu0
      %v2571 = vadd.f32 0.0, %v2570
      %v2572 = vpop.f32.mrb[0].mxu0
      %2573 = vmatprep.mubr.f32.mxu0 0.0
      %2574 = vmatmul.mubr.f32.gmra.mrb[0].mxu0 %v2375
      %v2575 = vpop.f32.mrb[0].mxu0
      %v2576 = vadd.f32 0.0, %v2575
      %v2577 = vpop.f32.mrb[0].mxu0
      %2578 = vmatprep.mubr.f32.mxu0 0.0
      %2579 = vmatmul.mubr.f32.gmra.mrb[0].mxu0 %v2378
      %v2580 = vpop.f32.mrb[0].mxu0
      %v2581 = vadd.f32 0.0, %v2580
      %v2582 = vpop.f32.mrb[0].mxu0
      %2583 = vmatprep.mubr.f32.mxu0 0.0
      %2584 = vmatmul.mubr.f32.gmra.mrb[0].mxu0 %v2381
      %v2585 = vpop.f32.mrb[0].mxu0
      %v2586 = vadd.f32 0.0, %v2585
      %v2587 = vpop.f32.mrb[0].mxu0
      %2588 = vmatprep.mubr.f32.mxu0 0.0
      %2589 = vmatmul.mubr.f32.gmra.mrb[0].mxu0 %v2384
      %v2590 = vpop.f32.mrb[0].mxu0
      %v2591 = vadd.f32 0.0, %v2590
      %v2592 = vpop.f32.mrb[0].mxu0
      %2593 = vmatprep.mubr.f32.mxu0 0.0
      %2594 = vmatmul.mubr.f32.gmra.mrb[0].mxu0 %v2387
      %v2595 = vpop.f32.mrb[0].mxu0
      %v2596 = vadd.f32 0.0, %v2595
      %v2597 = vpop.f32.mrb[0].mxu0
      %2598 = vmatprep.mubr.f32.mxu0 0.0
      %2599 = vmatmul.mubr.f32.gmra.mrb[0].mxu0 %v2390
      %v2600 = vpop.f32.mrb[0].mxu0
      %v2601 = vadd.f32 0.0, %v2600
      %v2602 = vpop.f32.mrb[0].mxu0
      %2603 = vmatprep.mubr.f32.mxu0 0.0
      %2604 = vmatmul.mubr.f32.gmra.mrb[0].mxu0 %v2393
      %v2605 = vpop.f32.mrb[0].mxu0
      %v2606 = vadd.f32 0.0, %v2605
      %v2607 = vpop.f32.mrb[0].mxu0
      %2608 = vmatprep.mubr.f32.mxu0 0.0
      %2609 = vmatmul.mubr.f32.gmra.mrb[0].mxu0 %v2396
      %v2610 = vpop.f32.mrb[0].mxu0
      %v2611 = vadd.f32 0.0, %v2610
      %v2612 = vpop.f32.mrb[0].mxu0
      %2613 = vmatprep.mubr.f32.mxu0 0.0
      %2614 = vmatmul.mubr.f32.gmra.mrb[0].mxu0 %v2399
      %v2615 = vpop.f32.mrb[0].mxu0
      %v2616 = vadd.f32 0.0, %v2615
      %v2617 = vpop.f32.mrb[0].mxu0
      %2618 = vmatprep.mubr.f32.mxu0 0.0
      %2619 = vmatmul.mubr.f32.gmra.mrb[0].mxu0 %v2402
      %v2620 = vpop.f32.mrb[0].mxu0
      %v2621 = vadd.f32 0.0, %v2620
      %v2622 = vpop.f32.mrb[0].mxu0
      %2623 = vmatprep.mubr.f32.mxu0 0.0
      %2624 = vmatmul.mubr.f32.gmra.mrb[0].mxu0 %v2405
      %v2625 = vpop.f32.mrb[0].mxu0
      %v2626 = vadd.f32 0.0, %v2625
      %v2627 = vpop.f32.mrb[0].mxu0
      %2628 = vmatprep.mubr.f32.mxu0 0.0
      %2629 = vmatmul.mubr.f32.gmra.mrb[0].mxu0 %v2408
      %v2630 = vpop.f32.mrb[0].mxu0
      %v2631 = vadd.f32 0.0, %v2630
      %v2632 = vpop.f32.mrb[0].mxu0
      %2633 = vmatprep.mubr.f32.mxu0 0.0
      %2634 = vmatmul.mubr.f32.gmra.mrb[0].mxu0 %v2411
      %v2635 = vpop.f32.mrb[0].mxu0
      %v2636 = vadd.f32 0.0, %v2635
      %v2637 = vpop.f32.mrb[0].mxu0
      %2638 = vmatprep.mubr.f32.mxu0 0.0
      %2639 = vmatmul.mubr.f32.gmra.mrb[0].mxu0 %v2414
      %v2640 = vpop.f32.mrb[0].mxu0
      %v2641 = vadd.f32 0.0, %v2640
      %v2642 = vpop.f32.mrb[0].mxu0
      %2643 = vdwg.mxu0
      %v2644 = vadd.f32 %v2254, %v2486
      %v2645 = vadd.f32 %v2255, %v2491
      %v2646 = vadd.f32 %v2256, %v2496
      %v2647 = vadd.f32 %v2257, %v2501
      %v2648 = vadd.f32 %v2258, %v2506
      %v2649 = vadd.f32 %v2259, %v2511
      %v2650 = vadd.f32 %v2260, %v2516
      %v2651 = vadd.f32 %v2261, %v2521
      %v2652 = vadd.f32 %v2262, %v2526
      %v2653 = vadd.f32 %v2263, %v2531
      %v2654 = vadd.f32 %v2264, %v2536
      %v2655 = vadd.f32 %v2265, %v2541
      %v2656 = vadd.f32 %v2266, %v2546
      %v2657 = vadd.f32 %v2267, %v2551
      %v2658 = vadd.f32 %v2268, %v2556
      %v2659 = vadd.f32 %v2269, %v2561
      %v2660 = vadd.f32 %v2270, %v2566
      %v2661 = vadd.f32 %v2271, %v2571
      %v2662 = vadd.f32 %v2272, %v2576
      %v2663 = vadd.f32 %v2273, %v2581
      %v2664 = vadd.f32 %v2274, %v2586
      %v2665 = vadd.f32 %v2275, %v2591
      %v2666 = vadd.f32 %v2276, %v2596
      %v2667 = vadd.f32 %v2277, %v2601
      %v2668 = vadd.f32 %v2278, %v2606
      %v2669 = vadd.f32 %v2279, %v2611
      %v2670 = vadd.f32 %v2280, %v2616
      %v2671 = vadd.f32 %v2281, %v2621
      %v2672 = vadd.f32 %v2282, %v2626
      %v2673 = vadd.f32 %v2283, %v2631
      %v2674 = vadd.f32 %v2284, %v2636
      %v2675 = vadd.f32 %v2285, %v2641
      %s2676 = scalar_lea.vmem [#allocation2], 48
      %v2677 = vld [vmem:[%s2676] sm:$0xff]
      %v2678 = vld [vmem:[%s2676 + $0x8] sm:$0xff]
      %v2679 = vld [vmem:[%s2676 + $0x18] sm:$0xff]
      %v2680 = vld [vmem:[%s2676 + $0x20] sm:$0xff]
      %v2681 = vld [vmem:[%s2676 + $0x30] sm:$0xff]
      %v2682 = vld [vmem:[%s2676 + $0x38] sm:$0xff]
      %v2683 = vld [vmem:[%s2676 + $0x48] sm:$0xff]
      %v2684 = vld [vmem:[%s2676 + $0x50] sm:$0xff]
      %v2685 = vld [vmem:[%s2676 + $0x60] sm:$0xff]
      %v2686 = vld [vmem:[%s2676 + $0x68] sm:$0xff]
      %v2687 = vld [vmem:[%s2676 + $0x78] sm:$0xff]
      %v2688 = vld [vmem:[%s2676 + $0x80] sm:$0xff]
      %v2689 = vld [vmem:[%s2676 + $0x90] sm:$0xff]
      %v2690 = vld [vmem:[%s2676 + $0x98] sm:$0xff]
      %v2691 = vld [vmem:[%s2676 + $0xa8] sm:$0xff]
      %v2692 = vld [vmem:[%s2676 + $0xb0] sm:$0xff]
      %v2693 = vld [vmem:[%s2676 + $0xc0] sm:$0xff]
      %v2694 = vld [vmem:[%s2676 + $0xc8] sm:$0xff]
      %v2695 = vld [vmem:[%s2676 + $0xd8] sm:$0xff]
      %v2696 = vld [vmem:[%s2676 + $0xe0] sm:$0xff]
      %v2697 = vld [vmem:[%s2676 + $0xf0] sm:$0xff]
      %v2698 = vld [vmem:[%s2676 + $0xf8] sm:$0xff]
      %v2699 = vld [vmem:[%s2676 + $0x108] sm:$0xff]
      %v2700 = vld [vmem:[%s2676 + $0x110] sm:$0xff]
      %v2701 = vld [vmem:[%s2676 + $0x120] sm:$0xff]
      %v2702 = vld [vmem:[%s2676 + $0x128] sm:$0xff]
      %v2703 = vld [vmem:[%s2676 + $0x138] sm:$0xff]
      %v2704 = vld [vmem:[%s2676 + $0x140] sm:$0xff]
      %v2705 = vld [vmem:[%s2676 + $0x150] sm:$0xff]
      %v2706 = vld [vmem:[%s2676 + $0x158] sm:$0xff]
      %v2707 = vld [vmem:[%s2676 + $0x168] sm:$0xff]
      %v2708 = vld [vmem:[%s2676 + $0x170] sm:$0xff]
      %s2709 = scalar_lea.vmem %s1, 24
      %v2710 = vld [vmem:[%s2709] sm:$0xf]
      %v2712 = vsel %vm225, %v2677, 0
      %v2715 = vsel %vm225, %v2678, 0
      %v2718 = vsel %vm225, %v2679, 0
      %v2721 = vsel %vm225, %v2680, 0
      %v2724 = vsel %vm225, %v2681, 0
      %v2727 = vsel %vm225, %v2682, 0
      %v2730 = vsel %vm225, %v2683, 0
      %v2733 = vsel %vm225, %v2684, 0
      %v2736 = vsel %vm225, %v2685, 0
      %v2739 = vsel %vm225, %v2686, 0
      %v2742 = vsel %vm225, %v2687, 0
      %v2745 = vsel %vm225, %v2688, 0
      %v2748 = vsel %vm225, %v2689, 0
      %v2751 = vsel %vm225, %v2690, 0
      %v2754 = vsel %vm225, %v2691, 0
      %v2757 = vsel %vm225, %v2692, 0
      %v2760 = vsel %vm225, %v2693, 0
      %v2763 = vsel %vm225, %v2694, 0
      %v2766 = vsel %vm225, %v2695, 0
      %v2769 = vsel %vm225, %v2696, 0
      %v2772 = vsel %vm225, %v2697, 0
      %v2775 = vsel %vm225, %v2698, 0
      %v2778 = vsel %vm225, %v2699, 0
      %v2781 = vsel %vm225, %v2700, 0
      %v2784 = vsel %vm225, %v2701, 0
      %v2787 = vsel %vm225, %v2702, 0
      %v2790 = vsel %vm225, %v2703, 0
      %v2793 = vsel %vm225, %v2704, 0
      %v2796 = vsel %vm225, %v2705, 0
      %v2799 = vsel %vm225, %v2706, 0
      %v2802 = vsel %vm225, %v2707, 0
      %v2805 = vsel %vm225, %v2708, 0
      %v2808 = vsel %vm563, %v2710, 0
      %2810 = vmatprep.subr.mxu0 0.0
      %2811 = vmatpush1.msra.mxu0 %v2808
      %2812 = vmatprep.subr.mxu0 0.0
      %2813 = vmatpush1.msra.mxu0 0.0
      %2814 = vmatprep.subr.mxu0 0.0
      %2815 = vmatpush1.msra.mxu0 0.0
      %2816 = vmatprep.subr.mxu0 0.0
      %2817 = vmatpush1.msra.mxu0 0.0
      %2818 = vmatprep.subr.mxu0 0.0
      %2819 = vmatpush1.msra.mxu0 0.0
      %2820 = vmatprep.subr.mxu0 0.0
      %2821 = vmatpush1.msra.mxu0 0.0
      %2822 = vmatprep.subr.mxu0 0.0
      %2823 = vmatpush1.msra.mxu0 0.0
      %2824 = vmatprep.subr.mxu0 0.0
      %2825 = vmatpush1.msra.mxu0 0.0
      %2826 = vmatprep.subr.mxu0 0.0
      %2827 = vmatpush1.msra.mxu0 0.0
      %2828 = vmatprep.subr.mxu0 0.0
      %2829 = vmatpush1.msra.mxu0 0.0
      %2830 = vmatprep.subr.mxu0 0.0
      %2831 = vmatpush1.msra.mxu0 0.0
      %2832 = vmatprep.subr.mxu0 0.0
      %2833 = vmatpush1.msra.mxu0 0.0
      %2834 = vmatprep.subr.mxu0 0.0
      %2835 = vmatpush1.msra.mxu0 0.0
      %2836 = vmatprep.subr.mxu0 0.0
      %2837 = vmatpush1.msra.mxu0 0.0
      %2838 = vmatprep.subr.mxu0 0.0
      %2839 = vmatpush1.msra.mxu0 0.0
      %2840 = vmatprep.subr.mxu0 0.0
      %2841 = vmatpush1.msra.mxu0 0.0
      %2842 = vmatprep.subr.mxu0 0.0
      %2843 = vmatpush1.msra.mxu0 0.0
      %2844 = vmatprep.subr.mxu0 0.0
      %2845 = vmatpush1.msra.mxu0 0.0
      %2846 = vmatprep.subr.mxu0 0.0
      %2847 = vmatpush1.msra.mxu0 0.0
      %2848 = vmatprep.subr.mxu0 0.0
      %2849 = vmatpush1.msra.mxu0 0.0
      %2850 = vmatprep.subr.mxu0 0.0
      %2851 = vmatpush1.msra.mxu0 0.0
      %2852 = vmatprep.subr.mxu0 0.0
      %2853 = vmatpush1.msra.mxu0 0.0
      %2854 = vmatprep.subr.mxu0 0.0
      %2855 = vmatpush1.msra.mxu0 0.0
      %2856 = vmatprep.subr.mxu0 0.0
      %2857 = vmatpush1.msra.mxu0 0.0
      %2858 = vmatprep.subr.mxu0 0.0
      %2859 = vmatpush1.msra.mxu0 0.0
      %2860 = vmatprep.subr.mxu0 0.0
      %2861 = vmatpush1.msra.mxu0 0.0
      %2862 = vmatprep.subr.mxu0 0.0
      %2863 = vmatpush1.msra.mxu0 0.0
      %2864 = vmatprep.subr.mxu0 0.0
      %2865 = vmatpush1.msra.mxu0 0.0
      %2866 = vmatprep.subr.mxu0 0.0
      %2867 = vmatpush1.msra.mxu0 0.0
      %2868 = vmatprep.subr.mxu0 0.0
      %2869 = vmatpush1.msra.mxu0 0.0
      %2870 = vmatprep.subr.mxu0 0.0
      %2871 = vmatpush1.msra.mxu0 0.0
      %2872 = vmatprep.subr.mxu0 0.0
      %2873 = vmatpush1.msra.mxu0 0.0
      %2874 = vmatprep.mubr.f32.mxu0 0.0
      %2875 = vmatmul.mubr.f32.gmra.mrb[0].mxu0 %v2712
      %v2876 = vpop.f32.mrb[0].mxu0
      %v2877 = vadd.f32 0.0, %v2876
      %v2878 = vpop.f32.mrb[0].mxu0
      %2879 = vmatprep.mubr.f32.mxu0 0.0
      %2880 = vmatmul.mubr.f32.gmra.mrb[0].mxu0 %v2715
      %v2881 = vpop.f32.mrb[0].mxu0
      %v2882 = vadd.f32 0.0, %v2881
      %v2883 = vpop.f32.mrb[0].mxu0
      %2884 = vmatprep.mubr.f32.mxu0 0.0
      %2885 = vmatmul.mubr.f32.gmra.mrb[0].mxu0 %v2718
      %v2886 = vpop.f32.mrb[0].mxu0
      %v2887 = vadd.f32 0.0, %v2886
      %v2888 = vpop.f32.mrb[0].mxu0
      %2889 = vmatprep.mubr.f32.mxu0 0.0
      %2890 = vmatmul.mubr.f32.gmra.mrb[0].mxu0 %v2721
      %v2891 = vpop.f32.mrb[0].mxu0
      %v2892 = vadd.f32 0.0, %v2891
      %v2893 = vpop.f32.mrb[0].mxu0
      %2894 = vmatprep.mubr.f32.mxu0 0.0
      %2895 = vmatmul.mubr.f32.gmra.mrb[0].mxu0 %v2724
      %v2896 = vpop.f32.mrb[0].mxu0
      %v2897 = vadd.f32 0.0, %v2896
      %v2898 = vpop.f32.mrb[0].mxu0
      %2899 = vmatprep.mubr.f32.mxu0 0.0
      %2900 = vmatmul.mubr.f32.gmra.mrb[0].mxu0 %v2727
      %v2901 = vpop.f32.mrb[0].mxu0
      %v2902 = vadd.f32 0.0, %v2901
      %v2903 = vpop.f32.mrb[0].mxu0
      %2904 = vmatprep.mubr.f32.mxu0 0.0
      %2905 = vmatmul.mubr.f32.gmra.mrb[0].mxu0 %v2730
      %v2906 = vpop.f32.mrb[0].mxu0
      %v2907 = vadd.f32 0.0, %v2906
      %v2908 = vpop.f32.mrb[0].mxu0
      %2909 = vmatprep.mubr.f32.mxu0 0.0
      %2910 = vmatmul.mubr.f32.gmra.mrb[0].mxu0 %v2733
      %v2911 = vpop.f32.mrb[0].mxu0
      %v2912 = vadd.f32 0.0, %v2911
      %v2913 = vpop.f32.mrb[0].mxu0
      %2914 = vmatprep.mubr.f32.mxu0 0.0
      %2915 = vmatmul.mubr.f32.gmra.mrb[0].mxu0 %v2736
      %v2916 = vpop.f32.mrb[0].mxu0
      %v2917 = vadd.f32 0.0, %v2916
      %v2918 = vpop.f32.mrb[0].mxu0
      %2919 = vmatprep.mubr.f32.mxu0 0.0
      %2920 = vmatmul.mubr.f32.gmra.mrb[0].mxu0 %v2739
      %v2921 = vpop.f32.mrb[0].mxu0
      %v2922 = vadd.f32 0.0, %v2921
      %v2923 = vpop.f32.mrb[0].mxu0
      %2924 = vmatprep.mubr.f32.mxu0 0.0
      %2925 = vmatmul.mubr.f32.gmra.mrb[0].mxu0 %v2742
      %v2926 = vpop.f32.mrb[0].mxu0
      %v2927 = vadd.f32 0.0, %v2926
      %v2928 = vpop.f32.mrb[0].mxu0
      %2929 = vmatprep.mubr.f32.mxu0 0.0
      %2930 = vmatmul.mubr.f32.gmra.mrb[0].mxu0 %v2745
      %v2931 = vpop.f32.mrb[0].mxu0
      %v2932 = vadd.f32 0.0, %v2931
      %v2933 = vpop.f32.mrb[0].mxu0
      %2934 = vmatprep.mubr.f32.mxu0 0.0
      %2935 = vmatmul.mubr.f32.gmra.mrb[0].mxu0 %v2748
      %v2936 = vpop.f32.mrb[0].mxu0
      %v2937 = vadd.f32 0.0, %v2936
      %v2938 = vpop.f32.mrb[0].mxu0
      %2939 = vmatprep.mubr.f32.mxu0 0.0
      %2940 = vmatmul.mubr.f32.gmra.mrb[0].mxu0 %v2751
      %v2941 = vpop.f32.mrb[0].mxu0
      %v2942 = vadd.f32 0.0, %v2941
      %v2943 = vpop.f32.mrb[0].mxu0
      %2944 = vmatprep.mubr.f32.mxu0 0.0
      %2945 = vmatmul.mubr.f32.gmra.mrb[0].mxu0 %v2754
      %v2946 = vpop.f32.mrb[0].mxu0
      %v2947 = vadd.f32 0.0, %v2946
      %v2948 = vpop.f32.mrb[0].mxu0
      %2949 = vmatprep.mubr.f32.mxu0 0.0
      %2950 = vmatmul.mubr.f32.gmra.mrb[0].mxu0 %v2757
      %v2951 = vpop.f32.mrb[0].mxu0
      %v2952 = vadd.f32 0.0, %v2951
      %v2953 = vpop.f32.mrb[0].mxu0
      %2954 = vmatprep.mubr.f32.mxu0 0.0
      %2955 = vmatmul.mubr.f32.gmra.mrb[0].mxu0 %v2760
      %v2956 = vpop.f32.mrb[0].mxu0
      %v2957 = vadd.f32 0.0, %v2956
      %v2958 = vpop.f32.mrb[0].mxu0
      %2959 = vmatprep.mubr.f32.mxu0 0.0
      %2960 = vmatmul.mubr.f32.gmra.mrb[0].mxu0 %v2763
      %v2961 = vpop.f32.mrb[0].mxu0
      %v2962 = vadd.f32 0.0, %v2961
      %v2963 = vpop.f32.mrb[0].mxu0
      %2964 = vmatprep.mubr.f32.mxu0 0.0
      %2965 = vmatmul.mubr.f32.gmra.mrb[0].mxu0 %v2766
      %v2966 = vpop.f32.mrb[0].mxu0
      %v2967 = vadd.f32 0.0, %v2966
      %v2968 = vpop.f32.mrb[0].mxu0
      %2969 = vmatprep.mubr.f32.mxu0 0.0
      %2970 = vmatmul.mubr.f32.gmra.mrb[0].mxu0 %v2769
      %v2971 = vpop.f32.mrb[0].mxu0
      %v2972 = vadd.f32 0.0, %v2971
      %v2973 = vpop.f32.mrb[0].mxu0
      %2974 = vmatprep.mubr.f32.mxu0 0.0
      %2975 = vmatmul.mubr.f32.gmra.mrb[0].mxu0 %v2772
      %v2976 = vpop.f32.mrb[0].mxu0
      %v2977 = vadd.f32 0.0, %v2976
      %v2978 = vpop.f32.mrb[0].mxu0
      %2979 = vmatprep.mubr.f32.mxu0 0.0
      %2980 = vmatmul.mubr.f32.gmra.mrb[0].mxu0 %v2775
      %v2981 = vpop.f32.mrb[0].mxu0
      %v2982 = vadd.f32 0.0, %v2981
      %v2983 = vpop.f32.mrb[0].mxu0
      %2984 = vmatprep.mubr.f32.mxu0 0.0
      %2985 = vmatmul.mubr.f32.gmra.mrb[0].mxu0 %v2778
      %v2986 = vpop.f32.mrb[0].mxu0
      %v2987 = vadd.f32 0.0, %v2986
      %v2988 = vpop.f32.mrb[0].mxu0
      %2989 = vmatprep.mubr.f32.mxu0 0.0
      %2990 = vmatmul.mubr.f32.gmra.mrb[0].mxu0 %v2781
      %v2991 = vpop.f32.mrb[0].mxu0
      %v2992 = vadd.f32 0.0, %v2991
      %v2993 = vpop.f32.mrb[0].mxu0
      %2994 = vmatprep.mubr.f32.mxu0 0.0
      %2995 = vmatmul.mubr.f32.gmra.mrb[0].mxu0 %v2784
      %v2996 = vpop.f32.mrb[0].mxu0
      %v2997 = vadd.f32 0.0, %v2996
      %v2998 = vpop.f32.mrb[0].mxu0
      %2999 = vmatprep.mubr.f32.mxu0 0.0
      %3000 = vmatmul.mubr.f32.gmra.mrb[0].mxu0 %v2787
      %v3001 = vpop.f32.mrb[0].mxu0
      %v3002 = vadd.f32 0.0, %v3001
      %v3003 = vpop.f32.mrb[0].mxu0
      %3004 = vmatprep.mubr.f32.mxu0 0.0
      %3005 = vmatmul.mubr.f32.gmra.mrb[0].mxu0 %v2790
      %v3006 = vpop.f32.mrb[0].mxu0
      %v3007 = vadd.f32 0.0, %v3006
      %v3008 = vpop.f32.mrb[0].mxu0
      %3009 = vmatprep.mubr.f32.mxu0 0.0
      %3010 = vmatmul.mubr.f32.gmra.mrb[0].mxu0 %v2793
      %v3011 = vpop.f32.mrb[0].mxu0
      %v3012 = vadd.f32 0.0, %v3011
      %v3013 = vpop.f32.mrb[0].mxu0
      %3014 = vmatprep.mubr.f32.mxu0 0.0
      %3015 = vmatmul.mubr.f32.gmra.mrb[0].mxu0 %v2796
      %v3016 = vpop.f32.mrb[0].mxu0
      %v3017 = vadd.f32 0.0, %v3016
      %v3018 = vpop.f32.mrb[0].mxu0
      %3019 = vmatprep.mubr.f32.mxu0 0.0
      %3020 = vmatmul.mubr.f32.gmra.mrb[0].mxu0 %v2799
      %v3021 = vpop.f32.mrb[0].mxu0
      %v3022 = vadd.f32 0.0, %v3021
      %v3023 = vpop.f32.mrb[0].mxu0
      %3024 = vmatprep.mubr.f32.mxu0 0.0
      %3025 = vmatmul.mubr.f32.gmra.mrb[0].mxu0 %v2802
      %v3026 = vpop.f32.mrb[0].mxu0
      %v3027 = vadd.f32 0.0, %v3026
      %v3028 = vpop.f32.mrb[0].mxu0
      %3029 = vmatprep.mubr.f32.mxu0 0.0
      %3030 = vmatmul.mubr.f32.gmra.mrb[0].mxu0 %v2805
      %v3031 = vpop.f32.mrb[0].mxu0
      %v3032 = vadd.f32 0.0, %v3031
      %v3033 = vpop.f32.mrb[0].mxu0
      %3034 = vdwg.mxu0
      %v3035 = vadd.f32 %v2644, %v2877
      %v3036 = vadd.f32 %v2645, %v2882
      %v3037 = vadd.f32 %v2646, %v2887
      %v3038 = vadd.f32 %v2647, %v2892
      %v3039 = vadd.f32 %v2648, %v2897
      %v3040 = vadd.f32 %v2649, %v2902
      %v3041 = vadd.f32 %v2650, %v2907
      %v3042 = vadd.f32 %v2651, %v2912
      %v3043 = vadd.f32 %v2652, %v2917
      %v3044 = vadd.f32 %v2653, %v2922
      %v3045 = vadd.f32 %v2654, %v2927
      %v3046 = vadd.f32 %v2655, %v2932
      %v3047 = vadd.f32 %v2656, %v2937
      %v3048 = vadd.f32 %v2657, %v2942
      %v3049 = vadd.f32 %v2658, %v2947
      %v3050 = vadd.f32 %v2659, %v2952
      %v3051 = vadd.f32 %v2660, %v2957
      %v3052 = vadd.f32 %v2661, %v2962
      %v3053 = vadd.f32 %v2662, %v2967
      %v3054 = vadd.f32 %v2663, %v2972
      %v3055 = vadd.f32 %v2664, %v2977
      %v3056 = vadd.f32 %v2665, %v2982
      %v3057 = vadd.f32 %v2666, %v2987
      %v3058 = vadd.f32 %v2667, %v2992
      %v3059 = vadd.f32 %v2668, %v2997
      %v3060 = vadd.f32 %v2669, %v3002
      %v3061 = vadd.f32 %v2670, %v3007
      %v3062 = vadd.f32 %v2671, %v3012
      %v3063 = vadd.f32 %v2672, %v3017
      %v3064 = vadd.f32 %v2673, %v3022
      %v3065 = vadd.f32 %v2674, %v3027
      %v3066 = vadd.f32 %v2675, %v3032
      %v3067 = vld [vmem:[%s2676 + $0x1] sm:$0xff]
      %v3068 = vld [vmem:[%s2676 + $0x9] sm:$0xff]
      %v3069 = vld [vmem:[%s2676 + $0x19] sm:$0xff]
      %v3070 = vld [vmem:[%s2676 + $0x21] sm:$0xff]
      %v3071 = vld [vmem:[%s2676 + $0x31] sm:$0xff]
      %v3072 = vld [vmem:[%s2676 + $0x39] sm:$0xff]
      %v3073 = vld [vmem:[%s2676 + $0x49] sm:$0xff]
      %v3074 = vld [vmem:[%s2676 + $0x51] sm:$0xff]
      %v3075 = vld [vmem:[%s2676 + $0x61] sm:$0xff]
      %v3076 = vld [vmem:[%s2676 + $0x69] sm:$0xff]
      %v3077 = vld [vmem:[%s2676 + $0x79] sm:$0xff]
      %v3078 = vld [vmem:[%s2676 + $0x81] sm:$0xff]
      %v3079 = vld [vmem:[%s2676 + $0x91] sm:$0xff]
      %v3080 = vld [vmem:[%s2676 + $0x99] sm:$0xff]
      %v3081 = vld [vmem:[%s2676 + $0xa9] sm:$0xff]
      %v3082 = vld [vmem:[%s2676 + $0xb1] sm:$0xff]
      %v3083 = vld [vmem:[%s2676 + $0xc1] sm:$0xff]
      %v3084 = vld [vmem:[%s2676 + $0xc9] sm:$0xff]
      %v3085 = vld [vmem:[%s2676 + $0xd9] sm:$0xff]
      %v3086 = vld [vmem:[%s2676 + $0xe1] sm:$0xff]
      %v3087 = vld [vmem:[%s2676 + $0xf1] sm:$0xff]
      %v3088 = vld [vmem:[%s2676 + $0xf9] sm:$0xff]
      %v3089 = vld [vmem:[%s2676 + $0x109] sm:$0xff]
      %v3090 = vld [vmem:[%s2676 + $0x111] sm:$0xff]
      %v3091 = vld [vmem:[%s2676 + $0x121] sm:$0xff]
      %v3092 = vld [vmem:[%s2676 + $0x129] sm:$0xff]
      %v3093 = vld [vmem:[%s2676 + $0x139] sm:$0xff]
      %v3094 = vld [vmem:[%s2676 + $0x141] sm:$0xff]
      %v3095 = vld [vmem:[%s2676 + $0x151] sm:$0xff]
      %v3096 = vld [vmem:[%s2676 + $0x159] sm:$0xff]
      %v3097 = vld [vmem:[%s2676 + $0x169] sm:$0xff]
      %v3098 = vld [vmem:[%s2676 + $0x171] sm:$0xff]
      %s3099 = scalar_lea.vmem %s1, 28
      %v3100 = vld [vmem:[%s3099] sm:$0xf]
      %v3102 = vsel %vm225, %v3067, 0
      %v3105 = vsel %vm225, %v3068, 0
      %v3108 = vsel %vm225, %v3069, 0
      %v3111 = vsel %vm225, %v3070, 0
      %v3114 = vsel %vm225, %v3071, 0
      %v3117 = vsel %vm225, %v3072, 0
      %v3120 = vsel %vm225, %v3073, 0
      %v3123 = vsel %vm225, %v3074, 0
      %v3126 = vsel %vm225, %v3075, 0
      %v3129 = vsel %vm225, %v3076, 0
      %v3132 = vsel %vm225, %v3077, 0
      %v3135 = vsel %vm225, %v3078, 0
      %v3138 = vsel %vm225, %v3079, 0
      %v3141 = vsel %vm225, %v3080, 0
      %v3144 = vsel %vm225, %v3081, 0
      %v3147 = vsel %vm225, %v3082, 0
      %v3150 = vsel %vm225, %v3083, 0
      %v3153 = vsel %vm225, %v3084, 0
      %v3156 = vsel %vm225, %v3085, 0
      %v3159 = vsel %vm225, %v3086, 0
      %v3162 = vsel %vm225, %v3087, 0
      %v3165 = vsel %vm225, %v3088, 0
      %v3168 = vsel %vm225, %v3089, 0
      %v3171 = vsel %vm225, %v3090, 0
      %v3174 = vsel %vm225, %v3091, 0
      %v3177 = vsel %vm225, %v3092, 0
      %v3180 = vsel %vm225, %v3093, 0
      %v3183 = vsel %vm225, %v3094, 0
      %v3186 = vsel %vm225, %v3095, 0
      %v3189 = vsel %vm225, %v3096, 0
      %v3192 = vsel %vm225, %v3097, 0
      %v3195 = vsel %vm225, %v3098, 0
      %v3198 = vsel %vm563, %v3100, 0
      %3200 = vmatprep.subr.mxu0 0.0
      %3201 = vmatpush1.msra.mxu0 %v3198
      %3202 = vmatprep.subr.mxu0 0.0
      %3203 = vmatpush1.msra.mxu0 0.0
      %3204 = vmatprep.subr.mxu0 0.0
      %3205 = vmatpush1.msra.mxu0 0.0
      %3206 = vmatprep.subr.mxu0 0.0
      %3207 = vmatpush1.msra.mxu0 0.0
      %3208 = vmatprep.subr.mxu0 0.0
      %3209 = vmatpush1.msra.mxu0 0.0
      %3210 = vmatprep.subr.mxu0 0.0
      %3211 = vmatpush1.msra.mxu0 0.0
      %3212 = vmatprep.subr.mxu0 0.0
      %3213 = vmatpush1.msra.mxu0 0.0
      %3214 = vmatprep.subr.mxu0 0.0
      %3215 = vmatpush1.msra.mxu0 0.0
      %3216 = vmatprep.subr.mxu0 0.0
      %3217 = vmatpush1.msra.mxu0 0.0
      %3218 = vmatprep.subr.mxu0 0.0
      %3219 = vmatpush1.msra.mxu0 0.0
      %3220 = vmatprep.subr.mxu0 0.0
      %3221 = vmatpush1.msra.mxu0 0.0
      %3222 = vmatprep.subr.mxu0 0.0
      %3223 = vmatpush1.msra.mxu0 0.0
      %3224 = vmatprep.subr.mxu0 0.0
      %3225 = vmatpush1.msra.mxu0 0.0
      %3226 = vmatprep.subr.mxu0 0.0
      %3227 = vmatpush1.msra.mxu0 0.0
      %3228 = vmatprep.subr.mxu0 0.0
      %3229 = vmatpush1.msra.mxu0 0.0
      %3230 = vmatprep.subr.mxu0 0.0
      %3231 = vmatpush1.msra.mxu0 0.0
      %3232 = vmatprep.subr.mxu0 0.0
      %3233 = vmatpush1.msra.mxu0 0.0
      %3234 = vmatprep.subr.mxu0 0.0
      %3235 = vmatpush1.msra.mxu0 0.0
      %3236 = vmatprep.subr.mxu0 0.0
      %3237 = vmatpush1.msra.mxu0 0.0
      %3238 = vmatprep.subr.mxu0 0.0
      %3239 = vmatpush1.msra.mxu0 0.0
      %3240 = vmatprep.subr.mxu0 0.0
      %3241 = vmatpush1.msra.mxu0 0.0
      %3242 = vmatprep.subr.mxu0 0.0
      %3243 = vmatpush1.msra.mxu0 0.0
      %3244 = vmatprep.subr.mxu0 0.0
      %3245 = vmatpush1.msra.mxu0 0.0
      %3246 = vmatprep.subr.mxu0 0.0
      %3247 = vmatpush1.msra.mxu0 0.0
      %3248 = vmatprep.subr.mxu0 0.0
      %3249 = vmatpush1.msra.mxu0 0.0
      %3250 = vmatprep.subr.mxu0 0.0
      %3251 = vmatpush1.msra.mxu0 0.0
      %3252 = vmatprep.subr.mxu0 0.0
      %3253 = vmatpush1.msra.mxu0 0.0
      %3254 = vmatprep.subr.mxu0 0.0
      %3255 = vmatpush1.msra.mxu0 0.0
      %3256 = vmatprep.subr.mxu0 0.0
      %3257 = vmatpush1.msra.mxu0 0.0
      %3258 = vmatprep.subr.mxu0 0.0
      %3259 = vmatpush1.msra.mxu0 0.0
      %3260 = vmatprep.subr.mxu0 0.0
      %3261 = vmatpush1.msra.mxu0 0.0
      %3262 = vmatprep.subr.mxu0 0.0
      %3263 = vmatpush1.msra.mxu0 0.0
      %3264 = vmatprep.mubr.f32.mxu0 0.0
      %3265 = vmatmul.mubr.f32.gmra.mrb[0].mxu0 %v3102
      %v3266 = vpop.f32.mrb[0].mxu0
      %v3267 = vadd.f32 0.0, %v3266
      %v3268 = vpop.f32.mrb[0].mxu0
      %3269 = vmatprep.mubr.f32.mxu0 0.0
      %3270 = vmatmul.mubr.f32.gmra.mrb[0].mxu0 %v3105
      %v3271 = vpop.f32.mrb[0].mxu0
      %v3272 = vadd.f32 0.0, %v3271
      %v3273 = vpop.f32.mrb[0].mxu0
      %3274 = vmatprep.mubr.f32.mxu0 0.0
      %3275 = vmatmul.mubr.f32.gmra.mrb[0].mxu0 %v3108
      %v3276 = vpop.f32.mrb[0].mxu0
      %v3277 = vadd.f32 0.0, %v3276
      %v3278 = vpop.f32.mrb[0].mxu0
      %3279 = vmatprep.mubr.f32.mxu0 0.0
      %3280 = vmatmul.mubr.f32.gmra.mrb[0].mxu0 %v3111
      %v3281 = vpop.f32.mrb[0].mxu0
      %v3282 = vadd.f32 0.0, %v3281
      %v3283 = vpop.f32.mrb[0].mxu0
      %3284 = vmatprep.mubr.f32.mxu0 0.0
      %3285 = vmatmul.mubr.f32.gmra.mrb[0].mxu0 %v3114
      %v3286 = vpop.f32.mrb[0].mxu0
      %v3287 = vadd.f32 0.0, %v3286
      %v3288 = vpop.f32.mrb[0].mxu0
      %3289 = vmatprep.mubr.f32.mxu0 0.0
      %3290 = vmatmul.mubr.f32.gmra.mrb[0].mxu0 %v3117
      %v3291 = vpop.f32.mrb[0].mxu0
      %v3292 = vadd.f32 0.0, %v3291
      %v3293 = vpop.f32.mrb[0].mxu0
      %3294 = vmatprep.mubr.f32.mxu0 0.0
      %3295 = vmatmul.mubr.f32.gmra.mrb[0].mxu0 %v3120
      %v3296 = vpop.f32.mrb[0].mxu0
      %v3297 = vadd.f32 0.0, %v3296
      %v3298 = vpop.f32.mrb[0].mxu0
      %3299 = vmatprep.mubr.f32.mxu0 0.0
      %3300 = vmatmul.mubr.f32.gmra.mrb[0].mxu0 %v3123
      %v3301 = vpop.f32.mrb[0].mxu0
      %v3302 = vadd.f32 0.0, %v3301
      %v3303 = vpop.f32.mrb[0].mxu0
      %3304 = vmatprep.mubr.f32.mxu0 0.0
      %3305 = vmatmul.mubr.f32.gmra.mrb[0].mxu0 %v3126
      %v3306 = vpop.f32.mrb[0].mxu0
      %v3307 = vadd.f32 0.0, %v3306
      %v3308 = vpop.f32.mrb[0].mxu0
      %3309 = vmatprep.mubr.f32.mxu0 0.0
      %3310 = vmatmul.mubr.f32.gmra.mrb[0].mxu0 %v3129
      %v3311 = vpop.f32.mrb[0].mxu0
      %v3312 = vadd.f32 0.0, %v3311
      %v3313 = vpop.f32.mrb[0].mxu0
      %3314 = vmatprep.mubr.f32.mxu0 0.0
      %3315 = vmatmul.mubr.f32.gmra.mrb[0].mxu0 %v3132
      %v3316 = vpop.f32.mrb[0].mxu0
      %v3317 = vadd.f32 0.0, %v3316
      %v3318 = vpop.f32.mrb[0].mxu0
      %3319 = vmatprep.mubr.f32.mxu0 0.0
      %3320 = vmatmul.mubr.f32.gmra.mrb[0].mxu0 %v3135
      %v3321 = vpop.f32.mrb[0].mxu0
      %v3322 = vadd.f32 0.0, %v3321
      %v3323 = vpop.f32.mrb[0].mxu0
      %3324 = vmatprep.mubr.f32.mxu0 0.0
      %3325 = vmatmul.mubr.f32.gmra.mrb[0].mxu0 %v3138
      %v3326 = vpop.f32.mrb[0].mxu0
      %v3327 = vadd.f32 0.0, %v3326
      %v3328 = vpop.f32.mrb[0].mxu0
      %3329 = vmatprep.mubr.f32.mxu0 0.0
      %3330 = vmatmul.mubr.f32.gmra.mrb[0].mxu0 %v3141
      %v3331 = vpop.f32.mrb[0].mxu0
      %v3332 = vadd.f32 0.0, %v3331
      %v3333 = vpop.f32.mrb[0].mxu0
      %3334 = vmatprep.mubr.f32.mxu0 0.0
      %3335 = vmatmul.mubr.f32.gmra.mrb[0].mxu0 %v3144
      %v3336 = vpop.f32.mrb[0].mxu0
      %v3337 = vadd.f32 0.0, %v3336
      %v3338 = vpop.f32.mrb[0].mxu0
      %3339 = vmatprep.mubr.f32.mxu0 0.0
      %3340 = vmatmul.mubr.f32.gmra.mrb[0].mxu0 %v3147
      %v3341 = vpop.f32.mrb[0].mxu0
      %v3342 = vadd.f32 0.0, %v3341
      %v3343 = vpop.f32.mrb[0].mxu0
      %3344 = vmatprep.mubr.f32.mxu0 0.0
      %3345 = vmatmul.mubr.f32.gmra.mrb[0].mxu0 %v3150
      %v3346 = vpop.f32.mrb[0].mxu0
      %v3347 = vadd.f32 0.0, %v3346
      %v3348 = vpop.f32.mrb[0].mxu0
      %3349 = vmatprep.mubr.f32.mxu0 0.0
      %3350 = vmatmul.mubr.f32.gmra.mrb[0].mxu0 %v3153
      %v3351 = vpop.f32.mrb[0].mxu0
      %v3352 = vadd.f32 0.0, %v3351
      %v3353 = vpop.f32.mrb[0].mxu0
      %3354 = vmatprep.mubr.f32.mxu0 0.0
      %3355 = vmatmul.mubr.f32.gmra.mrb[0].mxu0 %v3156
      %v3356 = vpop.f32.mrb[0].mxu0
      %v3357 = vadd.f32 0.0, %v3356
      %v3358 = vpop.f32.mrb[0].mxu0
      %3359 = vmatprep.mubr.f32.mxu0 0.0
      %3360 = vmatmul.mubr.f32.gmra.mrb[0].mxu0 %v3159
      %v3361 = vpop.f32.mrb[0].mxu0
      %v3362 = vadd.f32 0.0, %v3361
      %v3363 = vpop.f32.mrb[0].mxu0
      %3364 = vmatprep.mubr.f32.mxu0 0.0
      %3365 = vmatmul.mubr.f32.gmra.mrb[0].mxu0 %v3162
      %v3366 = vpop.f32.mrb[0].mxu0
      %v3367 = vadd.f32 0.0, %v3366
      %v3368 = vpop.f32.mrb[0].mxu0
      %3369 = vmatprep.mubr.f32.mxu0 0.0
      %3370 = vmatmul.mubr.f32.gmra.mrb[0].mxu0 %v3165
      %v3371 = vpop.f32.mrb[0].mxu0
      %v3372 = vadd.f32 0.0, %v3371
      %v3373 = vpop.f32.mrb[0].mxu0
      %3374 = vmatprep.mubr.f32.mxu0 0.0
      %3375 = vmatmul.mubr.f32.gmra.mrb[0].mxu0 %v3168
      %v3376 = vpop.f32.mrb[0].mxu0
      %v3377 = vadd.f32 0.0, %v3376
      %v3378 = vpop.f32.mrb[0].mxu0
      %3379 = vmatprep.mubr.f32.mxu0 0.0
      %3380 = vmatmul.mubr.f32.gmra.mrb[0].mxu0 %v3171
      %v3381 = vpop.f32.mrb[0].mxu0
      %v3382 = vadd.f32 0.0, %v3381
      %v3383 = vpop.f32.mrb[0].mxu0
      %3384 = vmatprep.mubr.f32.mxu0 0.0
      %3385 = vmatmul.mubr.f32.gmra.mrb[0].mxu0 %v3174
      %v3386 = vpop.f32.mrb[0].mxu0
      %v3387 = vadd.f32 0.0, %v3386
      %v3388 = vpop.f32.mrb[0].mxu0
      %3389 = vmatprep.mubr.f32.mxu0 0.0
      %3390 = vmatmul.mubr.f32.gmra.mrb[0].mxu0 %v3177
      %v3391 = vpop.f32.mrb[0].mxu0
      %v3392 = vadd.f32 0.0, %v3391
      %v3393 = vpop.f32.mrb[0].mxu0
      %3394 = vmatprep.mubr.f32.mxu0 0.0
      %3395 = vmatmul.mubr.f32.gmra.mrb[0].mxu0 %v3180
      %v3396 = vpop.f32.mrb[0].mxu0
      %v3397 = vadd.f32 0.0, %v3396
      %v3398 = vpop.f32.mrb[0].mxu0
      %3399 = vmatprep.mubr.f32.mxu0 0.0
      %3400 = vmatmul.mubr.f32.gmra.mrb[0].mxu0 %v3183
      %v3401 = vpop.f32.mrb[0].mxu0
      %v3402 = vadd.f32 0.0, %v3401
      %v3403 = vpop.f32.mrb[0].mxu0
      %3404 = vmatprep.mubr.f32.mxu0 0.0
      %3405 = vmatmul.mubr.f32.gmra.mrb[0].mxu0 %v3186
      %v3406 = vpop.f32.mrb[0].mxu0
      %v3407 = vadd.f32 0.0, %v3406
      %v3408 = vpop.f32.mrb[0].mxu0
      %3409 = vmatprep.mubr.f32.mxu0 0.0
      %3410 = vmatmul.mubr.f32.gmra.mrb[0].mxu0 %v3189
      %v3411 = vpop.f32.mrb[0].mxu0
      %v3412 = vadd.f32 0.0, %v3411
      %v3413 = vpop.f32.mrb[0].mxu0
      %3414 = vmatprep.mubr.f32.mxu0 0.0
      %3415 = vmatmul.mubr.f32.gmra.mrb[0].mxu0 %v3192
      %v3416 = vpop.f32.mrb[0].mxu0
      %v3417 = vadd.f32 0.0, %v3416
      %v3418 = vpop.f32.mrb[0].mxu0
      %3419 = vmatprep.mubr.f32.mxu0 0.0
      %3420 = vmatmul.mubr.f32.gmra.mrb[0].mxu0 %v3195
      %v3421 = vpop.f32.mrb[0].mxu0
      %v3422 = vadd.f32 0.0, %v3421
      %v3423 = vpop.f32.mrb[0].mxu0
      %3424 = vdwg.mxu0
      %v3425 = vadd.f32 %v3035, %v3267
      %v3426 = vadd.f32 %v3036, %v3272
      %v3427 = vadd.f32 %v3037, %v3277
      %v3428 = vadd.f32 %v3038, %v3282
      %v3429 = vadd.f32 %v3039, %v3287
      %v3430 = vadd.f32 %v3040, %v3292
      %v3431 = vadd.f32 %v3041, %v3297
      %v3432 = vadd.f32 %v3042, %v3302
      %v3433 = vadd.f32 %v3043, %v3307
      %v3434 = vadd.f32 %v3044, %v3312
      %v3435 = vadd.f32 %v3045, %v3317
      %v3436 = vadd.f32 %v3046, %v3322
      %v3437 = vadd.f32 %v3047, %v3327
      %v3438 = vadd.f32 %v3048, %v3332
      %v3439 = vadd.f32 %v3049, %v3337
      %v3440 = vadd.f32 %v3050, %v3342
      %v3441 = vadd.f32 %v3051, %v3347
      %v3442 = vadd.f32 %v3052, %v3352
      %v3443 = vadd.f32 %v3053, %v3357
      %v3444 = vadd.f32 %v3054, %v3362
      %v3445 = vadd.f32 %v3055, %v3367
      %v3446 = vadd.f32 %v3056, %v3372
      %v3447 = vadd.f32 %v3057, %v3377
      %v3448 = vadd.f32 %v3058, %v3382
      %v3449 = vadd.f32 %v3059, %v3387
      %v3450 = vadd.f32 %v3060, %v3392
      %v3451 = vadd.f32 %v3061, %v3397
      %v3452 = vadd.f32 %v3062, %v3402
      %v3453 = vadd.f32 %v3063, %v3407
      %v3454 = vadd.f32 %v3064, %v3412
      %v3455 = vadd.f32 %v3065, %v3417
      %v3456 = vadd.f32 %v3066, %v3422
      %v3457 = vld [vmem:[%s2676 + $0x2] sm:$0xff]
      %v3458 = vld [vmem:[%s2676 + $0xa] sm:$0xff]
      %v3459 = vld [vmem:[%s2676 + $0x1a] sm:$0xff]
      %v3460 = vld [vmem:[%s2676 + $0x22] sm:$0xff]
      %v3461 = vld [vmem:[%s2676 + $0x32] sm:$0xff]
      %v3462 = vld [vmem:[%s2676 + $0x3a] sm:$0xff]
      %v3463 = vld [vmem:[%s2676 + $0x4a] sm:$0xff]
      %v3464 = vld [vmem:[%s2676 + $0x52] sm:$0xff]
      %v3465 = vld [vmem:[%s2676 + $0x62] sm:$0xff]
      %v3466 = vld [vmem:[%s2676 + $0x6a] sm:$0xff]
      %v3467 = vld [vmem:[%s2676 + $0x7a] sm:$0xff]
      %v3468 = vld [vmem:[%s2676 + $0x82] sm:$0xff]
      %v3469 = vld [vmem:[%s2676 + $0x92] sm:$0xff]
      %v3470 = vld [vmem:[%s2676 + $0x9a] sm:$0xff]
      %v3471 = vld [vmem:[%s2676 + $0xaa] sm:$0xff]
      %v3472 = vld [vmem:[%s2676 + $0xb2] sm:$0xff]
      %v3473 = vld [vmem:[%s2676 + $0xc2] sm:$0xff]
      %v3474 = vld [vmem:[%s2676 + $0xca] sm:$0xff]
      %v3475 = vld [vmem:[%s2676 + $0xda] sm:$0xff]
      %v3476 = vld [vmem:[%s2676 + $0xe2] sm:$0xff]
      %v3477 = vld [vmem:[%s2676 + $0xf2] sm:$0xff]
      %v3478 = vld [vmem:[%s2676 + $0xfa] sm:$0xff]
      %v3479 = vld [vmem:[%s2676 + $0x10a] sm:$0xff]
      %v3480 = vld [vmem:[%s2676 + $0x112] sm:$0xff]
      %v3481 = vld [vmem:[%s2676 + $0x122] sm:$0xff]
      %v3482 = vld [vmem:[%s2676 + $0x12a] sm:$0xff]
      %v3483 = vld [vmem:[%s2676 + $0x13a] sm:$0xff]
      %v3484 = vld [vmem:[%s2676 + $0x142] sm:$0xff]
      %v3485 = vld [vmem:[%s2676 + $0x152] sm:$0xff]
      %v3486 = vld [vmem:[%s2676 + $0x15a] sm:$0xff]
      %v3487 = vld [vmem:[%s2676 + $0x16a] sm:$0xff]
      %v3488 = vld [vmem:[%s2676 + $0x172] sm:$0xff]
      %s3489 = scalar_lea.vmem %s1, 32
      %v3490 = vld [vmem:[%s3489] sm:$0xf]
      %v3492 = vsel %vm225, %v3457, 0
      %v3495 = vsel %vm225, %v3458, 0
      %v3498 = vsel %vm225, %v3459, 0
      %v3501 = vsel %vm225, %v3460, 0
      %v3504 = vsel %vm225, %v3461, 0
      %v3507 = vsel %vm225, %v3462, 0
      %v3510 = vsel %vm225, %v3463, 0
      %v3513 = vsel %vm225, %v3464, 0
      %v3516 = vsel %vm225, %v3465, 0
      %v3519 = vsel %vm225, %v3466, 0
      %v3522 = vsel %vm225, %v3467, 0
      %v3525 = vsel %vm225, %v3468, 0
      %v3528 = vsel %vm225, %v3469, 0
      %v3531 = vsel %vm225, %v3470, 0
      %v3534 = vsel %vm225, %v3471, 0
      %v3537 = vsel %vm225, %v3472, 0
      %v3540 = vsel %vm225, %v3473, 0
      %v3543 = vsel %vm225, %v3474, 0
      %v3546 = vsel %vm225, %v3475, 0
      %v3549 = vsel %vm225, %v3476, 0
      %v3552 = vsel %vm225, %v3477, 0
      %v3555 = vsel %vm225, %v3478, 0
      %v3558 = vsel %vm225, %v3479, 0
      %v3561 = vsel %vm225, %v3480, 0
      %v3564 = vsel %vm225, %v3481, 0
      %v3567 = vsel %vm225, %v3482, 0
      %v3570 = vsel %vm225, %v3483, 0
      %v3573 = vsel %vm225, %v3484, 0
      %v3576 = vsel %vm225, %v3485, 0
      %v3579 = vsel %vm225, %v3486, 0
      %v3582 = vsel %vm225, %v3487, 0
      %v3585 = vsel %vm225, %v3488, 0
      %v3588 = vsel %vm563, %v3490, 0
      %3590 = vmatprep.subr.mxu0 0.0
      %3591 = vmatpush1.msra.mxu0 %v3588
      %3592 = vmatprep.subr.mxu0 0.0
      %3593 = vmatpush1.msra.mxu0 0.0
      %3594 = vmatprep.subr.mxu0 0.0
      %3595 = vmatpush1.msra.mxu0 0.0
      %3596 = vmatprep.subr.mxu0 0.0
      %3597 = vmatpush1.msra.mxu0 0.0
      %3598 = vmatprep.subr.mxu0 0.0
      %3599 = vmatpush1.msra.mxu0 0.0
      %3600 = vmatprep.subr.mxu0 0.0
      %3601 = vmatpush1.msra.mxu0 0.0
      %3602 = vmatprep.subr.mxu0 0.0
      %3603 = vmatpush1.msra.mxu0 0.0
      %3604 = vmatprep.subr.mxu0 0.0
      %3605 = vmatpush1.msra.mxu0 0.0
      %3606 = vmatprep.subr.mxu0 0.0
      %3607 = vmatpush1.msra.mxu0 0.0
      %3608 = vmatprep.subr.mxu0 0.0
      %3609 = vmatpush1.msra.mxu0 0.0
      %3610 = vmatprep.subr.mxu0 0.0
      %3611 = vmatpush1.msra.mxu0 0.0
      %3612 = vmatprep.subr.mxu0 0.0
      %3613 = vmatpush1.msra.mxu0 0.0
      %3614 = vmatprep.subr.mxu0 0.0
      %3615 = vmatpush1.msra.mxu0 0.0
      %3616 = vmatprep.subr.mxu0 0.0
      %3617 = vmatpush1.msra.mxu0 0.0
      %3618 = vmatprep.subr.mxu0 0.0
      %3619 = vmatpush1.msra.mxu0 0.0
      %3620 = vmatprep.subr.mxu0 0.0
      %3621 = vmatpush1.msra.mxu0 0.0
      %3622 = vmatprep.subr.mxu0 0.0
      %3623 = vmatpush1.msra.mxu0 0.0
      %3624 = vmatprep.subr.mxu0 0.0
      %3625 = vmatpush1.msra.mxu0 0.0
      %3626 = vmatprep.subr.mxu0 0.0
      %3627 = vmatpush1.msra.mxu0 0.0
      %3628 = vmatprep.subr.mxu0 0.0
      %3629 = vmatpush1.msra.mxu0 0.0
      %3630 = vmatprep.subr.mxu0 0.0
      %3631 = vmatpush1.msra.mxu0 0.0
      %3632 = vmatprep.subr.mxu0 0.0
      %3633 = vmatpush1.msra.mxu0 0.0
      %3634 = vmatprep.subr.mxu0 0.0
      %3635 = vmatpush1.msra.mxu0 0.0
      %3636 = vmatprep.subr.mxu0 0.0
      %3637 = vmatpush1.msra.mxu0 0.0
      %3638 = vmatprep.subr.mxu0 0.0
      %3639 = vmatpush1.msra.mxu0 0.0
      %3640 = vmatprep.subr.mxu0 0.0
      %3641 = vmatpush1.msra.mxu0 0.0
      %3642 = vmatprep.subr.mxu0 0.0
      %3643 = vmatpush1.msra.mxu0 0.0
      %3644 = vmatprep.subr.mxu0 0.0
      %3645 = vmatpush1.msra.mxu0 0.0
      %3646 = vmatprep.subr.mxu0 0.0
      %3647 = vmatpush1.msra.mxu0 0.0
      %3648 = vmatprep.subr.mxu0 0.0
      %3649 = vmatpush1.msra.mxu0 0.0
      %3650 = vmatprep.subr.mxu0 0.0
      %3651 = vmatpush1.msra.mxu0 0.0
      %3652 = vmatprep.subr.mxu0 0.0
      %3653 = vmatpush1.msra.mxu0 0.0
      %3654 = vmatprep.mubr.f32.mxu0 0.0
      %3655 = vmatmul.mubr.f32.gmra.mrb[0].mxu0 %v3492
      %v3656 = vpop.f32.mrb[0].mxu0
      %v3657 = vadd.f32 0.0, %v3656
      %v3658 = vpop.f32.mrb[0].mxu0
      %3659 = vmatprep.mubr.f32.mxu0 0.0
      %3660 = vmatmul.mubr.f32.gmra.mrb[0].mxu0 %v3495
      %v3661 = vpop.f32.mrb[0].mxu0
      %v3662 = vadd.f32 0.0, %v3661
      %v3663 = vpop.f32.mrb[0].mxu0
      %3664 = vmatprep.mubr.f32.mxu0 0.0
      %3665 = vmatmul.mubr.f32.gmra.mrb[0].mxu0 %v3498
      %v3666 = vpop.f32.mrb[0].mxu0
      %v3667 = vadd.f32 0.0, %v3666
      %v3668 = vpop.f32.mrb[0].mxu0
      %3669 = vmatprep.mubr.f32.mxu0 0.0
      %3670 = vmatmul.mubr.f32.gmra.mrb[0].mxu0 %v3501
      %v3671 = vpop.f32.mrb[0].mxu0
      %v3672 = vadd.f32 0.0, %v3671
      %v3673 = vpop.f32.mrb[0].mxu0
      %3674 = vmatprep.mubr.f32.mxu0 0.0
      %3675 = vmatmul.mubr.f32.gmra.mrb[0].mxu0 %v3504
      %v3676 = vpop.f32.mrb[0].mxu0
      %v3677 = vadd.f32 0.0, %v3676
      %v3678 = vpop.f32.mrb[0].mxu0
      %3679 = vmatprep.mubr.f32.mxu0 0.0
      %3680 = vmatmul.mubr.f32.gmra.mrb[0].mxu0 %v3507
      %v3681 = vpop.f32.mrb[0].mxu0
      %v3682 = vadd.f32 0.0, %v3681
      %v3683 = vpop.f32.mrb[0].mxu0
      %3684 = vmatprep.mubr.f32.mxu0 0.0
      %3685 = vmatmul.mubr.f32.gmra.mrb[0].mxu0 %v3510
      %v3686 = vpop.f32.mrb[0].mxu0
      %v3687 = vadd.f32 0.0, %v3686
      %v3688 = vpop.f32.mrb[0].mxu0
      %3689 = vmatprep.mubr.f32.mxu0 0.0
      %3690 = vmatmul.mubr.f32.gmra.mrb[0].mxu0 %v3513
      %v3691 = vpop.f32.mrb[0].mxu0
      %v3692 = vadd.f32 0.0, %v3691
      %v3693 = vpop.f32.mrb[0].mxu0
      %3694 = vmatprep.mubr.f32.mxu0 0.0
      %3695 = vmatmul.mubr.f32.gmra.mrb[0].mxu0 %v3516
      %v3696 = vpop.f32.mrb[0].mxu0
      %v3697 = vadd.f32 0.0, %v3696
      %v3698 = vpop.f32.mrb[0].mxu0
      %3699 = vmatprep.mubr.f32.mxu0 0.0
      %3700 = vmatmul.mubr.f32.gmra.mrb[0].mxu0 %v3519
      %v3701 = vpop.f32.mrb[0].mxu0
      %v3702 = vadd.f32 0.0, %v3701
      %v3703 = vpop.f32.mrb[0].mxu0
      %3704 = vmatprep.mubr.f32.mxu0 0.0
      %3705 = vmatmul.mubr.f32.gmra.mrb[0].mxu0 %v3522
      %v3706 = vpop.f32.mrb[0].mxu0
      %v3707 = vadd.f32 0.0, %v3706
      %v3708 = vpop.f32.mrb[0].mxu0
      %3709 = vmatprep.mubr.f32.mxu0 0.0
      %3710 = vmatmul.mubr.f32.gmra.mrb[0].mxu0 %v3525
      %v3711 = vpop.f32.mrb[0].mxu0
      %v3712 = vadd.f32 0.0, %v3711
      %v3713 = vpop.f32.mrb[0].mxu0
      %3714 = vmatprep.mubr.f32.mxu0 0.0
      %3715 = vmatmul.mubr.f32.gmra.mrb[0].mxu0 %v3528
      %v3716 = vpop.f32.mrb[0].mxu0
      %v3717 = vadd.f32 0.0, %v3716
      %v3718 = vpop.f32.mrb[0].mxu0
      %3719 = vmatprep.mubr.f32.mxu0 0.0
      %3720 = vmatmul.mubr.f32.gmra.mrb[0].mxu0 %v3531
      %v3721 = vpop.f32.mrb[0].mxu0
      %v3722 = vadd.f32 0.0, %v3721
      %v3723 = vpop.f32.mrb[0].mxu0
      %3724 = vmatprep.mubr.f32.mxu0 0.0
      %3725 = vmatmul.mubr.f32.gmra.mrb[0].mxu0 %v3534
      %v3726 = vpop.f32.mrb[0].mxu0
      %v3727 = vadd.f32 0.0, %v3726
      %v3728 = vpop.f32.mrb[0].mxu0
      %3729 = vmatprep.mubr.f32.mxu0 0.0
      %3730 = vmatmul.mubr.f32.gmra.mrb[0].mxu0 %v3537
      %v3731 = vpop.f32.mrb[0].mxu0
      %v3732 = vadd.f32 0.0, %v3731
      %v3733 = vpop.f32.mrb[0].mxu0
      %3734 = vmatprep.mubr.f32.mxu0 0.0
      %3735 = vmatmul.mubr.f32.gmra.mrb[0].mxu0 %v3540
      %v3736 = vpop.f32.mrb[0].mxu0
      %v3737 = vadd.f32 0.0, %v3736
      %v3738 = vpop.f32.mrb[0].mxu0
      %3739 = vmatprep.mubr.f32.mxu0 0.0
      %3740 = vmatmul.mubr.f32.gmra.mrb[0].mxu0 %v3543
      %v3741 = vpop.f32.mrb[0].mxu0
      %v3742 = vadd.f32 0.0, %v3741
      %v3743 = vpop.f32.mrb[0].mxu0
      %3744 = vmatprep.mubr.f32.mxu0 0.0
      %3745 = vmatmul.mubr.f32.gmra.mrb[0].mxu0 %v3546
      %v3746 = vpop.f32.mrb[0].mxu0
      %v3747 = vadd.f32 0.0, %v3746
      %v3748 = vpop.f32.mrb[0].mxu0
      %3749 = vmatprep.mubr.f32.mxu0 0.0
      %3750 = vmatmul.mubr.f32.gmra.mrb[0].mxu0 %v3549
      %v3751 = vpop.f32.mrb[0].mxu0
      %v3752 = vadd.f32 0.0, %v3751
      %v3753 = vpop.f32.mrb[0].mxu0
      %3754 = vmatprep.mubr.f32.mxu0 0.0
      %3755 = vmatmul.mubr.f32.gmra.mrb[0].mxu0 %v3552
      %v3756 = vpop.f32.mrb[0].mxu0
      %v3757 = vadd.f32 0.0, %v3756
      %v3758 = vpop.f32.mrb[0].mxu0
      %3759 = vmatprep.mubr.f32.mxu0 0.0
      %3760 = vmatmul.mubr.f32.gmra.mrb[0].mxu0 %v3555
      %v3761 = vpop.f32.mrb[0].mxu0
      %v3762 = vadd.f32 0.0, %v3761
      %v3763 = vpop.f32.mrb[0].mxu0
      %3764 = vmatprep.mubr.f32.mxu0 0.0
      %3765 = vmatmul.mubr.f32.gmra.mrb[0].mxu0 %v3558
      %v3766 = vpop.f32.mrb[0].mxu0
      %v3767 = vadd.f32 0.0, %v3766
      %v3768 = vpop.f32.mrb[0].mxu0
      %3769 = vmatprep.mubr.f32.mxu0 0.0
      %3770 = vmatmul.mubr.f32.gmra.mrb[0].mxu0 %v3561
      %v3771 = vpop.f32.mrb[0].mxu0
      %v3772 = vadd.f32 0.0, %v3771
      %v3773 = vpop.f32.mrb[0].mxu0
      %3774 = vmatprep.mubr.f32.mxu0 0.0
      %3775 = vmatmul.mubr.f32.gmra.mrb[0].mxu0 %v3564
      %v3776 = vpop.f32.mrb[0].mxu0
      %v3777 = vadd.f32 0.0, %v3776
      %v3778 = vpop.f32.mrb[0].mxu0
      %3779 = vmatprep.mubr.f32.mxu0 0.0
      %3780 = vmatmul.mubr.f32.gmra.mrb[0].mxu0 %v3567
      %v3781 = vpop.f32.mrb[0].mxu0
      %v3782 = vadd.f32 0.0, %v3781
      %v3783 = vpop.f32.mrb[0].mxu0
      %3784 = vmatprep.mubr.f32.mxu0 0.0
      %3785 = vmatmul.mubr.f32.gmra.mrb[0].mxu0 %v3570
      %v3786 = vpop.f32.mrb[0].mxu0
      %v3787 = vadd.f32 0.0, %v3786
      %v3788 = vpop.f32.mrb[0].mxu0
      %3789 = vmatprep.mubr.f32.mxu0 0.0
      %3790 = vmatmul.mubr.f32.gmra.mrb[0].mxu0 %v3573
      %v3791 = vpop.f32.mrb[0].mxu0
      %v3792 = vadd.f32 0.0, %v3791
      %v3793 = vpop.f32.mrb[0].mxu0
      %3794 = vmatprep.mubr.f32.mxu0 0.0
      %3795 = vmatmul.mubr.f32.gmra.mrb[0].mxu0 %v3576
      %v3796 = vpop.f32.mrb[0].mxu0
      %v3797 = vadd.f32 0.0, %v3796
      %v3798 = vpop.f32.mrb[0].mxu0
      %3799 = vmatprep.mubr.f32.mxu0 0.0
      %3800 = vmatmul.mubr.f32.gmra.mrb[0].mxu0 %v3579
      %v3801 = vpop.f32.mrb[0].mxu0
      %v3802 = vadd.f32 0.0, %v3801
      %v3803 = vpop.f32.mrb[0].mxu0
      %3804 = vmatprep.mubr.f32.mxu0 0.0
      %3805 = vmatmul.mubr.f32.gmra.mrb[0].mxu0 %v3582
      %v3806 = vpop.f32.mrb[0].mxu0
      %v3807 = vadd.f32 0.0, %v3806
      %v3808 = vpop.f32.mrb[0].mxu0
      %3809 = vmatprep.mubr.f32.mxu0 0.0
      %3810 = vmatmul.mubr.f32.gmra.mrb[0].mxu0 %v3585
      %v3811 = vpop.f32.mrb[0].mxu0
      %v3812 = vadd.f32 0.0, %v3811
      %v3813 = vpop.f32.mrb[0].mxu0
      %3814 = vdwg.mxu0
      %v3815 = vadd.f32 %v3425, %v3657
      %v3816 = vadd.f32 %v3426, %v3662
      %v3817 = vadd.f32 %v3427, %v3667
      %v3818 = vadd.f32 %v3428, %v3672
      %v3819 = vadd.f32 %v3429, %v3677
      %v3820 = vadd.f32 %v3430, %v3682
      %v3821 = vadd.f32 %v3431, %v3687
      %v3822 = vadd.f32 %v3432, %v3692
      %v3823 = vadd.f32 %v3433, %v3697
      %v3824 = vadd.f32 %v3434, %v3702
      %v3825 = vadd.f32 %v3435, %v3707
      %v3826 = vadd.f32 %v3436, %v3712
      %v3827 = vadd.f32 %v3437, %v3717
      %v3828 = vadd.f32 %v3438, %v3722
      %v3829 = vadd.f32 %v3439, %v3727
      %v3830 = vadd.f32 %v3440, %v3732
      %v3831 = vadd.f32 %v3441, %v3737
      %v3832 = vadd.f32 %v3442, %v3742
      %v3833 = vadd.f32 %v3443, %v3747
      %v3834 = vadd.f32 %v3444, %v3752
      %v3835 = vadd.f32 %v3445, %v3757
      %v3836 = vadd.f32 %v3446, %v3762
      %v3837 = vadd.f32 %v3447, %v3767
      %v3838 = vadd.f32 %v3448, %v3772
      %v3839 = vadd.f32 %v3449, %v3777
      %v3840 = vadd.f32 %v3450, %v3782
      %v3841 = vadd.f32 %v3451, %v3787
      %v3842 = vadd.f32 %v3452, %v3792
      %v3843 = vadd.f32 %v3453, %v3797
      %v3844 = vadd.f32 %v3454, %v3802
      %v3845 = vadd.f32 %v3455, %v3807
      %v3846 = vadd.f32 %v3456, %v3812
      %v3847 = vld [vmem:[%s2] sm:$0x1]
      %v3849 = vlaneseq
      %v3850 = vshrl.u32 %v3849, 7
      %v3851 = vsub.s32 0, %v3850
      %v3852 = vrot.slane %v3847, %v3851
      %v3854 = vadd.f32 %v3815, %v3852
      %v3855 = vadd.f32 %v3816, %v3852
      %v3856 = vadd.f32 %v3817, %v3852
      %v3857 = vadd.f32 %v3818, %v3852
      %v3858 = vadd.f32 %v3819, %v3852
      %v3859 = vadd.f32 %v3820, %v3852
      %v3860 = vadd.f32 %v3821, %v3852
      %v3861 = vadd.f32 %v3822, %v3852
      %v3862 = vadd.f32 %v3823, %v3852
      %v3863 = vadd.f32 %v3824, %v3852
      %v3864 = vadd.f32 %v3825, %v3852
      %v3865 = vadd.f32 %v3826, %v3852
      %v3866 = vadd.f32 %v3827, %v3852
      %v3867 = vadd.f32 %v3828, %v3852
      %v3868 = vadd.f32 %v3829, %v3852
      %v3869 = vadd.f32 %v3830, %v3852
      %v3870 = vadd.f32 %v3831, %v3852
      %v3871 = vadd.f32 %v3832, %v3852
      %v3872 = vadd.f32 %v3833, %v3852
      %v3873 = vadd.f32 %v3834, %v3852
      %v3874 = vadd.f32 %v3835, %v3852
      %v3875 = vadd.f32 %v3836, %v3852
      %v3876 = vadd.f32 %v3837, %v3852
      %v3877 = vadd.f32 %v3838, %v3852
      %v3878 = vadd.f32 %v3839, %v3852
      %v3879 = vadd.f32 %v3840, %v3852
      %v3880 = vadd.f32 %v3841, %v3852
      %v3881 = vadd.f32 %v3842, %v3852
      %v3882 = vadd.f32 %v3843, %v3852
      %v3883 = vadd.f32 %v3844, %v3852
      %v3884 = vadd.f32 %v3845, %v3852
      %v3885 = vadd.f32 %v3846, %v3852
      %v3886 = vmax.f32 %v3854, 0.0
      %v3887 = vmax.f32 %v3855, 0.0
      %v3888 = vmax.f32 %v3856, 0.0
      %v3889 = vmax.f32 %v3857, 0.0
      %v3890 = vmax.f32 %v3858, 0.0
      %v3891 = vmax.f32 %v3859, 0.0
      %v3892 = vmax.f32 %v3860, 0.0
      %v3893 = vmax.f32 %v3861, 0.0
      %v3894 = vmax.f32 %v3862, 0.0
      %v3895 = vmax.f32 %v3863, 0.0
      %v3896 = vmax.f32 %v3864, 0.0
      %v3897 = vmax.f32 %v3865, 0.0
      %v3898 = vmax.f32 %v3866, 0.0
      %v3899 = vmax.f32 %v3867, 0.0
      %v3900 = vmax.f32 %v3868, 0.0
      %v3901 = vmax.f32 %v3869, 0.0
      %v3902 = vmax.f32 %v3870, 0.0
      %v3903 = vmax.f32 %v3871, 0.0
      %v3904 = vmax.f32 %v3872, 0.0
      %v3905 = vmax.f32 %v3873, 0.0
      %v3906 = vmax.f32 %v3874, 0.0
      %v3907 = vmax.f32 %v3875, 0.0
      %v3908 = vmax.f32 %v3876, 0.0
      %v3909 = vmax.f32 %v3877, 0.0
      %v3910 = vmax.f32 %v3878, 0.0
      %v3911 = vmax.f32 %v3879, 0.0
      %v3912 = vmax.f32 %v3880, 0.0
      %v3913 = vmax.f32 %v3881, 0.0
      %v3914 = vmax.f32 %v3882, 0.0
      %v3915 = vmax.f32 %v3883, 0.0
      %v3916 = vmax.f32 %v3884, 0.0
      %v3917 = vmax.f32 %v3885, 0.0
      %s3918 = scalar_lea.vmem [#allocation3], 24
      %3919 = vst.msk [vmem:[%s3918 + $0x1] sm:$0xff] %vm225, %v3886
      %3920 = vst.msk [vmem:[%s3918 + $0x9] sm:$0xff] %vm225, %v3887
      %3921 = vst.msk [vmem:[%s3918 + $0x19] sm:$0xff] %vm225, %v3888
      %3922 = vst.msk [vmem:[%s3918 + $0x21] sm:$0xff] %vm225, %v3889
      %3923 = vst.msk [vmem:[%s3918 + $0x31] sm:$0xff] %vm225, %v3890
      %3924 = vst.msk [vmem:[%s3918 + $0x39] sm:$0xff] %vm225, %v3891
      %3925 = vst.msk [vmem:[%s3918 + $0x49] sm:$0xff] %vm225, %v3892
      %3926 = vst.msk [vmem:[%s3918 + $0x51] sm:$0xff] %vm225, %v3893
      %3927 = vst.msk [vmem:[%s3918 + $0x61] sm:$0xff] %vm225, %v3894
      %3928 = vst.msk [vmem:[%s3918 + $0x69] sm:$0xff] %vm225, %v3895
      %3929 = vst.msk [vmem:[%s3918 + $0x79] sm:$0xff] %vm225, %v3896
      %3930 = vst.msk [vmem:[%s3918 + $0x81] sm:$0xff] %vm225, %v3897
      %3931 = vst.msk [vmem:[%s3918 + $0x91] sm:$0xff] %vm225, %v3898
      %3932 = vst.msk [vmem:[%s3918 + $0x99] sm:$0xff] %vm225, %v3899
      %3933 = vst.msk [vmem:[%s3918 + $0xa9] sm:$0xff] %vm225, %v3900
      %3934 = vst.msk [vmem:[%s3918 + $0xb1] sm:$0xff] %vm225, %v3901
      %3935 = vst.msk [vmem:[%s3918 + $0xc1] sm:$0xff] %vm225, %v3902
      %3936 = vst.msk [vmem:[%s3918 + $0xc9] sm:$0xff] %vm225, %v3903
      %3937 = vst.msk [vmem:[%s3918 + $0xd9] sm:$0xff] %vm225, %v3904
      %3938 = vst.msk [vmem:[%s3918 + $0xe1] sm:$0xff] %vm225, %v3905
      %3939 = vst.msk [vmem:[%s3918 + $0xf1] sm:$0xff] %vm225, %v3906
      %3940 = vst.msk [vmem:[%s3918 + $0xf9] sm:$0xff] %vm225, %v3907
      %3941 = vst.msk [vmem:[%s3918 + $0x109] sm:$0xff] %vm225, %v3908
      %3942 = vst.msk [vmem:[%s3918 + $0x111] sm:$0xff] %vm225, %v3909
      %3943 = vst.msk [vmem:[%s3918 + $0x121] sm:$0xff] %vm225, %v3910
      %3944 = vst.msk [vmem:[%s3918 + $0x129] sm:$0xff] %vm225, %v3911
      %3945 = vst.msk [vmem:[%s3918 + $0x139] sm:$0xff] %vm225, %v3912
      %3946 = vst.msk [vmem:[%s3918 + $0x141] sm:$0xff] %vm225, %v3913
      %3947 = vst.msk [vmem:[%s3918 + $0x151] sm:$0xff] %vm225, %v3914
      %3948 = vst.msk [vmem:[%s3918 + $0x159] sm:$0xff] %vm225, %v3915
      %3949 = vst.msk [vmem:[%s3918 + $0x169] sm:$0xff] %vm225, %v3916
      %3950 = vst.msk [vmem:[%s3918 + $0x171] sm:$0xff] %vm225, %v3917
      %v3951 = vld [vmem:[#allocation3] sm:$0xff]
      %v3952 = vld [vmem:[#allocation3 + $0x8] sm:$0xff]
      %v3953 = vld [vmem:[#allocation3 + $0x18] sm:$0xff]
      %v3954 = vld [vmem:[#allocation3 + $0x20] sm:$0xff]
      %v3955 = vld [vmem:[#allocation3 + $0x30] sm:$0xff]
      %v3956 = vld [vmem:[#allocation3 + $0x38] sm:$0xff]
      %v3957 = vld [vmem:[#allocation3 + $0x48] sm:$0xff]
      %v3958 = vld [vmem:[#allocation3 + $0x50] sm:$0xff]
      %v3959 = vld [vmem:[#allocation3 + $0x60] sm:$0xff]
      %v3960 = vld [vmem:[#allocation3 + $0x68] sm:$0xff]
      %v3961 = vld [vmem:[#allocation3 + $0x78] sm:$0xff]
      %v3962 = vld [vmem:[#allocation3 + $0x80] sm:$0xff]
      %v3963 = vld [vmem:[#allocation3 + $0x90] sm:$0xff]
      %v3964 = vld [vmem:[#allocation3 + $0x98] sm:$0xff]
      %v3965 = vld [vmem:[#allocation3 + $0xa8] sm:$0xff]
      %v3966 = vld [vmem:[#allocation3 + $0xb0] sm:$0xff]
      %v3967 = vld [vmem:[#allocation3 + $0xc0] sm:$0xff]
      %v3968 = vld [vmem:[#allocation3 + $0xc8] sm:$0xff]
      %v3969 = vld [vmem:[#allocation3 + $0xd8] sm:$0xff]
      %v3970 = vld [vmem:[#allocation3 + $0xe0] sm:$0xff]
      %v3971 = vld [vmem:[#allocation3 + $0xf0] sm:$0xff]
      %v3972 = vld [vmem:[#allocation3 + $0xf8] sm:$0xff]
      %v3973 = vld [vmem:[#allocation3 + $0x108] sm:$0xff]
      %v3974 = vld [vmem:[#allocation3 + $0x110] sm:$0xff]
      %v3975 = vld [vmem:[#allocation3 + $0x120] sm:$0xff]
      %v3976 = vld [vmem:[#allocation3 + $0x128] sm:$0xff]
      %v3977 = vld [vmem:[#allocation3 + $0x138] sm:$0xff]
      %v3978 = vld [vmem:[#allocation3 + $0x140] sm:$0xff]
      %v3979 = vld [vmem:[#allocation3 + $0x150] sm:$0xff]
      %v3980 = vld [vmem:[#allocation3 + $0x158] sm:$0xff]
      %v3981 = vld [vmem:[#allocation3 + $0x168] sm:$0xff]
      %v3982 = vld [vmem:[#allocation3 + $0x170] sm:$0xff]
      %v3983 = vld [vmem:[%s3] sm:$0xf]
      %v3984 = vld [vmem:[#allocation3 + $0x1] sm:$0xff]
      %v3985 = vld [vmem:[#allocation3 + $0x9] sm:$0xff]
      %v3986 = vld [vmem:[#allocation3 + $0x19] sm:$0xff]
      %v3987 = vld [vmem:[#allocation3 + $0x21] sm:$0xff]
      %v3988 = vld [vmem:[#allocation3 + $0x31] sm:$0xff]
      %v3989 = vld [vmem:[#allocation3 + $0x39] sm:$0xff]
      %v3990 = vld [vmem:[#allocation3 + $0x49] sm:$0xff]
      %v3991 = vld [vmem:[#allocation3 + $0x51] sm:$0xff]
      %v3992 = vld [vmem:[#allocation3 + $0x61] sm:$0xff]
      %v3993 = vld [vmem:[#allocation3 + $0x69] sm:$0xff]
      %v3994 = vld [vmem:[#allocation3 + $0x79] sm:$0xff]
      %v3995 = vld [vmem:[#allocation3 + $0x81] sm:$0xff]
      %v3996 = vld [vmem:[#allocation3 + $0x91] sm:$0xff]
      %v3997 = vld [vmem:[#allocation3 + $0x99] sm:$0xff]
      %v3998 = vld [vmem:[#allocation3 + $0xa9] sm:$0xff]
      %v3999 = vld [vmem:[#allocation3 + $0xb1] sm:$0xff]
      %v4000 = vld [vmem:[#allocation3 + $0xc1] sm:$0xff]
      %v4001 = vld [vmem:[#allocation3 + $0xc9] sm:$0xff]
      %v4002 = vld [vmem:[#allocation3 + $0xd9] sm:$0xff]
      %v4003 = vld [vmem:[#allocation3 + $0xe1] sm:$0xff]
      %v4004 = vld [vmem:[#allocation3 + $0xf1] sm:$0xff]
      %v4005 = vld [vmem:[#allocation3 + $0xf9] sm:$0xff]
      %v4006 = vld [vmem:[#allocation3 + $0x109] sm:$0xff]
      %v4007 = vld [vmem:[#allocation3 + $0x111] sm:$0xff]
      %v4008 = vld [vmem:[#allocation3 + $0x121] sm:$0xff]
      %v4009 = vld [vmem:[#allocation3 + $0x129] sm:$0xff]
      %v4010 = vld [vmem:[#allocation3 + $0x139] sm:$0xff]
      %v4011 = vld [vmem:[#allocation3 + $0x141] sm:$0xff]
      %v4012 = vld [vmem:[#allocation3 + $0x151] sm:$0xff]
      %v4013 = vld [vmem:[#allocation3 + $0x159] sm:$0xff]
      %v4014 = vld [vmem:[#allocation3 + $0x169] sm:$0xff]
      %v4015 = vld [vmem:[#allocation3 + $0x171] sm:$0xff]
      %s4016 = scalar_lea.vmem %s3, 4
      %v4017 = vld [vmem:[%s4016] sm:$0xf]
      %v4019 = vsel %vm225, %v3984, 0
      %v4022 = vsel %vm225, %v3985, 0
      %v4025 = vsel %vm225, %v3986, 0
      %v4028 = vsel %vm225, %v3987, 0
      %v4031 = vsel %vm225, %v3988, 0
      %v4034 = vsel %vm225, %v3989, 0
      %v4037 = vsel %vm225, %v3990, 0
      %v4040 = vsel %vm225, %v3991, 0
      %v4043 = vsel %vm225, %v3992, 0
      %v4046 = vsel %vm225, %v3993, 0
      %v4049 = vsel %vm225, %v3994, 0
      %v4052 = vsel %vm225, %v3995, 0
      %v4055 = vsel %vm225, %v3996, 0
      %v4058 = vsel %vm225, %v3997, 0
      %v4061 = vsel %vm225, %v3998, 0
      %v4064 = vsel %vm225, %v3999, 0
      %v4067 = vsel %vm225, %v4000, 0
      %v4070 = vsel %vm225, %v4001, 0
      %v4073 = vsel %vm225, %v4002, 0
      %v4076 = vsel %vm225, %v4003, 0
      %v4079 = vsel %vm225, %v4004, 0
      %v4082 = vsel %vm225, %v4005, 0
      %v4085 = vsel %vm225, %v4006, 0
      %v4088 = vsel %vm225, %v4007, 0
      %v4091 = vsel %vm225, %v4008, 0
      %v4094 = vsel %vm225, %v4009, 0
      %v4097 = vsel %vm225, %v4010, 0
      %v4100 = vsel %vm225, %v4011, 0
      %v4103 = vsel %vm225, %v4012, 0
      %v4106 = vsel %vm225, %v4013, 0
      %v4109 = vsel %vm225, %v4014, 0
      %v4112 = vsel %vm225, %v4015, 0
      %v4115 = vsel %vm563, %v4017, 0
      %4117 = vmatprep.subr.mxu0 0.0
      %4118 = vmatpush1.msra.mxu0 %v4115
      %4119 = vmatprep.subr.mxu0 0.0
      %4120 = vmatpush1.msra.mxu0 0.0
      %4121 = vmatprep.subr.mxu0 0.0
      %4122 = vmatpush1.msra.mxu0 0.0
      %4123 = vmatprep.subr.mxu0 0.0
      %4124 = vmatpush1.msra.mxu0 0.0
      %4125 = vmatprep.subr.mxu0 0.0
      %4126 = vmatpush1.msra.mxu0 0.0
      %4127 = vmatprep.subr.mxu0 0.0
      %4128 = vmatpush1.msra.mxu0 0.0
      %4129 = vmatprep.subr.mxu0 0.0
      %4130 = vmatpush1.msra.mxu0 0.0
      %4131 = vmatprep.subr.mxu0 0.0
      %4132 = vmatpush1.msra.mxu0 0.0
      %4133 = vmatprep.subr.mxu0 0.0
      %4134 = vmatpush1.msra.mxu0 0.0
      %4135 = vmatprep.subr.mxu0 0.0
      %4136 = vmatpush1.msra.mxu0 0.0
      %4137 = vmatprep.subr.mxu0 0.0
      %4138 = vmatpush1.msra.mxu0 0.0
      %4139 = vmatprep.subr.mxu0 0.0
      %4140 = vmatpush1.msra.mxu0 0.0
      %4141 = vmatprep.subr.mxu0 0.0
      %4142 = vmatpush1.msra.mxu0 0.0
      %4143 = vmatprep.subr.mxu0 0.0
      %4144 = vmatpush1.msra.mxu0 0.0
      %4145 = vmatprep.subr.mxu0 0.0
      %4146 = vmatpush1.msra.mxu0 0.0
      %4147 = vmatprep.subr.mxu0 0.0
      %4148 = vmatpush1.msra.mxu0 0.0
      %4149 = vmatprep.subr.mxu0 0.0
      %4150 = vmatpush1.msra.mxu0 0.0
      %4151 = vmatprep.subr.mxu0 0.0
      %4152 = vmatpush1.msra.mxu0 0.0
      %4153 = vmatprep.subr.mxu0 0.0
      %4154 = vmatpush1.msra.mxu0 0.0
      %4155 = vmatprep.subr.mxu0 0.0
      %4156 = vmatpush1.msra.mxu0 0.0
      %4157 = vmatprep.subr.mxu0 0.0
      %4158 = vmatpush1.msra.mxu0 0.0
      %4159 = vmatprep.subr.mxu0 0.0
      %4160 = vmatpush1.msra.mxu0 0.0
      %4161 = vmatprep.subr.mxu0 0.0
      %4162 = vmatpush1.msra.mxu0 0.0
      %4163 = vmatprep.subr.mxu0 0.0
      %4164 = vmatpush1.msra.mxu0 0.0
      %4165 = vmatprep.subr.mxu0 0.0
      %4166 = vmatpush1.msra.mxu0 0.0
      %4167 = vmatprep.subr.mxu0 0.0
      %4168 = vmatpush1.msra.mxu0 0.0
      %4169 = vmatprep.subr.mxu0 0.0
      %4170 = vmatpush1.msra.mxu0 0.0
      %4171 = vmatprep.subr.mxu0 0.0
      %4172 = vmatpush1.msra.mxu0 0.0
      %4173 = vmatprep.subr.mxu0 0.0
      %4174 = vmatpush1.msra.mxu0 0.0
      %4175 = vmatprep.subr.mxu0 0.0
      %4176 = vmatpush1.msra.mxu0 0.0
      %4177 = vmatprep.subr.mxu0 0.0
      %4178 = vmatpush1.msra.mxu0 0.0
      %4179 = vmatprep.subr.mxu0 0.0
      %4180 = vmatpush1.msra.mxu0 0.0
      %4181 = vmatprep.mubr.f32.mxu0 0.0
      %4182 = vmatmul.mubr.f32.gmra.mrb[0].mxu0 %v4019
      %v4183 = vpop.f32.mrb[0].mxu0
      %v4184 = vadd.f32 0.0, %v4183
      %v4185 = vpop.f32.mrb[0].mxu0
      %4186 = vmatprep.mubr.f32.mxu0 0.0
      %4187 = vmatmul.mubr.f32.gmra.mrb[0].mxu0 %v4022
      %v4188 = vpop.f32.mrb[0].mxu0
      %v4189 = vadd.f32 0.0, %v4188
      %v4190 = vpop.f32.mrb[0].mxu0
      %4191 = vmatprep.mubr.f32.mxu0 0.0
      %4192 = vmatmul.mubr.f32.gmra.mrb[0].mxu0 %v4025
      %v4193 = vpop.f32.mrb[0].mxu0
      %v4194 = vadd.f32 0.0, %v4193
      %v4195 = vpop.f32.mrb[0].mxu0
      %4196 = vmatprep.mubr.f32.mxu0 0.0
      %4197 = vmatmul.mubr.f32.gmra.mrb[0].mxu0 %v4028
      %v4198 = vpop.f32.mrb[0].mxu0
      %v4199 = vadd.f32 0.0, %v4198
      %v4200 = vpop.f32.mrb[0].mxu0
      %4201 = vmatprep.mubr.f32.mxu0 0.0
      %4202 = vmatmul.mubr.f32.gmra.mrb[0].mxu0 %v4031
      %v4203 = vpop.f32.mrb[0].mxu0
      %v4204 = vadd.f32 0.0, %v4203
      %v4205 = vpop.f32.mrb[0].mxu0
      %4206 = vmatprep.mubr.f32.mxu0 0.0
      %4207 = vmatmul.mubr.f32.gmra.mrb[0].mxu0 %v4034
      %v4208 = vpop.f32.mrb[0].mxu0
      %v4209 = vadd.f32 0.0, %v4208
      %v4210 = vpop.f32.mrb[0].mxu0
      %4211 = vmatprep.mubr.f32.mxu0 0.0
      %4212 = vmatmul.mubr.f32.gmra.mrb[0].mxu0 %v4037
      %v4213 = vpop.f32.mrb[0].mxu0
      %v4214 = vadd.f32 0.0, %v4213
      %v4215 = vpop.f32.mrb[0].mxu0
      %4216 = vmatprep.mubr.f32.mxu0 0.0
      %4217 = vmatmul.mubr.f32.gmra.mrb[0].mxu0 %v4040
      %v4218 = vpop.f32.mrb[0].mxu0
      %v4219 = vadd.f32 0.0, %v4218
      %v4220 = vpop.f32.mrb[0].mxu0
      %4221 = vmatprep.mubr.f32.mxu0 0.0
      %4222 = vmatmul.mubr.f32.gmra.mrb[0].mxu0 %v4043
      %v4223 = vpop.f32.mrb[0].mxu0
      %v4224 = vadd.f32 0.0, %v4223
      %v4225 = vpop.f32.mrb[0].mxu0
      %4226 = vmatprep.mubr.f32.mxu0 0.0
      %4227 = vmatmul.mubr.f32.gmra.mrb[0].mxu0 %v4046
      %v4228 = vpop.f32.mrb[0].mxu0
      %v4229 = vadd.f32 0.0, %v4228
      %v4230 = vpop.f32.mrb[0].mxu0
      %4231 = vmatprep.mubr.f32.mxu0 0.0
      %4232 = vmatmul.mubr.f32.gmra.mrb[0].mxu0 %v4049
      %v4233 = vpop.f32.mrb[0].mxu0
      %v4234 = vadd.f32 0.0, %v4233
      %v4235 = vpop.f32.mrb[0].mxu0
      %4236 = vmatprep.mubr.f32.mxu0 0.0
      %4237 = vmatmul.mubr.f32.gmra.mrb[0].mxu0 %v4052
      %v4238 = vpop.f32.mrb[0].mxu0
      %v4239 = vadd.f32 0.0, %v4238
      %v4240 = vpop.f32.mrb[0].mxu0
      %4241 = vmatprep.mubr.f32.mxu0 0.0
      %4242 = vmatmul.mubr.f32.gmra.mrb[0].mxu0 %v4055
      %v4243 = vpop.f32.mrb[0].mxu0
      %v4244 = vadd.f32 0.0, %v4243
      %v4245 = vpop.f32.mrb[0].mxu0
      %4246 = vmatprep.mubr.f32.mxu0 0.0
      %4247 = vmatmul.mubr.f32.gmra.mrb[0].mxu0 %v4058
      %v4248 = vpop.f32.mrb[0].mxu0
      %v4249 = vadd.f32 0.0, %v4248
      %v4250 = vpop.f32.mrb[0].mxu0
      %4251 = vmatprep.mubr.f32.mxu0 0.0
      %4252 = vmatmul.mubr.f32.gmra.mrb[0].mxu0 %v4061
      %v4253 = vpop.f32.mrb[0].mxu0
      %v4254 = vadd.f32 0.0, %v4253
      %v4255 = vpop.f32.mrb[0].mxu0
      %4256 = vmatprep.mubr.f32.mxu0 0.0
      %4257 = vmatmul.mubr.f32.gmra.mrb[0].mxu0 %v4064
      %v4258 = vpop.f32.mrb[0].mxu0
      %v4259 = vadd.f32 0.0, %v4258
      %v4260 = vpop.f32.mrb[0].mxu0
      %4261 = vmatprep.mubr.f32.mxu0 0.0
      %4262 = vmatmul.mubr.f32.gmra.mrb[0].mxu0 %v4067
      %v4263 = vpop.f32.mrb[0].mxu0
      %v4264 = vadd.f32 0.0, %v4263
      %v4265 = vpop.f32.mrb[0].mxu0
      %4266 = vmatprep.mubr.f32.mxu0 0.0
      %4267 = vmatmul.mubr.f32.gmra.mrb[0].mxu0 %v4070
      %v4268 = vpop.f32.mrb[0].mxu0
      %v4269 = vadd.f32 0.0, %v4268
      %v4270 = vpop.f32.mrb[0].mxu0
      %4271 = vmatprep.mubr.f32.mxu0 0.0
      %4272 = vmatmul.mubr.f32.gmra.mrb[0].mxu0 %v4073
      %v4273 = vpop.f32.mrb[0].mxu0
      %v4274 = vadd.f32 0.0, %v4273
      %v4275 = vpop.f32.mrb[0].mxu0
      %4276 = vmatprep.mubr.f32.mxu0 0.0
      %4277 = vmatmul.mubr.f32.gmra.mrb[0].mxu0 %v4076
      %v4278 = vpop.f32.mrb[0].mxu0
      %v4279 = vadd.f32 0.0, %v4278
      %v4280 = vpop.f32.mrb[0].mxu0
      %4281 = vmatprep.mubr.f32.mxu0 0.0
      %4282 = vmatmul.mubr.f32.gmra.mrb[0].mxu0 %v4079
      %v4283 = vpop.f32.mrb[0].mxu0
      %v4284 = vadd.f32 0.0, %v4283
      %v4285 = vpop.f32.mrb[0].mxu0
      %4286 = vmatprep.mubr.f32.mxu0 0.0
      %4287 = vmatmul.mubr.f32.gmra.mrb[0].mxu0 %v4082
      %v4288 = vpop.f32.mrb[0].mxu0
      %v4289 = vadd.f32 0.0, %v4288
      %v4290 = vpop.f32.mrb[0].mxu0
      %4291 = vmatprep.mubr.f32.mxu0 0.0
      %4292 = vmatmul.mubr.f32.gmra.mrb[0].mxu0 %v4085
      %v4293 = vpop.f32.mrb[0].mxu0
      %v4294 = vadd.f32 0.0, %v4293
      %v4295 = vpop.f32.mrb[0].mxu0
      %4296 = vmatprep.mubr.f32.mxu0 0.0
      %4297 = vmatmul.mubr.f32.gmra.mrb[0].mxu0 %v4088
      %v4298 = vpop.f32.mrb[0].mxu0
      %v4299 = vadd.f32 0.0, %v4298
      %v4300 = vpop.f32.mrb[0].mxu0
      %4301 = vmatprep.mubr.f32.mxu0 0.0
      %4302 = vmatmul.mubr.f32.gmra.mrb[0].mxu0 %v4091
      %v4303 = vpop.f32.mrb[0].mxu0
      %v4304 = vadd.f32 0.0, %v4303
      %v4305 = vpop.f32.mrb[0].mxu0
      %4306 = vmatprep.mubr.f32.mxu0 0.0
      %4307 = vmatmul.mubr.f32.gmra.mrb[0].mxu0 %v4094
      %v4308 = vpop.f32.mrb[0].mxu0
      %v4309 = vadd.f32 0.0, %v4308
      %v4310 = vpop.f32.mrb[0].mxu0
      %4311 = vmatprep.mubr.f32.mxu0 0.0
      %4312 = vmatmul.mubr.f32.gmra.mrb[0].mxu0 %v4097
      %v4313 = vpop.f32.mrb[0].mxu0
      %v4314 = vadd.f32 0.0, %v4313
      %v4315 = vpop.f32.mrb[0].mxu0
      %4316 = vmatprep.mubr.f32.mxu0 0.0
      %4317 = vmatmul.mubr.f32.gmra.mrb[0].mxu0 %v4100
      %v4318 = vpop.f32.mrb[0].mxu0
      %v4319 = vadd.f32 0.0, %v4318
      %v4320 = vpop.f32.mrb[0].mxu0
      %4321 = vmatprep.mubr.f32.mxu0 0.0
      %4322 = vmatmul.mubr.f32.gmra.mrb[0].mxu0 %v4103
      %v4323 = vpop.f32.mrb[0].mxu0
      %v4324 = vadd.f32 0.0, %v4323
      %v4325 = vpop.f32.mrb[0].mxu0
      %4326 = vmatprep.mubr.f32.mxu0 0.0
      %4327 = vmatmul.mubr.f32.gmra.mrb[0].mxu0 %v4106
      %v4328 = vpop.f32.mrb[0].mxu0
      %v4329 = vadd.f32 0.0, %v4328
      %v4330 = vpop.f32.mrb[0].mxu0
      %4331 = vmatprep.mubr.f32.mxu0 0.0
      %4332 = vmatmul.mubr.f32.gmra.mrb[0].mxu0 %v4109
      %v4333 = vpop.f32.mrb[0].mxu0
      %v4334 = vadd.f32 0.0, %v4333
      %v4335 = vpop.f32.mrb[0].mxu0
      %4336 = vmatprep.mubr.f32.mxu0 0.0
      %4337 = vmatmul.mubr.f32.gmra.mrb[0].mxu0 %v4112
      %v4338 = vpop.f32.mrb[0].mxu0
      %v4339 = vadd.f32 0.0, %v4338
      %v4340 = vpop.f32.mrb[0].mxu0
      %4341 = vdwg.mxu0
      %v4343 = vsel %vm225, %v3951, 0
      %v4346 = vsel %vm225, %v3952, 0
      %v4349 = vsel %vm225, %v3953, 0
      %v4352 = vsel %vm225, %v3954, 0
      %v4355 = vsel %vm225, %v3955, 0
      %v4358 = vsel %vm225, %v3956, 0
      %v4361 = vsel %vm225, %v3957, 0
      %v4364 = vsel %vm225, %v3958, 0
      %v4367 = vsel %vm225, %v3959, 0
      %v4370 = vsel %vm225, %v3960, 0
      %v4373 = vsel %vm225, %v3961, 0
      %v4376 = vsel %vm225, %v3962, 0
      %v4379 = vsel %vm225, %v3963, 0
      %v4382 = vsel %vm225, %v3964, 0
      %v4385 = vsel %vm225, %v3965, 0
      %v4388 = vsel %vm225, %v3966, 0
      %v4391 = vsel %vm225, %v3967, 0
      %v4394 = vsel %vm225, %v3968, 0
      %v4397 = vsel %vm225, %v3969, 0
      %v4400 = vsel %vm225, %v3970, 0
      %v4403 = vsel %vm225, %v3971, 0
      %v4406 = vsel %vm225, %v3972, 0
      %v4409 = vsel %vm225, %v3973, 0
      %v4412 = vsel %vm225, %v3974, 0
      %v4415 = vsel %vm225, %v3975, 0
      %v4418 = vsel %vm225, %v3976, 0
      %v4421 = vsel %vm225, %v3977, 0
      %v4424 = vsel %vm225, %v3978, 0
      %v4427 = vsel %vm225, %v3979, 0
      %v4430 = vsel %vm225, %v3980, 0
      %v4433 = vsel %vm225, %v3981, 0
      %v4436 = vsel %vm225, %v3982, 0
      %v4439 = vsel %vm563, %v3983, 0
      %4441 = vmatprep.subr.mxu0 0.0
      %4442 = vmatpush1.msra.mxu0 %v4439
      %4443 = vmatprep.subr.mxu0 0.0
      %4444 = vmatpush1.msra.mxu0 0.0
      %4445 = vmatprep.subr.mxu0 0.0
      %4446 = vmatpush1.msra.mxu0 0.0
      %4447 = vmatprep.subr.mxu0 0.0
      %4448 = vmatpush1.msra.mxu0 0.0
      %4449 = vmatprep.subr.mxu0 0.0
      %4450 = vmatpush1.msra.mxu0 0.0
      %4451 = vmatprep.subr.mxu0 0.0
      %4452 = vmatpush1.msra.mxu0 0.0
      %4453 = vmatprep.subr.mxu0 0.0
      %4454 = vmatpush1.msra.mxu0 0.0
      %4455 = vmatprep.subr.mxu0 0.0
      %4456 = vmatpush1.msra.mxu0 0.0
      %4457 = vmatprep.subr.mxu0 0.0
      %4458 = vmatpush1.msra.mxu0 0.0
      %4459 = vmatprep.subr.mxu0 0.0
      %4460 = vmatpush1.msra.mxu0 0.0
      %4461 = vmatprep.subr.mxu0 0.0
      %4462 = vmatpush1.msra.mxu0 0.0
      %4463 = vmatprep.subr.mxu0 0.0
      %4464 = vmatpush1.msra.mxu0 0.0
      %4465 = vmatprep.subr.mxu0 0.0
      %4466 = vmatpush1.msra.mxu0 0.0
      %4467 = vmatprep.subr.mxu0 0.0
      %4468 = vmatpush1.msra.mxu0 0.0
      %4469 = vmatprep.subr.mxu0 0.0
      %4470 = vmatpush1.msra.mxu0 0.0
      %4471 = vmatprep.subr.mxu0 0.0
      %4472 = vmatpush1.msra.mxu0 0.0
      %4473 = vmatprep.subr.mxu0 0.0
      %4474 = vmatpush1.msra.mxu0 0.0
      %4475 = vmatprep.subr.mxu0 0.0
      %4476 = vmatpush1.msra.mxu0 0.0
      %4477 = vmatprep.subr.mxu0 0.0
      %4478 = vmatpush1.msra.mxu0 0.0
      %4479 = vmatprep.subr.mxu0 0.0
      %4480 = vmatpush1.msra.mxu0 0.0
      %4481 = vmatprep.subr.mxu0 0.0
      %4482 = vmatpush1.msra.mxu0 0.0
      %4483 = vmatprep.subr.mxu0 0.0
      %4484 = vmatpush1.msra.mxu0 0.0
      %4485 = vmatprep.subr.mxu0 0.0
      %4486 = vmatpush1.msra.mxu0 0.0
      %4487 = vmatprep.subr.mxu0 0.0
      %4488 = vmatpush1.msra.mxu0 0.0
      %4489 = vmatprep.subr.mxu0 0.0
      %4490 = vmatpush1.msra.mxu0 0.0
      %4491 = vmatprep.subr.mxu0 0.0
      %4492 = vmatpush1.msra.mxu0 0.0
      %4493 = vmatprep.subr.mxu0 0.0
      %4494 = vmatpush1.msra.mxu0 0.0
      %4495 = vmatprep.subr.mxu0 0.0
      %4496 = vmatpush1.msra.mxu0 0.0
      %4497 = vmatprep.subr.mxu0 0.0
      %4498 = vmatpush1.msra.mxu0 0.0
      %4499 = vmatprep.subr.mxu0 0.0
      %4500 = vmatpush1.msra.mxu0 0.0
      %4501 = vmatprep.subr.mxu0 0.0
      %4502 = vmatpush1.msra.mxu0 0.0
      %4503 = vmatprep.subr.mxu0 0.0
      %4504 = vmatpush1.msra.mxu0 0.0
      %4505 = vmatprep.mubr.f32.mxu0 0.0
      %4506 = vmatmul.mubr.f32.gmra.mrb[0].mxu0 %v4343
      %v4507 = vpop.f32.mrb[0].mxu0
      %v4508 = vadd.f32 %v4184, %v4507
      %v4509 = vpop.f32.mrb[0].mxu0
      %4510 = vmatprep.mubr.f32.mxu0 0.0
      %4511 = vmatmul.mubr.f32.gmra.mrb[0].mxu0 %v4346
      %v4512 = vpop.f32.mrb[0].mxu0
      %v4513 = vadd.f32 %v4189, %v4512
      %v4514 = vpop.f32.mrb[0].mxu0
      %4515 = vmatprep.mubr.f32.mxu0 0.0
      %4516 = vmatmul.mubr.f32.gmra.mrb[0].mxu0 %v4349
      %v4517 = vpop.f32.mrb[0].mxu0
      %v4518 = vadd.f32 %v4194, %v4517
      %v4519 = vpop.f32.mrb[0].mxu0
      %4520 = vmatprep.mubr.f32.mxu0 0.0
      %4521 = vmatmul.mubr.f32.gmra.mrb[0].mxu0 %v4352
      %v4522 = vpop.f32.mrb[0].mxu0
      %v4523 = vadd.f32 %v4199, %v4522
      %v4524 = vpop.f32.mrb[0].mxu0
      %4525 = vmatprep.mubr.f32.mxu0 0.0
      %4526 = vmatmul.mubr.f32.gmra.mrb[0].mxu0 %v4355
      %v4527 = vpop.f32.mrb[0].mxu0
      %v4528 = vadd.f32 %v4204, %v4527
      %v4529 = vpop.f32.mrb[0].mxu0
      %4530 = vmatprep.mubr.f32.mxu0 0.0
      %4531 = vmatmul.mubr.f32.gmra.mrb[0].mxu0 %v4358
      %v4532 = vpop.f32.mrb[0].mxu0
      %v4533 = vadd.f32 %v4209, %v4532
      %v4534 = vpop.f32.mrb[0].mxu0
      %4535 = vmatprep.mubr.f32.mxu0 0.0
      %4536 = vmatmul.mubr.f32.gmra.mrb[0].mxu0 %v4361
      %v4537 = vpop.f32.mrb[0].mxu0
      %v4538 = vadd.f32 %v4214, %v4537
      %v4539 = vpop.f32.mrb[0].mxu0
      %4540 = vmatprep.mubr.f32.mxu0 0.0
      %4541 = vmatmul.mubr.f32.gmra.mrb[0].mxu0 %v4364
      %v4542 = vpop.f32.mrb[0].mxu0
      %v4543 = vadd.f32 %v4219, %v4542
      %v4544 = vpop.f32.mrb[0].mxu0
      %4545 = vmatprep.mubr.f32.mxu0 0.0
      %4546 = vmatmul.mubr.f32.gmra.mrb[0].mxu0 %v4367
      %v4547 = vpop.f32.mrb[0].mxu0
      %v4548 = vadd.f32 %v4224, %v4547
      %v4549 = vpop.f32.mrb[0].mxu0
      %4550 = vmatprep.mubr.f32.mxu0 0.0
      %4551 = vmatmul.mubr.f32.gmra.mrb[0].mxu0 %v4370
      %v4552 = vpop.f32.mrb[0].mxu0
      %v4553 = vadd.f32 %v4229, %v4552
      %v4554 = vpop.f32.mrb[0].mxu0
      %4555 = vmatprep.mubr.f32.mxu0 0.0
      %4556 = vmatmul.mubr.f32.gmra.mrb[0].mxu0 %v4373
      %v4557 = vpop.f32.mrb[0].mxu0
      %v4558 = vadd.f32 %v4234, %v4557
      %v4559 = vpop.f32.mrb[0].mxu0
      %4560 = vmatprep.mubr.f32.mxu0 0.0
      %4561 = vmatmul.mubr.f32.gmra.mrb[0].mxu0 %v4376
      %v4562 = vpop.f32.mrb[0].mxu0
      %v4563 = vadd.f32 %v4239, %v4562
      %v4564 = vpop.f32.mrb[0].mxu0
      %4565 = vmatprep.mubr.f32.mxu0 0.0
      %4566 = vmatmul.mubr.f32.gmra.mrb[0].mxu0 %v4379
      %v4567 = vpop.f32.mrb[0].mxu0
      %v4568 = vadd.f32 %v4244, %v4567
      %v4569 = vpop.f32.mrb[0].mxu0
      %4570 = vmatprep.mubr.f32.mxu0 0.0
      %4571 = vmatmul.mubr.f32.gmra.mrb[0].mxu0 %v4382
      %v4572 = vpop.f32.mrb[0].mxu0
      %v4573 = vadd.f32 %v4249, %v4572
      %v4574 = vpop.f32.mrb[0].mxu0
      %4575 = vmatprep.mubr.f32.mxu0 0.0
      %4576 = vmatmul.mubr.f32.gmra.mrb[0].mxu0 %v4385
      %v4577 = vpop.f32.mrb[0].mxu0
      %v4578 = vadd.f32 %v4254, %v4577
      %v4579 = vpop.f32.mrb[0].mxu0
      %4580 = vmatprep.mubr.f32.mxu0 0.0
      %4581 = vmatmul.mubr.f32.gmra.mrb[0].mxu0 %v4388
      %v4582 = vpop.f32.mrb[0].mxu0
      %v4583 = vadd.f32 %v4259, %v4582
      %v4584 = vpop.f32.mrb[0].mxu0
      %4585 = vmatprep.mubr.f32.mxu0 0.0
      %4586 = vmatmul.mubr.f32.gmra.mrb[0].mxu0 %v4391
      %v4587 = vpop.f32.mrb[0].mxu0
      %v4588 = vadd.f32 %v4264, %v4587
      %v4589 = vpop.f32.mrb[0].mxu0
      %4590 = vmatprep.mubr.f32.mxu0 0.0
      %4591 = vmatmul.mubr.f32.gmra.mrb[0].mxu0 %v4394
      %v4592 = vpop.f32.mrb[0].mxu0
      %v4593 = vadd.f32 %v4269, %v4592
      %v4594 = vpop.f32.mrb[0].mxu0
      %4595 = vmatprep.mubr.f32.mxu0 0.0
      %4596 = vmatmul.mubr.f32.gmra.mrb[0].mxu0 %v4397
      %v4597 = vpop.f32.mrb[0].mxu0
      %v4598 = vadd.f32 %v4274, %v4597
      %v4599 = vpop.f32.mrb[0].mxu0
      %4600 = vmatprep.mubr.f32.mxu0 0.0
      %4601 = vmatmul.mubr.f32.gmra.mrb[0].mxu0 %v4400
      %v4602 = vpop.f32.mrb[0].mxu0
      %v4603 = vadd.f32 %v4279, %v4602
      %v4604 = vpop.f32.mrb[0].mxu0
      %4605 = vmatprep.mubr.f32.mxu0 0.0
      %4606 = vmatmul.mubr.f32.gmra.mrb[0].mxu0 %v4403
      %v4607 = vpop.f32.mrb[0].mxu0
      %v4608 = vadd.f32 %v4284, %v4607
      %v4609 = vpop.f32.mrb[0].mxu0
      %4610 = vmatprep.mubr.f32.mxu0 0.0
      %4611 = vmatmul.mubr.f32.gmra.mrb[0].mxu0 %v4406
      %v4612 = vpop.f32.mrb[0].mxu0
      %v4613 = vadd.f32 %v4289, %v4612
      %v4614 = vpop.f32.mrb[0].mxu0
      %4615 = vmatprep.mubr.f32.mxu0 0.0
      %4616 = vmatmul.mubr.f32.gmra.mrb[0].mxu0 %v4409
      %v4617 = vpop.f32.mrb[0].mxu0
      %v4618 = vadd.f32 %v4294, %v4617
      %v4619 = vpop.f32.mrb[0].mxu0
      %4620 = vmatprep.mubr.f32.mxu0 0.0
      %4621 = vmatmul.mubr.f32.gmra.mrb[0].mxu0 %v4412
      %v4622 = vpop.f32.mrb[0].mxu0
      %v4623 = vadd.f32 %v4299, %v4622
      %v4624 = vpop.f32.mrb[0].mxu0
      %4625 = vmatprep.mubr.f32.mxu0 0.0
      %4626 = vmatmul.mubr.f32.gmra.mrb[0].mxu0 %v4415
      %v4627 = vpop.f32.mrb[0].mxu0
      %v4628 = vadd.f32 %v4304, %v4627
      %v4629 = vpop.f32.mrb[0].mxu0
      %4630 = vmatprep.mubr.f32.mxu0 0.0
      %4631 = vmatmul.mubr.f32.gmra.mrb[0].mxu0 %v4418
      %v4632 = vpop.f32.mrb[0].mxu0
      %v4633 = vadd.f32 %v4309, %v4632
      %v4634 = vpop.f32.mrb[0].mxu0
      %4635 = vmatprep.mubr.f32.mxu0 0.0
      %4636 = vmatmul.mubr.f32.gmra.mrb[0].mxu0 %v4421
      %v4637 = vpop.f32.mrb[0].mxu0
      %v4638 = vadd.f32 %v4314, %v4637
      %v4639 = vpop.f32.mrb[0].mxu0
      %4640 = vmatprep.mubr.f32.mxu0 0.0
      %4641 = vmatmul.mubr.f32.gmra.mrb[0].mxu0 %v4424
      %v4642 = vpop.f32.mrb[0].mxu0
      %v4643 = vadd.f32 %v4319, %v4642
      %v4644 = vpop.f32.mrb[0].mxu0
      %4645 = vmatprep.mubr.f32.mxu0 0.0
      %4646 = vmatmul.mubr.f32.gmra.mrb[0].mxu0 %v4427
      %v4647 = vpop.f32.mrb[0].mxu0
      %v4648 = vadd.f32 %v4324, %v4647
      %v4649 = vpop.f32.mrb[0].mxu0
      %4650 = vmatprep.mubr.f32.mxu0 0.0
      %4651 = vmatmul.mubr.f32.gmra.mrb[0].mxu0 %v4430
      %v4652 = vpop.f32.mrb[0].mxu0
      %v4653 = vadd.f32 %v4329, %v4652
      %v4654 = vpop.f32.mrb[0].mxu0
      %4655 = vmatprep.mubr.f32.mxu0 0.0
      %4656 = vmatmul.mubr.f32.gmra.mrb[0].mxu0 %v4433
      %v4657 = vpop.f32.mrb[0].mxu0
      %v4658 = vadd.f32 %v4334, %v4657
      %v4659 = vpop.f32.mrb[0].mxu0
      %4660 = vmatprep.mubr.f32.mxu0 0.0
      %4661 = vmatmul.mubr.f32.gmra.mrb[0].mxu0 %v4436
      %v4662 = vpop.f32.mrb[0].mxu0
      %v4663 = vadd.f32 %v4339, %v4662
      %v4664 = vpop.f32.mrb[0].mxu0
      %4665 = vdwg.mxu0
      %v4666 = vld [vmem:[#allocation3 + $0x2] sm:$0xff]
      %v4667 = vld [vmem:[#allocation3 + $0xa] sm:$0xff]
      %v4668 = vld [vmem:[#allocation3 + $0x1a] sm:$0xff]
      %v4669 = vld [vmem:[#allocation3 + $0x22] sm:$0xff]
      %v4670 = vld [vmem:[#allocation3 + $0x32] sm:$0xff]
      %v4671 = vld [vmem:[#allocation3 + $0x3a] sm:$0xff]
      %v4672 = vld [vmem:[#allocation3 + $0x4a] sm:$0xff]
      %v4673 = vld [vmem:[#allocation3 + $0x52] sm:$0xff]
      %v4674 = vld [vmem:[#allocation3 + $0x62] sm:$0xff]
      %v4675 = vld [vmem:[#allocation3 + $0x6a] sm:$0xff]
      %v4676 = vld [vmem:[#allocation3 + $0x7a] sm:$0xff]
      %v4677 = vld [vmem:[#allocation3 + $0x82] sm:$0xff]
      %v4678 = vld [vmem:[#allocation3 + $0x92] sm:$0xff]
      %v4679 = vld [vmem:[#allocation3 + $0x9a] sm:$0xff]
      %v4680 = vld [vmem:[#allocation3 + $0xaa] sm:$0xff]
      %v4681 = vld [vmem:[#allocation3 + $0xb2] sm:$0xff]
      %v4682 = vld [vmem:[#allocation3 + $0xc2] sm:$0xff]
      %v4683 = vld [vmem:[#allocation3 + $0xca] sm:$0xff]
      %v4684 = vld [vmem:[#allocation3 + $0xda] sm:$0xff]
      %v4685 = vld [vmem:[#allocation3 + $0xe2] sm:$0xff]
      %v4686 = vld [vmem:[#allocation3 + $0xf2] sm:$0xff]
      %v4687 = vld [vmem:[#allocation3 + $0xfa] sm:$0xff]
      %v4688 = vld [vmem:[#allocation3 + $0x10a] sm:$0xff]
      %v4689 = vld [vmem:[#allocation3 + $0x112] sm:$0xff]
      %v4690 = vld [vmem:[#allocation3 + $0x122] sm:$0xff]
      %v4691 = vld [vmem:[#allocation3 + $0x12a] sm:$0xff]
      %v4692 = vld [vmem:[#allocation3 + $0x13a] sm:$0xff]
      %v4693 = vld [vmem:[#allocation3 + $0x142] sm:$0xff]
      %v4694 = vld [vmem:[#allocation3 + $0x152] sm:$0xff]
      %v4695 = vld [vmem:[#allocation3 + $0x15a] sm:$0xff]
      %v4696 = vld [vmem:[#allocation3 + $0x16a] sm:$0xff]
      %v4697 = vld [vmem:[#allocation3 + $0x172] sm:$0xff]
      %s4698 = scalar_lea.vmem %s3, 8
      %v4699 = vld [vmem:[%s4698] sm:$0xf]
      %v4701 = vsel %vm225, %v4666, 0
      %v4704 = vsel %vm225, %v4667, 0
      %v4707 = vsel %vm225, %v4668, 0
      %v4710 = vsel %vm225, %v4669, 0
      %v4713 = vsel %vm225, %v4670, 0
      %v4716 = vsel %vm225, %v4671, 0
      %v4719 = vsel %vm225, %v4672, 0
      %v4722 = vsel %vm225, %v4673, 0
      %v4725 = vsel %vm225, %v4674, 0
      %v4728 = vsel %vm225, %v4675, 0
      %v4731 = vsel %vm225, %v4676, 0
      %v4734 = vsel %vm225, %v4677, 0
      %v4737 = vsel %vm225, %v4678, 0
      %v4740 = vsel %vm225, %v4679, 0
      %v4743 = vsel %vm225, %v4680, 0
      %v4746 = vsel %vm225, %v4681, 0
      %v4749 = vsel %vm225, %v4682, 0
      %v4752 = vsel %vm225, %v4683, 0
      %v4755 = vsel %vm225, %v4684, 0
      %v4758 = vsel %vm225, %v4685, 0
      %v4761 = vsel %vm225, %v4686, 0
      %v4764 = vsel %vm225, %v4687, 0
      %v4767 = vsel %vm225, %v4688, 0
      %v4770 = vsel %vm225, %v4689, 0
      %v4773 = vsel %vm225, %v4690, 0
      %v4776 = vsel %vm225, %v4691, 0
      %v4779 = vsel %vm225, %v4692, 0
      %v4782 = vsel %vm225, %v4693, 0
      %v4785 = vsel %vm225, %v4694, 0
      %v4788 = vsel %vm225, %v4695, 0
      %v4791 = vsel %vm225, %v4696, 0
      %v4794 = vsel %vm225, %v4697, 0
      %v4797 = vsel %vm563, %v4699, 0
      %4799 = vmatprep.subr.mxu0 0.0
      %4800 = vmatpush1.msra.mxu0 %v4797
      %4801 = vmatprep.subr.mxu0 0.0
      %4802 = vmatpush1.msra.mxu0 0.0
      %4803 = vmatprep.subr.mxu0 0.0
      %4804 = vmatpush1.msra.mxu0 0.0
      %4805 = vmatprep.subr.mxu0 0.0
      %4806 = vmatpush1.msra.mxu0 0.0
      %4807 = vmatprep.subr.mxu0 0.0
      %4808 = vmatpush1.msra.mxu0 0.0
      %4809 = vmatprep.subr.mxu0 0.0
      %4810 = vmatpush1.msra.mxu0 0.0
      %4811 = vmatprep.subr.mxu0 0.0
      %4812 = vmatpush1.msra.mxu0 0.0
      %4813 = vmatprep.subr.mxu0 0.0
      %4814 = vmatpush1.msra.mxu0 0.0
      %4815 = vmatprep.subr.mxu0 0.0
      %4816 = vmatpush1.msra.mxu0 0.0
      %4817 = vmatprep.subr.mxu0 0.0
      %4818 = vmatpush1.msra.mxu0 0.0
      %4819 = vmatprep.subr.mxu0 0.0
      %4820 = vmatpush1.msra.mxu0 0.0
      %4821 = vmatprep.subr.mxu0 0.0
      %4822 = vmatpush1.msra.mxu0 0.0
      %4823 = vmatprep.subr.mxu0 0.0
      %4824 = vmatpush1.msra.mxu0 0.0
      %4825 = vmatprep.subr.mxu0 0.0
      %4826 = vmatpush1.msra.mxu0 0.0
      %4827 = vmatprep.subr.mxu0 0.0
      %4828 = vmatpush1.msra.mxu0 0.0
      %4829 = vmatprep.subr.mxu0 0.0
      %4830 = vmatpush1.msra.mxu0 0.0
      %4831 = vmatprep.subr.mxu0 0.0
      %4832 = vmatpush1.msra.mxu0 0.0
      %4833 = vmatprep.subr.mxu0 0.0
      %4834 = vmatpush1.msra.mxu0 0.0
      %4835 = vmatprep.subr.mxu0 0.0
      %4836 = vmatpush1.msra.mxu0 0.0
      %4837 = vmatprep.subr.mxu0 0.0
      %4838 = vmatpush1.msra.mxu0 0.0
      %4839 = vmatprep.subr.mxu0 0.0
      %4840 = vmatpush1.msra.mxu0 0.0
      %4841 = vmatprep.subr.mxu0 0.0
      %4842 = vmatpush1.msra.mxu0 0.0
      %4843 = vmatprep.subr.mxu0 0.0
      %4844 = vmatpush1.msra.mxu0 0.0
      %4845 = vmatprep.subr.mxu0 0.0
      %4846 = vmatpush1.msra.mxu0 0.0
      %4847 = vmatprep.subr.mxu0 0.0
      %4848 = vmatpush1.msra.mxu0 0.0
      %4849 = vmatprep.subr.mxu0 0.0
      %4850 = vmatpush1.msra.mxu0 0.0
      %4851 = vmatprep.subr.mxu0 0.0
      %4852 = vmatpush1.msra.mxu0 0.0
      %4853 = vmatprep.subr.mxu0 0.0
      %4854 = vmatpush1.msra.mxu0 0.0
      %4855 = vmatprep.subr.mxu0 0.0
      %4856 = vmatpush1.msra.mxu0 0.0
      %4857 = vmatprep.subr.mxu0 0.0
      %4858 = vmatpush1.msra.mxu0 0.0
      %4859 = vmatprep.subr.mxu0 0.0
      %4860 = vmatpush1.msra.mxu0 0.0
      %4861 = vmatprep.subr.mxu0 0.0
      %4862 = vmatpush1.msra.mxu0 0.0
      %4863 = vmatprep.mubr.f32.mxu0 0.0
      %4864 = vmatmul.mubr.f32.gmra.mrb[0].mxu0 %v4701
      %v4865 = vpop.f32.mrb[0].mxu0
      %v4866 = vadd.f32 0.0, %v4865
      %v4867 = vpop.f32.mrb[0].mxu0
      %4868 = vmatprep.mubr.f32.mxu0 0.0
      %4869 = vmatmul.mubr.f32.gmra.mrb[0].mxu0 %v4704
      %v4870 = vpop.f32.mrb[0].mxu0
      %v4871 = vadd.f32 0.0, %v4870
      %v4872 = vpop.f32.mrb[0].mxu0
      %4873 = vmatprep.mubr.f32.mxu0 0.0
      %4874 = vmatmul.mubr.f32.gmra.mrb[0].mxu0 %v4707
      %v4875 = vpop.f32.mrb[0].mxu0
      %v4876 = vadd.f32 0.0, %v4875
      %v4877 = vpop.f32.mrb[0].mxu0
      %4878 = vmatprep.mubr.f32.mxu0 0.0
      %4879 = vmatmul.mubr.f32.gmra.mrb[0].mxu0 %v4710
      %v4880 = vpop.f32.mrb[0].mxu0
      %v4881 = vadd.f32 0.0, %v4880
      %v4882 = vpop.f32.mrb[0].mxu0
      %4883 = vmatprep.mubr.f32.mxu0 0.0
      %4884 = vmatmul.mubr.f32.gmra.mrb[0].mxu0 %v4713
      %v4885 = vpop.f32.mrb[0].mxu0
      %v4886 = vadd.f32 0.0, %v4885
      %v4887 = vpop.f32.mrb[0].mxu0
      %4888 = vmatprep.mubr.f32.mxu0 0.0
      %4889 = vmatmul.mubr.f32.gmra.mrb[0].mxu0 %v4716
      %v4890 = vpop.f32.mrb[0].mxu0
      %v4891 = vadd.f32 0.0, %v4890
      %v4892 = vpop.f32.mrb[0].mxu0
      %4893 = vmatprep.mubr.f32.mxu0 0.0
      %4894 = vmatmul.mubr.f32.gmra.mrb[0].mxu0 %v4719
      %v4895 = vpop.f32.mrb[0].mxu0
      %v4896 = vadd.f32 0.0, %v4895
      %v4897 = vpop.f32.mrb[0].mxu0
      %4898 = vmatprep.mubr.f32.mxu0 0.0
      %4899 = vmatmul.mubr.f32.gmra.mrb[0].mxu0 %v4722
      %v4900 = vpop.f32.mrb[0].mxu0
      %v4901 = vadd.f32 0.0, %v4900
      %v4902 = vpop.f32.mrb[0].mxu0
      %4903 = vmatprep.mubr.f32.mxu0 0.0
      %4904 = vmatmul.mubr.f32.gmra.mrb[0].mxu0 %v4725
      %v4905 = vpop.f32.mrb[0].mxu0
      %v4906 = vadd.f32 0.0, %v4905
      %v4907 = vpop.f32.mrb[0].mxu0
      %4908 = vmatprep.mubr.f32.mxu0 0.0
      %4909 = vmatmul.mubr.f32.gmra.mrb[0].mxu0 %v4728
      %v4910 = vpop.f32.mrb[0].mxu0
      %v4911 = vadd.f32 0.0, %v4910
      %v4912 = vpop.f32.mrb[0].mxu0
      %4913 = vmatprep.mubr.f32.mxu0 0.0
      %4914 = vmatmul.mubr.f32.gmra.mrb[0].mxu0 %v4731
      %v4915 = vpop.f32.mrb[0].mxu0
      %v4916 = vadd.f32 0.0, %v4915
      %v4917 = vpop.f32.mrb[0].mxu0
      %4918 = vmatprep.mubr.f32.mxu0 0.0
      %4919 = vmatmul.mubr.f32.gmra.mrb[0].mxu0 %v4734
      %v4920 = vpop.f32.mrb[0].mxu0
      %v4921 = vadd.f32 0.0, %v4920
      %v4922 = vpop.f32.mrb[0].mxu0
      %4923 = vmatprep.mubr.f32.mxu0 0.0
      %4924 = vmatmul.mubr.f32.gmra.mrb[0].mxu0 %v4737
      %v4925 = vpop.f32.mrb[0].mxu0
      %v4926 = vadd.f32 0.0, %v4925
      %v4927 = vpop.f32.mrb[0].mxu0
      %4928 = vmatprep.mubr.f32.mxu0 0.0
      %4929 = vmatmul.mubr.f32.gmra.mrb[0].mxu0 %v4740
      %v4930 = vpop.f32.mrb[0].mxu0
      %v4931 = vadd.f32 0.0, %v4930
      %v4932 = vpop.f32.mrb[0].mxu0
      %4933 = vmatprep.mubr.f32.mxu0 0.0
      %4934 = vmatmul.mubr.f32.gmra.mrb[0].mxu0 %v4743
      %v4935 = vpop.f32.mrb[0].mxu0
      %v4936 = vadd.f32 0.0, %v4935
      %v4937 = vpop.f32.mrb[0].mxu0
      %4938 = vmatprep.mubr.f32.mxu0 0.0
      %4939 = vmatmul.mubr.f32.gmra.mrb[0].mxu0 %v4746
      %v4940 = vpop.f32.mrb[0].mxu0
      %v4941 = vadd.f32 0.0, %v4940
      %v4942 = vpop.f32.mrb[0].mxu0
      %4943 = vmatprep.mubr.f32.mxu0 0.0
      %4944 = vmatmul.mubr.f32.gmra.mrb[0].mxu0 %v4749
      %v4945 = vpop.f32.mrb[0].mxu0
      %v4946 = vadd.f32 0.0, %v4945
      %v4947 = vpop.f32.mrb[0].mxu0
      %4948 = vmatprep.mubr.f32.mxu0 0.0
      %4949 = vmatmul.mubr.f32.gmra.mrb[0].mxu0 %v4752
      %v4950 = vpop.f32.mrb[0].mxu0
      %v4951 = vadd.f32 0.0, %v4950
      %v4952 = vpop.f32.mrb[0].mxu0
      %4953 = vmatprep.mubr.f32.mxu0 0.0
      %4954 = vmatmul.mubr.f32.gmra.mrb[0].mxu0 %v4755
      %v4955 = vpop.f32.mrb[0].mxu0
      %v4956 = vadd.f32 0.0, %v4955
      %v4957 = vpop.f32.mrb[0].mxu0
      %4958 = vmatprep.mubr.f32.mxu0 0.0
      %4959 = vmatmul.mubr.f32.gmra.mrb[0].mxu0 %v4758
      %v4960 = vpop.f32.mrb[0].mxu0
      %v4961 = vadd.f32 0.0, %v4960
      %v4962 = vpop.f32.mrb[0].mxu0
      %4963 = vmatprep.mubr.f32.mxu0 0.0
      %4964 = vmatmul.mubr.f32.gmra.mrb[0].mxu0 %v4761
      %v4965 = vpop.f32.mrb[0].mxu0
      %v4966 = vadd.f32 0.0, %v4965
      %v4967 = vpop.f32.mrb[0].mxu0
      %4968 = vmatprep.mubr.f32.mxu0 0.0
      %4969 = vmatmul.mubr.f32.gmra.mrb[0].mxu0 %v4764
      %v4970 = vpop.f32.mrb[0].mxu0
      %v4971 = vadd.f32 0.0, %v4970
      %v4972 = vpop.f32.mrb[0].mxu0
      %4973 = vmatprep.mubr.f32.mxu0 0.0
      %4974 = vmatmul.mubr.f32.gmra.mrb[0].mxu0 %v4767
      %v4975 = vpop.f32.mrb[0].mxu0
      %v4976 = vadd.f32 0.0, %v4975
      %v4977 = vpop.f32.mrb[0].mxu0
      %4978 = vmatprep.mubr.f32.mxu0 0.0
      %4979 = vmatmul.mubr.f32.gmra.mrb[0].mxu0 %v4770
      %v4980 = vpop.f32.mrb[0].mxu0
      %v4981 = vadd.f32 0.0, %v4980
      %v4982 = vpop.f32.mrb[0].mxu0
      %4983 = vmatprep.mubr.f32.mxu0 0.0
      %4984 = vmatmul.mubr.f32.gmra.mrb[0].mxu0 %v4773
      %v4985 = vpop.f32.mrb[0].mxu0
      %v4986 = vadd.f32 0.0, %v4985
      %v4987 = vpop.f32.mrb[0].mxu0
      %4988 = vmatprep.mubr.f32.mxu0 0.0
      %4989 = vmatmul.mubr.f32.gmra.mrb[0].mxu0 %v4776
      %v4990 = vpop.f32.mrb[0].mxu0
      %v4991 = vadd.f32 0.0, %v4990
      %v4992 = vpop.f32.mrb[0].mxu0
      %4993 = vmatprep.mubr.f32.mxu0 0.0
      %4994 = vmatmul.mubr.f32.gmra.mrb[0].mxu0 %v4779
      %v4995 = vpop.f32.mrb[0].mxu0
      %v4996 = vadd.f32 0.0, %v4995
      %v4997 = vpop.f32.mrb[0].mxu0
      %4998 = vmatprep.mubr.f32.mxu0 0.0
      %4999 = vmatmul.mubr.f32.gmra.mrb[0].mxu0 %v4782
      %v5000 = vpop.f32.mrb[0].mxu0
      %v5001 = vadd.f32 0.0, %v5000
      %v5002 = vpop.f32.mrb[0].mxu0
      %5003 = vmatprep.mubr.f32.mxu0 0.0
      %5004 = vmatmul.mubr.f32.gmra.mrb[0].mxu0 %v4785
      %v5005 = vpop.f32.mrb[0].mxu0
      %v5006 = vadd.f32 0.0, %v5005
      %v5007 = vpop.f32.mrb[0].mxu0
      %5008 = vmatprep.mubr.f32.mxu0 0.0
      %5009 = vmatmul.mubr.f32.gmra.mrb[0].mxu0 %v4788
      %v5010 = vpop.f32.mrb[0].mxu0
      %v5011 = vadd.f32 0.0, %v5010
      %v5012 = vpop.f32.mrb[0].mxu0
      %5013 = vmatprep.mubr.f32.mxu0 0.0
      %5014 = vmatmul.mubr.f32.gmra.mrb[0].mxu0 %v4791
      %v5015 = vpop.f32.mrb[0].mxu0
      %v5016 = vadd.f32 0.0, %v5015
      %v5017 = vpop.f32.mrb[0].mxu0
      %5018 = vmatprep.mubr.f32.mxu0 0.0
      %5019 = vmatmul.mubr.f32.gmra.mrb[0].mxu0 %v4794
      %v5020 = vpop.f32.mrb[0].mxu0
      %v5021 = vadd.f32 0.0, %v5020
      %v5022 = vpop.f32.mrb[0].mxu0
      %5023 = vdwg.mxu0
      %v5024 = vadd.f32 %v4508, %v4866
      %v5025 = vadd.f32 %v4513, %v4871
      %v5026 = vadd.f32 %v4518, %v4876
      %v5027 = vadd.f32 %v4523, %v4881
      %v5028 = vadd.f32 %v4528, %v4886
      %v5029 = vadd.f32 %v4533, %v4891
      %v5030 = vadd.f32 %v4538, %v4896
      %v5031 = vadd.f32 %v4543, %v4901
      %v5032 = vadd.f32 %v4548, %v4906
      %v5033 = vadd.f32 %v4553, %v4911
      %v5034 = vadd.f32 %v4558, %v4916
      %v5035 = vadd.f32 %v4563, %v4921
      %v5036 = vadd.f32 %v4568, %v4926
      %v5037 = vadd.f32 %v4573, %v4931
      %v5038 = vadd.f32 %v4578, %v4936
      %v5039 = vadd.f32 %v4583, %v4941
      %v5040 = vadd.f32 %v4588, %v4946
      %v5041 = vadd.f32 %v4593, %v4951
      %v5042 = vadd.f32 %v4598, %v4956
      %v5043 = vadd.f32 %v4603, %v4961
      %v5044 = vadd.f32 %v4608, %v4966
      %v5045 = vadd.f32 %v4613, %v4971
      %v5046 = vadd.f32 %v4618, %v4976
      %v5047 = vadd.f32 %v4623, %v4981
      %v5048 = vadd.f32 %v4628, %v4986
      %v5049 = vadd.f32 %v4633, %v4991
      %v5050 = vadd.f32 %v4638, %v4996
      %v5051 = vadd.f32 %v4643, %v5001
      %v5052 = vadd.f32 %v4648, %v5006
      %v5053 = vadd.f32 %v4653, %v5011
      %v5054 = vadd.f32 %v4658, %v5016
      %v5055 = vadd.f32 %v4663, %v5021
      %v5056 = vld [vmem:[%s3918] sm:$0xff]
      %v5057 = vld [vmem:[%s3918 + $0x8] sm:$0xff]
      %v5058 = vld [vmem:[%s3918 + $0x18] sm:$0xff]
      %v5059 = vld [vmem:[%s3918 + $0x20] sm:$0xff]
      %v5060 = vld [vmem:[%s3918 + $0x30] sm:$0xff]
      %v5061 = vld [vmem:[%s3918 + $0x38] sm:$0xff]
      %v5062 = vld [vmem:[%s3918 + $0x48] sm:$0xff]
      %v5063 = vld [vmem:[%s3918 + $0x50] sm:$0xff]
      %v5064 = vld [vmem:[%s3918 + $0x60] sm:$0xff]
      %v5065 = vld [vmem:[%s3918 + $0x68] sm:$0xff]
      %v5066 = vld [vmem:[%s3918 + $0x78] sm:$0xff]
      %v5067 = vld [vmem:[%s3918 + $0x80] sm:$0xff]
      %v5068 = vld [vmem:[%s3918 + $0x90] sm:$0xff]
      %v5069 = vld [vmem:[%s3918 + $0x98] sm:$0xff]
      %v5070 = vld [vmem:[%s3918 + $0xa8] sm:$0xff]
      %v5071 = vld [vmem:[%s3918 + $0xb0] sm:$0xff]
      %v5072 = vld [vmem:[%s3918 + $0xc0] sm:$0xff]
      %v5073 = vld [vmem:[%s3918 + $0xc8] sm:$0xff]
      %v5074 = vld [vmem:[%s3918 + $0xd8] sm:$0xff]
      %v5075 = vld [vmem:[%s3918 + $0xe0] sm:$0xff]
      %v5076 = vld [vmem:[%s3918 + $0xf0] sm:$0xff]
      %v5077 = vld [vmem:[%s3918 + $0xf8] sm:$0xff]
      %v5078 = vld [vmem:[%s3918 + $0x108] sm:$0xff]
      %v5079 = vld [vmem:[%s3918 + $0x110] sm:$0xff]
      %v5080 = vld [vmem:[%s3918 + $0x120] sm:$0xff]
      %v5081 = vld [vmem:[%s3918 + $0x128] sm:$0xff]
      %v5082 = vld [vmem:[%s3918 + $0x138] sm:$0xff]
      %v5083 = vld [vmem:[%s3918 + $0x140] sm:$0xff]
      %v5084 = vld [vmem:[%s3918 + $0x150] sm:$0xff]
      %v5085 = vld [vmem:[%s3918 + $0x158] sm:$0xff]
      %v5086 = vld [vmem:[%s3918 + $0x168] sm:$0xff]
      %v5087 = vld [vmem:[%s3918 + $0x170] sm:$0xff]
      %s5088 = scalar_lea.vmem %s3, 12
      %v5089 = vld [vmem:[%s5088] sm:$0xf]
      %v5091 = vsel %vm225, %v5056, 0
      %v5094 = vsel %vm225, %v5057, 0
      %v5097 = vsel %vm225, %v5058, 0
      %v5100 = vsel %vm225, %v5059, 0
      %v5103 = vsel %vm225, %v5060, 0
      %v5106 = vsel %vm225, %v5061, 0
      %v5109 = vsel %vm225, %v5062, 0
      %v5112 = vsel %vm225, %v5063, 0
      %v5115 = vsel %vm225, %v5064, 0
      %v5118 = vsel %vm225, %v5065, 0
      %v5121 = vsel %vm225, %v5066, 0
      %v5124 = vsel %vm225, %v5067, 0
      %v5127 = vsel %vm225, %v5068, 0
      %v5130 = vsel %vm225, %v5069, 0
      %v5133 = vsel %vm225, %v5070, 0
      %v5136 = vsel %vm225, %v5071, 0
      %v5139 = vsel %vm225, %v5072, 0
      %v5142 = vsel %vm225, %v5073, 0
      %v5145 = vsel %vm225, %v5074, 0
      %v5148 = vsel %vm225, %v5075, 0
      %v5151 = vsel %vm225, %v5076, 0
      %v5154 = vsel %vm225, %v5077, 0
      %v5157 = vsel %vm225, %v5078, 0
      %v5160 = vsel %vm225, %v5079, 0
      %v5163 = vsel %vm225, %v5080, 0
      %v5166 = vsel %vm225, %v5081, 0
      %v5169 = vsel %vm225, %v5082, 0
      %v5172 = vsel %vm225, %v5083, 0
      %v5175 = vsel %vm225, %v5084, 0
      %v5178 = vsel %vm225, %v5085, 0
      %v5181 = vsel %vm225, %v5086, 0
      %v5184 = vsel %vm225, %v5087, 0
      %v5187 = vsel %vm563, %v5089, 0
      %5189 = vmatprep.subr.mxu0 0.0
      %5190 = vmatpush1.msra.mxu0 %v5187
      %5191 = vmatprep.subr.mxu0 0.0
      %5192 = vmatpush1.msra.mxu0 0.0
      %5193 = vmatprep.subr.mxu0 0.0
      %5194 = vmatpush1.msra.mxu0 0.0
      %5195 = vmatprep.subr.mxu0 0.0
      %5196 = vmatpush1.msra.mxu0 0.0
      %5197 = vmatprep.subr.mxu0 0.0
      %5198 = vmatpush1.msra.mxu0 0.0
      %5199 = vmatprep.subr.mxu0 0.0
      %5200 = vmatpush1.msra.mxu0 0.0
      %5201 = vmatprep.subr.mxu0 0.0
      %5202 = vmatpush1.msra.mxu0 0.0
      %5203 = vmatprep.subr.mxu0 0.0
      %5204 = vmatpush1.msra.mxu0 0.0
      %5205 = vmatprep.subr.mxu0 0.0
      %5206 = vmatpush1.msra.mxu0 0.0
      %5207 = vmatprep.subr.mxu0 0.0
      %5208 = vmatpush1.msra.mxu0 0.0
      %5209 = vmatprep.subr.mxu0 0.0
      %5210 = vmatpush1.msra.mxu0 0.0
      %5211 = vmatprep.subr.mxu0 0.0
      %5212 = vmatpush1.msra.mxu0 0.0
      %5213 = vmatprep.subr.mxu0 0.0
      %5214 = vmatpush1.msra.mxu0 0.0
      %5215 = vmatprep.subr.mxu0 0.0
      %5216 = vmatpush1.msra.mxu0 0.0
      %5217 = vmatprep.subr.mxu0 0.0
      %5218 = vmatpush1.msra.mxu0 0.0
      %5219 = vmatprep.subr.mxu0 0.0
      %5220 = vmatpush1.msra.mxu0 0.0
      %5221 = vmatprep.subr.mxu0 0.0
      %5222 = vmatpush1.msra.mxu0 0.0
      %5223 = vmatprep.subr.mxu0 0.0
      %5224 = vmatpush1.msra.mxu0 0.0
      %5225 = vmatprep.subr.mxu0 0.0
      %5226 = vmatpush1.msra.mxu0 0.0
      %5227 = vmatprep.subr.mxu0 0.0
      %5228 = vmatpush1.msra.mxu0 0.0
      %5229 = vmatprep.subr.mxu0 0.0
      %5230 = vmatpush1.msra.mxu0 0.0
      %5231 = vmatprep.subr.mxu0 0.0
      %5232 = vmatpush1.msra.mxu0 0.0
      %5233 = vmatprep.subr.mxu0 0.0
      %5234 = vmatpush1.msra.mxu0 0.0
      %5235 = vmatprep.subr.mxu0 0.0
      %5236 = vmatpush1.msra.mxu0 0.0
      %5237 = vmatprep.subr.mxu0 0.0
      %5238 = vmatpush1.msra.mxu0 0.0
      %5239 = vmatprep.subr.mxu0 0.0
      %5240 = vmatpush1.msra.mxu0 0.0
      %5241 = vmatprep.subr.mxu0 0.0
      %5242 = vmatpush1.msra.mxu0 0.0
      %5243 = vmatprep.subr.mxu0 0.0
      %5244 = vmatpush1.msra.mxu0 0.0
      %5245 = vmatprep.subr.mxu0 0.0
      %5246 = vmatpush1.msra.mxu0 0.0
      %5247 = vmatprep.subr.mxu0 0.0
      %5248 = vmatpush1.msra.mxu0 0.0
      %5249 = vmatprep.subr.mxu0 0.0
      %5250 = vmatpush1.msra.mxu0 0.0
      %5251 = vmatprep.subr.mxu0 0.0
      %5252 = vmatpush1.msra.mxu0 0.0
      %5253 = vmatprep.mubr.f32.mxu0 0.0
      %5254 = vmatmul.mubr.f32.gmra.mrb[0].mxu0 %v5091
      %v5255 = vpop.f32.mrb[0].mxu0
      %v5256 = vadd.f32 0.0, %v5255
      %v5257 = vpop.f32.mrb[0].mxu0
      %5258 = vmatprep.mubr.f32.mxu0 0.0
      %5259 = vmatmul.mubr.f32.gmra.mrb[0].mxu0 %v5094
      %v5260 = vpop.f32.mrb[0].mxu0
      %v5261 = vadd.f32 0.0, %v5260
      %v5262 = vpop.f32.mrb[0].mxu0
      %5263 = vmatprep.mubr.f32.mxu0 0.0
      %5264 = vmatmul.mubr.f32.gmra.mrb[0].mxu0 %v5097
      %v5265 = vpop.f32.mrb[0].mxu0
      %v5266 = vadd.f32 0.0, %v5265
      %v5267 = vpop.f32.mrb[0].mxu0
      %5268 = vmatprep.mubr.f32.mxu0 0.0
      %5269 = vmatmul.mubr.f32.gmra.mrb[0].mxu0 %v5100
      %v5270 = vpop.f32.mrb[0].mxu0
      %v5271 = vadd.f32 0.0, %v5270
      %v5272 = vpop.f32.mrb[0].mxu0
      %5273 = vmatprep.mubr.f32.mxu0 0.0
      %5274 = vmatmul.mubr.f32.gmra.mrb[0].mxu0 %v5103
      %v5275 = vpop.f32.mrb[0].mxu0
      %v5276 = vadd.f32 0.0, %v5275
      %v5277 = vpop.f32.mrb[0].mxu0
      %5278 = vmatprep.mubr.f32.mxu0 0.0
      %5279 = vmatmul.mubr.f32.gmra.mrb[0].mxu0 %v5106
      %v5280 = vpop.f32.mrb[0].mxu0
      %v5281 = vadd.f32 0.0, %v5280
      %v5282 = vpop.f32.mrb[0].mxu0
      %5283 = vmatprep.mubr.f32.mxu0 0.0
      %5284 = vmatmul.mubr.f32.gmra.mrb[0].mxu0 %v5109
      %v5285 = vpop.f32.mrb[0].mxu0
      %v5286 = vadd.f32 0.0, %v5285
      %v5287 = vpop.f32.mrb[0].mxu0
      %5288 = vmatprep.mubr.f32.mxu0 0.0
      %5289 = vmatmul.mubr.f32.gmra.mrb[0].mxu0 %v5112
      %v5290 = vpop.f32.mrb[0].mxu0
      %v5291 = vadd.f32 0.0, %v5290
      %v5292 = vpop.f32.mrb[0].mxu0
      %5293 = vmatprep.mubr.f32.mxu0 0.0
      %5294 = vmatmul.mubr.f32.gmra.mrb[0].mxu0 %v5115
      %v5295 = vpop.f32.mrb[0].mxu0
      %v5296 = vadd.f32 0.0, %v5295
      %v5297 = vpop.f32.mrb[0].mxu0
      %5298 = vmatprep.mubr.f32.mxu0 0.0
      %5299 = vmatmul.mubr.f32.gmra.mrb[0].mxu0 %v5118
      %v5300 = vpop.f32.mrb[0].mxu0
      %v5301 = vadd.f32 0.0, %v5300
      %v5302 = vpop.f32.mrb[0].mxu0
      %5303 = vmatprep.mubr.f32.mxu0 0.0
      %5304 = vmatmul.mubr.f32.gmra.mrb[0].mxu0 %v5121
      %v5305 = vpop.f32.mrb[0].mxu0
      %v5306 = vadd.f32 0.0, %v5305
      %v5307 = vpop.f32.mrb[0].mxu0
      %5308 = vmatprep.mubr.f32.mxu0 0.0
      %5309 = vmatmul.mubr.f32.gmra.mrb[0].mxu0 %v5124
      %v5310 = vpop.f32.mrb[0].mxu0
      %v5311 = vadd.f32 0.0, %v5310
      %v5312 = vpop.f32.mrb[0].mxu0
      %5313 = vmatprep.mubr.f32.mxu0 0.0
      %5314 = vmatmul.mubr.f32.gmra.mrb[0].mxu0 %v5127
      %v5315 = vpop.f32.mrb[0].mxu0
      %v5316 = vadd.f32 0.0, %v5315
      %v5317 = vpop.f32.mrb[0].mxu0
      %5318 = vmatprep.mubr.f32.mxu0 0.0
      %5319 = vmatmul.mubr.f32.gmra.mrb[0].mxu0 %v5130
      %v5320 = vpop.f32.mrb[0].mxu0
      %v5321 = vadd.f32 0.0, %v5320
      %v5322 = vpop.f32.mrb[0].mxu0
      %5323 = vmatprep.mubr.f32.mxu0 0.0
      %5324 = vmatmul.mubr.f32.gmra.mrb[0].mxu0 %v5133
      %v5325 = vpop.f32.mrb[0].mxu0
      %v5326 = vadd.f32 0.0, %v5325
      %v5327 = vpop.f32.mrb[0].mxu0
      %5328 = vmatprep.mubr.f32.mxu0 0.0
      %5329 = vmatmul.mubr.f32.gmra.mrb[0].mxu0 %v5136
      %v5330 = vpop.f32.mrb[0].mxu0
      %v5331 = vadd.f32 0.0, %v5330
      %v5332 = vpop.f32.mrb[0].mxu0
      %5333 = vmatprep.mubr.f32.mxu0 0.0
      %5334 = vmatmul.mubr.f32.gmra.mrb[0].mxu0 %v5139
      %v5335 = vpop.f32.mrb[0].mxu0
      %v5336 = vadd.f32 0.0, %v5335
      %v5337 = vpop.f32.mrb[0].mxu0
      %5338 = vmatprep.mubr.f32.mxu0 0.0
      %5339 = vmatmul.mubr.f32.gmra.mrb[0].mxu0 %v5142
      %v5340 = vpop.f32.mrb[0].mxu0
      %v5341 = vadd.f32 0.0, %v5340
      %v5342 = vpop.f32.mrb[0].mxu0
      %5343 = vmatprep.mubr.f32.mxu0 0.0
      %5344 = vmatmul.mubr.f32.gmra.mrb[0].mxu0 %v5145
      %v5345 = vpop.f32.mrb[0].mxu0
      %v5346 = vadd.f32 0.0, %v5345
      %v5347 = vpop.f32.mrb[0].mxu0
      %5348 = vmatprep.mubr.f32.mxu0 0.0
      %5349 = vmatmul.mubr.f32.gmra.mrb[0].mxu0 %v5148
      %v5350 = vpop.f32.mrb[0].mxu0
      %v5351 = vadd.f32 0.0, %v5350
      %v5352 = vpop.f32.mrb[0].mxu0
      %5353 = vmatprep.mubr.f32.mxu0 0.0
      %5354 = vmatmul.mubr.f32.gmra.mrb[0].mxu0 %v5151
      %v5355 = vpop.f32.mrb[0].mxu0
      %v5356 = vadd.f32 0.0, %v5355
      %v5357 = vpop.f32.mrb[0].mxu0
      %5358 = vmatprep.mubr.f32.mxu0 0.0
      %5359 = vmatmul.mubr.f32.gmra.mrb[0].mxu0 %v5154
      %v5360 = vpop.f32.mrb[0].mxu0
      %v5361 = vadd.f32 0.0, %v5360
      %v5362 = vpop.f32.mrb[0].mxu0
      %5363 = vmatprep.mubr.f32.mxu0 0.0
      %5364 = vmatmul.mubr.f32.gmra.mrb[0].mxu0 %v5157
      %v5365 = vpop.f32.mrb[0].mxu0
      %v5366 = vadd.f32 0.0, %v5365
      %v5367 = vpop.f32.mrb[0].mxu0
      %5368 = vmatprep.mubr.f32.mxu0 0.0
      %5369 = vmatmul.mubr.f32.gmra.mrb[0].mxu0 %v5160
      %v5370 = vpop.f32.mrb[0].mxu0
      %v5371 = vadd.f32 0.0, %v5370
      %v5372 = vpop.f32.mrb[0].mxu0
      %5373 = vmatprep.mubr.f32.mxu0 0.0
      %5374 = vmatmul.mubr.f32.gmra.mrb[0].mxu0 %v5163
      %v5375 = vpop.f32.mrb[0].mxu0
      %v5376 = vadd.f32 0.0, %v5375
      %v5377 = vpop.f32.mrb[0].mxu0
      %5378 = vmatprep.mubr.f32.mxu0 0.0
      %5379 = vmatmul.mubr.f32.gmra.mrb[0].mxu0 %v5166
      %v5380 = vpop.f32.mrb[0].mxu0
      %v5381 = vadd.f32 0.0, %v5380
      %v5382 = vpop.f32.mrb[0].mxu0
      %5383 = vmatprep.mubr.f32.mxu0 0.0
      %5384 = vmatmul.mubr.f32.gmra.mrb[0].mxu0 %v5169
      %v5385 = vpop.f32.mrb[0].mxu0
      %v5386 = vadd.f32 0.0, %v5385
      %v5387 = vpop.f32.mrb[0].mxu0
      %5388 = vmatprep.mubr.f32.mxu0 0.0
      %5389 = vmatmul.mubr.f32.gmra.mrb[0].mxu0 %v5172
      %v5390 = vpop.f32.mrb[0].mxu0
      %v5391 = vadd.f32 0.0, %v5390
      %v5392 = vpop.f32.mrb[0].mxu0
      %5393 = vmatprep.mubr.f32.mxu0 0.0
      %5394 = vmatmul.mubr.f32.gmra.mrb[0].mxu0 %v5175
      %v5395 = vpop.f32.mrb[0].mxu0
      %v5396 = vadd.f32 0.0, %v5395
      %v5397 = vpop.f32.mrb[0].mxu0
      %5398 = vmatprep.mubr.f32.mxu0 0.0
      %5399 = vmatmul.mubr.f32.gmra.mrb[0].mxu0 %v5178
      %v5400 = vpop.f32.mrb[0].mxu0
      %v5401 = vadd.f32 0.0, %v5400
      %v5402 = vpop.f32.mrb[0].mxu0
      %5403 = vmatprep.mubr.f32.mxu0 0.0
      %5404 = vmatmul.mubr.f32.gmra.mrb[0].mxu0 %v5181
      %v5405 = vpop.f32.mrb[0].mxu0
      %v5406 = vadd.f32 0.0, %v5405
      %v5407 = vpop.f32.mrb[0].mxu0
      %5408 = vmatprep.mubr.f32.mxu0 0.0
      %5409 = vmatmul.mubr.f32.gmra.mrb[0].mxu0 %v5184
      %v5410 = vpop.f32.mrb[0].mxu0
      %v5411 = vadd.f32 0.0, %v5410
      %v5412 = vpop.f32.mrb[0].mxu0
      %5413 = vdwg.mxu0
      %v5414 = vadd.f32 %v5024, %v5256
      %v5415 = vadd.f32 %v5025, %v5261
      %v5416 = vadd.f32 %v5026, %v5266
      %v5417 = vadd.f32 %v5027, %v5271
      %v5418 = vadd.f32 %v5028, %v5276
      %v5419 = vadd.f32 %v5029, %v5281
      %v5420 = vadd.f32 %v5030, %v5286
      %v5421 = vadd.f32 %v5031, %v5291
      %v5422 = vadd.f32 %v5032, %v5296
      %v5423 = vadd.f32 %v5033, %v5301
      %v5424 = vadd.f32 %v5034, %v5306
      %v5425 = vadd.f32 %v5035, %v5311
      %v5426 = vadd.f32 %v5036, %v5316
      %v5427 = vadd.f32 %v5037, %v5321
      %v5428 = vadd.f32 %v5038, %v5326
      %v5429 = vadd.f32 %v5039, %v5331
      %v5430 = vadd.f32 %v5040, %v5336
      %v5431 = vadd.f32 %v5041, %v5341
      %v5432 = vadd.f32 %v5042, %v5346
      %v5433 = vadd.f32 %v5043, %v5351
      %v5434 = vadd.f32 %v5044, %v5356
      %v5435 = vadd.f32 %v5045, %v5361
      %v5436 = vadd.f32 %v5046, %v5366
      %v5437 = vadd.f32 %v5047, %v5371
      %v5438 = vadd.f32 %v5048, %v5376
      %v5439 = vadd.f32 %v5049, %v5381
      %v5440 = vadd.f32 %v5050, %v5386
      %v5441 = vadd.f32 %v5051, %v5391
      %v5442 = vadd.f32 %v5052, %v5396
      %v5443 = vadd.f32 %v5053, %v5401
      %v5444 = vadd.f32 %v5054, %v5406
      %v5445 = vadd.f32 %v5055, %v5411
      %v5446 = vld [vmem:[%s3918 + $0x1] sm:$0xff]
      %v5447 = vld [vmem:[%s3918 + $0x9] sm:$0xff]
      %v5448 = vld [vmem:[%s3918 + $0x19] sm:$0xff]
      %v5449 = vld [vmem:[%s3918 + $0x21] sm:$0xff]
      %v5450 = vld [vmem:[%s3918 + $0x31] sm:$0xff]
      %v5451 = vld [vmem:[%s3918 + $0x39] sm:$0xff]
      %v5452 = vld [vmem:[%s3918 + $0x49] sm:$0xff]
      %v5453 = vld [vmem:[%s3918 + $0x51] sm:$0xff]
      %v5454 = vld [vmem:[%s3918 + $0x61] sm:$0xff]
      %v5455 = vld [vmem:[%s3918 + $0x69] sm:$0xff]
      %v5456 = vld [vmem:[%s3918 + $0x79] sm:$0xff]
      %v5457 = vld [vmem:[%s3918 + $0x81] sm:$0xff]
      %v5458 = vld [vmem:[%s3918 + $0x91] sm:$0xff]
      %v5459 = vld [vmem:[%s3918 + $0x99] sm:$0xff]
      %v5460 = vld [vmem:[%s3918 + $0xa9] sm:$0xff]
      %v5461 = vld [vmem:[%s3918 + $0xb1] sm:$0xff]
      %v5462 = vld [vmem:[%s3918 + $0xc1] sm:$0xff]
      %v5463 = vld [vmem:[%s3918 + $0xc9] sm:$0xff]
      %v5464 = vld [vmem:[%s3918 + $0xd9] sm:$0xff]
      %v5465 = vld [vmem:[%s3918 + $0xe1] sm:$0xff]
      %v5466 = vld [vmem:[%s3918 + $0xf1] sm:$0xff]
      %v5467 = vld [vmem:[%s3918 + $0xf9] sm:$0xff]
      %v5468 = vld [vmem:[%s3918 + $0x109] sm:$0xff]
      %v5469 = vld [vmem:[%s3918 + $0x111] sm:$0xff]
      %v5470 = vld [vmem:[%s3918 + $0x121] sm:$0xff]
      %v5471 = vld [vmem:[%s3918 + $0x129] sm:$0xff]
      %v5472 = vld [vmem:[%s3918 + $0x139] sm:$0xff]
      %v5473 = vld [vmem:[%s3918 + $0x141] sm:$0xff]
      %v5474 = vld [vmem:[%s3918 + $0x151] sm:$0xff]
      %v5475 = vld [vmem:[%s3918 + $0x159] sm:$0xff]
      %v5476 = vld [vmem:[%s3918 + $0x169] sm:$0xff]
      %v5477 = vld [vmem:[%s3918 + $0x171] sm:$0xff]
      %s5478 = scalar_lea.vmem %s3, 16
      %v5479 = vld [vmem:[%s5478] sm:$0xf]
      %v5481 = vsel %vm225, %v5446, 0
      %v5484 = vsel %vm225, %v5447, 0
      %v5487 = vsel %vm225, %v5448, 0
      %v5490 = vsel %vm225, %v5449, 0
      %v5493 = vsel %vm225, %v5450, 0
      %v5496 = vsel %vm225, %v5451, 0
      %v5499 = vsel %vm225, %v5452, 0
      %v5502 = vsel %vm225, %v5453, 0
      %v5505 = vsel %vm225, %v5454, 0
      %v5508 = vsel %vm225, %v5455, 0
      %v5511 = vsel %vm225, %v5456, 0
      %v5514 = vsel %vm225, %v5457, 0
      %v5517 = vsel %vm225, %v5458, 0
      %v5520 = vsel %vm225, %v5459, 0
      %v5523 = vsel %vm225, %v5460, 0
      %v5526 = vsel %vm225, %v5461, 0
      %v5529 = vsel %vm225, %v5462, 0
      %v5532 = vsel %vm225, %v5463, 0
      %v5535 = vsel %vm225, %v5464, 0
      %v5538 = vsel %vm225, %v5465, 0
      %v5541 = vsel %vm225, %v5466, 0
      %v5544 = vsel %vm225, %v5467, 0
      %v5547 = vsel %vm225, %v5468, 0
      %v5550 = vsel %vm225, %v5469, 0
      %v5553 = vsel %vm225, %v5470, 0
      %v5556 = vsel %vm225, %v5471, 0
      %v5559 = vsel %vm225, %v5472, 0
      %v5562 = vsel %vm225, %v5473, 0
      %v5565 = vsel %vm225, %v5474, 0
      %v5568 = vsel %vm225, %v5475, 0
      %v5571 = vsel %vm225, %v5476, 0
      %v5574 = vsel %vm225, %v5477, 0
      %v5577 = vsel %vm563, %v5479, 0
      %5579 = vmatprep.subr.mxu0 0.0
      %5580 = vmatpush1.msra.mxu0 %v5577
      %5581 = vmatprep.subr.mxu0 0.0
      %5582 = vmatpush1.msra.mxu0 0.0
      %5583 = vmatprep.subr.mxu0 0.0
      %5584 = vmatpush1.msra.mxu0 0.0
      %5585 = vmatprep.subr.mxu0 0.0
      %5586 = vmatpush1.msra.mxu0 0.0
      %5587 = vmatprep.subr.mxu0 0.0
      %5588 = vmatpush1.msra.mxu0 0.0
      %5589 = vmatprep.subr.mxu0 0.0
      %5590 = vmatpush1.msra.mxu0 0.0
      %5591 = vmatprep.subr.mxu0 0.0
      %5592 = vmatpush1.msra.mxu0 0.0
      %5593 = vmatprep.subr.mxu0 0.0
      %5594 = vmatpush1.msra.mxu0 0.0
      %5595 = vmatprep.subr.mxu0 0.0
      %5596 = vmatpush1.msra.mxu0 0.0
      %5597 = vmatprep.subr.mxu0 0.0
      %5598 = vmatpush1.msra.mxu0 0.0
      %5599 = vmatprep.subr.mxu0 0.0
      %5600 = vmatpush1.msra.mxu0 0.0
      %5601 = vmatprep.subr.mxu0 0.0
      %5602 = vmatpush1.msra.mxu0 0.0
      %5603 = vmatprep.subr.mxu0 0.0
      %5604 = vmatpush1.msra.mxu0 0.0
      %5605 = vmatprep.subr.mxu0 0.0
      %5606 = vmatpush1.msra.mxu0 0.0
      %5607 = vmatprep.subr.mxu0 0.0
      %5608 = vmatpush1.msra.mxu0 0.0
      %5609 = vmatprep.subr.mxu0 0.0
      %5610 = vmatpush1.msra.mxu0 0.0
      %5611 = vmatprep.subr.mxu0 0.0
      %5612 = vmatpush1.msra.mxu0 0.0
      %5613 = vmatprep.subr.mxu0 0.0
      %5614 = vmatpush1.msra.mxu0 0.0
      %5615 = vmatprep.subr.mxu0 0.0
      %5616 = vmatpush1.msra.mxu0 0.0
      %5617 = vmatprep.subr.mxu0 0.0
      %5618 = vmatpush1.msra.mxu0 0.0
      %5619 = vmatprep.subr.mxu0 0.0
      %5620 = vmatpush1.msra.mxu0 0.0
      %5621 = vmatprep.subr.mxu0 0.0
      %5622 = vmatpush1.msra.mxu0 0.0
      %5623 = vmatprep.subr.mxu0 0.0
      %5624 = vmatpush1.msra.mxu0 0.0
      %5625 = vmatprep.subr.mxu0 0.0
      %5626 = vmatpush1.msra.mxu0 0.0
      %5627 = vmatprep.subr.mxu0 0.0
      %5628 = vmatpush1.msra.mxu0 0.0
      %5629 = vmatprep.subr.mxu0 0.0
      %5630 = vmatpush1.msra.mxu0 0.0
      %5631 = vmatprep.subr.mxu0 0.0
      %5632 = vmatpush1.msra.mxu0 0.0
      %5633 = vmatprep.subr.mxu0 0.0
      %5634 = vmatpush1.msra.mxu0 0.0
      %5635 = vmatprep.subr.mxu0 0.0
      %5636 = vmatpush1.msra.mxu0 0.0
      %5637 = vmatprep.subr.mxu0 0.0
      %5638 = vmatpush1.msra.mxu0 0.0
      %5639 = vmatprep.subr.mxu0 0.0
      %5640 = vmatpush1.msra.mxu0 0.0
      %5641 = vmatprep.subr.mxu0 0.0
      %5642 = vmatpush1.msra.mxu0 0.0
      %5643 = vmatprep.mubr.f32.mxu0 0.0
      %5644 = vmatmul.mubr.f32.gmra.mrb[0].mxu0 %v5481
      %v5645 = vpop.f32.mrb[0].mxu0
      %v5646 = vadd.f32 0.0, %v5645
      %v5647 = vpop.f32.mrb[0].mxu0
      %5648 = vmatprep.mubr.f32.mxu0 0.0
      %5649 = vmatmul.mubr.f32.gmra.mrb[0].mxu0 %v5484
      %v5650 = vpop.f32.mrb[0].mxu0
      %v5651 = vadd.f32 0.0, %v5650
      %v5652 = vpop.f32.mrb[0].mxu0
      %5653 = vmatprep.mubr.f32.mxu0 0.0
      %5654 = vmatmul.mubr.f32.gmra.mrb[0].mxu0 %v5487
      %v5655 = vpop.f32.mrb[0].mxu0
      %v5656 = vadd.f32 0.0, %v5655
      %v5657 = vpop.f32.mrb[0].mxu0
      %5658 = vmatprep.mubr.f32.mxu0 0.0
      %5659 = vmatmul.mubr.f32.gmra.mrb[0].mxu0 %v5490
      %v5660 = vpop.f32.mrb[0].mxu0
      %v5661 = vadd.f32 0.0, %v5660
      %v5662 = vpop.f32.mrb[0].mxu0
      %5663 = vmatprep.mubr.f32.mxu0 0.0
      %5664 = vmatmul.mubr.f32.gmra.mrb[0].mxu0 %v5493
      %v5665 = vpop.f32.mrb[0].mxu0
      %v5666 = vadd.f32 0.0, %v5665
      %v5667 = vpop.f32.mrb[0].mxu0
      %5668 = vmatprep.mubr.f32.mxu0 0.0
      %5669 = vmatmul.mubr.f32.gmra.mrb[0].mxu0 %v5496
      %v5670 = vpop.f32.mrb[0].mxu0
      %v5671 = vadd.f32 0.0, %v5670
      %v5672 = vpop.f32.mrb[0].mxu0
      %5673 = vmatprep.mubr.f32.mxu0 0.0
      %5674 = vmatmul.mubr.f32.gmra.mrb[0].mxu0 %v5499
      %v5675 = vpop.f32.mrb[0].mxu0
      %v5676 = vadd.f32 0.0, %v5675
      %v5677 = vpop.f32.mrb[0].mxu0
      %5678 = vmatprep.mubr.f32.mxu0 0.0
      %5679 = vmatmul.mubr.f32.gmra.mrb[0].mxu0 %v5502
      %v5680 = vpop.f32.mrb[0].mxu0
      %v5681 = vadd.f32 0.0, %v5680
      %v5682 = vpop.f32.mrb[0].mxu0
      %5683 = vmatprep.mubr.f32.mxu0 0.0
      %5684 = vmatmul.mubr.f32.gmra.mrb[0].mxu0 %v5505
      %v5685 = vpop.f32.mrb[0].mxu0
      %v5686 = vadd.f32 0.0, %v5685
      %v5687 = vpop.f32.mrb[0].mxu0
      %5688 = vmatprep.mubr.f32.mxu0 0.0
      %5689 = vmatmul.mubr.f32.gmra.mrb[0].mxu0 %v5508
      %v5690 = vpop.f32.mrb[0].mxu0
      %v5691 = vadd.f32 0.0, %v5690
      %v5692 = vpop.f32.mrb[0].mxu0
      %5693 = vmatprep.mubr.f32.mxu0 0.0
      %5694 = vmatmul.mubr.f32.gmra.mrb[0].mxu0 %v5511
      %v5695 = vpop.f32.mrb[0].mxu0
      %v5696 = vadd.f32 0.0, %v5695
      %v5697 = vpop.f32.mrb[0].mxu0
      %5698 = vmatprep.mubr.f32.mxu0 0.0
      %5699 = vmatmul.mubr.f32.gmra.mrb[0].mxu0 %v5514
      %v5700 = vpop.f32.mrb[0].mxu0
      %v5701 = vadd.f32 0.0, %v5700
      %v5702 = vpop.f32.mrb[0].mxu0
      %5703 = vmatprep.mubr.f32.mxu0 0.0
      %5704 = vmatmul.mubr.f32.gmra.mrb[0].mxu0 %v5517
      %v5705 = vpop.f32.mrb[0].mxu0
      %v5706 = vadd.f32 0.0, %v5705
      %v5707 = vpop.f32.mrb[0].mxu0
      %5708 = vmatprep.mubr.f32.mxu0 0.0
      %5709 = vmatmul.mubr.f32.gmra.mrb[0].mxu0 %v5520
      %v5710 = vpop.f32.mrb[0].mxu0
      %v5711 = vadd.f32 0.0, %v5710
      %v5712 = vpop.f32.mrb[0].mxu0
      %5713 = vmatprep.mubr.f32.mxu0 0.0
      %5714 = vmatmul.mubr.f32.gmra.mrb[0].mxu0 %v5523
      %v5715 = vpop.f32.mrb[0].mxu0
      %v5716 = vadd.f32 0.0, %v5715
      %v5717 = vpop.f32.mrb[0].mxu0
      %5718 = vmatprep.mubr.f32.mxu0 0.0
      %5719 = vmatmul.mubr.f32.gmra.mrb[0].mxu0 %v5526
      %v5720 = vpop.f32.mrb[0].mxu0
      %v5721 = vadd.f32 0.0, %v5720
      %v5722 = vpop.f32.mrb[0].mxu0
      %5723 = vmatprep.mubr.f32.mxu0 0.0
      %5724 = vmatmul.mubr.f32.gmra.mrb[0].mxu0 %v5529
      %v5725 = vpop.f32.mrb[0].mxu0
      %v5726 = vadd.f32 0.0, %v5725
      %v5727 = vpop.f32.mrb[0].mxu0
      %5728 = vmatprep.mubr.f32.mxu0 0.0
      %5729 = vmatmul.mubr.f32.gmra.mrb[0].mxu0 %v5532
      %v5730 = vpop.f32.mrb[0].mxu0
      %v5731 = vadd.f32 0.0, %v5730
      %v5732 = vpop.f32.mrb[0].mxu0
      %5733 = vmatprep.mubr.f32.mxu0 0.0
      %5734 = vmatmul.mubr.f32.gmra.mrb[0].mxu0 %v5535
      %v5735 = vpop.f32.mrb[0].mxu0
      %v5736 = vadd.f32 0.0, %v5735
      %v5737 = vpop.f32.mrb[0].mxu0
      %5738 = vmatprep.mubr.f32.mxu0 0.0
      %5739 = vmatmul.mubr.f32.gmra.mrb[0].mxu0 %v5538
      %v5740 = vpop.f32.mrb[0].mxu0
      %v5741 = vadd.f32 0.0, %v5740
      %v5742 = vpop.f32.mrb[0].mxu0
      %5743 = vmatprep.mubr.f32.mxu0 0.0
      %5744 = vmatmul.mubr.f32.gmra.mrb[0].mxu0 %v5541
      %v5745 = vpop.f32.mrb[0].mxu0
      %v5746 = vadd.f32 0.0, %v5745
      %v5747 = vpop.f32.mrb[0].mxu0
      %5748 = vmatprep.mubr.f32.mxu0 0.0
      %5749 = vmatmul.mubr.f32.gmra.mrb[0].mxu0 %v5544
      %v5750 = vpop.f32.mrb[0].mxu0
      %v5751 = vadd.f32 0.0, %v5750
      %v5752 = vpop.f32.mrb[0].mxu0
      %5753 = vmatprep.mubr.f32.mxu0 0.0
      %5754 = vmatmul.mubr.f32.gmra.mrb[0].mxu0 %v5547
      %v5755 = vpop.f32.mrb[0].mxu0
      %v5756 = vadd.f32 0.0, %v5755
      %v5757 = vpop.f32.mrb[0].mxu0
      %5758 = vmatprep.mubr.f32.mxu0 0.0
      %5759 = vmatmul.mubr.f32.gmra.mrb[0].mxu0 %v5550
      %v5760 = vpop.f32.mrb[0].mxu0
      %v5761 = vadd.f32 0.0, %v5760
      %v5762 = vpop.f32.mrb[0].mxu0
      %5763 = vmatprep.mubr.f32.mxu0 0.0
      %5764 = vmatmul.mubr.f32.gmra.mrb[0].mxu0 %v5553
      %v5765 = vpop.f32.mrb[0].mxu0
      %v5766 = vadd.f32 0.0, %v5765
      %v5767 = vpop.f32.mrb[0].mxu0
      %5768 = vmatprep.mubr.f32.mxu0 0.0
      %5769 = vmatmul.mubr.f32.gmra.mrb[0].mxu0 %v5556
      %v5770 = vpop.f32.mrb[0].mxu0
      %v5771 = vadd.f32 0.0, %v5770
      %v5772 = vpop.f32.mrb[0].mxu0
      %5773 = vmatprep.mubr.f32.mxu0 0.0
      %5774 = vmatmul.mubr.f32.gmra.mrb[0].mxu0 %v5559
      %v5775 = vpop.f32.mrb[0].mxu0
      %v5776 = vadd.f32 0.0, %v5775
      %v5777 = vpop.f32.mrb[0].mxu0
      %5778 = vmatprep.mubr.f32.mxu0 0.0
      %5779 = vmatmul.mubr.f32.gmra.mrb[0].mxu0 %v5562
      %v5780 = vpop.f32.mrb[0].mxu0
      %v5781 = vadd.f32 0.0, %v5780
      %v5782 = vpop.f32.mrb[0].mxu0
      %5783 = vmatprep.mubr.f32.mxu0 0.0
      %5784 = vmatmul.mubr.f32.gmra.mrb[0].mxu0 %v5565
      %v5785 = vpop.f32.mrb[0].mxu0
      %v5786 = vadd.f32 0.0, %v5785
      %v5787 = vpop.f32.mrb[0].mxu0
      %5788 = vmatprep.mubr.f32.mxu0 0.0
      %5789 = vmatmul.mubr.f32.gmra.mrb[0].mxu0 %v5568
      %v5790 = vpop.f32.mrb[0].mxu0
      %v5791 = vadd.f32 0.0, %v5790
      %v5792 = vpop.f32.mrb[0].mxu0
      %5793 = vmatprep.mubr.f32.mxu0 0.0
      %5794 = vmatmul.mubr.f32.gmra.mrb[0].mxu0 %v5571
      %v5795 = vpop.f32.mrb[0].mxu0
      %v5796 = vadd.f32 0.0, %v5795
      %v5797 = vpop.f32.mrb[0].mxu0
      %5798 = vmatprep.mubr.f32.mxu0 0.0
      %5799 = vmatmul.mubr.f32.gmra.mrb[0].mxu0 %v5574
      %v5800 = vpop.f32.mrb[0].mxu0
      %v5801 = vadd.f32 0.0, %v5800
      %v5802 = vpop.f32.mrb[0].mxu0
      %5803 = vdwg.mxu0
      %v5804 = vadd.f32 %v5414, %v5646
      %v5805 = vadd.f32 %v5415, %v5651
      %v5806 = vadd.f32 %v5416, %v5656
      %v5807 = vadd.f32 %v5417, %v5661
      %v5808 = vadd.f32 %v5418, %v5666
      %v5809 = vadd.f32 %v5419, %v5671
      %v5810 = vadd.f32 %v5420, %v5676
      %v5811 = vadd.f32 %v5421, %v5681
      %v5812 = vadd.f32 %v5422, %v5686
      %v5813 = vadd.f32 %v5423, %v5691
      %v5814 = vadd.f32 %v5424, %v5696
      %v5815 = vadd.f32 %v5425, %v5701
      %v5816 = vadd.f32 %v5426, %v5706
      %v5817 = vadd.f32 %v5427, %v5711
      %v5818 = vadd.f32 %v5428, %v5716
      %v5819 = vadd.f32 %v5429, %v5721
      %v5820 = vadd.f32 %v5430, %v5726
      %v5821 = vadd.f32 %v5431, %v5731
      %v5822 = vadd.f32 %v5432, %v5736
      %v5823 = vadd.f32 %v5433, %v5741
      %v5824 = vadd.f32 %v5434, %v5746
      %v5825 = vadd.f32 %v5435, %v5751
      %v5826 = vadd.f32 %v5436, %v5756
      %v5827 = vadd.f32 %v5437, %v5761
      %v5828 = vadd.f32 %v5438, %v5766
      %v5829 = vadd.f32 %v5439, %v5771
      %v5830 = vadd.f32 %v5440, %v5776
      %v5831 = vadd.f32 %v5441, %v5781
      %v5832 = vadd.f32 %v5442, %v5786
      %v5833 = vadd.f32 %v5443, %v5791
      %v5834 = vadd.f32 %v5444, %v5796
      %v5835 = vadd.f32 %v5445, %v5801
      %v5836 = vld [vmem:[%s3918 + $0x2] sm:$0xff]
      %v5837 = vld [vmem:[%s3918 + $0xa] sm:$0xff]
      %v5838 = vld [vmem:[%s3918 + $0x1a] sm:$0xff]
      %v5839 = vld [vmem:[%s3918 + $0x22] sm:$0xff]
      %v5840 = vld [vmem:[%s3918 + $0x32] sm:$0xff]
      %v5841 = vld [vmem:[%s3918 + $0x3a] sm:$0xff]
      %v5842 = vld [vmem:[%s3918 + $0x4a] sm:$0xff]
      %v5843 = vld [vmem:[%s3918 + $0x52] sm:$0xff]
      %v5844 = vld [vmem:[%s3918 + $0x62] sm:$0xff]
      %v5845 = vld [vmem:[%s3918 + $0x6a] sm:$0xff]
      %v5846 = vld [vmem:[%s3918 + $0x7a] sm:$0xff]
      %v5847 = vld [vmem:[%s3918 + $0x82] sm:$0xff]
      %v5848 = vld [vmem:[%s3918 + $0x92] sm:$0xff]
      %v5849 = vld [vmem:[%s3918 + $0x9a] sm:$0xff]
      %v5850 = vld [vmem:[%s3918 + $0xaa] sm:$0xff]
      %v5851 = vld [vmem:[%s3918 + $0xb2] sm:$0xff]
      %v5852 = vld [vmem:[%s3918 + $0xc2] sm:$0xff]
      %v5853 = vld [vmem:[%s3918 + $0xca] sm:$0xff]
      %v5854 = vld [vmem:[%s3918 + $0xda] sm:$0xff]
      %v5855 = vld [vmem:[%s3918 + $0xe2] sm:$0xff]
      %v5856 = vld [vmem:[%s3918 + $0xf2] sm:$0xff]
      %v5857 = vld [vmem:[%s3918 + $0xfa] sm:$0xff]
      %v5858 = vld [vmem:[%s3918 + $0x10a] sm:$0xff]
      %v5859 = vld [vmem:[%s3918 + $0x112] sm:$0xff]
      %v5860 = vld [vmem:[%s3918 + $0x122] sm:$0xff]
      %v5861 = vld [vmem:[%s3918 + $0x12a] sm:$0xff]
      %v5862 = vld [vmem:[%s3918 + $0x13a] sm:$0xff]
      %v5863 = vld [vmem:[%s3918 + $0x142] sm:$0xff]
      %v5864 = vld [vmem:[%s3918 + $0x152] sm:$0xff]
      %v5865 = vld [vmem:[%s3918 + $0x15a] sm:$0xff]
      %v5866 = vld [vmem:[%s3918 + $0x16a] sm:$0xff]
      %v5867 = vld [vmem:[%s3918 + $0x172] sm:$0xff]
      %s5868 = scalar_lea.vmem %s3, 20
      %v5869 = vld [vmem:[%s5868] sm:$0xf]
      %v5871 = vsel %vm225, %v5836, 0
      %v5874 = vsel %vm225, %v5837, 0
      %v5877 = vsel %vm225, %v5838, 0
      %v5880 = vsel %vm225, %v5839, 0
      %v5883 = vsel %vm225, %v5840, 0
      %v5886 = vsel %vm225, %v5841, 0
      %v5889 = vsel %vm225, %v5842, 0
      %v5892 = vsel %vm225, %v5843, 0
      %v5895 = vsel %vm225, %v5844, 0
      %v5898 = vsel %vm225, %v5845, 0
      %v5901 = vsel %vm225, %v5846, 0
      %v5904 = vsel %vm225, %v5847, 0
      %v5907 = vsel %vm225, %v5848, 0
      %v5910 = vsel %vm225, %v5849, 0
      %v5913 = vsel %vm225, %v5850, 0
      %v5916 = vsel %vm225, %v5851, 0
      %v5919 = vsel %vm225, %v5852, 0
      %v5922 = vsel %vm225, %v5853, 0
      %v5925 = vsel %vm225, %v5854, 0
      %v5928 = vsel %vm225, %v5855, 0
      %v5931 = vsel %vm225, %v5856, 0
      %v5934 = vsel %vm225, %v5857, 0
      %v5937 = vsel %vm225, %v5858, 0
      %v5940 = vsel %vm225, %v5859, 0
      %v5943 = vsel %vm225, %v5860, 0
      %v5946 = vsel %vm225, %v5861, 0
      %v5949 = vsel %vm225, %v5862, 0
      %v5952 = vsel %vm225, %v5863, 0
      %v5955 = vsel %vm225, %v5864, 0
      %v5958 = vsel %vm225, %v5865, 0
      %v5961 = vsel %vm225, %v5866, 0
      %v5964 = vsel %vm225, %v5867, 0
      %v5967 = vsel %vm563, %v5869, 0
      %5969 = vmatprep.subr.mxu0 0.0
      %5970 = vmatpush1.msra.mxu0 %v5967
      %5971 = vmatprep.subr.mxu0 0.0
      %5972 = vmatpush1.msra.mxu0 0.0
      %5973 = vmatprep.subr.mxu0 0.0
      %5974 = vmatpush1.msra.mxu0 0.0
      %5975 = vmatprep.subr.mxu0 0.0
      %5976 = vmatpush1.msra.mxu0 0.0
      %5977 = vmatprep.subr.mxu0 0.0
      %5978 = vmatpush1.msra.mxu0 0.0
      %5979 = vmatprep.subr.mxu0 0.0
      %5980 = vmatpush1.msra.mxu0 0.0
      %5981 = vmatprep.subr.mxu0 0.0
      %5982 = vmatpush1.msra.mxu0 0.0
      %5983 = vmatprep.subr.mxu0 0.0
      %5984 = vmatpush1.msra.mxu0 0.0
      %5985 = vmatprep.subr.mxu0 0.0
      %5986 = vmatpush1.msra.mxu0 0.0
      %5987 = vmatprep.subr.mxu0 0.0
      %5988 = vmatpush1.msra.mxu0 0.0
      %5989 = vmatprep.subr.mxu0 0.0
      %5990 = vmatpush1.msra.mxu0 0.0
      %5991 = vmatprep.subr.mxu0 0.0
      %5992 = vmatpush1.msra.mxu0 0.0
      %5993 = vmatprep.subr.mxu0 0.0
      %5994 = vmatpush1.msra.mxu0 0.0
      %5995 = vmatprep.subr.mxu0 0.0
      %5996 = vmatpush1.msra.mxu0 0.0
      %5997 = vmatprep.subr.mxu0 0.0
      %5998 = vmatpush1.msra.mxu0 0.0
      %5999 = vmatprep.subr.mxu0 0.0
      %6000 = vmatpush1.msra.mxu0 0.0
      %6001 = vmatprep.subr.mxu0 0.0
      %6002 = vmatpush1.msra.mxu0 0.0
      %6003 = vmatprep.subr.mxu0 0.0
      %6004 = vmatpush1.msra.mxu0 0.0
      %6005 = vmatprep.subr.mxu0 0.0
      %6006 = vmatpush1.msra.mxu0 0.0
      %6007 = vmatprep.subr.mxu0 0.0
      %6008 = vmatpush1.msra.mxu0 0.0
      %6009 = vmatprep.subr.mxu0 0.0
      %6010 = vmatpush1.msra.mxu0 0.0
      %6011 = vmatprep.subr.mxu0 0.0
      %6012 = vmatpush1.msra.mxu0 0.0
      %6013 = vmatprep.subr.mxu0 0.0
      %6014 = vmatpush1.msra.mxu0 0.0
      %6015 = vmatprep.subr.mxu0 0.0
      %6016 = vmatpush1.msra.mxu0 0.0
      %6017 = vmatprep.subr.mxu0 0.0
      %6018 = vmatpush1.msra.mxu0 0.0
      %6019 = vmatprep.subr.mxu0 0.0
      %6020 = vmatpush1.msra.mxu0 0.0
      %6021 = vmatprep.subr.mxu0 0.0
      %6022 = vmatpush1.msra.mxu0 0.0
      %6023 = vmatprep.subr.mxu0 0.0
      %6024 = vmatpush1.msra.mxu0 0.0
      %6025 = vmatprep.subr.mxu0 0.0
      %6026 = vmatpush1.msra.mxu0 0.0
      %6027 = vmatprep.subr.mxu0 0.0
      %6028 = vmatpush1.msra.mxu0 0.0
      %6029 = vmatprep.subr.mxu0 0.0
      %6030 = vmatpush1.msra.mxu0 0.0
      %6031 = vmatprep.subr.mxu0 0.0
      %6032 = vmatpush1.msra.mxu0 0.0
      %6033 = vmatprep.mubr.f32.mxu0 0.0
      %6034 = vmatmul.mubr.f32.gmra.mrb[0].mxu0 %v5871
      %v6035 = vpop.f32.mrb[0].mxu0
      %v6036 = vadd.f32 0.0, %v6035
      %v6037 = vpop.f32.mrb[0].mxu0
      %6038 = vmatprep.mubr.f32.mxu0 0.0
      %6039 = vmatmul.mubr.f32.gmra.mrb[0].mxu0 %v5874
      %v6040 = vpop.f32.mrb[0].mxu0
      %v6041 = vadd.f32 0.0, %v6040
      %v6042 = vpop.f32.mrb[0].mxu0
      %6043 = vmatprep.mubr.f32.mxu0 0.0
      %6044 = vmatmul.mubr.f32.gmra.mrb[0].mxu0 %v5877
      %v6045 = vpop.f32.mrb[0].mxu0
      %v6046 = vadd.f32 0.0, %v6045
      %v6047 = vpop.f32.mrb[0].mxu0
      %6048 = vmatprep.mubr.f32.mxu0 0.0
      %6049 = vmatmul.mubr.f32.gmra.mrb[0].mxu0 %v5880
      %v6050 = vpop.f32.mrb[0].mxu0
      %v6051 = vadd.f32 0.0, %v6050
      %v6052 = vpop.f32.mrb[0].mxu0
      %6053 = vmatprep.mubr.f32.mxu0 0.0
      %6054 = vmatmul.mubr.f32.gmra.mrb[0].mxu0 %v5883
      %v6055 = vpop.f32.mrb[0].mxu0
      %v6056 = vadd.f32 0.0, %v6055
      %v6057 = vpop.f32.mrb[0].mxu0
      %6058 = vmatprep.mubr.f32.mxu0 0.0
      %6059 = vmatmul.mubr.f32.gmra.mrb[0].mxu0 %v5886
      %v6060 = vpop.f32.mrb[0].mxu0
      %v6061 = vadd.f32 0.0, %v6060
      %v6062 = vpop.f32.mrb[0].mxu0
      %6063 = vmatprep.mubr.f32.mxu0 0.0
      %6064 = vmatmul.mubr.f32.gmra.mrb[0].mxu0 %v5889
      %v6065 = vpop.f32.mrb[0].mxu0
      %v6066 = vadd.f32 0.0, %v6065
      %v6067 = vpop.f32.mrb[0].mxu0
      %6068 = vmatprep.mubr.f32.mxu0 0.0
      %6069 = vmatmul.mubr.f32.gmra.mrb[0].mxu0 %v5892
      %v6070 = vpop.f32.mrb[0].mxu0
      %v6071 = vadd.f32 0.0, %v6070
      %v6072 = vpop.f32.mrb[0].mxu0
      %6073 = vmatprep.mubr.f32.mxu0 0.0
      %6074 = vmatmul.mubr.f32.gmra.mrb[0].mxu0 %v5895
      %v6075 = vpop.f32.mrb[0].mxu0
      %v6076 = vadd.f32 0.0, %v6075
      %v6077 = vpop.f32.mrb[0].mxu0
      %6078 = vmatprep.mubr.f32.mxu0 0.0
      %6079 = vmatmul.mubr.f32.gmra.mrb[0].mxu0 %v5898
      %v6080 = vpop.f32.mrb[0].mxu0
      %v6081 = vadd.f32 0.0, %v6080
      %v6082 = vpop.f32.mrb[0].mxu0
      %6083 = vmatprep.mubr.f32.mxu0 0.0
      %6084 = vmatmul.mubr.f32.gmra.mrb[0].mxu0 %v5901
      %v6085 = vpop.f32.mrb[0].mxu0
      %v6086 = vadd.f32 0.0, %v6085
      %v6087 = vpop.f32.mrb[0].mxu0
      %6088 = vmatprep.mubr.f32.mxu0 0.0
      %6089 = vmatmul.mubr.f32.gmra.mrb[0].mxu0 %v5904
      %v6090 = vpop.f32.mrb[0].mxu0
      %v6091 = vadd.f32 0.0, %v6090
      %v6092 = vpop.f32.mrb[0].mxu0
      %6093 = vmatprep.mubr.f32.mxu0 0.0
      %6094 = vmatmul.mubr.f32.gmra.mrb[0].mxu0 %v5907
      %v6095 = vpop.f32.mrb[0].mxu0
      %v6096 = vadd.f32 0.0, %v6095
      %v6097 = vpop.f32.mrb[0].mxu0
      %6098 = vmatprep.mubr.f32.mxu0 0.0
      %6099 = vmatmul.mubr.f32.gmra.mrb[0].mxu0 %v5910
      %v6100 = vpop.f32.mrb[0].mxu0
      %v6101 = vadd.f32 0.0, %v6100
      %v6102 = vpop.f32.mrb[0].mxu0
      %6103 = vmatprep.mubr.f32.mxu0 0.0
      %6104 = vmatmul.mubr.f32.gmra.mrb[0].mxu0 %v5913
      %v6105 = vpop.f32.mrb[0].mxu0
      %v6106 = vadd.f32 0.0, %v6105
      %v6107 = vpop.f32.mrb[0].mxu0
      %6108 = vmatprep.mubr.f32.mxu0 0.0
      %6109 = vmatmul.mubr.f32.gmra.mrb[0].mxu0 %v5916
      %v6110 = vpop.f32.mrb[0].mxu0
      %v6111 = vadd.f32 0.0, %v6110
      %v6112 = vpop.f32.mrb[0].mxu0
      %6113 = vmatprep.mubr.f32.mxu0 0.0
      %6114 = vmatmul.mubr.f32.gmra.mrb[0].mxu0 %v5919
      %v6115 = vpop.f32.mrb[0].mxu0
      %v6116 = vadd.f32 0.0, %v6115
      %v6117 = vpop.f32.mrb[0].mxu0
      %6118 = vmatprep.mubr.f32.mxu0 0.0
      %6119 = vmatmul.mubr.f32.gmra.mrb[0].mxu0 %v5922
      %v6120 = vpop.f32.mrb[0].mxu0
      %v6121 = vadd.f32 0.0, %v6120
      %v6122 = vpop.f32.mrb[0].mxu0
      %6123 = vmatprep.mubr.f32.mxu0 0.0
      %6124 = vmatmul.mubr.f32.gmra.mrb[0].mxu0 %v5925
      %v6125 = vpop.f32.mrb[0].mxu0
      %v6126 = vadd.f32 0.0, %v6125
      %v6127 = vpop.f32.mrb[0].mxu0
      %6128 = vmatprep.mubr.f32.mxu0 0.0
      %6129 = vmatmul.mubr.f32.gmra.mrb[0].mxu0 %v5928
      %v6130 = vpop.f32.mrb[0].mxu0
      %v6131 = vadd.f32 0.0, %v6130
      %v6132 = vpop.f32.mrb[0].mxu0
      %6133 = vmatprep.mubr.f32.mxu0 0.0
      %6134 = vmatmul.mubr.f32.gmra.mrb[0].mxu0 %v5931
      %v6135 = vpop.f32.mrb[0].mxu0
      %v6136 = vadd.f32 0.0, %v6135
      %v6137 = vpop.f32.mrb[0].mxu0
      %6138 = vmatprep.mubr.f32.mxu0 0.0
      %6139 = vmatmul.mubr.f32.gmra.mrb[0].mxu0 %v5934
      %v6140 = vpop.f32.mrb[0].mxu0
      %v6141 = vadd.f32 0.0, %v6140
      %v6142 = vpop.f32.mrb[0].mxu0
      %6143 = vmatprep.mubr.f32.mxu0 0.0
      %6144 = vmatmul.mubr.f32.gmra.mrb[0].mxu0 %v5937
      %v6145 = vpop.f32.mrb[0].mxu0
      %v6146 = vadd.f32 0.0, %v6145
      %v6147 = vpop.f32.mrb[0].mxu0
      %6148 = vmatprep.mubr.f32.mxu0 0.0
      %6149 = vmatmul.mubr.f32.gmra.mrb[0].mxu0 %v5940
      %v6150 = vpop.f32.mrb[0].mxu0
      %v6151 = vadd.f32 0.0, %v6150
      %v6152 = vpop.f32.mrb[0].mxu0
      %6153 = vmatprep.mubr.f32.mxu0 0.0
      %6154 = vmatmul.mubr.f32.gmra.mrb[0].mxu0 %v5943
      %v6155 = vpop.f32.mrb[0].mxu0
      %v6156 = vadd.f32 0.0, %v6155
      %v6157 = vpop.f32.mrb[0].mxu0
      %6158 = vmatprep.mubr.f32.mxu0 0.0
      %6159 = vmatmul.mubr.f32.gmra.mrb[0].mxu0 %v5946
      %v6160 = vpop.f32.mrb[0].mxu0
      %v6161 = vadd.f32 0.0, %v6160
      %v6162 = vpop.f32.mrb[0].mxu0
      %6163 = vmatprep.mubr.f32.mxu0 0.0
      %6164 = vmatmul.mubr.f32.gmra.mrb[0].mxu0 %v5949
      %v6165 = vpop.f32.mrb[0].mxu0
      %v6166 = vadd.f32 0.0, %v6165
      %v6167 = vpop.f32.mrb[0].mxu0
      %6168 = vmatprep.mubr.f32.mxu0 0.0
      %6169 = vmatmul.mubr.f32.gmra.mrb[0].mxu0 %v5952
      %v6170 = vpop.f32.mrb[0].mxu0
      %v6171 = vadd.f32 0.0, %v6170
      %v6172 = vpop.f32.mrb[0].mxu0
      %6173 = vmatprep.mubr.f32.mxu0 0.0
      %6174 = vmatmul.mubr.f32.gmra.mrb[0].mxu0 %v5955
      %v6175 = vpop.f32.mrb[0].mxu0
      %v6176 = vadd.f32 0.0, %v6175
      %v6177 = vpop.f32.mrb[0].mxu0
      %6178 = vmatprep.mubr.f32.mxu0 0.0
      %6179 = vmatmul.mubr.f32.gmra.mrb[0].mxu0 %v5958
      %v6180 = vpop.f32.mrb[0].mxu0
      %v6181 = vadd.f32 0.0, %v6180
      %v6182 = vpop.f32.mrb[0].mxu0
      %6183 = vmatprep.mubr.f32.mxu0 0.0
      %6184 = vmatmul.mubr.f32.gmra.mrb[0].mxu0 %v5961
      %v6185 = vpop.f32.mrb[0].mxu0
      %v6186 = vadd.f32 0.0, %v6185
      %v6187 = vpop.f32.mrb[0].mxu0
      %6188 = vmatprep.mubr.f32.mxu0 0.0
      %6189 = vmatmul.mubr.f32.gmra.mrb[0].mxu0 %v5964
      %v6190 = vpop.f32.mrb[0].mxu0
      %v6191 = vadd.f32 0.0, %v6190
      %v6192 = vpop.f32.mrb[0].mxu0
      %6193 = vdwg.mxu0
      %v6194 = vadd.f32 %v5804, %v6036
      %v6195 = vadd.f32 %v5805, %v6041
      %v6196 = vadd.f32 %v5806, %v6046
      %v6197 = vadd.f32 %v5807, %v6051
      %v6198 = vadd.f32 %v5808, %v6056
      %v6199 = vadd.f32 %v5809, %v6061
      %v6200 = vadd.f32 %v5810, %v6066
      %v6201 = vadd.f32 %v5811, %v6071
      %v6202 = vadd.f32 %v5812, %v6076
      %v6203 = vadd.f32 %v5813, %v6081
      %v6204 = vadd.f32 %v5814, %v6086
      %v6205 = vadd.f32 %v5815, %v6091
      %v6206 = vadd.f32 %v5816, %v6096
      %v6207 = vadd.f32 %v5817, %v6101
      %v6208 = vadd.f32 %v5818, %v6106
      %v6209 = vadd.f32 %v5819, %v6111
      %v6210 = vadd.f32 %v5820, %v6116
      %v6211 = vadd.f32 %v5821, %v6121
      %v6212 = vadd.f32 %v5822, %v6126
      %v6213 = vadd.f32 %v5823, %v6131
      %v6214 = vadd.f32 %v5824, %v6136
      %v6215 = vadd.f32 %v5825, %v6141
      %v6216 = vadd.f32 %v5826, %v6146
      %v6217 = vadd.f32 %v5827, %v6151
      %v6218 = vadd.f32 %v5828, %v6156
      %v6219 = vadd.f32 %v5829, %v6161
      %v6220 = vadd.f32 %v5830, %v6166
      %v6221 = vadd.f32 %v5831, %v6171
      %v6222 = vadd.f32 %v5832, %v6176
      %v6223 = vadd.f32 %v5833, %v6181
      %v6224 = vadd.f32 %v5834, %v6186
      %v6225 = vadd.f32 %v5835, %v6191
      %s6226 = scalar_lea.vmem [#allocation3], 48
      %v6227 = vld [vmem:[%s6226] sm:$0xff]
      %v6228 = vld [vmem:[%s6226 + $0x8] sm:$0xff]
      %v6229 = vld [vmem:[%s6226 + $0x18] sm:$0xff]
      %v6230 = vld [vmem:[%s6226 + $0x20] sm:$0xff]
      %v6231 = vld [vmem:[%s6226 + $0x30] sm:$0xff]
      %v6232 = vld [vmem:[%s6226 + $0x38] sm:$0xff]
      %v6233 = vld [vmem:[%s6226 + $0x48] sm:$0xff]
      %v6234 = vld [vmem:[%s6226 + $0x50] sm:$0xff]
      %v6235 = vld [vmem:[%s6226 + $0x60] sm:$0xff]
      %v6236 = vld [vmem:[%s6226 + $0x68] sm:$0xff]
      %v6237 = vld [vmem:[%s6226 + $0x78] sm:$0xff]
      %v6238 = vld [vmem:[%s6226 + $0x80] sm:$0xff]
      %v6239 = vld [vmem:[%s6226 + $0x90] sm:$0xff]
      %v6240 = vld [vmem:[%s6226 + $0x98] sm:$0xff]
      %v6241 = vld [vmem:[%s6226 + $0xa8] sm:$0xff]
      %v6242 = vld [vmem:[%s6226 + $0xb0] sm:$0xff]
      %v6243 = vld [vmem:[%s6226 + $0xc0] sm:$0xff]
      %v6244 = vld [vmem:[%s6226 + $0xc8] sm:$0xff]
      %v6245 = vld [vmem:[%s6226 + $0xd8] sm:$0xff]
      %v6246 = vld [vmem:[%s6226 + $0xe0] sm:$0xff]
      %v6247 = vld [vmem:[%s6226 + $0xf0] sm:$0xff]
      %v6248 = vld [vmem:[%s6226 + $0xf8] sm:$0xff]
      %v6249 = vld [vmem:[%s6226 + $0x108] sm:$0xff]
      %v6250 = vld [vmem:[%s6226 + $0x110] sm:$0xff]
      %v6251 = vld [vmem:[%s6226 + $0x120] sm:$0xff]
      %v6252 = vld [vmem:[%s6226 + $0x128] sm:$0xff]
      %v6253 = vld [vmem:[%s6226 + $0x138] sm:$0xff]
      %v6254 = vld [vmem:[%s6226 + $0x140] sm:$0xff]
      %v6255 = vld [vmem:[%s6226 + $0x150] sm:$0xff]
      %v6256 = vld [vmem:[%s6226 + $0x158] sm:$0xff]
      %v6257 = vld [vmem:[%s6226 + $0x168] sm:$0xff]
      %v6258 = vld [vmem:[%s6226 + $0x170] sm:$0xff]
      %s6259 = scalar_lea.vmem %s3, 24
      %v6260 = vld [vmem:[%s6259] sm:$0xf]
      %v6262 = vsel %vm225, %v6227, 0
      %v6265 = vsel %vm225, %v6228, 0
      %v6268 = vsel %vm225, %v6229, 0
      %v6271 = vsel %vm225, %v6230, 0
      %v6274 = vsel %vm225, %v6231, 0
      %v6277 = vsel %vm225, %v6232, 0
      %v6280 = vsel %vm225, %v6233, 0
      %v6283 = vsel %vm225, %v6234, 0
      %v6286 = vsel %vm225, %v6235, 0
      %v6289 = vsel %vm225, %v6236, 0
      %v6292 = vsel %vm225, %v6237, 0
      %v6295 = vsel %vm225, %v6238, 0
      %v6298 = vsel %vm225, %v6239, 0
      %v6301 = vsel %vm225, %v6240, 0
      %v6304 = vsel %vm225, %v6241, 0
      %v6307 = vsel %vm225, %v6242, 0
      %v6310 = vsel %vm225, %v6243, 0
      %v6313 = vsel %vm225, %v6244, 0
      %v6316 = vsel %vm225, %v6245, 0
      %v6319 = vsel %vm225, %v6246, 0
      %v6322 = vsel %vm225, %v6247, 0
      %v6325 = vsel %vm225, %v6248, 0
      %v6328 = vsel %vm225, %v6249, 0
      %v6331 = vsel %vm225, %v6250, 0
      %v6334 = vsel %vm225, %v6251, 0
      %v6337 = vsel %vm225, %v6252, 0
      %v6340 = vsel %vm225, %v6253, 0
      %v6343 = vsel %vm225, %v6254, 0
      %v6346 = vsel %vm225, %v6255, 0
      %v6349 = vsel %vm225, %v6256, 0
      %v6352 = vsel %vm225, %v6257, 0
      %v6355 = vsel %vm225, %v6258, 0
      %v6358 = vsel %vm563, %v6260, 0
      %6360 = vmatprep.subr.mxu0 0.0
      %6361 = vmatpush1.msra.mxu0 %v6358
      %6362 = vmatprep.subr.mxu0 0.0
      %6363 = vmatpush1.msra.mxu0 0.0
      %6364 = vmatprep.subr.mxu0 0.0
      %6365 = vmatpush1.msra.mxu0 0.0
      %6366 = vmatprep.subr.mxu0 0.0
      %6367 = vmatpush1.msra.mxu0 0.0
      %6368 = vmatprep.subr.mxu0 0.0
      %6369 = vmatpush1.msra.mxu0 0.0
      %6370 = vmatprep.subr.mxu0 0.0
      %6371 = vmatpush1.msra.mxu0 0.0
      %6372 = vmatprep.subr.mxu0 0.0
      %6373 = vmatpush1.msra.mxu0 0.0
      %6374 = vmatprep.subr.mxu0 0.0
      %6375 = vmatpush1.msra.mxu0 0.0
      %6376 = vmatprep.subr.mxu0 0.0
      %6377 = vmatpush1.msra.mxu0 0.0
      %6378 = vmatprep.subr.mxu0 0.0
      %6379 = vmatpush1.msra.mxu0 0.0
      %6380 = vmatprep.subr.mxu0 0.0
      %6381 = vmatpush1.msra.mxu0 0.0
      %6382 = vmatprep.subr.mxu0 0.0
      %6383 = vmatpush1.msra.mxu0 0.0
      %6384 = vmatprep.subr.mxu0 0.0
      %6385 = vmatpush1.msra.mxu0 0.0
      %6386 = vmatprep.subr.mxu0 0.0
      %6387 = vmatpush1.msra.mxu0 0.0
      %6388 = vmatprep.subr.mxu0 0.0
      %6389 = vmatpush1.msra.mxu0 0.0
      %6390 = vmatprep.subr.mxu0 0.0
      %6391 = vmatpush1.msra.mxu0 0.0
      %6392 = vmatprep.subr.mxu0 0.0
      %6393 = vmatpush1.msra.mxu0 0.0
      %6394 = vmatprep.subr.mxu0 0.0
      %6395 = vmatpush1.msra.mxu0 0.0
      %6396 = vmatprep.subr.mxu0 0.0
      %6397 = vmatpush1.msra.mxu0 0.0
      %6398 = vmatprep.subr.mxu0 0.0
      %6399 = vmatpush1.msra.mxu0 0.0
      %6400 = vmatprep.subr.mxu0 0.0
      %6401 = vmatpush1.msra.mxu0 0.0
      %6402 = vmatprep.subr.mxu0 0.0
      %6403 = vmatpush1.msra.mxu0 0.0
      %6404 = vmatprep.subr.mxu0 0.0
      %6405 = vmatpush1.msra.mxu0 0.0
      %6406 = vmatprep.subr.mxu0 0.0
      %6407 = vmatpush1.msra.mxu0 0.0
      %6408 = vmatprep.subr.mxu0 0.0
      %6409 = vmatpush1.msra.mxu0 0.0
      %6410 = vmatprep.subr.mxu0 0.0
      %6411 = vmatpush1.msra.mxu0 0.0
      %6412 = vmatprep.subr.mxu0 0.0
      %6413 = vmatpush1.msra.mxu0 0.0
      %6414 = vmatprep.subr.mxu0 0.0
      %6415 = vmatpush1.msra.mxu0 0.0
      %6416 = vmatprep.subr.mxu0 0.0
      %6417 = vmatpush1.msra.mxu0 0.0
      %6418 = vmatprep.subr.mxu0 0.0
      %6419 = vmatpush1.msra.mxu0 0.0
      %6420 = vmatprep.subr.mxu0 0.0
      %6421 = vmatpush1.msra.mxu0 0.0
      %6422 = vmatprep.subr.mxu0 0.0
      %6423 = vmatpush1.msra.mxu0 0.0
      %6424 = vmatprep.mubr.f32.mxu0 0.0
      %6425 = vmatmul.mubr.f32.gmra.mrb[0].mxu0 %v6262
      %v6426 = vpop.f32.mrb[0].mxu0
      %v6427 = vadd.f32 0.0, %v6426
      %v6428 = vpop.f32.mrb[0].mxu0
      %6429 = vmatprep.mubr.f32.mxu0 0.0
      %6430 = vmatmul.mubr.f32.gmra.mrb[0].mxu0 %v6265
      %v6431 = vpop.f32.mrb[0].mxu0
      %v6432 = vadd.f32 0.0, %v6431
      %v6433 = vpop.f32.mrb[0].mxu0
      %6434 = vmatprep.mubr.f32.mxu0 0.0
      %6435 = vmatmul.mubr.f32.gmra.mrb[0].mxu0 %v6268
      %v6436 = vpop.f32.mrb[0].mxu0
      %v6437 = vadd.f32 0.0, %v6436
      %v6438 = vpop.f32.mrb[0].mxu0
      %6439 = vmatprep.mubr.f32.mxu0 0.0
      %6440 = vmatmul.mubr.f32.gmra.mrb[0].mxu0 %v6271
      %v6441 = vpop.f32.mrb[0].mxu0
      %v6442 = vadd.f32 0.0, %v6441
      %v6443 = vpop.f32.mrb[0].mxu0
      %6444 = vmatprep.mubr.f32.mxu0 0.0
      %6445 = vmatmul.mubr.f32.gmra.mrb[0].mxu0 %v6274
      %v6446 = vpop.f32.mrb[0].mxu0
      %v6447 = vadd.f32 0.0, %v6446
      %v6448 = vpop.f32.mrb[0].mxu0
      %6449 = vmatprep.mubr.f32.mxu0 0.0
      %6450 = vmatmul.mubr.f32.gmra.mrb[0].mxu0 %v6277
      %v6451 = vpop.f32.mrb[0].mxu0
      %v6452 = vadd.f32 0.0, %v6451
      %v6453 = vpop.f32.mrb[0].mxu0
      %6454 = vmatprep.mubr.f32.mxu0 0.0
      %6455 = vmatmul.mubr.f32.gmra.mrb[0].mxu0 %v6280
      %v6456 = vpop.f32.mrb[0].mxu0
      %v6457 = vadd.f32 0.0, %v6456
      %v6458 = vpop.f32.mrb[0].mxu0
      %6459 = vmatprep.mubr.f32.mxu0 0.0
      %6460 = vmatmul.mubr.f32.gmra.mrb[0].mxu0 %v6283
      %v6461 = vpop.f32.mrb[0].mxu0
      %v6462 = vadd.f32 0.0, %v6461
      %v6463 = vpop.f32.mrb[0].mxu0
      %6464 = vmatprep.mubr.f32.mxu0 0.0
      %6465 = vmatmul.mubr.f32.gmra.mrb[0].mxu0 %v6286
      %v6466 = vpop.f32.mrb[0].mxu0
      %v6467 = vadd.f32 0.0, %v6466
      %v6468 = vpop.f32.mrb[0].mxu0
      %6469 = vmatprep.mubr.f32.mxu0 0.0
      %6470 = vmatmul.mubr.f32.gmra.mrb[0].mxu0 %v6289
      %v6471 = vpop.f32.mrb[0].mxu0
      %v6472 = vadd.f32 0.0, %v6471
      %v6473 = vpop.f32.mrb[0].mxu0
      %6474 = vmatprep.mubr.f32.mxu0 0.0
      %6475 = vmatmul.mubr.f32.gmra.mrb[0].mxu0 %v6292
      %v6476 = vpop.f32.mrb[0].mxu0
      %v6477 = vadd.f32 0.0, %v6476
      %v6478 = vpop.f32.mrb[0].mxu0
      %6479 = vmatprep.mubr.f32.mxu0 0.0
      %6480 = vmatmul.mubr.f32.gmra.mrb[0].mxu0 %v6295
      %v6481 = vpop.f32.mrb[0].mxu0
      %v6482 = vadd.f32 0.0, %v6481
      %v6483 = vpop.f32.mrb[0].mxu0
      %6484 = vmatprep.mubr.f32.mxu0 0.0
      %6485 = vmatmul.mubr.f32.gmra.mrb[0].mxu0 %v6298
      %v6486 = vpop.f32.mrb[0].mxu0
      %v6487 = vadd.f32 0.0, %v6486
      %v6488 = vpop.f32.mrb[0].mxu0
      %6489 = vmatprep.mubr.f32.mxu0 0.0
      %6490 = vmatmul.mubr.f32.gmra.mrb[0].mxu0 %v6301
      %v6491 = vpop.f32.mrb[0].mxu0
      %v6492 = vadd.f32 0.0, %v6491
      %v6493 = vpop.f32.mrb[0].mxu0
      %6494 = vmatprep.mubr.f32.mxu0 0.0
      %6495 = vmatmul.mubr.f32.gmra.mrb[0].mxu0 %v6304
      %v6496 = vpop.f32.mrb[0].mxu0
      %v6497 = vadd.f32 0.0, %v6496
      %v6498 = vpop.f32.mrb[0].mxu0
      %6499 = vmatprep.mubr.f32.mxu0 0.0
      %6500 = vmatmul.mubr.f32.gmra.mrb[0].mxu0 %v6307
      %v6501 = vpop.f32.mrb[0].mxu0
      %v6502 = vadd.f32 0.0, %v6501
      %v6503 = vpop.f32.mrb[0].mxu0
      %6504 = vmatprep.mubr.f32.mxu0 0.0
      %6505 = vmatmul.mubr.f32.gmra.mrb[0].mxu0 %v6310
      %v6506 = vpop.f32.mrb[0].mxu0
      %v6507 = vadd.f32 0.0, %v6506
      %v6508 = vpop.f32.mrb[0].mxu0
      %6509 = vmatprep.mubr.f32.mxu0 0.0
      %6510 = vmatmul.mubr.f32.gmra.mrb[0].mxu0 %v6313
      %v6511 = vpop.f32.mrb[0].mxu0
      %v6512 = vadd.f32 0.0, %v6511
      %v6513 = vpop.f32.mrb[0].mxu0
      %6514 = vmatprep.mubr.f32.mxu0 0.0
      %6515 = vmatmul.mubr.f32.gmra.mrb[0].mxu0 %v6316
      %v6516 = vpop.f32.mrb[0].mxu0
      %v6517 = vadd.f32 0.0, %v6516
      %v6518 = vpop.f32.mrb[0].mxu0
      %6519 = vmatprep.mubr.f32.mxu0 0.0
      %6520 = vmatmul.mubr.f32.gmra.mrb[0].mxu0 %v6319
      %v6521 = vpop.f32.mrb[0].mxu0
      %v6522 = vadd.f32 0.0, %v6521
      %v6523 = vpop.f32.mrb[0].mxu0
      %6524 = vmatprep.mubr.f32.mxu0 0.0
      %6525 = vmatmul.mubr.f32.gmra.mrb[0].mxu0 %v6322
      %v6526 = vpop.f32.mrb[0].mxu0
      %v6527 = vadd.f32 0.0, %v6526
      %v6528 = vpop.f32.mrb[0].mxu0
      %6529 = vmatprep.mubr.f32.mxu0 0.0
      %6530 = vmatmul.mubr.f32.gmra.mrb[0].mxu0 %v6325
      %v6531 = vpop.f32.mrb[0].mxu0
      %v6532 = vadd.f32 0.0, %v6531
      %v6533 = vpop.f32.mrb[0].mxu0
      %6534 = vmatprep.mubr.f32.mxu0 0.0
      %6535 = vmatmul.mubr.f32.gmra.mrb[0].mxu0 %v6328
      %v6536 = vpop.f32.mrb[0].mxu0
      %v6537 = vadd.f32 0.0, %v6536
      %v6538 = vpop.f32.mrb[0].mxu0
      %6539 = vmatprep.mubr.f32.mxu0 0.0
      %6540 = vmatmul.mubr.f32.gmra.mrb[0].mxu0 %v6331
      %v6541 = vpop.f32.mrb[0].mxu0
      %v6542 = vadd.f32 0.0, %v6541
      %v6543 = vpop.f32.mrb[0].mxu0
      %6544 = vmatprep.mubr.f32.mxu0 0.0
      %6545 = vmatmul.mubr.f32.gmra.mrb[0].mxu0 %v6334
      %v6546 = vpop.f32.mrb[0].mxu0
      %v6547 = vadd.f32 0.0, %v6546
      %v6548 = vpop.f32.mrb[0].mxu0
      %6549 = vmatprep.mubr.f32.mxu0 0.0
      %6550 = vmatmul.mubr.f32.gmra.mrb[0].mxu0 %v6337
      %v6551 = vpop.f32.mrb[0].mxu0
      %v6552 = vadd.f32 0.0, %v6551
      %v6553 = vpop.f32.mrb[0].mxu0
      %6554 = vmatprep.mubr.f32.mxu0 0.0
      %6555 = vmatmul.mubr.f32.gmra.mrb[0].mxu0 %v6340
      %v6556 = vpop.f32.mrb[0].mxu0
      %v6557 = vadd.f32 0.0, %v6556
      %v6558 = vpop.f32.mrb[0].mxu0
      %6559 = vmatprep.mubr.f32.mxu0 0.0
      %6560 = vmatmul.mubr.f32.gmra.mrb[0].mxu0 %v6343
      %v6561 = vpop.f32.mrb[0].mxu0
      %v6562 = vadd.f32 0.0, %v6561
      %v6563 = vpop.f32.mrb[0].mxu0
      %6564 = vmatprep.mubr.f32.mxu0 0.0
      %6565 = vmatmul.mubr.f32.gmra.mrb[0].mxu0 %v6346
      %v6566 = vpop.f32.mrb[0].mxu0
      %v6567 = vadd.f32 0.0, %v6566
      %v6568 = vpop.f32.mrb[0].mxu0
      %6569 = vmatprep.mubr.f32.mxu0 0.0
      %6570 = vmatmul.mubr.f32.gmra.mrb[0].mxu0 %v6349
      %v6571 = vpop.f32.mrb[0].mxu0
      %v6572 = vadd.f32 0.0, %v6571
      %v6573 = vpop.f32.mrb[0].mxu0
      %6574 = vmatprep.mubr.f32.mxu0 0.0
      %6575 = vmatmul.mubr.f32.gmra.mrb[0].mxu0 %v6352
      %v6576 = vpop.f32.mrb[0].mxu0
      %v6577 = vadd.f32 0.0, %v6576
      %v6578 = vpop.f32.mrb[0].mxu0
      %6579 = vmatprep.mubr.f32.mxu0 0.0
      %6580 = vmatmul.mubr.f32.gmra.mrb[0].mxu0 %v6355
      %v6581 = vpop.f32.mrb[0].mxu0
      %v6582 = vadd.f32 0.0, %v6581
      %v6583 = vpop.f32.mrb[0].mxu0
      %6584 = vdwg.mxu0
      %v6585 = vadd.f32 %v6194, %v6427
      %v6586 = vadd.f32 %v6195, %v6432
      %v6587 = vadd.f32 %v6196, %v6437
      %v6588 = vadd.f32 %v6197, %v6442
      %v6589 = vadd.f32 %v6198, %v6447
      %v6590 = vadd.f32 %v6199, %v6452
      %v6591 = vadd.f32 %v6200, %v6457
      %v6592 = vadd.f32 %v6201, %v6462
      %v6593 = vadd.f32 %v6202, %v6467
      %v6594 = vadd.f32 %v6203, %v6472
      %v6595 = vadd.f32 %v6204, %v6477
      %v6596 = vadd.f32 %v6205, %v6482
      %v6597 = vadd.f32 %v6206, %v6487
      %v6598 = vadd.f32 %v6207, %v6492
      %v6599 = vadd.f32 %v6208, %v6497
      %v6600 = vadd.f32 %v6209, %v6502
      %v6601 = vadd.f32 %v6210, %v6507
      %v6602 = vadd.f32 %v6211, %v6512
      %v6603 = vadd.f32 %v6212, %v6517
      %v6604 = vadd.f32 %v6213, %v6522
      %v6605 = vadd.f32 %v6214, %v6527
      %v6606 = vadd.f32 %v6215, %v6532
      %v6607 = vadd.f32 %v6216, %v6537
      %v6608 = vadd.f32 %v6217, %v6542
      %v6609 = vadd.f32 %v6218, %v6547
      %v6610 = vadd.f32 %v6219, %v6552
      %v6611 = vadd.f32 %v6220, %v6557
      %v6612 = vadd.f32 %v6221, %v6562
      %v6613 = vadd.f32 %v6222, %v6567
      %v6614 = vadd.f32 %v6223, %v6572
      %v6615 = vadd.f32 %v6224, %v6577
      %v6616 = vadd.f32 %v6225, %v6582
      %v6617 = vld [vmem:[%s6226 + $0x1] sm:$0xff]
      %v6618 = vld [vmem:[%s6226 + $0x9] sm:$0xff]
      %v6619 = vld [vmem:[%s6226 + $0x19] sm:$0xff]
      %v6620 = vld [vmem:[%s6226 + $0x21] sm:$0xff]
      %v6621 = vld [vmem:[%s6226 + $0x31] sm:$0xff]
      %v6622 = vld [vmem:[%s6226 + $0x39] sm:$0xff]
      %v6623 = vld [vmem:[%s6226 + $0x49] sm:$0xff]
      %v6624 = vld [vmem:[%s6226 + $0x51] sm:$0xff]
      %v6625 = vld [vmem:[%s6226 + $0x61] sm:$0xff]
      %v6626 = vld [vmem:[%s6226 + $0x69] sm:$0xff]
      %v6627 = vld [vmem:[%s6226 + $0x79] sm:$0xff]
      %v6628 = vld [vmem:[%s6226 + $0x81] sm:$0xff]
      %v6629 = vld [vmem:[%s6226 + $0x91] sm:$0xff]
      %v6630 = vld [vmem:[%s6226 + $0x99] sm:$0xff]
      %v6631 = vld [vmem:[%s6226 + $0xa9] sm:$0xff]
      %v6632 = vld [vmem:[%s6226 + $0xb1] sm:$0xff]
      %v6633 = vld [vmem:[%s6226 + $0xc1] sm:$0xff]
      %v6634 = vld [vmem:[%s6226 + $0xc9] sm:$0xff]
      %v6635 = vld [vmem:[%s6226 + $0xd9] sm:$0xff]
      %v6636 = vld [vmem:[%s6226 + $0xe1] sm:$0xff]
      %v6637 = vld [vmem:[%s6226 + $0xf1] sm:$0xff]
      %v6638 = vld [vmem:[%s6226 + $0xf9] sm:$0xff]
      %v6639 = vld [vmem:[%s6226 + $0x109] sm:$0xff]
      %v6640 = vld [vmem:[%s6226 + $0x111] sm:$0xff]
      %v6641 = vld [vmem:[%s6226 + $0x121] sm:$0xff]
      %v6642 = vld [vmem:[%s6226 + $0x129] sm:$0xff]
      %v6643 = vld [vmem:[%s6226 + $0x139] sm:$0xff]
      %v6644 = vld [vmem:[%s6226 + $0x141] sm:$0xff]
      %v6645 = vld [vmem:[%s6226 + $0x151] sm:$0xff]
      %v6646 = vld [vmem:[%s6226 + $0x159] sm:$0xff]
      %v6647 = vld [vmem:[%s6226 + $0x169] sm:$0xff]
      %v6648 = vld [vmem:[%s6226 + $0x171] sm:$0xff]
      %s6649 = scalar_lea.vmem %s3, 28
      %v6650 = vld [vmem:[%s6649] sm:$0xf]
      %v6652 = vsel %vm225, %v6617, 0
      %v6655 = vsel %vm225, %v6618, 0
      %v6658 = vsel %vm225, %v6619, 0
      %v6661 = vsel %vm225, %v6620, 0
      %v6664 = vsel %vm225, %v6621, 0
      %v6667 = vsel %vm225, %v6622, 0
      %v6670 = vsel %vm225, %v6623, 0
      %v6673 = vsel %vm225, %v6624, 0
      %v6676 = vsel %vm225, %v6625, 0
      %v6679 = vsel %vm225, %v6626, 0
      %v6682 = vsel %vm225, %v6627, 0
      %v6685 = vsel %vm225, %v6628, 0
      %v6688 = vsel %vm225, %v6629, 0
      %v6691 = vsel %vm225, %v6630, 0
      %v6694 = vsel %vm225, %v6631, 0
      %v6697 = vsel %vm225, %v6632, 0
      %v6700 = vsel %vm225, %v6633, 0
      %v6703 = vsel %vm225, %v6634, 0
      %v6706 = vsel %vm225, %v6635, 0
      %v6709 = vsel %vm225, %v6636, 0
      %v6712 = vsel %vm225, %v6637, 0
      %v6715 = vsel %vm225, %v6638, 0
      %v6718 = vsel %vm225, %v6639, 0
      %v6721 = vsel %vm225, %v6640, 0
      %v6724 = vsel %vm225, %v6641, 0
      %v6727 = vsel %vm225, %v6642, 0
      %v6730 = vsel %vm225, %v6643, 0
      %v6733 = vsel %vm225, %v6644, 0
      %v6736 = vsel %vm225, %v6645, 0
      %v6739 = vsel %vm225, %v6646, 0
      %v6742 = vsel %vm225, %v6647, 0
      %v6745 = vsel %vm225, %v6648, 0
      %v6748 = vsel %vm563, %v6650, 0
      %6750 = vmatprep.subr.mxu0 0.0
      %6751 = vmatpush1.msra.mxu0 %v6748
      %6752 = vmatprep.subr.mxu0 0.0
      %6753 = vmatpush1.msra.mxu0 0.0
      %6754 = vmatprep.subr.mxu0 0.0
      %6755 = vmatpush1.msra.mxu0 0.0
      %6756 = vmatprep.subr.mxu0 0.0
      %6757 = vmatpush1.msra.mxu0 0.0
      %6758 = vmatprep.subr.mxu0 0.0
      %6759 = vmatpush1.msra.mxu0 0.0
      %6760 = vmatprep.subr.mxu0 0.0
      %6761 = vmatpush1.msra.mxu0 0.0
      %6762 = vmatprep.subr.mxu0 0.0
      %6763 = vmatpush1.msra.mxu0 0.0
      %6764 = vmatprep.subr.mxu0 0.0
      %6765 = vmatpush1.msra.mxu0 0.0
      %6766 = vmatprep.subr.mxu0 0.0
      %6767 = vmatpush1.msra.mxu0 0.0
      %6768 = vmatprep.subr.mxu0 0.0
      %6769 = vmatpush1.msra.mxu0 0.0
      %6770 = vmatprep.subr.mxu0 0.0
      %6771 = vmatpush1.msra.mxu0 0.0
      %6772 = vmatprep.subr.mxu0 0.0
      %6773 = vmatpush1.msra.mxu0 0.0
      %6774 = vmatprep.subr.mxu0 0.0
      %6775 = vmatpush1.msra.mxu0 0.0
      %6776 = vmatprep.subr.mxu0 0.0
      %6777 = vmatpush1.msra.mxu0 0.0
      %6778 = vmatprep.subr.mxu0 0.0
      %6779 = vmatpush1.msra.mxu0 0.0
      %6780 = vmatprep.subr.mxu0 0.0
      %6781 = vmatpush1.msra.mxu0 0.0
      %6782 = vmatprep.subr.mxu0 0.0
      %6783 = vmatpush1.msra.mxu0 0.0
      %6784 = vmatprep.subr.mxu0 0.0
      %6785 = vmatpush1.msra.mxu0 0.0
      %6786 = vmatprep.subr.mxu0 0.0
      %6787 = vmatpush1.msra.mxu0 0.0
      %6788 = vmatprep.subr.mxu0 0.0
      %6789 = vmatpush1.msra.mxu0 0.0
      %6790 = vmatprep.subr.mxu0 0.0
      %6791 = vmatpush1.msra.mxu0 0.0
      %6792 = vmatprep.subr.mxu0 0.0
      %6793 = vmatpush1.msra.mxu0 0.0
      %6794 = vmatprep.subr.mxu0 0.0
      %6795 = vmatpush1.msra.mxu0 0.0
      %6796 = vmatprep.subr.mxu0 0.0
      %6797 = vmatpush1.msra.mxu0 0.0
      %6798 = vmatprep.subr.mxu0 0.0
      %6799 = vmatpush1.msra.mxu0 0.0
      %6800 = vmatprep.subr.mxu0 0.0
      %6801 = vmatpush1.msra.mxu0 0.0
      %6802 = vmatprep.subr.mxu0 0.0
      %6803 = vmatpush1.msra.mxu0 0.0
      %6804 = vmatprep.subr.mxu0 0.0
      %6805 = vmatpush1.msra.mxu0 0.0
      %6806 = vmatprep.subr.mxu0 0.0
      %6807 = vmatpush1.msra.mxu0 0.0
      %6808 = vmatprep.subr.mxu0 0.0
      %6809 = vmatpush1.msra.mxu0 0.0
      %6810 = vmatprep.subr.mxu0 0.0
      %6811 = vmatpush1.msra.mxu0 0.0
      %6812 = vmatprep.subr.mxu0 0.0
      %6813 = vmatpush1.msra.mxu0 0.0
      %6814 = vmatprep.mubr.f32.mxu0 0.0
      %6815 = vmatmul.mubr.f32.gmra.mrb[0].mxu0 %v6652
      %v6816 = vpop.f32.mrb[0].mxu0
      %v6817 = vadd.f32 0.0, %v6816
      %v6818 = vpop.f32.mrb[0].mxu0
      %6819 = vmatprep.mubr.f32.mxu0 0.0
      %6820 = vmatmul.mubr.f32.gmra.mrb[0].mxu0 %v6655
      %v6821 = vpop.f32.mrb[0].mxu0
      %v6822 = vadd.f32 0.0, %v6821
      %v6823 = vpop.f32.mrb[0].mxu0
      %6824 = vmatprep.mubr.f32.mxu0 0.0
      %6825 = vmatmul.mubr.f32.gmra.mrb[0].mxu0 %v6658
      %v6826 = vpop.f32.mrb[0].mxu0
      %v6827 = vadd.f32 0.0, %v6826
      %v6828 = vpop.f32.mrb[0].mxu0
      %6829 = vmatprep.mubr.f32.mxu0 0.0
      %6830 = vmatmul.mubr.f32.gmra.mrb[0].mxu0 %v6661
      %v6831 = vpop.f32.mrb[0].mxu0
      %v6832 = vadd.f32 0.0, %v6831
      %v6833 = vpop.f32.mrb[0].mxu0
      %6834 = vmatprep.mubr.f32.mxu0 0.0
      %6835 = vmatmul.mubr.f32.gmra.mrb[0].mxu0 %v6664
      %v6836 = vpop.f32.mrb[0].mxu0
      %v6837 = vadd.f32 0.0, %v6836
      %v6838 = vpop.f32.mrb[0].mxu0
      %6839 = vmatprep.mubr.f32.mxu0 0.0
      %6840 = vmatmul.mubr.f32.gmra.mrb[0].mxu0 %v6667
      %v6841 = vpop.f32.mrb[0].mxu0
      %v6842 = vadd.f32 0.0, %v6841
      %v6843 = vpop.f32.mrb[0].mxu0
      %6844 = vmatprep.mubr.f32.mxu0 0.0
      %6845 = vmatmul.mubr.f32.gmra.mrb[0].mxu0 %v6670
      %v6846 = vpop.f32.mrb[0].mxu0
      %v6847 = vadd.f32 0.0, %v6846
      %v6848 = vpop.f32.mrb[0].mxu0
      %6849 = vmatprep.mubr.f32.mxu0 0.0
      %6850 = vmatmul.mubr.f32.gmra.mrb[0].mxu0 %v6673
      %v6851 = vpop.f32.mrb[0].mxu0
      %v6852 = vadd.f32 0.0, %v6851
      %v6853 = vpop.f32.mrb[0].mxu0
      %6854 = vmatprep.mubr.f32.mxu0 0.0
      %6855 = vmatmul.mubr.f32.gmra.mrb[0].mxu0 %v6676
      %v6856 = vpop.f32.mrb[0].mxu0
      %v6857 = vadd.f32 0.0, %v6856
      %v6858 = vpop.f32.mrb[0].mxu0
      %6859 = vmatprep.mubr.f32.mxu0 0.0
      %6860 = vmatmul.mubr.f32.gmra.mrb[0].mxu0 %v6679
      %v6861 = vpop.f32.mrb[0].mxu0
      %v6862 = vadd.f32 0.0, %v6861
      %v6863 = vpop.f32.mrb[0].mxu0
      %6864 = vmatprep.mubr.f32.mxu0 0.0
      %6865 = vmatmul.mubr.f32.gmra.mrb[0].mxu0 %v6682
      %v6866 = vpop.f32.mrb[0].mxu0
      %v6867 = vadd.f32 0.0, %v6866
      %v6868 = vpop.f32.mrb[0].mxu0
      %6869 = vmatprep.mubr.f32.mxu0 0.0
      %6870 = vmatmul.mubr.f32.gmra.mrb[0].mxu0 %v6685
      %v6871 = vpop.f32.mrb[0].mxu0
      %v6872 = vadd.f32 0.0, %v6871
      %v6873 = vpop.f32.mrb[0].mxu0
      %6874 = vmatprep.mubr.f32.mxu0 0.0
      %6875 = vmatmul.mubr.f32.gmra.mrb[0].mxu0 %v6688
      %v6876 = vpop.f32.mrb[0].mxu0
      %v6877 = vadd.f32 0.0, %v6876
      %v6878 = vpop.f32.mrb[0].mxu0
      %6879 = vmatprep.mubr.f32.mxu0 0.0
      %6880 = vmatmul.mubr.f32.gmra.mrb[0].mxu0 %v6691
      %v6881 = vpop.f32.mrb[0].mxu0
      %v6882 = vadd.f32 0.0, %v6881
      %v6883 = vpop.f32.mrb[0].mxu0
      %6884 = vmatprep.mubr.f32.mxu0 0.0
      %6885 = vmatmul.mubr.f32.gmra.mrb[0].mxu0 %v6694
      %v6886 = vpop.f32.mrb[0].mxu0
      %v6887 = vadd.f32 0.0, %v6886
      %v6888 = vpop.f32.mrb[0].mxu0
      %6889 = vmatprep.mubr.f32.mxu0 0.0
      %6890 = vmatmul.mubr.f32.gmra.mrb[0].mxu0 %v6697
      %v6891 = vpop.f32.mrb[0].mxu0
      %v6892 = vadd.f32 0.0, %v6891
      %v6893 = vpop.f32.mrb[0].mxu0
      %6894 = vmatprep.mubr.f32.mxu0 0.0
      %6895 = vmatmul.mubr.f32.gmra.mrb[0].mxu0 %v6700
      %v6896 = vpop.f32.mrb[0].mxu0
      %v6897 = vadd.f32 0.0, %v6896
      %v6898 = vpop.f32.mrb[0].mxu0
      %6899 = vmatprep.mubr.f32.mxu0 0.0
      %6900 = vmatmul.mubr.f32.gmra.mrb[0].mxu0 %v6703
      %v6901 = vpop.f32.mrb[0].mxu0
      %v6902 = vadd.f32 0.0, %v6901
      %v6903 = vpop.f32.mrb[0].mxu0
      %6904 = vmatprep.mubr.f32.mxu0 0.0
      %6905 = vmatmul.mubr.f32.gmra.mrb[0].mxu0 %v6706
      %v6906 = vpop.f32.mrb[0].mxu0
      %v6907 = vadd.f32 0.0, %v6906
      %v6908 = vpop.f32.mrb[0].mxu0
      %6909 = vmatprep.mubr.f32.mxu0 0.0
      %6910 = vmatmul.mubr.f32.gmra.mrb[0].mxu0 %v6709
      %v6911 = vpop.f32.mrb[0].mxu0
      %v6912 = vadd.f32 0.0, %v6911
      %v6913 = vpop.f32.mrb[0].mxu0
      %6914 = vmatprep.mubr.f32.mxu0 0.0
      %6915 = vmatmul.mubr.f32.gmra.mrb[0].mxu0 %v6712
      %v6916 = vpop.f32.mrb[0].mxu0
      %v6917 = vadd.f32 0.0, %v6916
      %v6918 = vpop.f32.mrb[0].mxu0
      %6919 = vmatprep.mubr.f32.mxu0 0.0
      %6920 = vmatmul.mubr.f32.gmra.mrb[0].mxu0 %v6715
      %v6921 = vpop.f32.mrb[0].mxu0
      %v6922 = vadd.f32 0.0, %v6921
      %v6923 = vpop.f32.mrb[0].mxu0
      %6924 = vmatprep.mubr.f32.mxu0 0.0
      %6925 = vmatmul.mubr.f32.gmra.mrb[0].mxu0 %v6718
      %v6926 = vpop.f32.mrb[0].mxu0
      %v6927 = vadd.f32 0.0, %v6926
      %v6928 = vpop.f32.mrb[0].mxu0
      %6929 = vmatprep.mubr.f32.mxu0 0.0
      %6930 = vmatmul.mubr.f32.gmra.mrb[0].mxu0 %v6721
      %v6931 = vpop.f32.mrb[0].mxu0
      %v6932 = vadd.f32 0.0, %v6931
      %v6933 = vpop.f32.mrb[0].mxu0
      %6934 = vmatprep.mubr.f32.mxu0 0.0
      %6935 = vmatmul.mubr.f32.gmra.mrb[0].mxu0 %v6724
      %v6936 = vpop.f32.mrb[0].mxu0
      %v6937 = vadd.f32 0.0, %v6936
      %v6938 = vpop.f32.mrb[0].mxu0
      %6939 = vmatprep.mubr.f32.mxu0 0.0
      %6940 = vmatmul.mubr.f32.gmra.mrb[0].mxu0 %v6727
      %v6941 = vpop.f32.mrb[0].mxu0
      %v6942 = vadd.f32 0.0, %v6941
      %v6943 = vpop.f32.mrb[0].mxu0
      %6944 = vmatprep.mubr.f32.mxu0 0.0
      %6945 = vmatmul.mubr.f32.gmra.mrb[0].mxu0 %v6730
      %v6946 = vpop.f32.mrb[0].mxu0
      %v6947 = vadd.f32 0.0, %v6946
      %v6948 = vpop.f32.mrb[0].mxu0
      %6949 = vmatprep.mubr.f32.mxu0 0.0
      %6950 = vmatmul.mubr.f32.gmra.mrb[0].mxu0 %v6733
      %v6951 = vpop.f32.mrb[0].mxu0
      %v6952 = vadd.f32 0.0, %v6951
      %v6953 = vpop.f32.mrb[0].mxu0
      %6954 = vmatprep.mubr.f32.mxu0 0.0
      %6955 = vmatmul.mubr.f32.gmra.mrb[0].mxu0 %v6736
      %v6956 = vpop.f32.mrb[0].mxu0
      %v6957 = vadd.f32 0.0, %v6956
      %v6958 = vpop.f32.mrb[0].mxu0
      %6959 = vmatprep.mubr.f32.mxu0 0.0
      %6960 = vmatmul.mubr.f32.gmra.mrb[0].mxu0 %v6739
      %v6961 = vpop.f32.mrb[0].mxu0
      %v6962 = vadd.f32 0.0, %v6961
      %v6963 = vpop.f32.mrb[0].mxu0
      %6964 = vmatprep.mubr.f32.mxu0 0.0
      %6965 = vmatmul.mubr.f32.gmra.mrb[0].mxu0 %v6742
      %v6966 = vpop.f32.mrb[0].mxu0
      %v6967 = vadd.f32 0.0, %v6966
      %v6968 = vpop.f32.mrb[0].mxu0
      %6969 = vmatprep.mubr.f32.mxu0 0.0
      %6970 = vmatmul.mubr.f32.gmra.mrb[0].mxu0 %v6745
      %v6971 = vpop.f32.mrb[0].mxu0
      %v6972 = vadd.f32 0.0, %v6971
      %v6973 = vpop.f32.mrb[0].mxu0
      %6974 = vdwg.mxu0
      %v6975 = vadd.f32 %v6585, %v6817
      %v6976 = vadd.f32 %v6586, %v6822
      %v6977 = vadd.f32 %v6587, %v6827
      %v6978 = vadd.f32 %v6588, %v6832
      %v6979 = vadd.f32 %v6589, %v6837
      %v6980 = vadd.f32 %v6590, %v6842
      %v6981 = vadd.f32 %v6591, %v6847
      %v6982 = vadd.f32 %v6592, %v6852
      %v6983 = vadd.f32 %v6593, %v6857
      %v6984 = vadd.f32 %v6594, %v6862
      %v6985 = vadd.f32 %v6595, %v6867
      %v6986 = vadd.f32 %v6596, %v6872
      %v6987 = vadd.f32 %v6597, %v6877
      %v6988 = vadd.f32 %v6598, %v6882
      %v6989 = vadd.f32 %v6599, %v6887
      %v6990 = vadd.f32 %v6600, %v6892
      %v6991 = vadd.f32 %v6601, %v6897
      %v6992 = vadd.f32 %v6602, %v6902
      %v6993 = vadd.f32 %v6603, %v6907
      %v6994 = vadd.f32 %v6604, %v6912
      %v6995 = vadd.f32 %v6605, %v6917
      %v6996 = vadd.f32 %v6606, %v6922
      %v6997 = vadd.f32 %v6607, %v6927
      %v6998 = vadd.f32 %v6608, %v6932
      %v6999 = vadd.f32 %v6609, %v6937
      %v7000 = vadd.f32 %v6610, %v6942
      %v7001 = vadd.f32 %v6611, %v6947
      %v7002 = vadd.f32 %v6612, %v6952
      %v7003 = vadd.f32 %v6613, %v6957
      %v7004 = vadd.f32 %v6614, %v6962
      %v7005 = vadd.f32 %v6615, %v6967
      %v7006 = vadd.f32 %v6616, %v6972
      %v7007 = vld [vmem:[%s6226 + $0x2] sm:$0xff]
      %v7008 = vld [vmem:[%s6226 + $0xa] sm:$0xff]
      %v7009 = vld [vmem:[%s6226 + $0x1a] sm:$0xff]
      %v7010 = vld [vmem:[%s6226 + $0x22] sm:$0xff]
      %v7011 = vld [vmem:[%s6226 + $0x32] sm:$0xff]
      %v7012 = vld [vmem:[%s6226 + $0x3a] sm:$0xff]
      %v7013 = vld [vmem:[%s6226 + $0x4a] sm:$0xff]
      %v7014 = vld [vmem:[%s6226 + $0x52] sm:$0xff]
      %v7015 = vld [vmem:[%s6226 + $0x62] sm:$0xff]
      %v7016 = vld [vmem:[%s6226 + $0x6a] sm:$0xff]
      %v7017 = vld [vmem:[%s6226 + $0x7a] sm:$0xff]
      %v7018 = vld [vmem:[%s6226 + $0x82] sm:$0xff]
      %v7019 = vld [vmem:[%s6226 + $0x92] sm:$0xff]
      %v7020 = vld [vmem:[%s6226 + $0x9a] sm:$0xff]
      %v7021 = vld [vmem:[%s6226 + $0xaa] sm:$0xff]
      %v7022 = vld [vmem:[%s6226 + $0xb2] sm:$0xff]
      %v7023 = vld [vmem:[%s6226 + $0xc2] sm:$0xff]
      %v7024 = vld [vmem:[%s6226 + $0xca] sm:$0xff]
      %v7025 = vld [vmem:[%s6226 + $0xda] sm:$0xff]
      %v7026 = vld [vmem:[%s6226 + $0xe2] sm:$0xff]
      %v7027 = vld [vmem:[%s6226 + $0xf2] sm:$0xff]
      %v7028 = vld [vmem:[%s6226 + $0xfa] sm:$0xff]
      %v7029 = vld [vmem:[%s6226 + $0x10a] sm:$0xff]
      %v7030 = vld [vmem:[%s6226 + $0x112] sm:$0xff]
      %v7031 = vld [vmem:[%s6226 + $0x122] sm:$0xff]
      %v7032 = vld [vmem:[%s6226 + $0x12a] sm:$0xff]
      %v7033 = vld [vmem:[%s6226 + $0x13a] sm:$0xff]
      %v7034 = vld [vmem:[%s6226 + $0x142] sm:$0xff]
      %v7035 = vld [vmem:[%s6226 + $0x152] sm:$0xff]
      %v7036 = vld [vmem:[%s6226 + $0x15a] sm:$0xff]
      %v7037 = vld [vmem:[%s6226 + $0x16a] sm:$0xff]
      %v7038 = vld [vmem:[%s6226 + $0x172] sm:$0xff]
      %s7039 = scalar_lea.vmem %s3, 32
      %v7040 = vld [vmem:[%s7039] sm:$0xf]
      %v7042 = vsel %vm225, %v7007, 0
      %v7045 = vsel %vm225, %v7008, 0
      %v7048 = vsel %vm225, %v7009, 0
      %v7051 = vsel %vm225, %v7010, 0
      %v7054 = vsel %vm225, %v7011, 0
      %v7057 = vsel %vm225, %v7012, 0
      %v7060 = vsel %vm225, %v7013, 0
      %v7063 = vsel %vm225, %v7014, 0
      %v7066 = vsel %vm225, %v7015, 0
      %v7069 = vsel %vm225, %v7016, 0
      %v7072 = vsel %vm225, %v7017, 0
      %v7075 = vsel %vm225, %v7018, 0
      %v7078 = vsel %vm225, %v7019, 0
      %v7081 = vsel %vm225, %v7020, 0
      %v7084 = vsel %vm225, %v7021, 0
      %v7087 = vsel %vm225, %v7022, 0
      %v7090 = vsel %vm225, %v7023, 0
      %v7093 = vsel %vm225, %v7024, 0
      %v7096 = vsel %vm225, %v7025, 0
      %v7099 = vsel %vm225, %v7026, 0
      %v7102 = vsel %vm225, %v7027, 0
      %v7105 = vsel %vm225, %v7028, 0
      %v7108 = vsel %vm225, %v7029, 0
      %v7111 = vsel %vm225, %v7030, 0
      %v7114 = vsel %vm225, %v7031, 0
      %v7117 = vsel %vm225, %v7032, 0
      %v7120 = vsel %vm225, %v7033, 0
      %v7123 = vsel %vm225, %v7034, 0
      %v7126 = vsel %vm225, %v7035, 0
      %v7129 = vsel %vm225, %v7036, 0
      %v7132 = vsel %vm225, %v7037, 0
      %v7135 = vsel %vm225, %v7038, 0
      %v7138 = vsel %vm563, %v7040, 0
      %7140 = vmatprep.subr.mxu0 0.0
      %7141 = vmatpush1.msra.mxu0 %v7138
      %7142 = vmatprep.subr.mxu0 0.0
      %7143 = vmatpush1.msra.mxu0 0.0
      %7144 = vmatprep.subr.mxu0 0.0
      %7145 = vmatpush1.msra.mxu0 0.0
      %7146 = vmatprep.subr.mxu0 0.0
      %7147 = vmatpush1.msra.mxu0 0.0
      %7148 = vmatprep.subr.mxu0 0.0
      %7149 = vmatpush1.msra.mxu0 0.0
      %7150 = vmatprep.subr.mxu0 0.0
      %7151 = vmatpush1.msra.mxu0 0.0
      %7152 = vmatprep.subr.mxu0 0.0
      %7153 = vmatpush1.msra.mxu0 0.0
      %7154 = vmatprep.subr.mxu0 0.0
      %7155 = vmatpush1.msra.mxu0 0.0
      %7156 = vmatprep.subr.mxu0 0.0
      %7157 = vmatpush1.msra.mxu0 0.0
      %7158 = vmatprep.subr.mxu0 0.0
      %7159 = vmatpush1.msra.mxu0 0.0
      %7160 = vmatprep.subr.mxu0 0.0
      %7161 = vmatpush1.msra.mxu0 0.0
      %7162 = vmatprep.subr.mxu0 0.0
      %7163 = vmatpush1.msra.mxu0 0.0
      %7164 = vmatprep.subr.mxu0 0.0
      %7165 = vmatpush1.msra.mxu0 0.0
      %7166 = vmatprep.subr.mxu0 0.0
      %7167 = vmatpush1.msra.mxu0 0.0
      %7168 = vmatprep.subr.mxu0 0.0
      %7169 = vmatpush1.msra.mxu0 0.0
      %7170 = vmatprep.subr.mxu0 0.0
      %7171 = vmatpush1.msra.mxu0 0.0
      %7172 = vmatprep.subr.mxu0 0.0
      %7173 = vmatpush1.msra.mxu0 0.0
      %7174 = vmatprep.subr.mxu0 0.0
      %7175 = vmatpush1.msra.mxu0 0.0
      %7176 = vmatprep.subr.mxu0 0.0
      %7177 = vmatpush1.msra.mxu0 0.0
      %7178 = vmatprep.subr.mxu0 0.0
      %7179 = vmatpush1.msra.mxu0 0.0
      %7180 = vmatprep.subr.mxu0 0.0
      %7181 = vmatpush1.msra.mxu0 0.0
      %7182 = vmatprep.subr.mxu0 0.0
      %7183 = vmatpush1.msra.mxu0 0.0
      %7184 = vmatprep.subr.mxu0 0.0
      %7185 = vmatpush1.msra.mxu0 0.0
      %7186 = vmatprep.subr.mxu0 0.0
      %7187 = vmatpush1.msra.mxu0 0.0
      %7188 = vmatprep.subr.mxu0 0.0
      %7189 = vmatpush1.msra.mxu0 0.0
      %7190 = vmatprep.subr.mxu0 0.0
      %7191 = vmatpush1.msra.mxu0 0.0
      %7192 = vmatprep.subr.mxu0 0.0
      %7193 = vmatpush1.msra.mxu0 0.0
      %7194 = vmatprep.subr.mxu0 0.0
      %7195 = vmatpush1.msra.mxu0 0.0
      %7196 = vmatprep.subr.mxu0 0.0
      %7197 = vmatpush1.msra.mxu0 0.0
      %7198 = vmatprep.subr.mxu0 0.0
      %7199 = vmatpush1.msra.mxu0 0.0
      %7200 = vmatprep.subr.mxu0 0.0
      %7201 = vmatpush1.msra.mxu0 0.0
      %7202 = vmatprep.subr.mxu0 0.0
      %7203 = vmatpush1.msra.mxu0 0.0
      %7204 = vmatprep.mubr.f32.mxu0 0.0
      %7205 = vmatmul.mubr.f32.gmra.mrb[0].mxu0 %v7042
      %v7206 = vpop.f32.mrb[0].mxu0
      %v7207 = vadd.f32 0.0, %v7206
      %v7208 = vpop.f32.mrb[0].mxu0
      %7209 = vmatprep.mubr.f32.mxu0 0.0
      %7210 = vmatmul.mubr.f32.gmra.mrb[0].mxu0 %v7045
      %v7211 = vpop.f32.mrb[0].mxu0
      %v7212 = vadd.f32 0.0, %v7211
      %v7213 = vpop.f32.mrb[0].mxu0
      %7214 = vmatprep.mubr.f32.mxu0 0.0
      %7215 = vmatmul.mubr.f32.gmra.mrb[0].mxu0 %v7048
      %v7216 = vpop.f32.mrb[0].mxu0
      %v7217 = vadd.f32 0.0, %v7216
      %v7218 = vpop.f32.mrb[0].mxu0
      %7219 = vmatprep.mubr.f32.mxu0 0.0
      %7220 = vmatmul.mubr.f32.gmra.mrb[0].mxu0 %v7051
      %v7221 = vpop.f32.mrb[0].mxu0
      %v7222 = vadd.f32 0.0, %v7221
      %v7223 = vpop.f32.mrb[0].mxu0
      %7224 = vmatprep.mubr.f32.mxu0 0.0
      %7225 = vmatmul.mubr.f32.gmra.mrb[0].mxu0 %v7054
      %v7226 = vpop.f32.mrb[0].mxu0
      %v7227 = vadd.f32 0.0, %v7226
      %v7228 = vpop.f32.mrb[0].mxu0
      %7229 = vmatprep.mubr.f32.mxu0 0.0
      %7230 = vmatmul.mubr.f32.gmra.mrb[0].mxu0 %v7057
      %v7231 = vpop.f32.mrb[0].mxu0
      %v7232 = vadd.f32 0.0, %v7231
      %v7233 = vpop.f32.mrb[0].mxu0
      %7234 = vmatprep.mubr.f32.mxu0 0.0
      %7235 = vmatmul.mubr.f32.gmra.mrb[0].mxu0 %v7060
      %v7236 = vpop.f32.mrb[0].mxu0
      %v7237 = vadd.f32 0.0, %v7236
      %v7238 = vpop.f32.mrb[0].mxu0
      %7239 = vmatprep.mubr.f32.mxu0 0.0
      %7240 = vmatmul.mubr.f32.gmra.mrb[0].mxu0 %v7063
      %v7241 = vpop.f32.mrb[0].mxu0
      %v7242 = vadd.f32 0.0, %v7241
      %v7243 = vpop.f32.mrb[0].mxu0
      %7244 = vmatprep.mubr.f32.mxu0 0.0
      %7245 = vmatmul.mubr.f32.gmra.mrb[0].mxu0 %v7066
      %v7246 = vpop.f32.mrb[0].mxu0
      %v7247 = vadd.f32 0.0, %v7246
      %v7248 = vpop.f32.mrb[0].mxu0
      %7249 = vmatprep.mubr.f32.mxu0 0.0
      %7250 = vmatmul.mubr.f32.gmra.mrb[0].mxu0 %v7069
      %v7251 = vpop.f32.mrb[0].mxu0
      %v7252 = vadd.f32 0.0, %v7251
      %v7253 = vpop.f32.mrb[0].mxu0
      %7254 = vmatprep.mubr.f32.mxu0 0.0
      %7255 = vmatmul.mubr.f32.gmra.mrb[0].mxu0 %v7072
      %v7256 = vpop.f32.mrb[0].mxu0
      %v7257 = vadd.f32 0.0, %v7256
      %v7258 = vpop.f32.mrb[0].mxu0
      %7259 = vmatprep.mubr.f32.mxu0 0.0
      %7260 = vmatmul.mubr.f32.gmra.mrb[0].mxu0 %v7075
      %v7261 = vpop.f32.mrb[0].mxu0
      %v7262 = vadd.f32 0.0, %v7261
      %v7263 = vpop.f32.mrb[0].mxu0
      %7264 = vmatprep.mubr.f32.mxu0 0.0
      %7265 = vmatmul.mubr.f32.gmra.mrb[0].mxu0 %v7078
      %v7266 = vpop.f32.mrb[0].mxu0
      %v7267 = vadd.f32 0.0, %v7266
      %v7268 = vpop.f32.mrb[0].mxu0
      %7269 = vmatprep.mubr.f32.mxu0 0.0
      %7270 = vmatmul.mubr.f32.gmra.mrb[0].mxu0 %v7081
      %v7271 = vpop.f32.mrb[0].mxu0
      %v7272 = vadd.f32 0.0, %v7271
      %v7273 = vpop.f32.mrb[0].mxu0
      %7274 = vmatprep.mubr.f32.mxu0 0.0
      %7275 = vmatmul.mubr.f32.gmra.mrb[0].mxu0 %v7084
      %v7276 = vpop.f32.mrb[0].mxu0
      %v7277 = vadd.f32 0.0, %v7276
      %v7278 = vpop.f32.mrb[0].mxu0
      %7279 = vmatprep.mubr.f32.mxu0 0.0
      %7280 = vmatmul.mubr.f32.gmra.mrb[0].mxu0 %v7087
      %v7281 = vpop.f32.mrb[0].mxu0
      %v7282 = vadd.f32 0.0, %v7281
      %v7283 = vpop.f32.mrb[0].mxu0
      %7284 = vmatprep.mubr.f32.mxu0 0.0
      %7285 = vmatmul.mubr.f32.gmra.mrb[0].mxu0 %v7090
      %v7286 = vpop.f32.mrb[0].mxu0
      %v7287 = vadd.f32 0.0, %v7286
      %v7288 = vpop.f32.mrb[0].mxu0
      %7289 = vmatprep.mubr.f32.mxu0 0.0
      %7290 = vmatmul.mubr.f32.gmra.mrb[0].mxu0 %v7093
      %v7291 = vpop.f32.mrb[0].mxu0
      %v7292 = vadd.f32 0.0, %v7291
      %v7293 = vpop.f32.mrb[0].mxu0
      %7294 = vmatprep.mubr.f32.mxu0 0.0
      %7295 = vmatmul.mubr.f32.gmra.mrb[0].mxu0 %v7096
      %v7296 = vpop.f32.mrb[0].mxu0
      %v7297 = vadd.f32 0.0, %v7296
      %v7298 = vpop.f32.mrb[0].mxu0
      %7299 = vmatprep.mubr.f32.mxu0 0.0
      %7300 = vmatmul.mubr.f32.gmra.mrb[0].mxu0 %v7099
      %v7301 = vpop.f32.mrb[0].mxu0
      %v7302 = vadd.f32 0.0, %v7301
      %v7303 = vpop.f32.mrb[0].mxu0
      %7304 = vmatprep.mubr.f32.mxu0 0.0
      %7305 = vmatmul.mubr.f32.gmra.mrb[0].mxu0 %v7102
      %v7306 = vpop.f32.mrb[0].mxu0
      %v7307 = vadd.f32 0.0, %v7306
      %v7308 = vpop.f32.mrb[0].mxu0
      %7309 = vmatprep.mubr.f32.mxu0 0.0
      %7310 = vmatmul.mubr.f32.gmra.mrb[0].mxu0 %v7105
      %v7311 = vpop.f32.mrb[0].mxu0
      %v7312 = vadd.f32 0.0, %v7311
      %v7313 = vpop.f32.mrb[0].mxu0
      %7314 = vmatprep.mubr.f32.mxu0 0.0
      %7315 = vmatmul.mubr.f32.gmra.mrb[0].mxu0 %v7108
      %v7316 = vpop.f32.mrb[0].mxu0
      %v7317 = vadd.f32 0.0, %v7316
      %v7318 = vpop.f32.mrb[0].mxu0
      %7319 = vmatprep.mubr.f32.mxu0 0.0
      %7320 = vmatmul.mubr.f32.gmra.mrb[0].mxu0 %v7111
      %v7321 = vpop.f32.mrb[0].mxu0
      %v7322 = vadd.f32 0.0, %v7321
      %v7323 = vpop.f32.mrb[0].mxu0
      %7324 = vmatprep.mubr.f32.mxu0 0.0
      %7325 = vmatmul.mubr.f32.gmra.mrb[0].mxu0 %v7114
      %v7326 = vpop.f32.mrb[0].mxu0
      %v7327 = vadd.f32 0.0, %v7326
      %v7328 = vpop.f32.mrb[0].mxu0
      %7329 = vmatprep.mubr.f32.mxu0 0.0
      %7330 = vmatmul.mubr.f32.gmra.mrb[0].mxu0 %v7117
      %v7331 = vpop.f32.mrb[0].mxu0
      %v7332 = vadd.f32 0.0, %v7331
      %v7333 = vpop.f32.mrb[0].mxu0
      %7334 = vmatprep.mubr.f32.mxu0 0.0
      %7335 = vmatmul.mubr.f32.gmra.mrb[0].mxu0 %v7120
      %v7336 = vpop.f32.mrb[0].mxu0
      %v7337 = vadd.f32 0.0, %v7336
      %v7338 = vpop.f32.mrb[0].mxu0
      %7339 = vmatprep.mubr.f32.mxu0 0.0
      %7340 = vmatmul.mubr.f32.gmra.mrb[0].mxu0 %v7123
      %v7341 = vpop.f32.mrb[0].mxu0
      %v7342 = vadd.f32 0.0, %v7341
      %v7343 = vpop.f32.mrb[0].mxu0
      %7344 = vmatprep.mubr.f32.mxu0 0.0
      %7345 = vmatmul.mubr.f32.gmra.mrb[0].mxu0 %v7126
      %v7346 = vpop.f32.mrb[0].mxu0
      %v7347 = vadd.f32 0.0, %v7346
      %v7348 = vpop.f32.mrb[0].mxu0
      %7349 = vmatprep.mubr.f32.mxu0 0.0
      %7350 = vmatmul.mubr.f32.gmra.mrb[0].mxu0 %v7129
      %v7351 = vpop.f32.mrb[0].mxu0
      %v7352 = vadd.f32 0.0, %v7351
      %v7353 = vpop.f32.mrb[0].mxu0
      %7354 = vmatprep.mubr.f32.mxu0 0.0
      %7355 = vmatmul.mubr.f32.gmra.mrb[0].mxu0 %v7132
      %v7356 = vpop.f32.mrb[0].mxu0
      %v7357 = vadd.f32 0.0, %v7356
      %v7358 = vpop.f32.mrb[0].mxu0
      %7359 = vmatprep.mubr.f32.mxu0 0.0
      %7360 = vmatmul.mubr.f32.gmra.mrb[0].mxu0 %v7135
      %v7361 = vpop.f32.mrb[0].mxu0
      %v7362 = vadd.f32 0.0, %v7361
      %v7363 = vpop.f32.mrb[0].mxu0
      %7364 = vdwg.mxu0
      %v7365 = vadd.f32 %v6975, %v7207
      %v7366 = vadd.f32 %v6976, %v7212
      %v7367 = vadd.f32 %v6977, %v7217
      %v7368 = vadd.f32 %v6978, %v7222
      %v7369 = vadd.f32 %v6979, %v7227
      %v7370 = vadd.f32 %v6980, %v7232
      %v7371 = vadd.f32 %v6981, %v7237
      %v7372 = vadd.f32 %v6982, %v7242
      %v7373 = vadd.f32 %v6983, %v7247
      %v7374 = vadd.f32 %v6984, %v7252
      %v7375 = vadd.f32 %v6985, %v7257
      %v7376 = vadd.f32 %v6986, %v7262
      %v7377 = vadd.f32 %v6987, %v7267
      %v7378 = vadd.f32 %v6988, %v7272
      %v7379 = vadd.f32 %v6989, %v7277
      %v7380 = vadd.f32 %v6990, %v7282
      %v7381 = vadd.f32 %v6991, %v7287
      %v7382 = vadd.f32 %v6992, %v7292
      %v7383 = vadd.f32 %v6993, %v7297
      %v7384 = vadd.f32 %v6994, %v7302
      %v7385 = vadd.f32 %v6995, %v7307
      %v7386 = vadd.f32 %v6996, %v7312
      %v7387 = vadd.f32 %v6997, %v7317
      %v7388 = vadd.f32 %v6998, %v7322
      %v7389 = vadd.f32 %v6999, %v7327
      %v7390 = vadd.f32 %v7000, %v7332
      %v7391 = vadd.f32 %v7001, %v7337
      %v7392 = vadd.f32 %v7002, %v7342
      %v7393 = vadd.f32 %v7003, %v7347
      %v7394 = vadd.f32 %v7004, %v7352
      %v7395 = vadd.f32 %v7005, %v7357
      %v7396 = vadd.f32 %v7006, %v7362
      %v7397 = vld [vmem:[%s4] sm:$0x1]
      %v7399 = vlaneseq
      %v7400 = vshrl.u32 %v7399, 7
      %v7401 = vsub.s32 0, %v7400
      %v7402 = vrot.slane %v7397, %v7401
      %v7404 = vadd.f32 %v7365, %v7402
      %v7405 = vadd.f32 %v7366, %v7402
      %v7406 = vadd.f32 %v7367, %v7402
      %v7407 = vadd.f32 %v7368, %v7402
      %v7408 = vadd.f32 %v7369, %v7402
      %v7409 = vadd.f32 %v7370, %v7402
      %v7410 = vadd.f32 %v7371, %v7402
      %v7411 = vadd.f32 %v7372, %v7402
      %v7412 = vadd.f32 %v7373, %v7402
      %v7413 = vadd.f32 %v7374, %v7402
      %v7414 = vadd.f32 %v7375, %v7402
      %v7415 = vadd.f32 %v7376, %v7402
      %v7416 = vadd.f32 %v7377, %v7402
      %v7417 = vadd.f32 %v7378, %v7402
      %v7418 = vadd.f32 %v7379, %v7402
      %v7419 = vadd.f32 %v7380, %v7402
      %v7420 = vadd.f32 %v7381, %v7402
      %v7421 = vadd.f32 %v7382, %v7402
      %v7422 = vadd.f32 %v7383, %v7402
      %v7423 = vadd.f32 %v7384, %v7402
      %v7424 = vadd.f32 %v7385, %v7402
      %v7425 = vadd.f32 %v7386, %v7402
      %v7426 = vadd.f32 %v7387, %v7402
      %v7427 = vadd.f32 %v7388, %v7402
      %v7428 = vadd.f32 %v7389, %v7402
      %v7429 = vadd.f32 %v7390, %v7402
      %v7430 = vadd.f32 %v7391, %v7402
      %v7431 = vadd.f32 %v7392, %v7402
      %v7432 = vadd.f32 %v7393, %v7402
      %v7433 = vadd.f32 %v7394, %v7402
      %v7434 = vadd.f32 %v7395, %v7402
      %v7435 = vadd.f32 %v7396, %v7402
      %v7436 = vld [vmem:[%s219] sm:$0xff]
      %v7437 = vld [vmem:[%s219 + $0x8] sm:$0xff]
      %v7438 = vld [vmem:[%s219 + $0x10] sm:$0xff]
      %v7439 = vld [vmem:[%s219 + $0x18] sm:$0xff]
      %v7440 = vld [vmem:[%s219 + $0x20] sm:$0xff]
      %v7441 = vld [vmem:[%s219 + $0x28] sm:$0xff]
      %v7442 = vld [vmem:[%s219 + $0x30] sm:$0xff]
      %v7443 = vld [vmem:[%s219 + $0x38] sm:$0xff]
      %v7444 = vld [vmem:[%s219 + $0x40] sm:$0xff]
      %v7445 = vld [vmem:[%s219 + $0x48] sm:$0xff]
      %v7446 = vld [vmem:[%s219 + $0x50] sm:$0xff]
      %v7447 = vld [vmem:[%s219 + $0x58] sm:$0xff]
      %v7448 = vld [vmem:[%s219 + $0x60] sm:$0xff]
      %v7449 = vld [vmem:[%s219 + $0x68] sm:$0xff]
      %v7450 = vld [vmem:[%s219 + $0x70] sm:$0xff]
      %v7451 = vld [vmem:[%s219 + $0x78] sm:$0xff]
      %v7452 = vld [vmem:[%s219 + $0x80] sm:$0xff]
      %v7453 = vld [vmem:[%s219 + $0x88] sm:$0xff]
      %v7454 = vld [vmem:[%s219 + $0x90] sm:$0xff]
      %v7455 = vld [vmem:[%s219 + $0x98] sm:$0xff]
      %v7456 = vld [vmem:[%s219 + $0xa0] sm:$0xff]
      %v7457 = vld [vmem:[%s219 + $0xa8] sm:$0xff]
      %v7458 = vld [vmem:[%s219 + $0xb0] sm:$0xff]
      %v7459 = vld [vmem:[%s219 + $0xb8] sm:$0xff]
      %v7460 = vld [vmem:[%s219 + $0xc0] sm:$0xff]
      %v7461 = vld [vmem:[%s219 + $0xc8] sm:$0xff]
      %v7462 = vld [vmem:[%s219 + $0xd0] sm:$0xff]
      %v7463 = vld [vmem:[%s219 + $0xd8] sm:$0xff]
      %v7464 = vld [vmem:[%s219 + $0xe0] sm:$0xff]
      %v7465 = vld [vmem:[%s219 + $0xe8] sm:$0xff]
      %v7466 = vld [vmem:[%s219 + $0xf0] sm:$0xff]
      %v7467 = vld [vmem:[%s219 + $0xf8] sm:$0xff]
      %v7468 = vadd.f32 %v7404, %v7436
      %v7469 = vadd.f32 %v7405, %v7437
      %v7470 = vadd.f32 %v7406, %v7438
      %v7471 = vadd.f32 %v7407, %v7439
      %v7472 = vadd.f32 %v7408, %v7440
      %v7473 = vadd.f32 %v7409, %v7441
      %v7474 = vadd.f32 %v7410, %v7442
      %v7475 = vadd.f32 %v7411, %v7443
      %v7476 = vadd.f32 %v7412, %v7444
      %v7477 = vadd.f32 %v7413, %v7445
      %v7478 = vadd.f32 %v7414, %v7446
      %v7479 = vadd.f32 %v7415, %v7447
      %v7480 = vadd.f32 %v7416, %v7448
      %v7481 = vadd.f32 %v7417, %v7449
      %v7482 = vadd.f32 %v7418, %v7450
      %v7483 = vadd.f32 %v7419, %v7451
      %v7484 = vadd.f32 %v7420, %v7452
      %v7485 = vadd.f32 %v7421, %v7453
      %v7486 = vadd.f32 %v7422, %v7454
      %v7487 = vadd.f32 %v7423, %v7455
      %v7488 = vadd.f32 %v7424, %v7456
      %v7489 = vadd.f32 %v7425, %v7457
      %v7490 = vadd.f32 %v7426, %v7458
      %v7491 = vadd.f32 %v7427, %v7459
      %v7492 = vadd.f32 %v7428, %v7460
      %v7493 = vadd.f32 %v7429, %v7461
      %v7494 = vadd.f32 %v7430, %v7462
      %v7495 = vadd.f32 %v7431, %v7463
      %v7496 = vadd.f32 %v7432, %v7464
      %v7497 = vadd.f32 %v7433, %v7465
      %v7498 = vadd.f32 %v7434, %v7466
      %v7499 = vadd.f32 %v7435, %v7467
      %v7500 = vmax.f32 %v7468, 0.0
      %v7501 = vmax.f32 %v7469, 0.0
      %v7502 = vmax.f32 %v7470, 0.0
      %v7503 = vmax.f32 %v7471, 0.0
      %v7504 = vmax.f32 %v7472, 0.0
      %v7505 = vmax.f32 %v7473, 0.0
      %v7506 = vmax.f32 %v7474, 0.0
      %v7507 = vmax.f32 %v7475, 0.0
      %v7508 = vmax.f32 %v7476, 0.0
      %v7509 = vmax.f32 %v7477, 0.0
      %v7510 = vmax.f32 %v7478, 0.0
      %v7511 = vmax.f32 %v7479, 0.0
      %v7512 = vmax.f32 %v7480, 0.0
      %v7513 = vmax.f32 %v7481, 0.0
      %v7514 = vmax.f32 %v7482, 0.0
      %v7515 = vmax.f32 %v7483, 0.0
      %v7516 = vmax.f32 %v7484, 0.0
      %v7517 = vmax.f32 %v7485, 0.0
      %v7518 = vmax.f32 %v7486, 0.0
      %v7519 = vmax.f32 %v7487, 0.0
      %v7520 = vmax.f32 %v7488, 0.0
      %v7521 = vmax.f32 %v7489, 0.0
      %v7522 = vmax.f32 %v7490, 0.0
      %v7523 = vmax.f32 %v7491, 0.0
      %v7524 = vmax.f32 %v7492, 0.0
      %v7525 = vmax.f32 %v7493, 0.0
      %v7526 = vmax.f32 %v7494, 0.0
      %v7527 = vmax.f32 %v7495, 0.0
      %v7528 = vmax.f32 %v7496, 0.0
      %v7529 = vmax.f32 %v7497, 0.0
      %v7530 = vmax.f32 %v7498, 0.0
      %v7531 = vmax.f32 %v7499, 0.0
      %7532 = vst.msk [vmem:[%s224] sm:$0xff] %vm225, %v7500
      %7533 = vst.msk [vmem:[%s224 + $0x8] sm:$0xff] %vm225, %v7501
      %7534 = vst.msk [vmem:[%s224 + $0x10] sm:$0xff] %vm225, %v7502
      %7535 = vst.msk [vmem:[%s224 + $0x18] sm:$0xff] %vm225, %v7503
      %7536 = vst.msk [vmem:[%s224 + $0x20] sm:$0xff] %vm225, %v7504
      %7537 = vst.msk [vmem:[%s224 + $0x28] sm:$0xff] %vm225, %v7505
      %7538 = vst.msk [vmem:[%s224 + $0x30] sm:$0xff] %vm225, %v7506
      %7539 = vst.msk [vmem:[%s224 + $0x38] sm:$0xff] %vm225, %v7507
      %7540 = vst.msk [vmem:[%s224 + $0x40] sm:$0xff] %vm225, %v7508
      %7541 = vst.msk [vmem:[%s224 + $0x48] sm:$0xff] %vm225, %v7509
      %7542 = vst.msk [vmem:[%s224 + $0x50] sm:$0xff] %vm225, %v7510
      %7543 = vst.msk [vmem:[%s224 + $0x58] sm:$0xff] %vm225, %v7511
      %7544 = vst.msk [vmem:[%s224 + $0x60] sm:$0xff] %vm225, %v7512
      %7545 = vst.msk [vmem:[%s224 + $0x68] sm:$0xff] %vm225, %v7513
      %7546 = vst.msk [vmem:[%s224 + $0x70] sm:$0xff] %vm225, %v7514
      %7547 = vst.msk [vmem:[%s224 + $0x78] sm:$0xff] %vm225, %v7515
      %7548 = vst.msk [vmem:[%s224 + $0x80] sm:$0xff] %vm225, %v7516
      %7549 = vst.msk [vmem:[%s224 + $0x88] sm:$0xff] %vm225, %v7517
      %7550 = vst.msk [vmem:[%s224 + $0x90] sm:$0xff] %vm225, %v7518
      %7551 = vst.msk [vmem:[%s224 + $0x98] sm:$0xff] %vm225, %v7519
      %7552 = vst.msk [vmem:[%s224 + $0xa0] sm:$0xff] %vm225, %v7520
      %7553 = vst.msk [vmem:[%s224 + $0xa8] sm:$0xff] %vm225, %v7521
      %7554 = vst.msk [vmem:[%s224 + $0xb0] sm:$0xff] %vm225, %v7522
      %7555 = vst.msk [vmem:[%s224 + $0xb8] sm:$0xff] %vm225, %v7523
      %7556 = vst.msk [vmem:[%s224 + $0xc0] sm:$0xff] %vm225, %v7524
      %7557 = vst.msk [vmem:[%s224 + $0xc8] sm:$0xff] %vm225, %v7525
      %7558 = vst.msk [vmem:[%s224 + $0xd0] sm:$0xff] %vm225, %v7526
      %7559 = vst.msk [vmem:[%s224 + $0xd8] sm:$0xff] %vm225, %v7527
      %7560 = vst.msk [vmem:[%s224 + $0xe0] sm:$0xff] %vm225, %v7528
      %7561 = vst.msk [vmem:[%s224 + $0xe8] sm:$0xff] %vm225, %v7529
      %7562 = vst.msk [vmem:[%s224 + $0xf0] sm:$0xff] %vm225, %v7530
      %7563 = vst.msk [vmem:[%s224 + $0xf8] sm:$0xff] %vm225, %v7531
      %p7564 = scmp.lt.s32.totalorder %s16, 1
      %s7565 = scalar_select %p7564, %s16, 1
      %s7566 = smul.addr %s7565, 32
      %s7567 = smul.addr %s7566, 8
      %s7568 = scalar_lea.vmem %s5, %s7567
      // Predicated region
      $region41: #{tpu_custom_call.1} parent=39 // pred_check
        %p7569 = pneg %p144
      $region42: #{tpu_custom_call.1} parent=39 // pred_check_branch
        %7571 = sbr.rel (%p7569) target = $region44
      $region43: #{tpu_custom_call.1} parent=39 // pred_region
        _
      $region44: #{tpu_custom_call.1} parent=39 // pred_fallthru
        _
    $region40: #{tpu_custom_call.1} parent=5 // pred_fallthru
      _
    %p7572 = scmp.le.s32.totalorder 2, %s11
    // Predicated region
    $region45: #{tpu_custom_call.1} parent=5 // pred_check
      %p7573 = pneg %p7572
    $region46: #{tpu_custom_call.1} parent=5 // pred_check_branch
      %7575 = sbr.rel (%p7573) target = $region48
    $region47: #{tpu_custom_call.1} parent=5 // pred_region
      %s7576 = ssub.s32 %s11, 2
      // Predicated region
      $region49: #{tpu_custom_call.1} parent=47 // pred_check
        %p7577 = pneg %p150
      $region50: #{tpu_custom_call.1} parent=47 // pred_check_branch
        %7579 = sbr.rel (%p7577) target = $region52
      $region51: #{tpu_custom_call.1} parent=47 // pred_region
        %p7580 = scmp.lt.s32.totalorder %s17, 1
        %s7581 = scalar_select %p7580, %s17, 1
        %s7582 = smul.addr %s7581, 32
        %s7583 = smul.addr %s7582, 8
        %s7584 = scalar_lea.vmem %s5, %s7583
      $region52: #{tpu_custom_call.1} parent=47 // pred_fallthru
        _
    $region48: #{tpu_custom_call.1} parent=5 // pred_fallthru
      _
  $region6: #{tpu_custom_call.1} parent=0 // loop_footer
    %s15 = sadd.s32 1, %s11
  $region7: #{tpu_custom_call.1} parent=0 // loop_footer_branch
    %10 = sbr.rel target = $region3
  $region8: #{tpu_custom_call.1} parent=0 // loop_exit
    _

</llo_original>
